<compile_context>
chip_gen: v7x
topology: tpu7x:2x2x1
jax: 0.10.0
libtpu: 0.0.40
codegen_flags: <defaults>
</compile_context>

<pallas_src>
import functools

import jax
import jax.numpy as jnp
import numpy as np
from jax.experimental import pallas as pl
from jax.experimental.pallas import tpu as pltpu

HP = jax.lax.Precision.HIGHEST
HEAD_PAD = 128      # lane-dense padded width of the 7-dim head output
CH_PAD = 8          # sublane-aligned padded channel / contraction dim (3 -> 8)


# ----------------------------------------------------------------------------
# Pallas kernels
# ----------------------------------------------------------------------------
def backbone_kernel(x_ref, a_ref, beff_ref, w2, b2, w3, b3,
                    w4, b4, w5, b5, w6, b6, out_ref):
    """RigidTNet trunk: (folded apply_tfm+conv1) -> conv2 -> conv3 -> max -> FC head.

    Runs in a single grid step; the whole point cloud is resident in VMEM.
    """
    B, N, _ = x_ref.shape
    x = x_ref[...]                     # (B, N, 8) f32, channels 3..7 are zeros
    A = a_ref[...]                     # (B, 8, 64) f32 per-batch folded conv1 weights
    beff = beff_ref[...]               # (B, 64)    f32 per-batch folded conv1 bias

    # conv1 (+BN1, rigid transform folded): per-batch 2D matmul (B is tiny/static).
    hs = [jnp.dot(x[b], A[b], preferred_element_type=jnp.float32) + beff[b:b + 1, :]
          for b in range(B)]
    h = jnp.maximum(jnp.concatenate(hs, axis=0), 0.0)            # (B*N, 64)

    # conv2 / conv3: bf16 MXU operands, f32 accumulation, BN folded, ReLU in f32.
    h = jnp.maximum(jnp.dot(h.astype(jnp.bfloat16), w2[...],
                            preferred_element_type=jnp.float32) + b2[...], 0.0)
    h = jnp.maximum(jnp.dot(h.astype(jnp.bfloat16), w3[...],
                            preferred_element_type=jnp.float32) + b3[...], 0.0)

    f = jnp.max(h.reshape(B, N, -1), axis=1)                     # (B, 1024) global max

    # FC head (fc1/fc2 bf16 operands, fc3 f32; output padded to 128 lanes).
    g = jnp.maximum(jnp.dot(f.astype(jnp.bfloat16), w4[...],
                            preferred_element_type=jnp.float32) + b4[...], 0.0)
    g = jnp.maximum(jnp.dot(g.astype(jnp.bfloat16), w5[...],
                            preferred_element_type=jnp.float32) + b5[...], 0.0)
    out_ref[...] = (jnp.dot(g, w6[...], preferred_element_type=jnp.float32)
                    + b6[...])                                   # (B, 128)


def apply_tfm_kernel(pts_ref, T_ref, out_ref):
    """out[b,d,n] = sum_c T[b,d,c] * pts[b,c,n] + T[b,d,3]; NCW layout, lane dim = N."""
    x = pts_ref[...].astype(jnp.float32)       # (B, 3, N)  lane-dense loads
    Tm = T_ref[...].astype(jnp.float32)        # (B, 4, 4)
    rows = []
    for d in range(3):
        acc = Tm[:, d, 3:4]                    # (B, 1) translation
        for c in range(3):
            acc = acc + Tm[:, d, c:c + 1] * x[:, c, :]     # (B, N) lane-dense FMA
        rows.append(acc)
    out = jnp.stack(rows, axis=1)              # (B, 3, N) -- one full-block store
    out_ref[...] = out.astype(out_ref.dtype)


# ----------------------------------------------------------------------------
# Pallas wrappers
# ----------------------------------------------------------------------------
def _full_spec(shape):
    nd = len(shape)
    return pl.BlockSpec(shape, lambda n, _nd=nd: (0,) * _nd)


def rigid_tnet_backbone_pallas(pts_nlc, T, params):
    """pts_nlc: (B, N, 3) channels-last points, T: (B, 4, 4). Returns (B, 7) head."""
    B, N, C = pts_nlc.shape
    assert C == 3
    # Single-step design: the (B*N, 1024) activation must fit VMEM.
    # For much larger N, reintroduce an N-reduction grid axis with a running max.
    assert B * N * 1024 * 4 <= 16 * 1024 * 1024
    p = params

    # Fold the rigid transform into per-batch conv1 weights (tiny XLA einsums).
    R, t = T[:, :3, :3], T[:, :3, 3]
    A = jnp.einsum('bdc,df->bcf', R, p['w1'], precision=HP)              # (B, 3, 64)
    beff = jnp.einsum('bd,df->bf', t, p['w1'], precision=HP) + p['b1']   # (B, 64)

    # Zero-pad the tiny contraction dim 3 -> 8 (sublane-aligned K).
    x_pad = jnp.pad(pts_nlc.astype(jnp.float32), ((0, 0), (0, 0), (0, CH_PAD - 3)))
    A_pad = jnp.pad(A, ((0, 0), (0, CH_PAD - 3), (0, 0)))

    # bf16 MXU operands; head weights padded to a lane-dense 128-wide output.
    w2, w3, w4, w5 = (p[k].astype(jnp.bfloat16) for k in ('w2', 'w3', 'w4', 'w5'))
    b2, b3, b4, b5 = p['b2'], p['b3'], p['b4'], p['b5']
    w6p = jnp.pad(p['w6'], ((0, 0), (0, HEAD_PAD - p['w6'].shape[1])))
    b6p = jnp.pad(p['b6'], ((0, 0), (0, HEAD_PAD - p['b6'].shape[1])))

    operands = (x_pad, A_pad, beff, w2, b2, w3, b3, w4, b4, w5, b5, w6p, b6p)

    flops = (2 * B * N * (CH_PAD * 64 + 64 * 128 + 128 * 1024)
             + 2 * B * (1024 * 512 + 512 * 256 + 256 * HEAD_PAD))
    bytes_accessed = int(sum(o.size * o.dtype.itemsize for o in operands)
                         + B * HEAD_PAD * 4)

    out = pl.pallas_call(
        backbone_kernel,
        out_shape=jax.ShapeDtypeStruct((B, HEAD_PAD), jnp.float32),
        grid_spec=pltpu.PrefetchScalarGridSpec(
            num_scalar_prefetch=0,
            grid=(1,),
            in_specs=[_full_spec(o.shape) for o in operands],
            out_specs=_full_spec((B, HEAD_PAD))),
        compiler_params=pltpu.CompilerParams(
            dimension_semantics=("arbitrary",),
            vmem_limit_bytes=32 * 1024 * 1024),
        cost_estimate=pl.CostEstimate(flops=flops, transcendentals=0,
                                      bytes_accessed=bytes_accessed),
    )(*operands)
    return out[:, :7]


def apply_tfm_pallas(points_ncw, T):
    """points_ncw: (B, 3, N) PyTorch NCW layout. Returns transformed (B, 3, N)."""
    B, C, N = points_ncw.shape
    assert C == 3
    flops = 2 * B * 3 * 4 * N
    bytes_accessed = int(2 * B * C * N * points_ncw.dtype.itemsize + B * 16 * 4)
    return pl.pallas_call(
        apply_tfm_kernel,
        out_shape=jax.ShapeDtypeStruct((B, C, N), points_ncw.dtype),
        grid_spec=pltpu.PrefetchScalarGridSpec(
            num_scalar_prefetch=0,
            grid=(1,),
            in_specs=[_full_spec((B, C, N)), _full_spec((B, 4, 4))],
            out_specs=_full_spec((B, C, N))),
        compiler_params=pltpu.CompilerParams(
            dimension_semantics=("arbitrary",)),
        cost_estimate=pl.CostEstimate(flops=flops, transcendentals=0,
                                      bytes_accessed=bytes_accessed),
    )(points_ncw, T)


# ----------------------------------------------------------------------------
# Pure-JAX glue (tiny (B,4,4)/(B,7) math) + reference implementations
# ----------------------------------------------------------------------------
def quaternion_to_matrix(q):
    # q: (B, 4), real-first (w, x, y, z)
    w, x, y, z = q[:, 0], q[:, 1], q[:, 2], q[:, 3]
    two_s = 2.0 / jnp.sum(q * q, axis=-1)
    m = jnp.stack([
        1 - two_s * (y * y + z * z), two_s * (x * y - z * w), two_s * (x * z + y * w),
        two_s * (x * y + z * w), 1 - two_s * (x * x + z * z), two_s * (y * z - x * w),
        two_s * (x * z - y * w), two_s * (y * z + x * w), 1 - two_s * (x * x + y * y),
    ], axis=-1)
    return m.reshape(q.shape[0], 3, 3)


def head_to_transform(x):
    B = x.shape[0]
    quat = jnp.array([1.0, 0.0, 0.0, 0.0], x.dtype)[None, :] + x[:, :4]
    quat = quat / jnp.sqrt(jnp.sum(quat * quat, axis=1, keepdims=True))
    rotation = quaternion_to_matrix(quat)
    translation = x[:, 4:7]
    Td = jnp.tile(jnp.eye(4, dtype=x.dtype)[None], (B, 1, 1))
    Td = Td.at[:, :3, :3].set(rotation)
    Td = Td.at[:, :3, 3].set(translation)
    return Td, rotation, translation


def itnet_forward(points_ncw, params, num_iters, backbone_fn, apply_fn):
    """points_ncw: (B, 3, N) PyTorch NCW layout."""
    B = points_ncw.shape[0]
    pts_nlc = jnp.transpose(points_ncw, (0, 2, 1))            # (B, N, 3), once
    T = jnp.tile(jnp.eye(4, dtype=points_ncw.dtype)[None], (B, 1, 1))
    T_deltas = []
    for _ in range(num_iters):
        # backbone includes apply_tfm(points, T) (folded into conv1 weights)
        head = backbone_fn(pts_nlc, T, params)                 # (B, 7)
        T_delta, _rot, _trans = head_to_transform(head)
        T_deltas.append(T_delta)
        # compose_tfms(T, T_delta): new transform = T_delta applied after T
        T = jnp.einsum('bij,bjk->bik', T_delta, T, precision=HP)
    out = apply_fn(points_ncw, T)                              # (B, 3, N) NCW
    return out, T, T_deltas


def rigid_tnet_backbone_ref(pts_nlc, T, p):
    """Pure-JAX reference, mirroring the kernel's bf16-at-the-dot numerics."""
    B, N, C = pts_nlc.shape
    R, t = T[:, :3, :3], T[:, :3, 3]
    x = jnp.einsum('bnc,bdc->bnd', pts_nlc, R, precision=HP) + t[:, None, :]
    h = x.reshape(B * N, C)
    h = jax.nn.relu(jnp.dot(h, p['w1'], precision=HP) + p['b1'])
    h = jax.nn.relu(jnp.dot(h.astype(jnp.bfloat16), p['w2'].astype(jnp.bfloat16),
                            preferred_element_type=jnp.float32) + p['b2'])
    h = jax.nn.relu(jnp.dot(h.astype(jnp.bfloat16), p['w3'].astype(jnp.bfloat16),
                            preferred_element_type=jnp.float32) + p['b3'])
    f = jnp.max(h.reshape(B, N, -1), axis=1)
    g = jax.nn.relu(jnp.dot(f.astype(jnp.bfloat16), p['w4'].astype(jnp.bfloat16),
                            preferred_element_type=jnp.float32) + p['b4'])
    g = jax.nn.relu(jnp.dot(g.astype(jnp.bfloat16), p['w5'].astype(jnp.bfloat16),
                            preferred_element_type=jnp.float32) + p['b5'])
    return jnp.dot(g, p['w6'], precision=HP) + p['b6']


def apply_tfm_ref(points_ncw, T):
    R, t = T[:, :3, :3], T[:, :3, 3]
    return jnp.einsum('bdc,bcn->bdn', R, points_ncw, precision=HP) + t[:, :, None]


# ----------------------------------------------------------------------------
# Deterministic parameter init (BN folded, eval-mode running stats)
# ----------------------------------------------------------------------------
def init_params(key):
    keys = jax.random.split(key, 12)

    def lin(k, fin, fout, scale=0.05):
        kw, kb = jax.random.split(k)
        w = scale * jax.random.normal(kw, (fin, fout), jnp.float32)
        b = scale * jax.random.normal(kb, (fout,), jnp.float32)
        return w, b

    def bn(k, c):
        k1, k2, k3, k4 = jax.random.split(k, 4)
        gamma = 1.0 + 0.1 * jax.random.normal(k1, (c,), jnp.float32)
        beta = 0.1 * jax.random.normal(k2, (c,), jnp.float32)
        mean = 0.1 * jax.random.normal(k3, (c,), jnp.float32)
        var = 0.5 + jax.random.uniform(k4, (c,), jnp.float32)
        return gamma, beta, mean, var

    def fold(w, b, g, bt, m, v, eps=1e-5):
        s = g / jnp.sqrt(v + eps)
        return w * s[None, :], ((b - m) * s + bt).reshape(1, -1)

    dims = [(3, 64), (64, 128), (128, 1024), (1024, 512), (512, 256)]
    p = {}
    for i, (fin, fout) in enumerate(dims, start=1):
        w, b = lin(keys[2 * (i - 1)], fin, fout)
        g, bt, m, v = bn(keys[2 * (i - 1) + 1], fout)
        p[f'w{i}'], p[f'b{i}'] = fold(w, b, g, bt, m, v)
    w6, b6 = lin(keys[10], 256, 7)
    p['w6'], p['b6'] = w6, b6.reshape(1, -1)
    return p


# ----------------------------------------------------------------------------
if __name__ == "__main__":
    key = jax.random.PRNGKey(0)
    kp, kx = jax.random.split(key)

    B, C, N = 2, 3, 256          # channel must be 3 for rigid 3-D transforms
    num_iters = 2

    params = init_params(kp)
    points = jax.random.normal(kx, (B, C, N), jnp.float32)   # PyTorch NCW layout

    fwd = jax.jit(functools.partial(
        itnet_forward, params=params, num_iters=num_iters,
        backbone_fn=rigid_tnet_backbone_pallas,
        apply_fn=apply_tfm_pallas))

    out_pts, T_final, T_deltas = fwd(points)
    jax.block_until_ready((out_pts, T_final, T_deltas))

    # pure-JAX reference check (same bf16-at-the-dot precision choices)
    ref_pts, ref_T, ref_Td = itnet_forward(
        points, params, num_iters, rigid_tnet_backbone_ref, apply_tfm_ref)

    np.testing.assert_allclose(np.asarray(out_pts), np.asarray(ref_pts),
                               rtol=5e-3, atol=5e-3)
    np.testing.assert_allclose(np.asarray(T_final), np.asarray(ref_T),
                               rtol=5e-3, atol=5e-3)
    for td_k, td_r in zip(T_deltas, ref_Td):
        np.testing.assert_allclose(np.asarray(td_k), np.asarray(td_r),
                                   rtol=5e-3, atol=5e-3)

    print("KERNEL_OK")
</pallas_src>

<mosaic_0001>
module attributes {stable_mosaic.version = 11 : i64} {
  func.func @backbone_kernel(%arg0: i32, %arg1: memref<2x256x8xf32, #tpu.memory_space<vmem>>, %arg2: memref<2x8x64xf32, #tpu.memory_space<vmem>>, %arg3: memref<2x64xf32, #tpu.memory_space<vmem>>, %arg4: memref<64x128xbf16, #tpu.memory_space<vmem>>, %arg5: memref<1x128xf32, #tpu.memory_space<vmem>>, %arg6: memref<128x1024xbf16, #tpu.memory_space<vmem>>, %arg7: memref<1x1024xf32, #tpu.memory_space<vmem>>, %arg8: memref<1024x512xbf16, #tpu.memory_space<vmem>>, %arg9: memref<1x512xf32, #tpu.memory_space<vmem>>, %arg10: memref<512x256xbf16, #tpu.memory_space<vmem>>, %arg11: memref<1x256xf32, #tpu.memory_space<vmem>>, %arg12: memref<256x128xf32, #tpu.memory_space<vmem>>, %arg13: memref<1x128xf32, #tpu.memory_space<vmem>>, %arg14: memref<2x128xf32, #tpu.memory_space<vmem>>) attributes {dimension_semantics = [#tpu.dimension_semantics<arbitrary>], iteration_bounds = array<i64: 1>, scalar_prefetch = 0 : i64, scratch_operands = 0 : i64, tpu.core_type = #tpu.core_type<tc>, window_params = [{pipeline_mode = #tpu.pipeline_mode<synchronous>, transform_indices = @transform_0, window_bounds = array<i64: 2, 256, 8>}, {pipeline_mode = #tpu.pipeline_mode<synchronous>, transform_indices = @transform_1, window_bounds = array<i64: 2, 8, 64>}, {pipeline_mode = #tpu.pipeline_mode<synchronous>, transform_indices = @transform_2, window_bounds = array<i64: 2, 64>}, {pipeline_mode = #tpu.pipeline_mode<synchronous>, transform_indices = @transform_3, window_bounds = array<i64: 64, 128>}, {pipeline_mode = #tpu.pipeline_mode<synchronous>, transform_indices = @transform_4, window_bounds = array<i64: 1, 128>}, {pipeline_mode = #tpu.pipeline_mode<synchronous>, transform_indices = @transform_5, window_bounds = array<i64: 128, 1024>}, {pipeline_mode = #tpu.pipeline_mode<synchronous>, transform_indices = @transform_6, window_bounds = array<i64: 1, 1024>}, {pipeline_mode = #tpu.pipeline_mode<synchronous>, transform_indices = @transform_7, window_bounds = array<i64: 1024, 512>}, {pipeline_mode = #tpu.pipeline_mode<synchronous>, transform_indices = @transform_8, window_bounds = array<i64: 1, 512>}, {pipeline_mode = #tpu.pipeline_mode<synchronous>, transform_indices = @transform_9, window_bounds = array<i64: 512, 256>}, {pipeline_mode = #tpu.pipeline_mode<synchronous>, transform_indices = @transform_10, window_bounds = array<i64: 1, 256>}, {pipeline_mode = #tpu.pipeline_mode<synchronous>, transform_indices = @transform_11, window_bounds = array<i64: 256, 128>}, {pipeline_mode = #tpu.pipeline_mode<synchronous>, transform_indices = @transform_12, window_bounds = array<i64: 1, 128>}, {pipeline_mode = #tpu.pipeline_mode<synchronous>, transform_indices = @transform_13, window_bounds = array<i64: 2, 128>}]} {
    %c0 = arith.constant 0 : index
    %c0_0 = arith.constant 0 : index
    %c0_1 = arith.constant 0 : index
    %0 = vector.load %arg1[%c0, %c0_0, %c0_1] : memref<2x256x8xf32, #tpu.memory_space<vmem>>, vector<2x256x8xf32>
    %c0_2 = arith.constant 0 : index
    %c0_3 = arith.constant 0 : index
    %c0_4 = arith.constant 0 : index
    %1 = vector.load %arg2[%c0_2, %c0_3, %c0_4] : memref<2x8x64xf32, #tpu.memory_space<vmem>>, vector<2x8x64xf32>
    %c0_5 = arith.constant 0 : index
    %c0_6 = arith.constant 0 : index
    %2 = vector.load %arg3[%c0_5, %c0_6] : memref<2x64xf32, #tpu.memory_space<vmem>>, vector<2x64xf32>
    %3 = vector.extract_strided_slice %0 {offsets = [0, 0, 0], sizes = [1, 256, 8], strides = [1, 1, 1]} : vector<2x256x8xf32> to vector<1x256x8xf32>
    %4 = vector.shape_cast %3 : vector<1x256x8xf32> to vector<256x8xf32>
    %5 = vector.extract_strided_slice %1 {offsets = [0, 0, 0], sizes = [1, 8, 64], strides = [1, 1, 1]} : vector<2x8x64xf32> to vector<1x8x64xf32>
    %6 = vector.shape_cast %5 : vector<1x8x64xf32> to vector<8x64xf32>
    %cst = arith.constant dense<0.000000e+00> : vector<256x64xf32>
    %7 = tpu.matmul %4, %6, %cst {dimension_numbers = #tpu.dot_dimension_numbers<[1], [0], [0], [1], [0, 0, 1, 1], [], []>} : vector<256x8xf32>, vector<8x64xf32>, vector<256x64xf32> -> vector<256x64xf32>
    %8 = vector.extract_strided_slice %2 {offsets = [0, 0], sizes = [1, 64], strides = [1, 1]} : vector<2x64xf32> to vector<1x64xf32>
    %9 = vector.broadcast %8 : vector<1x64xf32> to vector<256x64xf32>
    %10 = arith.addf %7, %9 : vector<256x64xf32>
    %11 = vector.extract_strided_slice %0 {offsets = [1, 0, 0], sizes = [1, 256, 8], strides = [1, 1, 1]} : vector<2x256x8xf32> to vector<1x256x8xf32>
    %12 = vector.shape_cast %11 : vector<1x256x8xf32> to vector<256x8xf32>
    %13 = vector.extract_strided_slice %1 {offsets = [1, 0, 0], sizes = [1, 8, 64], strides = [1, 1, 1]} : vector<2x8x64xf32> to vector<1x8x64xf32>
    %14 = vector.shape_cast %13 : vector<1x8x64xf32> to vector<8x64xf32>
    %cst_7 = arith.constant dense<0.000000e+00> : vector<256x64xf32>
    %15 = tpu.matmul %12, %14, %cst_7 {dimension_numbers = #tpu.dot_dimension_numbers<[1], [0], [0], [1], [0, 0, 1, 1], [], []>} : vector<256x8xf32>, vector<8x64xf32>, vector<256x64xf32> -> vector<256x64xf32>
    %16 = vector.extract_strided_slice %2 {offsets = [1, 0], sizes = [1, 64], strides = [1, 1]} : vector<2x64xf32> to vector<1x64xf32>
    %17 = vector.broadcast %16 : vector<1x64xf32> to vector<256x64xf32>
    %18 = arith.addf %15, %17 : vector<256x64xf32>
    %19 = tpu.concatenate %10, %18 in 0 : vector<256x64xf32>, vector<256x64xf32> -> vector<512x64xf32>
    %cst_8 = arith.constant 0.000000e+00 : f32
    %20 = vector.broadcast %cst_8 : f32 to vector<512x64xf32>
    %21 = arith.maximumf %19, %20 : vector<512x64xf32>
    %22 = arith.truncf %21 : vector<512x64xf32> to vector<512x64xbf16>
    %c0_9 = arith.constant 0 : index
    %c0_10 = arith.constant 0 : index
    %23 = vector.load %arg4[%c0_9, %c0_10] : memref<64x128xbf16, #tpu.memory_space<vmem>>, vector<64x128xbf16>
    %cst_11 = arith.constant dense<0.000000e+00> : vector<512x128xf32>
    %24 = tpu.matmul %22, %23, %cst_11 {dimension_numbers = #tpu.dot_dimension_numbers<[1], [0], [0], [1], [0, 0, 1, 1], [], []>} : vector<512x64xbf16>, vector<64x128xbf16>, vector<512x128xf32> -> vector<512x128xf32>
    %c0_12 = arith.constant 0 : index
    %c0_13 = arith.constant 0 : index
    %25 = vector.load %arg5[%c0_12, %c0_13] : memref<1x128xf32, #tpu.memory_space<vmem>>, vector<1x128xf32>
    %26 = vector.broadcast %25 : vector<1x128xf32> to vector<512x128xf32>
    %27 = arith.addf %24, %26 : vector<512x128xf32>
    %cst_14 = arith.constant 0.000000e+00 : f32
    %28 = vector.broadcast %cst_14 : f32 to vector<512x128xf32>
    %29 = arith.maximumf %27, %28 : vector<512x128xf32>
    %30 = arith.truncf %29 : vector<512x128xf32> to vector<512x128xbf16>
    %c0_15 = arith.constant 0 : index
    %c0_16 = arith.constant 0 : index
    %31 = vector.load %arg6[%c0_15, %c0_16] : memref<128x1024xbf16, #tpu.memory_space<vmem>>, vector<128x1024xbf16>
    %cst_17 = arith.constant dense<0.000000e+00> : vector<512x1024xf32>
    %32 = tpu.matmul %30, %31, %cst_17 {dimension_numbers = #tpu.dot_dimension_numbers<[1], [0], [0], [1], [0, 0, 1, 1], [], []>} : vector<512x128xbf16>, vector<128x1024xbf16>, vector<512x1024xf32> -> vector<512x1024xf32>
    %c0_18 = arith.constant 0 : index
    %c0_19 = arith.constant 0 : index
    %33 = vector.load %arg7[%c0_18, %c0_19] : memref<1x1024xf32, #tpu.memory_space<vmem>>, vector<1x1024xf32>
    %34 = vector.broadcast %33 : vector<1x1024xf32> to vector<512x1024xf32>
    %35 = arith.addf %32, %34 : vector<512x1024xf32>
    %cst_20 = arith.constant 0.000000e+00 : f32
    %36 = vector.broadcast %cst_20 : f32 to vector<512x1024xf32>
    %37 = arith.maximumf %35, %36 : vector<512x1024xf32>
    %38 = vector.shape_cast %37 : vector<512x1024xf32> to vector<2x256x1024xf32>
    %cst_21 = arith.constant dense<0xFF800000> : vector<2x1024xf32>
    %39 = vector.multi_reduction <maximumf>, %38, %cst_21 [1] : vector<2x256x1024xf32> to vector<2x1024xf32>
    %40 = arith.truncf %39 : vector<2x1024xf32> to vector<2x1024xbf16>
    %c0_22 = arith.constant 0 : index
    %c0_23 = arith.constant 0 : index
    %41 = vector.load %arg8[%c0_22, %c0_23] : memref<1024x512xbf16, #tpu.memory_space<vmem>>, vector<1024x512xbf16>
    %cst_24 = arith.constant dense<0.000000e+00> : vector<2x512xf32>
    %42 = tpu.matmul %40, %41, %cst_24 {dimension_numbers = #tpu.dot_dimension_numbers<[1], [0], [0], [1], [0, 0, 1, 1], [], []>} : vector<2x1024xbf16>, vector<1024x512xbf16>, vector<2x512xf32> -> vector<2x512xf32>
    %c0_25 = arith.constant 0 : index
    %c0_26 = arith.constant 0 : index
    %43 = vector.load %arg9[%c0_25, %c0_26] : memref<1x512xf32, #tpu.memory_space<vmem>>, vector<1x512xf32>
    %44 = vector.broadcast %43 : vector<1x512xf32> to vector<2x512xf32>
    %45 = arith.addf %42, %44 : vector<2x512xf32>
    %cst_27 = arith.constant 0.000000e+00 : f32
    %46 = vector.broadcast %cst_27 : f32 to vector<2x512xf32>
    %47 = arith.maximumf %45, %46 : vector<2x512xf32>
    %48 = arith.truncf %47 : vector<2x512xf32> to vector<2x512xbf16>
    %c0_28 = arith.constant 0 : index
    %c0_29 = arith.constant 0 : index
    %49 = vector.load %arg10[%c0_28, %c0_29] : memref<512x256xbf16, #tpu.memory_space<vmem>>, vector<512x256xbf16>
    %cst_30 = arith.constant dense<0.000000e+00> : vector<2x256xf32>
    %50 = tpu.matmul %48, %49, %cst_30 {dimension_numbers = #tpu.dot_dimension_numbers<[1], [0], [0], [1], [0, 0, 1, 1], [], []>} : vector<2x512xbf16>, vector<512x256xbf16>, vector<2x256xf32> -> vector<2x256xf32>
    %c0_31 = arith.constant 0 : index
    %c0_32 = arith.constant 0 : index
    %51 = vector.load %arg11[%c0_31, %c0_32] : memref<1x256xf32, #tpu.memory_space<vmem>>, vector<1x256xf32>
    %52 = vector.broadcast %51 : vector<1x256xf32> to vector<2x256xf32>
    %53 = arith.addf %50, %52 : vector<2x256xf32>
    %cst_33 = arith.constant 0.000000e+00 : f32
    %54 = vector.broadcast %cst_33 : f32 to vector<2x256xf32>
    %55 = arith.maximumf %53, %54 : vector<2x256xf32>
    %c0_34 = arith.constant 0 : index
    %c0_35 = arith.constant 0 : index
    %56 = vector.load %arg12[%c0_34, %c0_35] : memref<256x128xf32, #tpu.memory_space<vmem>>, vector<256x128xf32>
    %cst_36 = arith.constant dense<0.000000e+00> : vector<2x128xf32>
    %57 = tpu.matmul %55, %56, %cst_36 {dimension_numbers = #tpu.dot_dimension_numbers<[1], [0], [0], [1], [0, 0, 1, 1], [], []>} : vector<2x256xf32>, vector<256x128xf32>, vector<2x128xf32> -> vector<2x128xf32>
    %c0_37 = arith.constant 0 : index
    %c0_38 = arith.constant 0 : index
    %58 = vector.load %arg13[%c0_37, %c0_38] : memref<1x128xf32, #tpu.memory_space<vmem>>, vector<1x128xf32>
    %59 = vector.broadcast %58 : vector<1x128xf32> to vector<2x128xf32>
    %60 = arith.addf %57, %59 : vector<2x128xf32>
    %c0_39 = arith.constant 0 : index
    %c0_40 = arith.constant 0 : index
    %61 = vector.load %arg14[%c0_39, %c0_40] : memref<2x128xf32, #tpu.memory_space<vmem>>, vector<2x128xf32>
    tpu.vector_store %arg14[%c0_39, %c0_40], %60 {strides = array<i32>} : memref<2x128xf32, #tpu.memory_space<vmem>>, vector<2x128xf32>,
    return
  }
  func.func @transform_0(%arg0: i32) -> (i32, i32, i32) {
    %c0_i32 = arith.constant 0 : i32
    %c0_i32_0 = arith.constant 0 : i32
    %c0_i32_1 = arith.constant 0 : i32
    %c0_i32_2 = arith.constant 0 : i32
    return %c0_i32, %c0_i32_0, %c0_i32_1 : i32, i32, i32
  }
  func.func @transform_1(%arg0: i32) -> (i32, i32, i32) {
    %c0_i32 = arith.constant 0 : i32
    %c0_i32_0 = arith.constant 0 : i32
    %c0_i32_1 = arith.constant 0 : i32
    %c0_i32_2 = arith.constant 0 : i32
    return %c0_i32, %c0_i32_0, %c0_i32_1 : i32, i32, i32
  }
  func.func @transform_2(%arg0: i32) -> (i32, i32) {
    %c0_i32 = arith.constant 0 : i32
    %c0_i32_0 = arith.constant 0 : i32
    %c0_i32_1 = arith.constant 0 : i32
    return %c0_i32, %c0_i32_0 : i32, i32
  }
  func.func @transform_3(%arg0: i32) -> (i32, i32) {
    %c0_i32 = arith.constant 0 : i32
    %c0_i32_0 = arith.constant 0 : i32
    %c0_i32_1 = arith.constant 0 : i32
    return %c0_i32, %c0_i32_0 : i32, i32
  }
  func.func @transform_4(%arg0: i32) -> (i32, i32) {
    %c0_i32 = arith.constant 0 : i32
    %c0_i32_0 = arith.constant 0 : i32
    %c0_i32_1 = arith.constant 0 : i32
    return %c0_i32, %c0_i32_0 : i32, i32
  }
  func.func @transform_5(%arg0: i32) -> (i32, i32) {
    %c0_i32 = arith.constant 0 : i32
    %c0_i32_0 = arith.constant 0 : i32
    %c0_i32_1 = arith.constant 0 : i32
    return %c0_i32, %c0_i32_0 : i32, i32
  }
  func.func @transform_6(%arg0: i32) -> (i32, i32) {
    %c0_i32 = arith.constant 0 : i32
    %c0_i32_0 = arith.constant 0 : i32
    %c0_i32_1 = arith.constant 0 : i32
    return %c0_i32, %c0_i32_0 : i32, i32
  }
  func.func @transform_7(%arg0: i32) -> (i32, i32) {
    %c0_i32 = arith.constant 0 : i32
    %c0_i32_0 = arith.constant 0 : i32
    %c0_i32_1 = arith.constant 0 : i32
    return %c0_i32, %c0_i32_0 : i32, i32
  }
  func.func @transform_8(%arg0: i32) -> (i32, i32) {
    %c0_i32 = arith.constant 0 : i32
    %c0_i32_0 = arith.constant 0 : i32
    %c0_i32_1 = arith.constant 0 : i32
    return %c0_i32, %c0_i32_0 : i32, i32
  }
  func.func @transform_9(%arg0: i32) -> (i32, i32) {
    %c0_i32 = arith.constant 0 : i32
    %c0_i32_0 = arith.constant 0 : i32
    %c0_i32_1 = arith.constant 0 : i32
    return %c0_i32, %c0_i32_0 : i32, i32
  }
  func.func @transform_10(%arg0: i32) -> (i32, i32) {
    %c0_i32 = arith.constant 0 : i32
    %c0_i32_0 = arith.constant 0 : i32
    %c0_i32_1 = arith.constant 0 : i32
    return %c0_i32, %c0_i32_0 : i32, i32
  }
  func.func @transform_11(%arg0: i32) -> (i32, i32) {
    %c0_i32 = arith.constant 0 : i32
    %c0_i32_0 = arith.constant 0 : i32
    %c0_i32_1 = arith.constant 0 : i32
    return %c0_i32, %c0_i32_0 : i32, i32
  }
  func.func @transform_12(%arg0: i32) -> (i32, i32) {
    %c0_i32 = arith.constant 0 : i32
    %c0_i32_0 = arith.constant 0 : i32
    %c0_i32_1 = arith.constant 0 : i32
    return %c0_i32, %c0_i32_0 : i32, i32
  }
  func.func @transform_13(%arg0: i32) -> (i32, i32) {
    %c0_i32 = arith.constant 0 : i32
    %c0_i32_0 = arith.constant 0 : i32
    %c0_i32_1 = arith.constant 0 : i32
    return %c0_i32, %c0_i32_0 : i32, i32
  }
}

module attributes {stable_mosaic.version = 11 : i64} {
  func.func @apply_tfm_kernel(%arg0: i32, %arg1: memref<2x3x256xf32, #tpu.memory_space<vmem>>, %arg2: memref<2x4x4xf32, #tpu.memory_space<vmem>>, %arg3: memref<2x3x256xf32, #tpu.memory_space<vmem>>) attributes {dimension_semantics = [#tpu.dimension_semantics<arbitrary>], iteration_bounds = array<i64: 1>, scalar_prefetch = 0 : i64, scratch_operands = 0 : i64, tpu.core_type = #tpu.core_type<tc>, window_params = [{pipeline_mode = #tpu.pipeline_mode<synchronous>, transform_indices = @transform_0, window_bounds = array<i64: 2, 3, 256>}, {pipeline_mode = #tpu.pipeline_mode<synchronous>, transform_indices = @transform_1, window_bounds = array<i64: 2, 4, 4>}, {pipeline_mode = #tpu.pipeline_mode<synchronous>, transform_indices = @transform_2, window_bounds = array<i64: 2, 3, 256>}]} {
    %c0 = arith.constant 0 : index
    %c0_0 = arith.constant 0 : index
    %c0_1 = arith.constant 0 : index
    %0 = vector.load %arg1[%c0, %c0_0, %c0_1] : memref<2x3x256xf32, #tpu.memory_space<vmem>>, vector<2x3x256xf32>
    %c0_2 = arith.constant 0 : index
    %c0_3 = arith.constant 0 : index
    %c0_4 = arith.constant 0 : index
    %1 = vector.load %arg2[%c0_2, %c0_3, %c0_4] : memref<2x4x4xf32, #tpu.memory_space<vmem>>, vector<2x4x4xf32>
    %2 = vector.extract_strided_slice %1 {offsets = [0, 0, 3], sizes = [2, 1, 1], strides = [1, 1, 1]} : vector<2x4x4xf32> to vector<2x1x1xf32>
    %3 = vector.shape_cast %2 : vector<2x1x1xf32> to vector<2x1xf32>
    %4 = vector.extract_strided_slice %1 {offsets = [0, 0, 0], sizes = [2, 1, 1], strides = [1, 1, 1]} : vector<2x4x4xf32> to vector<2x1x1xf32>
    %5 = vector.shape_cast %4 : vector<2x1x1xf32> to vector<2x1xf32>
    %6 = vector.extract_strided_slice %0 {offsets = [0, 0, 0], sizes = [2, 1, 256], strides = [1, 1, 1]} : vector<2x3x256xf32> to vector<2x1x256xf32>
    %7 = vector.shape_cast %6 : vector<2x1x256xf32> to vector<2x256xf32>
    %8 = vector.broadcast %5 : vector<2x1xf32> to vector<2x256xf32>
    %9 = arith.mulf %8, %7 : vector<2x256xf32>
    %10 = vector.broadcast %3 : vector<2x1xf32> to vector<2x256xf32>
    %11 = arith.addf %10, %9 : vector<2x256xf32>
    %12 = vector.extract_strided_slice %1 {offsets = [0, 0, 1], sizes = [2, 1, 1], strides = [1, 1, 1]} : vector<2x4x4xf32> to vector<2x1x1xf32>
    %13 = vector.shape_cast %12 : vector<2x1x1xf32> to vector<2x1xf32>
    %14 = vector.extract_strided_slice %0 {offsets = [0, 1, 0], sizes = [2, 1, 256], strides = [1, 1, 1]} : vector<2x3x256xf32> to vector<2x1x256xf32>
    %15 = vector.shape_cast %14 : vector<2x1x256xf32> to vector<2x256xf32>
    %16 = vector.broadcast %13 : vector<2x1xf32> to vector<2x256xf32>
    %17 = arith.mulf %16, %15 : vector<2x256xf32>
    %18 = arith.addf %11, %17 : vector<2x256xf32>
    %19 = vector.extract_strided_slice %1 {offsets = [0, 0, 2], sizes = [2, 1, 1], strides = [1, 1, 1]} : vector<2x4x4xf32> to vector<2x1x1xf32>
    %20 = vector.shape_cast %19 : vector<2x1x1xf32> to vector<2x1xf32>
    %21 = vector.extract_strided_slice %0 {offsets = [0, 2, 0], sizes = [2, 1, 256], strides = [1, 1, 1]} : vector<2x3x256xf32> to vector<2x1x256xf32>
    %22 = vector.shape_cast %21 : vector<2x1x256xf32> to vector<2x256xf32>
    %23 = vector.broadcast %20 : vector<2x1xf32> to vector<2x256xf32>
    %24 = arith.mulf %23, %22 : vector<2x256xf32>
    %25 = arith.addf %18, %24 : vector<2x256xf32>
    %26 = vector.extract_strided_slice %1 {offsets = [0, 1, 3], sizes = [2, 1, 1], strides = [1, 1, 1]} : vector<2x4x4xf32> to vector<2x1x1xf32>
    %27 = vector.shape_cast %26 : vector<2x1x1xf32> to vector<2x1xf32>
    %28 = vector.extract_strided_slice %1 {offsets = [0, 1, 0], sizes = [2, 1, 1], strides = [1, 1, 1]} : vector<2x4x4xf32> to vector<2x1x1xf32>
    %29 = vector.shape_cast %28 : vector<2x1x1xf32> to vector<2x1xf32>
    %30 = vector.extract_strided_slice %0 {offsets = [0, 0, 0], sizes = [2, 1, 256], strides = [1, 1, 1]} : vector<2x3x256xf32> to vector<2x1x256xf32>
    %31 = vector.shape_cast %30 : vector<2x1x256xf32> to vector<2x256xf32>
    %32 = vector.broadcast %29 : vector<2x1xf32> to vector<2x256xf32>
    %33 = arith.mulf %32, %31 : vector<2x256xf32>
    %34 = vector.broadcast %27 : vector<2x1xf32> to vector<2x256xf32>
    %35 = arith.addf %34, %33 : vector<2x256xf32>
    %36 = vector.extract_strided_slice %1 {offsets = [0, 1, 1], sizes = [2, 1, 1], strides = [1, 1, 1]} : vector<2x4x4xf32> to vector<2x1x1xf32>
    %37 = vector.shape_cast %36 : vector<2x1x1xf32> to vector<2x1xf32>
    %38 = vector.extract_strided_slice %0 {offsets = [0, 1, 0], sizes = [2, 1, 256], strides = [1, 1, 1]} : vector<2x3x256xf32> to vector<2x1x256xf32>
    %39 = vector.shape_cast %38 : vector<2x1x256xf32> to vector<2x256xf32>
    %40 = vector.broadcast %37 : vector<2x1xf32> to vector<2x256xf32>
    %41 = arith.mulf %40, %39 : vector<2x256xf32>
    %42 = arith.addf %35, %41 : vector<2x256xf32>
    %43 = vector.extract_strided_slice %1 {offsets = [0, 1, 2], sizes = [2, 1, 1], strides = [1, 1, 1]} : vector<2x4x4xf32> to vector<2x1x1xf32>
    %44 = vector.shape_cast %43 : vector<2x1x1xf32> to vector<2x1xf32>
    %45 = vector.extract_strided_slice %0 {offsets = [0, 2, 0], sizes = [2, 1, 256], strides = [1, 1, 1]} : vector<2x3x256xf32> to vector<2x1x256xf32>
    %46 = vector.shape_cast %45 : vector<2x1x256xf32> to vector<2x256xf32>
    %47 = vector.broadcast %44 : vector<2x1xf32> to vector<2x256xf32>
    %48 = arith.mulf %47, %46 : vector<2x256xf32>
    %49 = arith.addf %42, %48 : vector<2x256xf32>
    %50 = vector.extract_strided_slice %1 {offsets = [0, 2, 3], sizes = [2, 1, 1], strides = [1, 1, 1]} : vector<2x4x4xf32> to vector<2x1x1xf32>
    %51 = vector.shape_cast %50 : vector<2x1x1xf32> to vector<2x1xf32>
    %52 = vector.extract_strided_slice %1 {offsets = [0, 2, 0], sizes = [2, 1, 1], strides = [1, 1, 1]} : vector<2x4x4xf32> to vector<2x1x1xf32>
    %53 = vector.shape_cast %52 : vector<2x1x1xf32> to vector<2x1xf32>
    %54 = vector.extract_strided_slice %0 {offsets = [0, 0, 0], sizes = [2, 1, 256], strides = [1, 1, 1]} : vector<2x3x256xf32> to vector<2x1x256xf32>
    %55 = vector.shape_cast %54 : vector<2x1x256xf32> to vector<2x256xf32>
    %56 = vector.broadcast %53 : vector<2x1xf32> to vector<2x256xf32>
    %57 = arith.mulf %56, %55 : vector<2x256xf32>
    %58 = vector.broadcast %51 : vector<2x1xf32> to vector<2x256xf32>
    %59 = arith.addf %58, %57 : vector<2x256xf32>
    %60 = vector.extract_strided_slice %1 {offsets = [0, 2, 1], sizes = [2, 1, 1], strides = [1, 1, 1]} : vector<2x4x4xf32> to vector<2x1x1xf32>
    %61 = vector.shape_cast %60 : vector<2x1x1xf32> to vector<2x1xf32>
    %62 = vector.extract_strided_slice %0 {offsets = [0, 1, 0], sizes = [2, 1, 256], strides = [1, 1, 1]} : vector<2x3x256xf32> to vector<2x1x256xf32>
    %63 = vector.shape_cast %62 : vector<2x1x256xf32> to vector<2x256xf32>
    %64 = vector.broadcast %61 : vector<2x1xf32> to vector<2x256xf32>
    %65 = arith.mulf %64, %63 : vector<2x256xf32>
    %66 = arith.addf %59, %65 : vector<2x256xf32>
    %67 = vector.extract_strided_slice %1 {offsets = [0, 2, 2], sizes = [2, 1, 1], strides = [1, 1, 1]} : vector<2x4x4xf32> to vector<2x1x1xf32>
    %68 = vector.shape_cast %67 : vector<2x1x1xf32> to vector<2x1xf32>
    %69 = vector.extract_strided_slice %0 {offsets = [0, 2, 0], sizes = [2, 1, 256], strides = [1, 1, 1]} : vector<2x3x256xf32> to vector<2x1x256xf32>
    %70 = vector.shape_cast %69 : vector<2x1x256xf32> to vector<2x256xf32>
    %71 = vector.broadcast %68 : vector<2x1xf32> to vector<2x256xf32>
    %72 = arith.mulf %71, %70 : vector<2x256xf32>
    %73 = arith.addf %66, %72 : vector<2x256xf32>
    %74 = vector.shape_cast %25 : vector<2x256xf32> to vector<2x1x256xf32>
    %75 = vector.shape_cast %49 : vector<2x256xf32> to vector<2x1x256xf32>
    %76 = vector.shape_cast %73 : vector<2x256xf32> to vector<2x1x256xf32>
    %77 = tpu.concatenate %74, %75, %76 in 1 : vector<2x1x256xf32>, vector<2x1x256xf32>, vector<2x1x256xf32> -> vector<2x3x256xf32>
    %c0_5 = arith.constant 0 : index
    %c0_6 = arith.constant 0 : index
    %c0_7 = arith.constant 0 : index
    %78 = vector.load %arg3[%c0_5, %c0_6, %c0_7] : memref<2x3x256xf32, #tpu.memory_space<vmem>>, vector<2x3x256xf32>
    tpu.vector_store %arg3[%c0_5, %c0_6, %c0_7], %77 {strides = array<i32>} : memref<2x3x256xf32, #tpu.memory_space<vmem>>, vector<2x3x256xf32>,
    return
  }
  func.func @transform_0(%arg0: i32) -> (i32, i32, i32) {
    %c0_i32 = arith.constant 0 : i32
    %c0_i32_0 = arith.constant 0 : i32
    %c0_i32_1 = arith.constant 0 : i32
    %c0_i32_2 = arith.constant 0 : i32
    return %c0_i32, %c0_i32_0, %c0_i32_1 : i32, i32, i32
  }
  func.func @transform_1(%arg0: i32) -> (i32, i32, i32) {
    %c0_i32 = arith.constant 0 : i32
    %c0_i32_0 = arith.constant 0 : i32
    %c0_i32_1 = arith.constant 0 : i32
    %c0_i32_2 = arith.constant 0 : i32
    return %c0_i32, %c0_i32_0, %c0_i32_1 : i32, i32, i32
  }
  func.func @transform_2(%arg0: i32) -> (i32, i32, i32) {
    %c0_i32 = arith.constant 0 : i32
    %c0_i32_0 = arith.constant 0 : i32
    %c0_i32_1 = arith.constant 0 : i32
    %c0_i32_2 = arith.constant 0 : i32
    return %c0_i32, %c0_i32_0, %c0_i32_1 : i32, i32, i32
  }
}

</mosaic_0001>

<llo_original>
// kernel: itnet_forward.5
$region0: #{itnet_forward.5}
  #allocation0 [shape = 'u32[]', space=smem, size = 0x4, offset = 0x4, fixed_abs, tag = 'smem constant byte address 0x4 - core index']
  #allocation1 [shape = 'u32[144,128]{1,0:T(1,128)}', space=vmem, size = 0x12000, scoped, tag = 'internal scratch']
  %s0 = inlined_call_operand.vmem [shape: f32[2,3,256], index: 0, kind: input, shape index: {}]
  %s1 = inlined_call_operand.vmem [shape: f32[2,4,4], index: 1, kind: input, shape index: {}]
  %s2 = inlined_call_operand.vmem [shape: f32[2,3,256], index: 2, kind: output, shape index: {}]
  %s3 = sld [smem:[#allocation0]]
  $region18: #{itnet_forward.5} parent=0
    _
  %s5 = ssub.s32 1, %s3
  %s6 = scalar_select 0, %s5, %s3
  // Predicated region
  $region2: #{itnet_forward.5} parent=0 // pred_check
    _
  $region3: #{itnet_forward.5} parent=0 // pred_check_branch
    %8 = sbr.rel (0) target = $region5
  $region4: #{itnet_forward.5} parent=0 // pred_region
    _
  $region5: #{itnet_forward.5} parent=0 // pred_fallthru
    _
  // Predicated region
  $region6: #{itnet_forward.5} parent=0 // pred_check
    _
  $region7: #{itnet_forward.5} parent=0 // pred_check_branch
    %10 = sbr.rel (0) target = $region9
  $region8: #{itnet_forward.5} parent=0 // pred_region
    _
  $region9: #{itnet_forward.5} parent=0 // pred_fallthru
    _
  %v11 = vld [vmem:[%s0] sm:$0x77]
  %v12 = vld [vmem:[%s0 + $0x8] sm:$0x77]
  %v13 = vld [vmem:[%s1] sm:$0xf]
  %v14 = vld [vmem:[%s1 + $0x4] sm:$0xf]
  %16 = vset.pattern.permute.xlu0 0
  %17 = vperm.xlu0 %16, %v13
  %v18 = vpop.permute.xlu0 %17
  %21 = vset.pattern.permute.xlu0 0
  %22 = vperm.xlu0 %21, %v14
  %v23 = vpop.permute.xlu0 %22
  %v27 = vlaneseq
  %v28 = vshrl.u32 %v27, 7
  %v29 = vsub.s32 0, %v28
  %v30 = vrot.slane %v11, %v29
  %v31 = vlaneseq
  %v32 = vshrl.u32 %v31, 7
  %v33 = vsub.s32 4, %v32
  %v34 = vrot.slane %v11, %v33
  %v35 = vlaneseq
  %v36 = vshrl.u32 %v35, 7
  %v37 = vsub.s32 0, %v36
  %v38 = vrot.slane %v12, %v37
  %v39 = vlaneseq
  %v40 = vshrl.u32 %v39, 7
  %v41 = vsub.s32 4, %v40
  %v42 = vrot.slane %v12, %v41
  %v47 = vmul.f32 %v18, %v30
  %v48 = vmul.f32 %v18, %v34
  %v49 = vmul.f32 %v23, %v38
  %v50 = vmul.f32 %v23, %v42
  %51 = vset.pattern.permute.xlu0 3
  %52 = vperm.xlu0 %51, %v13
  %v53 = vpop.permute.xlu0 %52
  %55 = vset.pattern.permute.xlu0 3
  %56 = vperm.xlu0 %55, %v14
  %v57 = vpop.permute.xlu0 %56
  %v59 = vadd.f32 %v53, %v47
  %v60 = vadd.f32 %v53, %v48
  %v61 = vadd.f32 %v57, %v49
  %v62 = vadd.f32 %v57, %v50
  %63 = vset.pattern.permute.xlu0 1
  %64 = vperm.xlu0 %63, %v13
  %v65 = vpop.permute.xlu0 %64
  %67 = vset.pattern.permute.xlu0 1
  %68 = vperm.xlu0 %67, %v14
  %v69 = vpop.permute.xlu0 %68
  %v71 = vlaneseq
  %v72 = vshrl.u32 %v71, 7
  %v73 = vsub.s32 1, %v72
  %v74 = vrot.slane %v11, %v73
  %v75 = vlaneseq
  %v76 = vshrl.u32 %v75, 7
  %v77 = vsub.s32 5, %v76
  %v78 = vrot.slane %v11, %v77
  %v79 = vlaneseq
  %v80 = vshrl.u32 %v79, 7
  %v81 = vsub.s32 1, %v80
  %v82 = vrot.slane %v12, %v81
  %v83 = vlaneseq
  %v84 = vshrl.u32 %v83, 7
  %v85 = vsub.s32 5, %v84
  %v86 = vrot.slane %v12, %v85
  %v91 = vmul.f32 %v65, %v74
  %v92 = vmul.f32 %v65, %v78
  %v93 = vmul.f32 %v69, %v82
  %v94 = vmul.f32 %v69, %v86
  %v95 = vadd.f32 %v59, %v91
  %v96 = vadd.f32 %v60, %v92
  %v97 = vadd.f32 %v61, %v93
  %v98 = vadd.f32 %v62, %v94
  %99 = vset.pattern.permute.xlu0 2
  %100 = vperm.xlu0 %99, %v13
  %v101 = vpop.permute.xlu0 %100
  %103 = vset.pattern.permute.xlu0 2
  %104 = vperm.xlu0 %103, %v14
  %v105 = vpop.permute.xlu0 %104
  %v107 = vlaneseq
  %v108 = vshrl.u32 %v107, 7
  %v109 = vsub.s32 2, %v108
  %v110 = vrot.slane %v11, %v109
  %v111 = vlaneseq
  %v112 = vshrl.u32 %v111, 7
  %v113 = vsub.s32 6, %v112
  %v114 = vrot.slane %v11, %v113
  %v115 = vlaneseq
  %v116 = vshrl.u32 %v115, 7
  %v117 = vsub.s32 2, %v116
  %v118 = vrot.slane %v12, %v117
  %v119 = vlaneseq
  %v120 = vshrl.u32 %v119, 7
  %v121 = vsub.s32 6, %v120
  %v122 = vrot.slane %v12, %v121
  %v127 = vmul.f32 %v101, %v110
  %v128 = vmul.f32 %v101, %v114
  %v129 = vmul.f32 %v105, %v118
  %v130 = vmul.f32 %v105, %v122
  %v131 = vadd.f32 %v95, %v127
  %v132 = vadd.f32 %v96, %v128
  %v133 = vadd.f32 %v97, %v129
  %v134 = vadd.f32 %v98, %v130
  %vm135 = vcmask 1041408
  %v136 = vsel %vm135, %v131, %v131
  %v137 = vsel %vm135, %v132, %v132
  %v138 = vsel %vm135, %v133, %v133
  %v139 = vsel %vm135, %v134, %v134
  %v144 = vcombine.low %v136, %v137
  %v145 = vcombine.low %v138, %v139
  %148 = vst [vmem:[%s2] sm:$0x77] %v144
  %149 = vst [vmem:[%s2 + $0x8] sm:$0x77] %v145
  // Predicated region
  $region10: #{itnet_forward.5} parent=0 // pred_check
    _
  $region11: #{itnet_forward.5} parent=0 // pred_check_branch
    %151 = sbr.rel (0) target = $region13
  $region12: #{itnet_forward.5} parent=0 // pred_region
    _
  $region13: #{itnet_forward.5} parent=0 // pred_fallthru
    _
  // Predicated region
  $region14: #{itnet_forward.5} parent=0 // pred_check
    _
  $region15: #{itnet_forward.5} parent=0 // pred_check_branch
    %153 = sbr.rel (0) target = $region17
  $region16: #{itnet_forward.5} parent=0 // pred_region
    _
  $region17: #{itnet_forward.5} parent=0 // pred_fallthru
    _

// kernel: itnet_forward.3
$region0: #{itnet_forward.3}
  #allocation0 [shape = 'u32[]', space=smem, size = 0x4, offset = 0x4, fixed_abs, tag = 'smem constant byte address 0x4 - core index']
  #allocation1 [shape = 'u32[144,128]{1,0:T(1,128)}', space=vmem, size = 0x12000, scoped, tag = 'internal scratch']
  %s0 = inlined_call_operand.vmem [shape: f32[2,256,8], index: 0, kind: input, shape index: {}]
  %s1 = inlined_call_operand.vmem [shape: f32[2,8,64], index: 1, kind: input, shape index: {}]
  %s2 = inlined_call_operand.vmem [shape: f32[2,64], index: 2, kind: input, shape index: {}]
  %s3 = inlined_call_operand.vmem [shape: bf16[64,128], index: 3, kind: input, shape index: {}]
  %s4 = inlined_call_operand.vmem [shape: f32[1,128], index: 4, kind: input, shape index: {}]
  %s5 = inlined_call_operand.vmem [shape: bf16[128,1024], index: 5, kind: input, shape index: {}]
  %s6 = inlined_call_operand.vmem [shape: f32[1,1024], index: 6, kind: input, shape index: {}]
  %s7 = inlined_call_operand.vmem [shape: bf16[1024,512], index: 7, kind: input, shape index: {}]
  %s8 = inlined_call_operand.vmem [shape: f32[1,512], index: 8, kind: input, shape index: {}]
  %s9 = inlined_call_operand.vmem [shape: bf16[512,256], index: 9, kind: input, shape index: {}]
  %s10 = inlined_call_operand.vmem [shape: f32[1,256], index: 10, kind: input, shape index: {}]
  %s11 = inlined_call_operand.vmem [shape: f32[256,128], index: 11, kind: input, shape index: {}]
  %s12 = inlined_call_operand.vmem [shape: f32[1,128], index: 12, kind: input, shape index: {}]
  %s13 = inlined_call_operand.vmem [shape: f32[2,128], index: 13, kind: output, shape index: {}]
  %s14 = sld [smem:[#allocation0]]
  $region62: #{itnet_forward.3} parent=0
    _
  %s16 = ssub.s32 1, %s14
  %s17 = scalar_select 0, %s16, %s14
  // Predicated region
  $region2: #{itnet_forward.3} parent=0 // pred_check
    _
  $region3: #{itnet_forward.3} parent=0 // pred_check_branch
    %19 = sbr.rel (0) target = $region5
  $region4: #{itnet_forward.3} parent=0 // pred_region
    _
  $region5: #{itnet_forward.3} parent=0 // pred_fallthru
    _
  // Predicated region
  $region6: #{itnet_forward.3} parent=0 // pred_check
    _
  $region7: #{itnet_forward.3} parent=0 // pred_check_branch
    %21 = sbr.rel (0) target = $region9
  $region8: #{itnet_forward.3} parent=0 // pred_region
    _
  $region9: #{itnet_forward.3} parent=0 // pred_fallthru
    _
  // Predicated region
  $region10: #{itnet_forward.3} parent=0 // pred_check
    _
  $region11: #{itnet_forward.3} parent=0 // pred_check_branch
    %23 = sbr.rel (0) target = $region13
  $region12: #{itnet_forward.3} parent=0 // pred_region
    _
  $region13: #{itnet_forward.3} parent=0 // pred_fallthru
    _
  // Predicated region
  $region14: #{itnet_forward.3} parent=0 // pred_check
    _
  $region15: #{itnet_forward.3} parent=0 // pred_check_branch
    %25 = sbr.rel (0) target = $region17
  $region16: #{itnet_forward.3} parent=0 // pred_region
    _
  $region17: #{itnet_forward.3} parent=0 // pred_fallthru
    _
  // Predicated region
  $region18: #{itnet_forward.3} parent=0 // pred_check
    _
  $region19: #{itnet_forward.3} parent=0 // pred_check_branch
    %27 = sbr.rel (0) target = $region21
  $region20: #{itnet_forward.3} parent=0 // pred_region
    _
  $region21: #{itnet_forward.3} parent=0 // pred_fallthru
    _
  // Predicated region
  $region22: #{itnet_forward.3} parent=0 // pred_check
    _
  $region23: #{itnet_forward.3} parent=0 // pred_check_branch
    %29 = sbr.rel (0) target = $region25
  $region24: #{itnet_forward.3} parent=0 // pred_region
    _
  $region25: #{itnet_forward.3} parent=0 // pred_fallthru
    _
  // Predicated region
  $region26: #{itnet_forward.3} parent=0 // pred_check
    _
  $region27: #{itnet_forward.3} parent=0 // pred_check_branch
    %31 = sbr.rel (0) target = $region29
  $region28: #{itnet_forward.3} parent=0 // pred_region
    _
  $region29: #{itnet_forward.3} parent=0 // pred_fallthru
    _
  // Predicated region
  $region30: #{itnet_forward.3} parent=0 // pred_check
    _
  $region31: #{itnet_forward.3} parent=0 // pred_check_branch
    %33 = sbr.rel (0) target = $region33
  $region32: #{itnet_forward.3} parent=0 // pred_region
    _
  $region33: #{itnet_forward.3} parent=0 // pred_fallthru
    _
  // Predicated region
  $region34: #{itnet_forward.3} parent=0 // pred_check
    _
  $region35: #{itnet_forward.3} parent=0 // pred_check_branch
    %35 = sbr.rel (0) target = $region37
  $region36: #{itnet_forward.3} parent=0 // pred_region
    _
  $region37: #{itnet_forward.3} parent=0 // pred_fallthru
    _
  // Predicated region
  $region38: #{itnet_forward.3} parent=0 // pred_check
    _
  $region39: #{itnet_forward.3} parent=0 // pred_check_branch
    %37 = sbr.rel (0) target = $region41
  $region40: #{itnet_forward.3} parent=0 // pred_region
    _
  $region41: #{itnet_forward.3} parent=0 // pred_fallthru
    _
  // Predicated region
  $region42: #{itnet_forward.3} parent=0 // pred_check
    _
  $region43: #{itnet_forward.3} parent=0 // pred_check_branch
    %39 = sbr.rel (0) target = $region45
  $region44: #{itnet_forward.3} parent=0 // pred_region
    _
  $region45: #{itnet_forward.3} parent=0 // pred_fallthru
    _
  // Predicated region
  $region46: #{itnet_forward.3} parent=0 // pred_check
    _
  $region47: #{itnet_forward.3} parent=0 // pred_check_branch
    %41 = sbr.rel (0) target = $region49
  $region48: #{itnet_forward.3} parent=0 // pred_region
    _
  $region49: #{itnet_forward.3} parent=0 // pred_fallthru
    _
  // Predicated region
  $region50: #{itnet_forward.3} parent=0 // pred_check
    _
  $region51: #{itnet_forward.3} parent=0 // pred_check_branch
    %43 = sbr.rel (0) target = $region53
  $region52: #{itnet_forward.3} parent=0 // pred_region
    _
  $region53: #{itnet_forward.3} parent=0 // pred_fallthru
    _
  %v45 = vld [vmem:[%s0] sm:$0xff]
  %v46 = vld [vmem:[%s0 + $0x8] sm:$0xff]
  %v47 = vld [vmem:[%s0 + $0x10] sm:$0xff]
  %v48 = vld [vmem:[%s0 + $0x18] sm:$0xff]
  %v49 = vld [vmem:[%s0 + $0x20] sm:$0xff]
  %v50 = vld [vmem:[%s0 + $0x28] sm:$0xff]
  %v51 = vld [vmem:[%s0 + $0x30] sm:$0xff]
  %v52 = vld [vmem:[%s0 + $0x38] sm:$0xff]
  %v53 = vld [vmem:[%s0 + $0x40] sm:$0xff]
  %v54 = vld [vmem:[%s0 + $0x48] sm:$0xff]
  %v55 = vld [vmem:[%s0 + $0x50] sm:$0xff]
  %v56 = vld [vmem:[%s0 + $0x58] sm:$0xff]
  %v57 = vld [vmem:[%s0 + $0x60] sm:$0xff]
  %v58 = vld [vmem:[%s0 + $0x68] sm:$0xff]
  %v59 = vld [vmem:[%s0 + $0x70] sm:$0xff]
  %v60 = vld [vmem:[%s0 + $0x78] sm:$0xff]
  %v61 = vld [vmem:[%s0 + $0x80] sm:$0xff]
  %v62 = vld [vmem:[%s0 + $0x88] sm:$0xff]
  %v63 = vld [vmem:[%s0 + $0x90] sm:$0xff]
  %v64 = vld [vmem:[%s0 + $0x98] sm:$0xff]
  %v65 = vld [vmem:[%s0 + $0xa0] sm:$0xff]
  %v66 = vld [vmem:[%s0 + $0xa8] sm:$0xff]
  %v67 = vld [vmem:[%s0 + $0xb0] sm:$0xff]
  %v68 = vld [vmem:[%s0 + $0xb8] sm:$0xff]
  %v69 = vld [vmem:[%s0 + $0xc0] sm:$0xff]
  %v70 = vld [vmem:[%s0 + $0xc8] sm:$0xff]
  %v71 = vld [vmem:[%s0 + $0xd0] sm:$0xff]
  %v72 = vld [vmem:[%s0 + $0xd8] sm:$0xff]
  %v73 = vld [vmem:[%s0 + $0xe0] sm:$0xff]
  %v74 = vld [vmem:[%s0 + $0xe8] sm:$0xff]
  %v75 = vld [vmem:[%s0 + $0xf0] sm:$0xff]
  %v76 = vld [vmem:[%s0 + $0xf8] sm:$0xff]
  %v77 = vld [vmem:[%s0 + $0x100] sm:$0xff]
  %v78 = vld [vmem:[%s0 + $0x108] sm:$0xff]
  %v79 = vld [vmem:[%s0 + $0x110] sm:$0xff]
  %v80 = vld [vmem:[%s0 + $0x118] sm:$0xff]
  %v81 = vld [vmem:[%s0 + $0x120] sm:$0xff]
  %v82 = vld [vmem:[%s0 + $0x128] sm:$0xff]
  %v83 = vld [vmem:[%s0 + $0x130] sm:$0xff]
  %v84 = vld [vmem:[%s0 + $0x138] sm:$0xff]
  %v85 = vld [vmem:[%s0 + $0x140] sm:$0xff]
  %v86 = vld [vmem:[%s0 + $0x148] sm:$0xff]
  %v87 = vld [vmem:[%s0 + $0x150] sm:$0xff]
  %v88 = vld [vmem:[%s0 + $0x158] sm:$0xff]
  %v89 = vld [vmem:[%s0 + $0x160] sm:$0xff]
  %v90 = vld [vmem:[%s0 + $0x168] sm:$0xff]
  %v91 = vld [vmem:[%s0 + $0x170] sm:$0xff]
  %v92 = vld [vmem:[%s0 + $0x178] sm:$0xff]
  %v93 = vld [vmem:[%s0 + $0x180] sm:$0xff]
  %v94 = vld [vmem:[%s0 + $0x188] sm:$0xff]
  %v95 = vld [vmem:[%s0 + $0x190] sm:$0xff]
  %v96 = vld [vmem:[%s0 + $0x198] sm:$0xff]
  %v97 = vld [vmem:[%s0 + $0x1a0] sm:$0xff]
  %v98 = vld [vmem:[%s0 + $0x1a8] sm:$0xff]
  %v99 = vld [vmem:[%s0 + $0x1b0] sm:$0xff]
  %v100 = vld [vmem:[%s0 + $0x1b8] sm:$0xff]
  %v101 = vld [vmem:[%s0 + $0x1c0] sm:$0xff]
  %v102 = vld [vmem:[%s0 + $0x1c8] sm:$0xff]
  %v103 = vld [vmem:[%s0 + $0x1d0] sm:$0xff]
  %v104 = vld [vmem:[%s0 + $0x1d8] sm:$0xff]
  %v105 = vld [vmem:[%s0 + $0x1e0] sm:$0xff]
  %v106 = vld [vmem:[%s0 + $0x1e8] sm:$0xff]
  %v107 = vld [vmem:[%s0 + $0x1f0] sm:$0xff]
  %v108 = vld [vmem:[%s0 + $0x1f8] sm:$0xff]
  %v109 = vld [vmem:[%s1] sm:$0xff]
  %v110 = vld [vmem:[%s1 + $0x8] sm:$0xff]
  %v111 = vld [vmem:[%s2] sm:$0x3]
  %v112 = vlaneseq
  %v113 = vshrl.u32 %v112, 7
  %v114 = vsub.s32 0, %v113
  %v115 = vrot.slane %v111, %v114
  %vm116 = vcmask 64512
  %v118 = vsel %vm116, %v45, 0
  %v121 = vsel %vm116, %v46, 0
  %v124 = vsel %vm116, %v47, 0
  %v127 = vsel %vm116, %v48, 0
  %v130 = vsel %vm116, %v49, 0
  %v133 = vsel %vm116, %v50, 0
  %v136 = vsel %vm116, %v51, 0
  %v139 = vsel %vm116, %v52, 0
  %v142 = vsel %vm116, %v53, 0
  %v145 = vsel %vm116, %v54, 0
  %v148 = vsel %vm116, %v55, 0
  %v151 = vsel %vm116, %v56, 0
  %v154 = vsel %vm116, %v57, 0
  %v157 = vsel %vm116, %v58, 0
  %v160 = vsel %vm116, %v59, 0
  %v163 = vsel %vm116, %v60, 0
  %v166 = vsel %vm116, %v61, 0
  %v169 = vsel %vm116, %v62, 0
  %v172 = vsel %vm116, %v63, 0
  %v175 = vsel %vm116, %v64, 0
  %v178 = vsel %vm116, %v65, 0
  %v181 = vsel %vm116, %v66, 0
  %v184 = vsel %vm116, %v67, 0
  %v187 = vsel %vm116, %v68, 0
  %v190 = vsel %vm116, %v69, 0
  %v193 = vsel %vm116, %v70, 0
  %v196 = vsel %vm116, %v71, 0
  %v199 = vsel %vm116, %v72, 0
  %v202 = vsel %vm116, %v73, 0
  %v205 = vsel %vm116, %v74, 0
  %v208 = vsel %vm116, %v75, 0
  %v211 = vsel %vm116, %v76, 0
  %213 = vmatprep.subr.mxu0 0.0
  %214 = vmatpush1.msra.mxu0 %v109
  %215 = vmatprep.subr.mxu0 0.0
  %216 = vmatpush1.msra.mxu0 0.0
  %217 = vmatprep.subr.mxu0 0.0
  %218 = vmatpush1.msra.mxu0 0.0
  %219 = vmatprep.subr.mxu0 0.0
  %220 = vmatpush1.msra.mxu0 0.0
  %221 = vmatprep.subr.mxu0 0.0
  %222 = vmatpush1.msra.mxu0 0.0
  %223 = vmatprep.subr.mxu0 0.0
  %224 = vmatpush1.msra.mxu0 0.0
  %225 = vmatprep.subr.mxu0 0.0
  %226 = vmatpush1.msra.mxu0 0.0
  %227 = vmatprep.subr.mxu0 0.0
  %228 = vmatpush1.msra.mxu0 0.0
  %229 = vmatprep.subr.mxu0 0.0
  %230 = vmatpush1.msra.mxu0 0.0
  %231 = vmatprep.subr.mxu0 0.0
  %232 = vmatpush1.msra.mxu0 0.0
  %233 = vmatprep.subr.mxu0 0.0
  %234 = vmatpush1.msra.mxu0 0.0
  %235 = vmatprep.subr.mxu0 0.0
  %236 = vmatpush1.msra.mxu0 0.0
  %237 = vmatprep.subr.mxu0 0.0
  %238 = vmatpush1.msra.mxu0 0.0
  %239 = vmatprep.subr.mxu0 0.0
  %240 = vmatpush1.msra.mxu0 0.0
  %241 = vmatprep.subr.mxu0 0.0
  %242 = vmatpush1.msra.mxu0 0.0
  %243 = vmatprep.subr.mxu0 0.0
  %244 = vmatpush1.msra.mxu0 0.0
  %245 = vmatprep.subr.mxu0 0.0
  %246 = vmatpush1.msra.mxu0 0.0
  %247 = vmatprep.subr.mxu0 0.0
  %248 = vmatpush1.msra.mxu0 0.0
  %249 = vmatprep.subr.mxu0 0.0
  %250 = vmatpush1.msra.mxu0 0.0
  %251 = vmatprep.subr.mxu0 0.0
  %252 = vmatpush1.msra.mxu0 0.0
  %253 = vmatprep.subr.mxu0 0.0
  %254 = vmatpush1.msra.mxu0 0.0
  %255 = vmatprep.subr.mxu0 0.0
  %256 = vmatpush1.msra.mxu0 0.0
  %257 = vmatprep.subr.mxu0 0.0
  %258 = vmatpush1.msra.mxu0 0.0
  %259 = vmatprep.subr.mxu0 0.0
  %260 = vmatpush1.msra.mxu0 0.0
  %261 = vmatprep.subr.mxu0 0.0
  %262 = vmatpush1.msra.mxu0 0.0
  %263 = vmatprep.subr.mxu0 0.0
  %264 = vmatpush1.msra.mxu0 0.0
  %265 = vmatprep.subr.mxu0 0.0
  %266 = vmatpush1.msra.mxu0 0.0
  %267 = vmatprep.subr.mxu0 0.0
  %268 = vmatpush1.msra.mxu0 0.0
  %269 = vmatprep.subr.mxu0 0.0
  %270 = vmatpush1.msra.mxu0 0.0
  %271 = vmatprep.subr.mxu0 0.0
  %272 = vmatpush1.msra.mxu0 0.0
  %273 = vmatprep.subr.mxu0 0.0
  %274 = vmatpush1.msra.mxu0 0.0
  %275 = vmatprep.subr.mxu0 0.0
  %276 = vmatpush1.msra.mxu0 0.0
  %277 = vmatprep.mubr.f32.mxu0 0.0
  %278 = vmatmul.mubr.f32.gmra.mrb[0].mxu0 %v118
  %v279 = vpop.f32.mrb[0].mxu0
  %v280 = vadd.f32 %v115, %v279
  %v281 = vpop.f32.mrb[0].mxu0
  %282 = vmatprep.mubr.f32.mxu0 0.0
  %283 = vmatmul.mubr.f32.gmra.mrb[0].mxu0 %v121
  %v284 = vpop.f32.mrb[0].mxu0
  %v285 = vadd.f32 %v115, %v284
  %v286 = vpop.f32.mrb[0].mxu0
  %287 = vmatprep.mubr.f32.mxu0 0.0
  %288 = vmatmul.mubr.f32.gmra.mrb[0].mxu0 %v124
  %v289 = vpop.f32.mrb[0].mxu0
  %v290 = vadd.f32 %v115, %v289
  %v291 = vpop.f32.mrb[0].mxu0
  %292 = vmatprep.mubr.f32.mxu0 0.0
  %293 = vmatmul.mubr.f32.gmra.mrb[0].mxu0 %v127
  %v294 = vpop.f32.mrb[0].mxu0
  %v295 = vadd.f32 %v115, %v294
  %v296 = vpop.f32.mrb[0].mxu0
  %297 = vmatprep.mubr.f32.mxu0 0.0
  %298 = vmatmul.mubr.f32.gmra.mrb[0].mxu0 %v130
  %v299 = vpop.f32.mrb[0].mxu0
  %v300 = vadd.f32 %v115, %v299
  %v301 = vpop.f32.mrb[0].mxu0
  %302 = vmatprep.mubr.f32.mxu0 0.0
  %303 = vmatmul.mubr.f32.gmra.mrb[0].mxu0 %v133
  %v304 = vpop.f32.mrb[0].mxu0
  %v305 = vadd.f32 %v115, %v304
  %v306 = vpop.f32.mrb[0].mxu0
  %307 = vmatprep.mubr.f32.mxu0 0.0
  %308 = vmatmul.mubr.f32.gmra.mrb[0].mxu0 %v136
  %v309 = vpop.f32.mrb[0].mxu0
  %v310 = vadd.f32 %v115, %v309
  %v311 = vpop.f32.mrb[0].mxu0
  %312 = vmatprep.mubr.f32.mxu0 0.0
  %313 = vmatmul.mubr.f32.gmra.mrb[0].mxu0 %v139
  %v314 = vpop.f32.mrb[0].mxu0
  %v315 = vadd.f32 %v115, %v314
  %v316 = vpop.f32.mrb[0].mxu0
  %317 = vmatprep.mubr.f32.mxu0 0.0
  %318 = vmatmul.mubr.f32.gmra.mrb[0].mxu0 %v142
  %v319 = vpop.f32.mrb[0].mxu0
  %v320 = vadd.f32 %v115, %v319
  %v321 = vpop.f32.mrb[0].mxu0
  %322 = vmatprep.mubr.f32.mxu0 0.0
  %323 = vmatmul.mubr.f32.gmra.mrb[0].mxu0 %v145
  %v324 = vpop.f32.mrb[0].mxu0
  %v325 = vadd.f32 %v115, %v324
  %v326 = vpop.f32.mrb[0].mxu0
  %327 = vmatprep.mubr.f32.mxu0 0.0
  %328 = vmatmul.mubr.f32.gmra.mrb[0].mxu0 %v148
  %v329 = vpop.f32.mrb[0].mxu0
  %v330 = vadd.f32 %v115, %v329
  %v331 = vpop.f32.mrb[0].mxu0
  %332 = vmatprep.mubr.f32.mxu0 0.0
  %333 = vmatmul.mubr.f32.gmra.mrb[0].mxu0 %v151
  %v334 = vpop.f32.mrb[0].mxu0
  %v335 = vadd.f32 %v115, %v334
  %v336 = vpop.f32.mrb[0].mxu0
  %337 = vmatprep.mubr.f32.mxu0 0.0
  %338 = vmatmul.mubr.f32.gmra.mrb[0].mxu0 %v154
  %v339 = vpop.f32.mrb[0].mxu0
  %v340 = vadd.f32 %v115, %v339
  %v341 = vpop.f32.mrb[0].mxu0
  %342 = vmatprep.mubr.f32.mxu0 0.0
  %343 = vmatmul.mubr.f32.gmra.mrb[0].mxu0 %v157
  %v344 = vpop.f32.mrb[0].mxu0
  %v345 = vadd.f32 %v115, %v344
  %v346 = vpop.f32.mrb[0].mxu0
  %347 = vmatprep.mubr.f32.mxu0 0.0
  %348 = vmatmul.mubr.f32.gmra.mrb[0].mxu0 %v160
  %v349 = vpop.f32.mrb[0].mxu0
  %v350 = vadd.f32 %v115, %v349
  %v351 = vpop.f32.mrb[0].mxu0
  %352 = vmatprep.mubr.f32.mxu0 0.0
  %353 = vmatmul.mubr.f32.gmra.mrb[0].mxu0 %v163
  %v354 = vpop.f32.mrb[0].mxu0
  %v355 = vadd.f32 %v115, %v354
  %v356 = vpop.f32.mrb[0].mxu0
  %357 = vmatprep.mubr.f32.mxu0 0.0
  %358 = vmatmul.mubr.f32.gmra.mrb[0].mxu0 %v166
  %v359 = vpop.f32.mrb[0].mxu0
  %v360 = vadd.f32 %v115, %v359
  %v361 = vpop.f32.mrb[0].mxu0
  %362 = vmatprep.mubr.f32.mxu0 0.0
  %363 = vmatmul.mubr.f32.gmra.mrb[0].mxu0 %v169
  %v364 = vpop.f32.mrb[0].mxu0
  %v365 = vadd.f32 %v115, %v364
  %v366 = vpop.f32.mrb[0].mxu0
  %367 = vmatprep.mubr.f32.mxu0 0.0
  %368 = vmatmul.mubr.f32.gmra.mrb[0].mxu0 %v172
  %v369 = vpop.f32.mrb[0].mxu0
  %v370 = vadd.f32 %v115, %v369
  %v371 = vpop.f32.mrb[0].mxu0
  %372 = vmatprep.mubr.f32.mxu0 0.0
  %373 = vmatmul.mubr.f32.gmra.mrb[0].mxu0 %v175
  %v374 = vpop.f32.mrb[0].mxu0
  %v375 = vadd.f32 %v115, %v374
  %v376 = vpop.f32.mrb[0].mxu0
  %377 = vmatprep.mubr.f32.mxu0 0.0
  %378 = vmatmul.mubr.f32.gmra.mrb[0].mxu0 %v178
  %v379 = vpop.f32.mrb[0].mxu0
  %v380 = vadd.f32 %v115, %v379
  %v381 = vpop.f32.mrb[0].mxu0
  %382 = vmatprep.mubr.f32.mxu0 0.0
  %383 = vmatmul.mubr.f32.gmra.mrb[0].mxu0 %v181
  %v384 = vpop.f32.mrb[0].mxu0
  %v385 = vadd.f32 %v115, %v384
  %v386 = vpop.f32.mrb[0].mxu0
  %387 = vmatprep.mubr.f32.mxu0 0.0
  %388 = vmatmul.mubr.f32.gmra.mrb[0].mxu0 %v184
  %v389 = vpop.f32.mrb[0].mxu0
  %v390 = vadd.f32 %v115, %v389
  %v391 = vpop.f32.mrb[0].mxu0
  %392 = vmatprep.mubr.f32.mxu0 0.0
  %393 = vmatmul.mubr.f32.gmra.mrb[0].mxu0 %v187
  %v394 = vpop.f32.mrb[0].mxu0
  %v395 = vadd.f32 %v115, %v394
  %v396 = vpop.f32.mrb[0].mxu0
  %397 = vmatprep.mubr.f32.mxu0 0.0
  %398 = vmatmul.mubr.f32.gmra.mrb[0].mxu0 %v190
  %v399 = vpop.f32.mrb[0].mxu0
  %v400 = vadd.f32 %v115, %v399
  %v401 = vpop.f32.mrb[0].mxu0
  %402 = vmatprep.mubr.f32.mxu0 0.0
  %403 = vmatmul.mubr.f32.gmra.mrb[0].mxu0 %v193
  %v404 = vpop.f32.mrb[0].mxu0
  %v405 = vadd.f32 %v115, %v404
  %v406 = vpop.f32.mrb[0].mxu0
  %407 = vmatprep.mubr.f32.mxu0 0.0
  %408 = vmatmul.mubr.f32.gmra.mrb[0].mxu0 %v196
  %v409 = vpop.f32.mrb[0].mxu0
  %v410 = vadd.f32 %v115, %v409
  %v411 = vpop.f32.mrb[0].mxu0
  %412 = vmatprep.mubr.f32.mxu0 0.0
  %413 = vmatmul.mubr.f32.gmra.mrb[0].mxu0 %v199
  %v414 = vpop.f32.mrb[0].mxu0
  %v415 = vadd.f32 %v115, %v414
  %v416 = vpop.f32.mrb[0].mxu0
  %417 = vmatprep.mubr.f32.mxu0 0.0
  %418 = vmatmul.mubr.f32.gmra.mrb[0].mxu0 %v202
  %v419 = vpop.f32.mrb[0].mxu0
  %v420 = vadd.f32 %v115, %v419
  %v421 = vpop.f32.mrb[0].mxu0
  %422 = vmatprep.mubr.f32.mxu0 0.0
  %423 = vmatmul.mubr.f32.gmra.mrb[0].mxu0 %v205
  %v424 = vpop.f32.mrb[0].mxu0
  %v425 = vadd.f32 %v115, %v424
  %v426 = vpop.f32.mrb[0].mxu0
  %427 = vmatprep.mubr.f32.mxu0 0.0
  %428 = vmatmul.mubr.f32.gmra.mrb[0].mxu0 %v208
  %v429 = vpop.f32.mrb[0].mxu0
  %v430 = vadd.f32 %v115, %v429
  %v431 = vpop.f32.mrb[0].mxu0
  %432 = vmatprep.mubr.f32.mxu0 0.0
  %433 = vmatmul.mubr.f32.gmra.mrb[0].mxu0 %v211
  %v434 = vpop.f32.mrb[0].mxu0
  %v435 = vadd.f32 %v115, %v434
  %v436 = vpop.f32.mrb[0].mxu0
  %437 = vdwg.mxu0
  %v438 = vlaneseq
  %v439 = vshrl.u32 %v438, 7
  %v440 = vsub.s32 1, %v439
  %v441 = vrot.slane %v111, %v440
  %v443 = vsel %vm116, %v77, 0
  %v446 = vsel %vm116, %v78, 0
  %v449 = vsel %vm116, %v79, 0
  %v452 = vsel %vm116, %v80, 0
  %v455 = vsel %vm116, %v81, 0
  %v458 = vsel %vm116, %v82, 0
  %v461 = vsel %vm116, %v83, 0
  %v464 = vsel %vm116, %v84, 0
  %v467 = vsel %vm116, %v85, 0
  %v470 = vsel %vm116, %v86, 0
  %v473 = vsel %vm116, %v87, 0
  %v476 = vsel %vm116, %v88, 0
  %v479 = vsel %vm116, %v89, 0
  %v482 = vsel %vm116, %v90, 0
  %v485 = vsel %vm116, %v91, 0
  %v488 = vsel %vm116, %v92, 0
  %v491 = vsel %vm116, %v93, 0
  %v494 = vsel %vm116, %v94, 0
  %v497 = vsel %vm116, %v95, 0
  %v500 = vsel %vm116, %v96, 0
  %v503 = vsel %vm116, %v97, 0
  %v506 = vsel %vm116, %v98, 0
  %v509 = vsel %vm116, %v99, 0
  %v512 = vsel %vm116, %v100, 0
  %v515 = vsel %vm116, %v101, 0
  %v518 = vsel %vm116, %v102, 0
  %v521 = vsel %vm116, %v103, 0
  %v524 = vsel %vm116, %v104, 0
  %v527 = vsel %vm116, %v105, 0
  %v530 = vsel %vm116, %v106, 0
  %v533 = vsel %vm116, %v107, 0
  %v536 = vsel %vm116, %v108, 0
  %538 = vmatprep.subr.mxu0 0.0
  %539 = vmatpush1.msra.mxu0 %v110
  %540 = vmatprep.subr.mxu0 0.0
  %541 = vmatpush1.msra.mxu0 0.0
  %542 = vmatprep.subr.mxu0 0.0
  %543 = vmatpush1.msra.mxu0 0.0
  %544 = vmatprep.subr.mxu0 0.0
  %545 = vmatpush1.msra.mxu0 0.0
  %546 = vmatprep.subr.mxu0 0.0
  %547 = vmatpush1.msra.mxu0 0.0
  %548 = vmatprep.subr.mxu0 0.0
  %549 = vmatpush1.msra.mxu0 0.0
  %550 = vmatprep.subr.mxu0 0.0
  %551 = vmatpush1.msra.mxu0 0.0
  %552 = vmatprep.subr.mxu0 0.0
  %553 = vmatpush1.msra.mxu0 0.0
  %554 = vmatprep.subr.mxu0 0.0
  %555 = vmatpush1.msra.mxu0 0.0
  %556 = vmatprep.subr.mxu0 0.0
  %557 = vmatpush1.msra.mxu0 0.0
  %558 = vmatprep.subr.mxu0 0.0
  %559 = vmatpush1.msra.mxu0 0.0
  %560 = vmatprep.subr.mxu0 0.0
  %561 = vmatpush1.msra.mxu0 0.0
  %562 = vmatprep.subr.mxu0 0.0
  %563 = vmatpush1.msra.mxu0 0.0
  %564 = vmatprep.subr.mxu0 0.0
  %565 = vmatpush1.msra.mxu0 0.0
  %566 = vmatprep.subr.mxu0 0.0
  %567 = vmatpush1.msra.mxu0 0.0
  %568 = vmatprep.subr.mxu0 0.0
  %569 = vmatpush1.msra.mxu0 0.0
  %570 = vmatprep.subr.mxu0 0.0
  %571 = vmatpush1.msra.mxu0 0.0
  %572 = vmatprep.subr.mxu0 0.0
  %573 = vmatpush1.msra.mxu0 0.0
  %574 = vmatprep.subr.mxu0 0.0
  %575 = vmatpush1.msra.mxu0 0.0
  %576 = vmatprep.subr.mxu0 0.0
  %577 = vmatpush1.msra.mxu0 0.0
  %578 = vmatprep.subr.mxu0 0.0
  %579 = vmatpush1.msra.mxu0 0.0
  %580 = vmatprep.subr.mxu0 0.0
  %581 = vmatpush1.msra.mxu0 0.0
  %582 = vmatprep.subr.mxu0 0.0
  %583 = vmatpush1.msra.mxu0 0.0
  %584 = vmatprep.subr.mxu0 0.0
  %585 = vmatpush1.msra.mxu0 0.0
  %586 = vmatprep.subr.mxu0 0.0
  %587 = vmatpush1.msra.mxu0 0.0
  %588 = vmatprep.subr.mxu0 0.0
  %589 = vmatpush1.msra.mxu0 0.0
  %590 = vmatprep.subr.mxu0 0.0
  %591 = vmatpush1.msra.mxu0 0.0
  %592 = vmatprep.subr.mxu0 0.0
  %593 = vmatpush1.msra.mxu0 0.0
  %594 = vmatprep.subr.mxu0 0.0
  %595 = vmatpush1.msra.mxu0 0.0
  %596 = vmatprep.subr.mxu0 0.0
  %597 = vmatpush1.msra.mxu0 0.0
  %598 = vmatprep.subr.mxu0 0.0
  %599 = vmatpush1.msra.mxu0 0.0
  %600 = vmatprep.subr.mxu0 0.0
  %601 = vmatpush1.msra.mxu0 0.0
  %602 = vmatprep.mubr.f32.mxu0 0.0
  %603 = vmatmul.mubr.f32.gmra.mrb[0].mxu0 %v443
  %v604 = vpop.f32.mrb[0].mxu0
  %v605 = vadd.f32 %v441, %v604
  %v606 = vpop.f32.mrb[0].mxu0
  %607 = vmatprep.mubr.f32.mxu0 0.0
  %608 = vmatmul.mubr.f32.gmra.mrb[0].mxu0 %v446
  %v609 = vpop.f32.mrb[0].mxu0
  %v610 = vadd.f32 %v441, %v609
  %v611 = vpop.f32.mrb[0].mxu0
  %612 = vmatprep.mubr.f32.mxu0 0.0
  %613 = vmatmul.mubr.f32.gmra.mrb[0].mxu0 %v449
  %v614 = vpop.f32.mrb[0].mxu0
  %v615 = vadd.f32 %v441, %v614
  %v616 = vpop.f32.mrb[0].mxu0
  %617 = vmatprep.mubr.f32.mxu0 0.0
  %618 = vmatmul.mubr.f32.gmra.mrb[0].mxu0 %v452
  %v619 = vpop.f32.mrb[0].mxu0
  %v620 = vadd.f32 %v441, %v619
  %v621 = vpop.f32.mrb[0].mxu0
  %622 = vmatprep.mubr.f32.mxu0 0.0
  %623 = vmatmul.mubr.f32.gmra.mrb[0].mxu0 %v455
  %v624 = vpop.f32.mrb[0].mxu0
  %v625 = vadd.f32 %v441, %v624
  %v626 = vpop.f32.mrb[0].mxu0
  %627 = vmatprep.mubr.f32.mxu0 0.0
  %628 = vmatmul.mubr.f32.gmra.mrb[0].mxu0 %v458
  %v629 = vpop.f32.mrb[0].mxu0
  %v630 = vadd.f32 %v441, %v629
  %v631 = vpop.f32.mrb[0].mxu0
  %632 = vmatprep.mubr.f32.mxu0 0.0
  %633 = vmatmul.mubr.f32.gmra.mrb[0].mxu0 %v461
  %v634 = vpop.f32.mrb[0].mxu0
  %v635 = vadd.f32 %v441, %v634
  %v636 = vpop.f32.mrb[0].mxu0
  %637 = vmatprep.mubr.f32.mxu0 0.0
  %638 = vmatmul.mubr.f32.gmra.mrb[0].mxu0 %v464
  %v639 = vpop.f32.mrb[0].mxu0
  %v640 = vadd.f32 %v441, %v639
  %v641 = vpop.f32.mrb[0].mxu0
  %642 = vmatprep.mubr.f32.mxu0 0.0
  %643 = vmatmul.mubr.f32.gmra.mrb[0].mxu0 %v467
  %v644 = vpop.f32.mrb[0].mxu0
  %v645 = vadd.f32 %v441, %v644
  %v646 = vpop.f32.mrb[0].mxu0
  %647 = vmatprep.mubr.f32.mxu0 0.0
  %648 = vmatmul.mubr.f32.gmra.mrb[0].mxu0 %v470
  %v649 = vpop.f32.mrb[0].mxu0
  %v650 = vadd.f32 %v441, %v649
  %v651 = vpop.f32.mrb[0].mxu0
  %652 = vmatprep.mubr.f32.mxu0 0.0
  %653 = vmatmul.mubr.f32.gmra.mrb[0].mxu0 %v473
  %v654 = vpop.f32.mrb[0].mxu0
  %v655 = vadd.f32 %v441, %v654
  %v656 = vpop.f32.mrb[0].mxu0
  %657 = vmatprep.mubr.f32.mxu0 0.0
  %658 = vmatmul.mubr.f32.gmra.mrb[0].mxu0 %v476
  %v659 = vpop.f32.mrb[0].mxu0
  %v660 = vadd.f32 %v441, %v659
  %v661 = vpop.f32.mrb[0].mxu0
  %662 = vmatprep.mubr.f32.mxu0 0.0
  %663 = vmatmul.mubr.f32.gmra.mrb[0].mxu0 %v479
  %v664 = vpop.f32.mrb[0].mxu0
  %v665 = vadd.f32 %v441, %v664
  %v666 = vpop.f32.mrb[0].mxu0
  %667 = vmatprep.mubr.f32.mxu0 0.0
  %668 = vmatmul.mubr.f32.gmra.mrb[0].mxu0 %v482
  %v669 = vpop.f32.mrb[0].mxu0
  %v670 = vadd.f32 %v441, %v669
  %v671 = vpop.f32.mrb[0].mxu0
  %672 = vmatprep.mubr.f32.mxu0 0.0
  %673 = vmatmul.mubr.f32.gmra.mrb[0].mxu0 %v485
  %v674 = vpop.f32.mrb[0].mxu0
  %v675 = vadd.f32 %v441, %v674
  %v676 = vpop.f32.mrb[0].mxu0
  %677 = vmatprep.mubr.f32.mxu0 0.0
  %678 = vmatmul.mubr.f32.gmra.mrb[0].mxu0 %v488
  %v679 = vpop.f32.mrb[0].mxu0
  %v680 = vadd.f32 %v441, %v679
  %v681 = vpop.f32.mrb[0].mxu0
  %682 = vmatprep.mubr.f32.mxu0 0.0
  %683 = vmatmul.mubr.f32.gmra.mrb[0].mxu0 %v491
  %v684 = vpop.f32.mrb[0].mxu0
  %v685 = vadd.f32 %v441, %v684
  %v686 = vpop.f32.mrb[0].mxu0
  %687 = vmatprep.mubr.f32.mxu0 0.0
  %688 = vmatmul.mubr.f32.gmra.mrb[0].mxu0 %v494
  %v689 = vpop.f32.mrb[0].mxu0
  %v690 = vadd.f32 %v441, %v689
  %v691 = vpop.f32.mrb[0].mxu0
  %692 = vmatprep.mubr.f32.mxu0 0.0
  %693 = vmatmul.mubr.f32.gmra.mrb[0].mxu0 %v497
  %v694 = vpop.f32.mrb[0].mxu0
  %v695 = vadd.f32 %v441, %v694
  %v696 = vpop.f32.mrb[0].mxu0
  %697 = vmatprep.mubr.f32.mxu0 0.0
  %698 = vmatmul.mubr.f32.gmra.mrb[0].mxu0 %v500
  %v699 = vpop.f32.mrb[0].mxu0
  %v700 = vadd.f32 %v441, %v699
  %v701 = vpop.f32.mrb[0].mxu0
  %702 = vmatprep.mubr.f32.mxu0 0.0
  %703 = vmatmul.mubr.f32.gmra.mrb[0].mxu0 %v503
  %v704 = vpop.f32.mrb[0].mxu0
  %v705 = vadd.f32 %v441, %v704
  %v706 = vpop.f32.mrb[0].mxu0
  %707 = vmatprep.mubr.f32.mxu0 0.0
  %708 = vmatmul.mubr.f32.gmra.mrb[0].mxu0 %v506
  %v709 = vpop.f32.mrb[0].mxu0
  %v710 = vadd.f32 %v441, %v709
  %v711 = vpop.f32.mrb[0].mxu0
  %712 = vmatprep.mubr.f32.mxu0 0.0
  %713 = vmatmul.mubr.f32.gmra.mrb[0].mxu0 %v509
  %v714 = vpop.f32.mrb[0].mxu0
  %v715 = vadd.f32 %v441, %v714
  %v716 = vpop.f32.mrb[0].mxu0
  %717 = vmatprep.mubr.f32.mxu0 0.0
  %718 = vmatmul.mubr.f32.gmra.mrb[0].mxu0 %v512
  %v719 = vpop.f32.mrb[0].mxu0
  %v720 = vadd.f32 %v441, %v719
  %v721 = vpop.f32.mrb[0].mxu0
  %722 = vmatprep.mubr.f32.mxu0 0.0
  %723 = vmatmul.mubr.f32.gmra.mrb[0].mxu0 %v515
  %v724 = vpop.f32.mrb[0].mxu0
  %v725 = vadd.f32 %v441, %v724
  %v726 = vpop.f32.mrb[0].mxu0
  %727 = vmatprep.mubr.f32.mxu0 0.0
  %728 = vmatmul.mubr.f32.gmra.mrb[0].mxu0 %v518
  %v729 = vpop.f32.mrb[0].mxu0
  %v730 = vadd.f32 %v441, %v729
  %v731 = vpop.f32.mrb[0].mxu0
  %732 = vmatprep.mubr.f32.mxu0 0.0
  %733 = vmatmul.mubr.f32.gmra.mrb[0].mxu0 %v521
  %v734 = vpop.f32.mrb[0].mxu0
  %v735 = vadd.f32 %v441, %v734
  %v736 = vpop.f32.mrb[0].mxu0
  %737 = vmatprep.mubr.f32.mxu0 0.0
  %738 = vmatmul.mubr.f32.gmra.mrb[0].mxu0 %v524
  %v739 = vpop.f32.mrb[0].mxu0
  %v740 = vadd.f32 %v441, %v739
  %v741 = vpop.f32.mrb[0].mxu0
  %742 = vmatprep.mubr.f32.mxu0 0.0
  %743 = vmatmul.mubr.f32.gmra.mrb[0].mxu0 %v527
  %v744 = vpop.f32.mrb[0].mxu0
  %v745 = vadd.f32 %v441, %v744
  %v746 = vpop.f32.mrb[0].mxu0
  %747 = vmatprep.mubr.f32.mxu0 0.0
  %748 = vmatmul.mubr.f32.gmra.mrb[0].mxu0 %v530
  %v749 = vpop.f32.mrb[0].mxu0
  %v750 = vadd.f32 %v441, %v749
  %v751 = vpop.f32.mrb[0].mxu0
  %752 = vmatprep.mubr.f32.mxu0 0.0
  %753 = vmatmul.mubr.f32.gmra.mrb[0].mxu0 %v533
  %v754 = vpop.f32.mrb[0].mxu0
  %v755 = vadd.f32 %v441, %v754
  %v756 = vpop.f32.mrb[0].mxu0
  %757 = vmatprep.mubr.f32.mxu0 0.0
  %758 = vmatmul.mubr.f32.gmra.mrb[0].mxu0 %v536
  %v759 = vpop.f32.mrb[0].mxu0
  %v760 = vadd.f32 %v441, %v759
  %v761 = vpop.f32.mrb[0].mxu0
  %762 = vdwg.mxu0
  %v763 = vmax.f32 %v280, 0.0
  %v764 = vmax.f32 %v285, 0.0
  %v765 = vmax.f32 %v290, 0.0
  %v766 = vmax.f32 %v295, 0.0
  %v767 = vmax.f32 %v300, 0.0
  %v768 = vmax.f32 %v305, 0.0
  %v769 = vmax.f32 %v310, 0.0
  %v770 = vmax.f32 %v315, 0.0
  %v771 = vmax.f32 %v320, 0.0
  %v772 = vmax.f32 %v325, 0.0
  %v773 = vmax.f32 %v330, 0.0
  %v774 = vmax.f32 %v335, 0.0
  %v775 = vmax.f32 %v340, 0.0
  %v776 = vmax.f32 %v345, 0.0
  %v777 = vmax.f32 %v350, 0.0
  %v778 = vmax.f32 %v355, 0.0
  %v779 = vmax.f32 %v360, 0.0
  %v780 = vmax.f32 %v365, 0.0
  %v781 = vmax.f32 %v370, 0.0
  %v782 = vmax.f32 %v375, 0.0
  %v783 = vmax.f32 %v380, 0.0
  %v784 = vmax.f32 %v385, 0.0
  %v785 = vmax.f32 %v390, 0.0
  %v786 = vmax.f32 %v395, 0.0
  %v787 = vmax.f32 %v400, 0.0
  %v788 = vmax.f32 %v405, 0.0
  %v789 = vmax.f32 %v410, 0.0
  %v790 = vmax.f32 %v415, 0.0
  %v791 = vmax.f32 %v420, 0.0
  %v792 = vmax.f32 %v425, 0.0
  %v793 = vmax.f32 %v430, 0.0
  %v794 = vmax.f32 %v435, 0.0
  %v795 = vmax.f32 %v605, 0.0
  %v796 = vmax.f32 %v610, 0.0
  %v797 = vmax.f32 %v615, 0.0
  %v798 = vmax.f32 %v620, 0.0
  %v799 = vmax.f32 %v625, 0.0
  %v800 = vmax.f32 %v630, 0.0
  %v801 = vmax.f32 %v635, 0.0
  %v802 = vmax.f32 %v640, 0.0
  %v803 = vmax.f32 %v645, 0.0
  %v804 = vmax.f32 %v650, 0.0
  %v805 = vmax.f32 %v655, 0.0
  %v806 = vmax.f32 %v660, 0.0
  %v807 = vmax.f32 %v665, 0.0
  %v808 = vmax.f32 %v670, 0.0
  %v809 = vmax.f32 %v675, 0.0
  %v810 = vmax.f32 %v680, 0.0
  %v811 = vmax.f32 %v685, 0.0
  %v812 = vmax.f32 %v690, 0.0
  %v813 = vmax.f32 %v695, 0.0
  %v814 = vmax.f32 %v700, 0.0
  %v815 = vmax.f32 %v705, 0.0
  %v816 = vmax.f32 %v710, 0.0
  %v817 = vmax.f32 %v715, 0.0
  %v818 = vmax.f32 %v720, 0.0
  %v819 = vmax.f32 %v725, 0.0
  %v820 = vmax.f32 %v730, 0.0
  %v821 = vmax.f32 %v735, 0.0
  %v822 = vmax.f32 %v740, 0.0
  %v823 = vmax.f32 %v745, 0.0
  %v824 = vmax.f32 %v750, 0.0
  %v825 = vmax.f32 %v755, 0.0
  %v826 = vmax.f32 %v760, 0.0
  %v827 = vpack.c.bf16 %v764, %v763
  %v828 = vpack.c.bf16 %v766, %v765
  %v829 = vpack.c.bf16 %v768, %v767
  %v830 = vpack.c.bf16 %v770, %v769
  %v831 = vpack.c.bf16 %v772, %v771
  %v832 = vpack.c.bf16 %v774, %v773
  %v833 = vpack.c.bf16 %v776, %v775
  %v834 = vpack.c.bf16 %v778, %v777
  %v835 = vpack.c.bf16 %v780, %v779
  %v836 = vpack.c.bf16 %v782, %v781
  %v837 = vpack.c.bf16 %v784, %v783
  %v838 = vpack.c.bf16 %v786, %v785
  %v839 = vpack.c.bf16 %v788, %v787
  %v840 = vpack.c.bf16 %v790, %v789
  %v841 = vpack.c.bf16 %v792, %v791
  %v842 = vpack.c.bf16 %v794, %v793
  %v843 = vpack.c.bf16 %v796, %v795
  %v844 = vpack.c.bf16 %v798, %v797
  %v845 = vpack.c.bf16 %v800, %v799
  %v846 = vpack.c.bf16 %v802, %v801
  %v847 = vpack.c.bf16 %v804, %v803
  %v848 = vpack.c.bf16 %v806, %v805
  %v849 = vpack.c.bf16 %v808, %v807
  %v850 = vpack.c.bf16 %v810, %v809
  %v851 = vpack.c.bf16 %v812, %v811
  %v852 = vpack.c.bf16 %v814, %v813
  %v853 = vpack.c.bf16 %v816, %v815
  %v854 = vpack.c.bf16 %v818, %v817
  %v855 = vpack.c.bf16 %v820, %v819
  %v856 = vpack.c.bf16 %v822, %v821
  %v857 = vpack.c.bf16 %v824, %v823
  %v858 = vpack.c.bf16 %v826, %v825
  %v859 = vld [vmem:[%s3] sm:$0xf]
  %v860 = vld [vmem:[%s3 + $0x4] sm:$0xf]
  %v861 = vld [vmem:[%s3 + $0x8] sm:$0xf]
  %v862 = vld [vmem:[%s3 + $0xc] sm:$0xf]
  %v863 = vld [vmem:[%s3 + $0x10] sm:$0xf]
  %v864 = vld [vmem:[%s3 + $0x14] sm:$0xf]
  %v865 = vld [vmem:[%s3 + $0x18] sm:$0xf]
  %v866 = vld [vmem:[%s3 + $0x1c] sm:$0xf]
  %v867 = vld [vmem:[%s4] sm:$0x1]
  %v869 = vlaneseq
  %v870 = vshrl.u32 %v869, 7
  %v871 = vsub.s32 0, %v870
  %v872 = vrot.slane %v867, %v871
  %v882 = vunpack.c.l.b16 %v859
  %v883 = vunpack.c.l.b16 %v860
  %v884 = vunpack.c.l.b16 %v861
  %v885 = vunpack.c.l.b16 %v862
  %v886 = vunpack.c.l.b16 %v863
  %v887 = vunpack.c.l.b16 %v864
  %v888 = vunpack.c.l.b16 %v865
  %v889 = vunpack.c.l.b16 %v866
  %v890 = vpack.c.b16 %v883, %v882
  %v891 = vpack.c.b16 %v885, %v884
  %v892 = vpack.c.b16 %v887, %v886
  %v893 = vpack.c.b16 %v889, %v888
  %vm898 = vcmask 523264
  %v900 = vsel %vm898, %v827, 0
  %v903 = vsel %vm898, %v828, 0
  %v906 = vsel %vm898, %v829, 0
  %v909 = vsel %vm898, %v830, 0
  %v912 = vsel %vm898, %v831, 0
  %v915 = vsel %vm898, %v832, 0
  %v918 = vsel %vm898, %v833, 0
  %v921 = vsel %vm898, %v834, 0
  %v924 = vsel %vm898, %v835, 0
  %v927 = vsel %vm898, %v836, 0
  %v930 = vsel %vm898, %v837, 0
  %v933 = vsel %vm898, %v838, 0
  %v936 = vsel %vm898, %v839, 0
  %v939 = vsel %vm898, %v840, 0
  %v942 = vsel %vm898, %v841, 0
  %v945 = vsel %vm898, %v842, 0
  %v948 = vsel %vm898, %v843, 0
  %v951 = vsel %vm898, %v844, 0
  %v954 = vsel %vm898, %v845, 0
  %v957 = vsel %vm898, %v846, 0
  %v960 = vsel %vm898, %v847, 0
  %v963 = vsel %vm898, %v848, 0
  %v966 = vsel %vm898, %v849, 0
  %v969 = vsel %vm898, %v850, 0
  %v972 = vsel %vm898, %v851, 0
  %v975 = vsel %vm898, %v852, 0
  %v978 = vsel %vm898, %v853, 0
  %v981 = vsel %vm898, %v854, 0
  %v984 = vsel %vm898, %v855, 0
  %v987 = vsel %vm898, %v856, 0
  %v990 = vsel %vm898, %v857, 0
  %v993 = vsel %vm898, %v858, 0
  %995 = vmatprep.subr.bf16.mxu0 0
  %996 = vmatpush1.bf16.msra.mxu0 %v890
  %997 = vmatprep.subr.bf16.mxu0 0
  %998 = vmatpush1.bf16.msra.mxu0 %v891
  %999 = vmatprep.subr.bf16.mxu0 0
  %1000 = vmatpush1.bf16.msra.mxu0 %v892
  %1001 = vmatprep.subr.bf16.mxu0 0
  %1002 = vmatpush1.bf16.msra.mxu0 %v893
  %1003 = vmatprep.subr.bf16.mxu0 0
  %1004 = vmatpush1.bf16.msra.mxu0 0
  %1005 = vmatprep.subr.bf16.mxu0 0
  %1006 = vmatpush1.bf16.msra.mxu0 0
  %1007 = vmatprep.subr.bf16.mxu0 0
  %1008 = vmatpush1.bf16.msra.mxu0 0
  %1009 = vmatprep.subr.bf16.mxu0 0
  %1010 = vmatpush1.bf16.msra.mxu0 0
  %1011 = vmatprep.subr.bf16.mxu0 0
  %1012 = vmatpush1.bf16.msra.mxu0 0
  %1013 = vmatprep.subr.bf16.mxu0 0
  %1014 = vmatpush1.bf16.msra.mxu0 0
  %1015 = vmatprep.subr.bf16.mxu0 0
  %1016 = vmatpush1.bf16.msra.mxu0 0
  %1017 = vmatprep.subr.bf16.mxu0 0
  %1018 = vmatpush1.bf16.msra.mxu0 0
  %1019 = vmatprep.subr.bf16.mxu0 0
  %1020 = vmatpush1.bf16.msra.mxu0 0
  %1021 = vmatprep.subr.bf16.mxu0 0
  %1022 = vmatpush1.bf16.msra.mxu0 0
  %1023 = vmatprep.subr.bf16.mxu0 0
  %1024 = vmatpush1.bf16.msra.mxu0 0
  %1025 = vmatprep.subr.bf16.mxu0 0
  %1026 = vmatpush1.bf16.msra.mxu0 0
  %1027 = vmatprep.mubr.bf16.mxu0 0
  %1028 = vmatmul.mubr.bf16.gmra.mrb[0].mxu0 %v900
  %v1029 = vpop.f32.mrb[0].mxu0
  %v1030 = vadd.f32 %v872, %v1029
  %v1031 = vpop.f32.mrb[0].mxu0
  %v1032 = vpop.f32.mrb[0].mxu0
  %v1033 = vadd.f32 %v872, %v1032
  %v1034 = vpop.f32.mrb[0].mxu0
  %1035 = vmatprep.mubr.bf16.mxu0 0
  %1036 = vmatmul.mubr.bf16.gmra.mrb[0].mxu0 %v903
  %v1037 = vpop.f32.mrb[0].mxu0
  %v1038 = vadd.f32 %v872, %v1037
  %v1039 = vpop.f32.mrb[0].mxu0
  %v1040 = vpop.f32.mrb[0].mxu0
  %v1041 = vadd.f32 %v872, %v1040
  %v1042 = vpop.f32.mrb[0].mxu0
  %1043 = vmatprep.mubr.bf16.mxu0 0
  %1044 = vmatmul.mubr.bf16.gmra.mrb[0].mxu0 %v906
  %v1045 = vpop.f32.mrb[0].mxu0
  %v1046 = vadd.f32 %v872, %v1045
  %v1047 = vpop.f32.mrb[0].mxu0
  %v1048 = vpop.f32.mrb[0].mxu0
  %v1049 = vadd.f32 %v872, %v1048
  %v1050 = vpop.f32.mrb[0].mxu0
  %1051 = vmatprep.mubr.bf16.mxu0 0
  %1052 = vmatmul.mubr.bf16.gmra.mrb[0].mxu0 %v909
  %v1053 = vpop.f32.mrb[0].mxu0
  %v1054 = vadd.f32 %v872, %v1053
  %v1055 = vpop.f32.mrb[0].mxu0
  %v1056 = vpop.f32.mrb[0].mxu0
  %v1057 = vadd.f32 %v872, %v1056
  %v1058 = vpop.f32.mrb[0].mxu0
  %1059 = vmatprep.mubr.bf16.mxu0 0
  %1060 = vmatmul.mubr.bf16.gmra.mrb[0].mxu0 %v912
  %v1061 = vpop.f32.mrb[0].mxu0
  %v1062 = vadd.f32 %v872, %v1061
  %v1063 = vpop.f32.mrb[0].mxu0
  %v1064 = vpop.f32.mrb[0].mxu0
  %v1065 = vadd.f32 %v872, %v1064
  %v1066 = vpop.f32.mrb[0].mxu0
  %1067 = vmatprep.mubr.bf16.mxu0 0
  %1068 = vmatmul.mubr.bf16.gmra.mrb[0].mxu0 %v915
  %v1069 = vpop.f32.mrb[0].mxu0
  %v1070 = vadd.f32 %v872, %v1069
  %v1071 = vpop.f32.mrb[0].mxu0
  %v1072 = vpop.f32.mrb[0].mxu0
  %v1073 = vadd.f32 %v872, %v1072
  %v1074 = vpop.f32.mrb[0].mxu0
  %1075 = vmatprep.mubr.bf16.mxu0 0
  %1076 = vmatmul.mubr.bf16.gmra.mrb[0].mxu0 %v918
  %v1077 = vpop.f32.mrb[0].mxu0
  %v1078 = vadd.f32 %v872, %v1077
  %v1079 = vpop.f32.mrb[0].mxu0
  %v1080 = vpop.f32.mrb[0].mxu0
  %v1081 = vadd.f32 %v872, %v1080
  %v1082 = vpop.f32.mrb[0].mxu0
  %1083 = vmatprep.mubr.bf16.mxu0 0
  %1084 = vmatmul.mubr.bf16.gmra.mrb[0].mxu0 %v921
  %v1085 = vpop.f32.mrb[0].mxu0
  %v1086 = vadd.f32 %v872, %v1085
  %v1087 = vpop.f32.mrb[0].mxu0
  %v1088 = vpop.f32.mrb[0].mxu0
  %v1089 = vadd.f32 %v872, %v1088
  %v1090 = vpop.f32.mrb[0].mxu0
  %1091 = vmatprep.mubr.bf16.mxu0 0
  %1092 = vmatmul.mubr.bf16.gmra.mrb[0].mxu0 %v924
  %v1093 = vpop.f32.mrb[0].mxu0
  %v1094 = vadd.f32 %v872, %v1093
  %v1095 = vpop.f32.mrb[0].mxu0
  %v1096 = vpop.f32.mrb[0].mxu0
  %v1097 = vadd.f32 %v872, %v1096
  %v1098 = vpop.f32.mrb[0].mxu0
  %1099 = vmatprep.mubr.bf16.mxu0 0
  %1100 = vmatmul.mubr.bf16.gmra.mrb[0].mxu0 %v927
  %v1101 = vpop.f32.mrb[0].mxu0
  %v1102 = vadd.f32 %v872, %v1101
  %v1103 = vpop.f32.mrb[0].mxu0
  %v1104 = vpop.f32.mrb[0].mxu0
  %v1105 = vadd.f32 %v872, %v1104
  %v1106 = vpop.f32.mrb[0].mxu0
  %1107 = vmatprep.mubr.bf16.mxu0 0
  %1108 = vmatmul.mubr.bf16.gmra.mrb[0].mxu0 %v930
  %v1109 = vpop.f32.mrb[0].mxu0
  %v1110 = vadd.f32 %v872, %v1109
  %v1111 = vpop.f32.mrb[0].mxu0
  %v1112 = vpop.f32.mrb[0].mxu0
  %v1113 = vadd.f32 %v872, %v1112
  %v1114 = vpop.f32.mrb[0].mxu0
  %1115 = vmatprep.mubr.bf16.mxu0 0
  %1116 = vmatmul.mubr.bf16.gmra.mrb[0].mxu0 %v933
  %v1117 = vpop.f32.mrb[0].mxu0
  %v1118 = vadd.f32 %v872, %v1117
  %v1119 = vpop.f32.mrb[0].mxu0
  %v1120 = vpop.f32.mrb[0].mxu0
  %v1121 = vadd.f32 %v872, %v1120
  %v1122 = vpop.f32.mrb[0].mxu0
  %1123 = vmatprep.mubr.bf16.mxu0 0
  %1124 = vmatmul.mubr.bf16.gmra.mrb[0].mxu0 %v936
  %v1125 = vpop.f32.mrb[0].mxu0
  %v1126 = vadd.f32 %v872, %v1125
  %v1127 = vpop.f32.mrb[0].mxu0
  %v1128 = vpop.f32.mrb[0].mxu0
  %v1129 = vadd.f32 %v872, %v1128
  %v1130 = vpop.f32.mrb[0].mxu0
  %1131 = vmatprep.mubr.bf16.mxu0 0
  %1132 = vmatmul.mubr.bf16.gmra.mrb[0].mxu0 %v939
  %v1133 = vpop.f32.mrb[0].mxu0
  %v1134 = vadd.f32 %v872, %v1133
  %v1135 = vpop.f32.mrb[0].mxu0
  %v1136 = vpop.f32.mrb[0].mxu0
  %v1137 = vadd.f32 %v872, %v1136
  %v1138 = vpop.f32.mrb[0].mxu0
  %1139 = vmatprep.mubr.bf16.mxu0 0
  %1140 = vmatmul.mubr.bf16.gmra.mrb[0].mxu0 %v942
  %v1141 = vpop.f32.mrb[0].mxu0
  %v1142 = vadd.f32 %v872, %v1141
  %v1143 = vpop.f32.mrb[0].mxu0
  %v1144 = vpop.f32.mrb[0].mxu0
  %v1145 = vadd.f32 %v872, %v1144
  %v1146 = vpop.f32.mrb[0].mxu0
  %1147 = vmatprep.mubr.bf16.mxu0 0
  %1148 = vmatmul.mubr.bf16.gmra.mrb[0].mxu0 %v945
  %v1149 = vpop.f32.mrb[0].mxu0
  %v1150 = vadd.f32 %v872, %v1149
  %v1151 = vpop.f32.mrb[0].mxu0
  %v1152 = vpop.f32.mrb[0].mxu0
  %v1153 = vadd.f32 %v872, %v1152
  %v1154 = vpop.f32.mrb[0].mxu0
  %1155 = vmatprep.mubr.bf16.mxu0 0
  %1156 = vmatmul.mubr.bf16.gmra.mrb[0].mxu0 %v948
  %v1157 = vpop.f32.mrb[0].mxu0
  %v1158 = vadd.f32 %v872, %v1157
  %v1159 = vpop.f32.mrb[0].mxu0
  %v1160 = vpop.f32.mrb[0].mxu0
  %v1161 = vadd.f32 %v872, %v1160
  %v1162 = vpop.f32.mrb[0].mxu0
  %1163 = vmatprep.mubr.bf16.mxu0 0
  %1164 = vmatmul.mubr.bf16.gmra.mrb[0].mxu0 %v951
  %v1165 = vpop.f32.mrb[0].mxu0
  %v1166 = vadd.f32 %v872, %v1165
  %v1167 = vpop.f32.mrb[0].mxu0
  %v1168 = vpop.f32.mrb[0].mxu0
  %v1169 = vadd.f32 %v872, %v1168
  %v1170 = vpop.f32.mrb[0].mxu0
  %1171 = vmatprep.mubr.bf16.mxu0 0
  %1172 = vmatmul.mubr.bf16.gmra.mrb[0].mxu0 %v954
  %v1173 = vpop.f32.mrb[0].mxu0
  %v1174 = vadd.f32 %v872, %v1173
  %v1175 = vpop.f32.mrb[0].mxu0
  %v1176 = vpop.f32.mrb[0].mxu0
  %v1177 = vadd.f32 %v872, %v1176
  %v1178 = vpop.f32.mrb[0].mxu0
  %1179 = vmatprep.mubr.bf16.mxu0 0
  %1180 = vmatmul.mubr.bf16.gmra.mrb[0].mxu0 %v957
  %v1181 = vpop.f32.mrb[0].mxu0
  %v1182 = vadd.f32 %v872, %v1181
  %v1183 = vpop.f32.mrb[0].mxu0
  %v1184 = vpop.f32.mrb[0].mxu0
  %v1185 = vadd.f32 %v872, %v1184
  %v1186 = vpop.f32.mrb[0].mxu0
  %1187 = vmatprep.mubr.bf16.mxu0 0
  %1188 = vmatmul.mubr.bf16.gmra.mrb[0].mxu0 %v960
  %v1189 = vpop.f32.mrb[0].mxu0
  %v1190 = vadd.f32 %v872, %v1189
  %v1191 = vpop.f32.mrb[0].mxu0
  %v1192 = vpop.f32.mrb[0].mxu0
  %v1193 = vadd.f32 %v872, %v1192
  %v1194 = vpop.f32.mrb[0].mxu0
  %1195 = vmatprep.mubr.bf16.mxu0 0
  %1196 = vmatmul.mubr.bf16.gmra.mrb[0].mxu0 %v963
  %v1197 = vpop.f32.mrb[0].mxu0
  %v1198 = vadd.f32 %v872, %v1197
  %v1199 = vpop.f32.mrb[0].mxu0
  %v1200 = vpop.f32.mrb[0].mxu0
  %v1201 = vadd.f32 %v872, %v1200
  %v1202 = vpop.f32.mrb[0].mxu0
  %1203 = vmatprep.mubr.bf16.mxu0 0
  %1204 = vmatmul.mubr.bf16.gmra.mrb[0].mxu0 %v966
  %v1205 = vpop.f32.mrb[0].mxu0
  %v1206 = vadd.f32 %v872, %v1205
  %v1207 = vpop.f32.mrb[0].mxu0
  %v1208 = vpop.f32.mrb[0].mxu0
  %v1209 = vadd.f32 %v872, %v1208
  %v1210 = vpop.f32.mrb[0].mxu0
  %1211 = vmatprep.mubr.bf16.mxu0 0
  %1212 = vmatmul.mubr.bf16.gmra.mrb[0].mxu0 %v969
  %v1213 = vpop.f32.mrb[0].mxu0
  %v1214 = vadd.f32 %v872, %v1213
  %v1215 = vpop.f32.mrb[0].mxu0
  %v1216 = vpop.f32.mrb[0].mxu0
  %v1217 = vadd.f32 %v872, %v1216
  %v1218 = vpop.f32.mrb[0].mxu0
  %1219 = vmatprep.mubr.bf16.mxu0 0
  %1220 = vmatmul.mubr.bf16.gmra.mrb[0].mxu0 %v972
  %v1221 = vpop.f32.mrb[0].mxu0
  %v1222 = vadd.f32 %v872, %v1221
  %v1223 = vpop.f32.mrb[0].mxu0
  %v1224 = vpop.f32.mrb[0].mxu0
  %v1225 = vadd.f32 %v872, %v1224
  %v1226 = vpop.f32.mrb[0].mxu0
  %1227 = vmatprep.mubr.bf16.mxu0 0
  %1228 = vmatmul.mubr.bf16.gmra.mrb[0].mxu0 %v975
  %v1229 = vpop.f32.mrb[0].mxu0
  %v1230 = vadd.f32 %v872, %v1229
  %v1231 = vpop.f32.mrb[0].mxu0
  %v1232 = vpop.f32.mrb[0].mxu0
  %v1233 = vadd.f32 %v872, %v1232
  %v1234 = vpop.f32.mrb[0].mxu0
  %1235 = vmatprep.mubr.bf16.mxu0 0
  %1236 = vmatmul.mubr.bf16.gmra.mrb[0].mxu0 %v978
  %v1237 = vpop.f32.mrb[0].mxu0
  %v1238 = vadd.f32 %v872, %v1237
  %v1239 = vpop.f32.mrb[0].mxu0
  %v1240 = vpop.f32.mrb[0].mxu0
  %v1241 = vadd.f32 %v872, %v1240
  %v1242 = vpop.f32.mrb[0].mxu0
  %1243 = vmatprep.mubr.bf16.mxu0 0
  %1244 = vmatmul.mubr.bf16.gmra.mrb[0].mxu0 %v981
  %v1245 = vpop.f32.mrb[0].mxu0
  %v1246 = vadd.f32 %v872, %v1245
  %v1247 = vpop.f32.mrb[0].mxu0
  %v1248 = vpop.f32.mrb[0].mxu0
  %v1249 = vadd.f32 %v872, %v1248
  %v1250 = vpop.f32.mrb[0].mxu0
  %1251 = vmatprep.mubr.bf16.mxu0 0
  %1252 = vmatmul.mubr.bf16.gmra.mrb[0].mxu0 %v984
  %v1253 = vpop.f32.mrb[0].mxu0
  %v1254 = vadd.f32 %v872, %v1253
  %v1255 = vpop.f32.mrb[0].mxu0
  %v1256 = vpop.f32.mrb[0].mxu0
  %v1257 = vadd.f32 %v872, %v1256
  %v1258 = vpop.f32.mrb[0].mxu0
  %1259 = vmatprep.mubr.bf16.mxu0 0
  %1260 = vmatmul.mubr.bf16.gmra.mrb[0].mxu0 %v987
  %v1261 = vpop.f32.mrb[0].mxu0
  %v1262 = vadd.f32 %v872, %v1261
  %v1263 = vpop.f32.mrb[0].mxu0
  %v1264 = vpop.f32.mrb[0].mxu0
  %v1265 = vadd.f32 %v872, %v1264
  %v1266 = vpop.f32.mrb[0].mxu0
  %1267 = vmatprep.mubr.bf16.mxu0 0
  %1268 = vmatmul.mubr.bf16.gmra.mrb[0].mxu0 %v990
  %v1269 = vpop.f32.mrb[0].mxu0
  %v1270 = vadd.f32 %v872, %v1269
  %v1271 = vpop.f32.mrb[0].mxu0
  %v1272 = vpop.f32.mrb[0].mxu0
  %v1273 = vadd.f32 %v872, %v1272
  %v1274 = vpop.f32.mrb[0].mxu0
  %1275 = vmatprep.mubr.bf16.mxu0 0
  %1276 = vmatmul.mubr.bf16.gmra.mrb[0].mxu0 %v993
  %v1277 = vpop.f32.mrb[0].mxu0
  %v1278 = vadd.f32 %v872, %v1277
  %v1279 = vpop.f32.mrb[0].mxu0
  %v1280 = vpop.f32.mrb[0].mxu0
  %v1281 = vadd.f32 %v872, %v1280
  %v1282 = vpop.f32.mrb[0].mxu0
  %1283 = vdwg.mxu0
  %v1284 = vmax.f32 %v1030, 0.0
  %v1285 = vmax.f32 %v1033, 0.0
  %v1286 = vmax.f32 %v1038, 0.0
  %v1287 = vmax.f32 %v1041, 0.0
  %v1288 = vmax.f32 %v1046, 0.0
  %v1289 = vmax.f32 %v1049, 0.0
  %v1290 = vmax.f32 %v1054, 0.0
  %v1291 = vmax.f32 %v1057, 0.0
  %v1292 = vmax.f32 %v1062, 0.0
  %v1293 = vmax.f32 %v1065, 0.0
  %v1294 = vmax.f32 %v1070, 0.0
  %v1295 = vmax.f32 %v1073, 0.0
  %v1296 = vmax.f32 %v1078, 0.0
  %v1297 = vmax.f32 %v1081, 0.0
  %v1298 = vmax.f32 %v1086, 0.0
  %v1299 = vmax.f32 %v1089, 0.0
  %v1300 = vmax.f32 %v1094, 0.0
  %v1301 = vmax.f32 %v1097, 0.0
  %v1302 = vmax.f32 %v1102, 0.0
  %v1303 = vmax.f32 %v1105, 0.0
  %v1304 = vmax.f32 %v1110, 0.0
  %v1305 = vmax.f32 %v1113, 0.0
  %v1306 = vmax.f32 %v1118, 0.0
  %v1307 = vmax.f32 %v1121, 0.0
  %v1308 = vmax.f32 %v1126, 0.0
  %v1309 = vmax.f32 %v1129, 0.0
  %v1310 = vmax.f32 %v1134, 0.0
  %v1311 = vmax.f32 %v1137, 0.0
  %v1312 = vmax.f32 %v1142, 0.0
  %v1313 = vmax.f32 %v1145, 0.0
  %v1314 = vmax.f32 %v1150, 0.0
  %v1315 = vmax.f32 %v1153, 0.0
  %v1316 = vmax.f32 %v1158, 0.0
  %v1317 = vmax.f32 %v1161, 0.0
  %v1318 = vmax.f32 %v1166, 0.0
  %v1319 = vmax.f32 %v1169, 0.0
  %v1320 = vmax.f32 %v1174, 0.0
  %v1321 = vmax.f32 %v1177, 0.0
  %v1322 = vmax.f32 %v1182, 0.0
  %v1323 = vmax.f32 %v1185, 0.0
  %v1324 = vmax.f32 %v1190, 0.0
  %v1325 = vmax.f32 %v1193, 0.0
  %v1326 = vmax.f32 %v1198, 0.0
  %v1327 = vmax.f32 %v1201, 0.0
  %v1328 = vmax.f32 %v1206, 0.0
  %v1329 = vmax.f32 %v1209, 0.0
  %v1330 = vmax.f32 %v1214, 0.0
  %v1331 = vmax.f32 %v1217, 0.0
  %v1332 = vmax.f32 %v1222, 0.0
  %v1333 = vmax.f32 %v1225, 0.0
  %v1334 = vmax.f32 %v1230, 0.0
  %v1335 = vmax.f32 %v1233, 0.0
  %v1336 = vmax.f32 %v1238, 0.0
  %v1337 = vmax.f32 %v1241, 0.0
  %v1338 = vmax.f32 %v1246, 0.0
  %v1339 = vmax.f32 %v1249, 0.0
  %v1340 = vmax.f32 %v1254, 0.0
  %v1341 = vmax.f32 %v1257, 0.0
  %v1342 = vmax.f32 %v1262, 0.0
  %v1343 = vmax.f32 %v1265, 0.0
  %v1344 = vmax.f32 %v1270, 0.0
  %v1345 = vmax.f32 %v1273, 0.0
  %v1346 = vmax.f32 %v1278, 0.0
  %v1347 = vmax.f32 %v1281, 0.0
  %v1348 = vpack.c.bf16 %v1285, %v1284
  %v1349 = vpack.c.bf16 %v1287, %v1286
  %v1350 = vpack.c.bf16 %v1289, %v1288
  %v1351 = vpack.c.bf16 %v1291, %v1290
  %v1352 = vpack.c.bf16 %v1293, %v1292
  %v1353 = vpack.c.bf16 %v1295, %v1294
  %v1354 = vpack.c.bf16 %v1297, %v1296
  %v1355 = vpack.c.bf16 %v1299, %v1298
  %v1356 = vpack.c.bf16 %v1301, %v1300
  %v1357 = vpack.c.bf16 %v1303, %v1302
  %v1358 = vpack.c.bf16 %v1305, %v1304
  %v1359 = vpack.c.bf16 %v1307, %v1306
  %v1360 = vpack.c.bf16 %v1309, %v1308
  %v1361 = vpack.c.bf16 %v1311, %v1310
  %v1362 = vpack.c.bf16 %v1313, %v1312
  %v1363 = vpack.c.bf16 %v1315, %v1314
  %v1364 = vpack.c.bf16 %v1317, %v1316
  %v1365 = vpack.c.bf16 %v1319, %v1318
  %v1366 = vpack.c.bf16 %v1321, %v1320
  %v1367 = vpack.c.bf16 %v1323, %v1322
  %v1368 = vpack.c.bf16 %v1325, %v1324
  %v1369 = vpack.c.bf16 %v1327, %v1326
  %v1370 = vpack.c.bf16 %v1329, %v1328
  %v1371 = vpack.c.bf16 %v1331, %v1330
  %v1372 = vpack.c.bf16 %v1333, %v1332
  %v1373 = vpack.c.bf16 %v1335, %v1334
  %v1374 = vpack.c.bf16 %v1337, %v1336
  %v1375 = vpack.c.bf16 %v1339, %v1338
  %v1376 = vpack.c.bf16 %v1341, %v1340
  %v1377 = vpack.c.bf16 %v1343, %v1342
  %v1378 = vpack.c.bf16 %v1345, %v1344
  %v1379 = vpack.c.bf16 %v1347, %v1346
  %v1380 = vld [vmem:[%s5] sm:$0xff]
  %v1381 = vld [vmem:[%s5 + $0x8] sm:$0xff]
  %v1382 = vld [vmem:[%s5 + $0x10] sm:$0xff]
  %v1383 = vld [vmem:[%s5 + $0x18] sm:$0xff]
  %v1384 = vld [vmem:[%s5 + $0x20] sm:$0xff]
  %v1385 = vld [vmem:[%s5 + $0x28] sm:$0xff]
  %v1386 = vld [vmem:[%s5 + $0x30] sm:$0xff]
  %v1387 = vld [vmem:[%s5 + $0x38] sm:$0xff]
  %v1388 = vld [vmem:[%s5 + $0x40] sm:$0xff]
  %v1389 = vld [vmem:[%s5 + $0x48] sm:$0xff]
  %v1390 = vld [vmem:[%s5 + $0x50] sm:$0xff]
  %v1391 = vld [vmem:[%s5 + $0x58] sm:$0xff]
  %v1392 = vld [vmem:[%s5 + $0x60] sm:$0xff]
  %v1393 = vld [vmem:[%s5 + $0x68] sm:$0xff]
  %v1394 = vld [vmem:[%s5 + $0x70] sm:$0xff]
  %v1395 = vld [vmem:[%s5 + $0x78] sm:$0xff]
  %v1396 = vld [vmem:[%s5 + $0x80] sm:$0xff]
  %v1397 = vld [vmem:[%s5 + $0x88] sm:$0xff]
  %v1398 = vld [vmem:[%s5 + $0x90] sm:$0xff]
  %v1399 = vld [vmem:[%s5 + $0x98] sm:$0xff]
  %v1400 = vld [vmem:[%s5 + $0xa0] sm:$0xff]
  %v1401 = vld [vmem:[%s5 + $0xa8] sm:$0xff]
  %v1402 = vld [vmem:[%s5 + $0xb0] sm:$0xff]
  %v1403 = vld [vmem:[%s5 + $0xb8] sm:$0xff]
  %v1404 = vld [vmem:[%s5 + $0xc0] sm:$0xff]
  %v1405 = vld [vmem:[%s5 + $0xc8] sm:$0xff]
  %v1406 = vld [vmem:[%s5 + $0xd0] sm:$0xff]
  %v1407 = vld [vmem:[%s5 + $0xd8] sm:$0xff]
  %v1408 = vld [vmem:[%s5 + $0xe0] sm:$0xff]
  %v1409 = vld [vmem:[%s5 + $0xe8] sm:$0xff]
  %v1410 = vld [vmem:[%s5 + $0xf0] sm:$0xff]
  %v1411 = vld [vmem:[%s5 + $0xf8] sm:$0xff]
  %v1412 = vld [vmem:[%s5 + $0x100] sm:$0xff]
  %v1413 = vld [vmem:[%s5 + $0x108] sm:$0xff]
  %v1414 = vld [vmem:[%s5 + $0x110] sm:$0xff]
  %v1415 = vld [vmem:[%s5 + $0x118] sm:$0xff]
  %v1416 = vld [vmem:[%s5 + $0x120] sm:$0xff]
  %v1417 = vld [vmem:[%s5 + $0x128] sm:$0xff]
  %v1418 = vld [vmem:[%s5 + $0x130] sm:$0xff]
  %v1419 = vld [vmem:[%s5 + $0x138] sm:$0xff]
  %v1420 = vld [vmem:[%s5 + $0x140] sm:$0xff]
  %v1421 = vld [vmem:[%s5 + $0x148] sm:$0xff]
  %v1422 = vld [vmem:[%s5 + $0x150] sm:$0xff]
  %v1423 = vld [vmem:[%s5 + $0x158] sm:$0xff]
  %v1424 = vld [vmem:[%s5 + $0x160] sm:$0xff]
  %v1425 = vld [vmem:[%s5 + $0x168] sm:$0xff]
  %v1426 = vld [vmem:[%s5 + $0x170] sm:$0xff]
  %v1427 = vld [vmem:[%s5 + $0x178] sm:$0xff]
  %v1428 = vld [vmem:[%s5 + $0x180] sm:$0xff]
  %v1429 = vld [vmem:[%s5 + $0x188] sm:$0xff]
  %v1430 = vld [vmem:[%s5 + $0x190] sm:$0xff]
  %v1431 = vld [vmem:[%s5 + $0x198] sm:$0xff]
  %v1432 = vld [vmem:[%s5 + $0x1a0] sm:$0xff]
  %v1433 = vld [vmem:[%s5 + $0x1a8] sm:$0xff]
  %v1434 = vld [vmem:[%s5 + $0x1b0] sm:$0xff]
  %v1435 = vld [vmem:[%s5 + $0x1b8] sm:$0xff]
  %v1436 = vld [vmem:[%s5 + $0x1c0] sm:$0xff]
  %v1437 = vld [vmem:[%s5 + $0x1c8] sm:$0xff]
  %v1438 = vld [vmem:[%s5 + $0x1d0] sm:$0xff]
  %v1439 = vld [vmem:[%s5 + $0x1d8] sm:$0xff]
  %v1440 = vld [vmem:[%s5 + $0x1e0] sm:$0xff]
  %v1441 = vld [vmem:[%s5 + $0x1e8] sm:$0xff]
  %v1442 = vld [vmem:[%s5 + $0x1f0] sm:$0xff]
  %v1443 = vld [vmem:[%s5 + $0x1f8] sm:$0xff]
  %v1444 = vld [vmem:[%s6] sm:$0xff]
  %v1446 = vlaneseq
  %v1447 = vshrl.u32 %v1446, 7
  %v1448 = vsub.s32 0, %v1447
  %v1449 = vrot.slane %v1444, %v1448
  %v1450 = vlaneseq
  %v1451 = vshrl.u32 %v1450, 7
  %v1452 = vsub.s32 1, %v1451
  %v1453 = vrot.slane %v1444, %v1452
  %v1454 = vlaneseq
  %v1455 = vshrl.u32 %v1454, 7
  %v1456 = vsub.s32 2, %v1455
  %v1457 = vrot.slane %v1444, %v1456
  %v1458 = vlaneseq
  %v1459 = vshrl.u32 %v1458, 7
  %v1460 = vsub.s32 3, %v1459
  %v1461 = vrot.slane %v1444, %v1460
  %v1462 = vlaneseq
  %v1463 = vshrl.u32 %v1462, 7
  %v1464 = vsub.s32 4, %v1463
  %v1465 = vrot.slane %v1444, %v1464
  %v1466 = vlaneseq
  %v1467 = vshrl.u32 %v1466, 7
  %v1468 = vsub.s32 5, %v1467
  %v1469 = vrot.slane %v1444, %v1468
  %v1470 = vlaneseq
  %v1471 = vshrl.u32 %v1470, 7
  %v1472 = vsub.s32 6, %v1471
  %v1473 = vrot.slane %v1444, %v1472
  %v1474 = vlaneseq
  %v1475 = vshrl.u32 %v1474, 7
  %v1476 = vsub.s32 7, %v1475
  %v1477 = vrot.slane %v1444, %v1476
  %v1550 = vunpack.c.l.b16 %v1380
  %v1551 = vunpack.c.h.b16 %v1380
  %v1552 = vunpack.c.l.b16 %v1381
  %v1553 = vunpack.c.h.b16 %v1381
  %v1554 = vunpack.c.l.b16 %v1382
  %v1555 = vunpack.c.h.b16 %v1382
  %v1556 = vunpack.c.l.b16 %v1383
  %v1557 = vunpack.c.h.b16 %v1383
  %v1558 = vunpack.c.l.b16 %v1384
  %v1559 = vunpack.c.h.b16 %v1384
  %v1560 = vunpack.c.l.b16 %v1385
  %v1561 = vunpack.c.h.b16 %v1385
  %v1562 = vunpack.c.l.b16 %v1386
  %v1563 = vunpack.c.h.b16 %v1386
  %v1564 = vunpack.c.l.b16 %v1387
  %v1565 = vunpack.c.h.b16 %v1387
  %v1566 = vunpack.c.l.b16 %v1388
  %v1567 = vunpack.c.h.b16 %v1388
  %v1568 = vunpack.c.l.b16 %v1389
  %v1569 = vunpack.c.h.b16 %v1389
  %v1570 = vunpack.c.l.b16 %v1390
  %v1571 = vunpack.c.h.b16 %v1390
  %v1572 = vunpack.c.l.b16 %v1391
  %v1573 = vunpack.c.h.b16 %v1391
  %v1574 = vunpack.c.l.b16 %v1392
  %v1575 = vunpack.c.h.b16 %v1392
  %v1576 = vunpack.c.l.b16 %v1393
  %v1577 = vunpack.c.h.b16 %v1393
  %v1578 = vunpack.c.l.b16 %v1394
  %v1579 = vunpack.c.h.b16 %v1394
  %v1580 = vunpack.c.l.b16 %v1395
  %v1581 = vunpack.c.h.b16 %v1395
  %v1582 = vunpack.c.l.b16 %v1396
  %v1583 = vunpack.c.h.b16 %v1396
  %v1584 = vunpack.c.l.b16 %v1397
  %v1585 = vunpack.c.h.b16 %v1397
  %v1586 = vunpack.c.l.b16 %v1398
  %v1587 = vunpack.c.h.b16 %v1398
  %v1588 = vunpack.c.l.b16 %v1399
  %v1589 = vunpack.c.h.b16 %v1399
  %v1590 = vunpack.c.l.b16 %v1400
  %v1591 = vunpack.c.h.b16 %v1400
  %v1592 = vunpack.c.l.b16 %v1401
  %v1593 = vunpack.c.h.b16 %v1401
  %v1594 = vunpack.c.l.b16 %v1402
  %v1595 = vunpack.c.h.b16 %v1402
  %v1596 = vunpack.c.l.b16 %v1403
  %v1597 = vunpack.c.h.b16 %v1403
  %v1598 = vunpack.c.l.b16 %v1404
  %v1599 = vunpack.c.h.b16 %v1404
  %v1600 = vunpack.c.l.b16 %v1405
  %v1601 = vunpack.c.h.b16 %v1405
  %v1602 = vunpack.c.l.b16 %v1406
  %v1603 = vunpack.c.h.b16 %v1406
  %v1604 = vunpack.c.l.b16 %v1407
  %v1605 = vunpack.c.h.b16 %v1407
  %v1606 = vunpack.c.l.b16 %v1408
  %v1607 = vunpack.c.h.b16 %v1408
  %v1608 = vunpack.c.l.b16 %v1409
  %v1609 = vunpack.c.h.b16 %v1409
  %v1610 = vunpack.c.l.b16 %v1410
  %v1611 = vunpack.c.h.b16 %v1410
  %v1612 = vunpack.c.l.b16 %v1411
  %v1613 = vunpack.c.h.b16 %v1411
  %v1614 = vunpack.c.l.b16 %v1412
  %v1615 = vunpack.c.h.b16 %v1412
  %v1616 = vunpack.c.l.b16 %v1413
  %v1617 = vunpack.c.h.b16 %v1413
  %v1618 = vunpack.c.l.b16 %v1414
  %v1619 = vunpack.c.h.b16 %v1414
  %v1620 = vunpack.c.l.b16 %v1415
  %v1621 = vunpack.c.h.b16 %v1415
  %v1622 = vunpack.c.l.b16 %v1416
  %v1623 = vunpack.c.h.b16 %v1416
  %v1624 = vunpack.c.l.b16 %v1417
  %v1625 = vunpack.c.h.b16 %v1417
  %v1626 = vunpack.c.l.b16 %v1418
  %v1627 = vunpack.c.h.b16 %v1418
  %v1628 = vunpack.c.l.b16 %v1419
  %v1629 = vunpack.c.h.b16 %v1419
  %v1630 = vunpack.c.l.b16 %v1420
  %v1631 = vunpack.c.h.b16 %v1420
  %v1632 = vunpack.c.l.b16 %v1421
  %v1633 = vunpack.c.h.b16 %v1421
  %v1634 = vunpack.c.l.b16 %v1422
  %v1635 = vunpack.c.h.b16 %v1422
  %v1636 = vunpack.c.l.b16 %v1423
  %v1637 = vunpack.c.h.b16 %v1423
  %v1638 = vunpack.c.l.b16 %v1424
  %v1639 = vunpack.c.h.b16 %v1424
  %v1640 = vunpack.c.l.b16 %v1425
  %v1641 = vunpack.c.h.b16 %v1425
  %v1642 = vunpack.c.l.b16 %v1426
  %v1643 = vunpack.c.h.b16 %v1426
  %v1644 = vunpack.c.l.b16 %v1427
  %v1645 = vunpack.c.h.b16 %v1427
  %v1646 = vunpack.c.l.b16 %v1428
  %v1647 = vunpack.c.h.b16 %v1428
  %v1648 = vunpack.c.l.b16 %v1429
  %v1649 = vunpack.c.h.b16 %v1429
  %v1650 = vunpack.c.l.b16 %v1430
  %v1651 = vunpack.c.h.b16 %v1430
  %v1652 = vunpack.c.l.b16 %v1431
  %v1653 = vunpack.c.h.b16 %v1431
  %v1654 = vunpack.c.l.b16 %v1432
  %v1655 = vunpack.c.h.b16 %v1432
  %v1656 = vunpack.c.l.b16 %v1433
  %v1657 = vunpack.c.h.b16 %v1433
  %v1658 = vunpack.c.l.b16 %v1434
  %v1659 = vunpack.c.h.b16 %v1434
  %v1660 = vunpack.c.l.b16 %v1435
  %v1661 = vunpack.c.h.b16 %v1435
  %v1662 = vunpack.c.l.b16 %v1436
  %v1663 = vunpack.c.h.b16 %v1436
  %v1664 = vunpack.c.l.b16 %v1437
  %v1665 = vunpack.c.h.b16 %v1437
  %v1666 = vunpack.c.l.b16 %v1438
  %v1667 = vunpack.c.h.b16 %v1438
  %v1668 = vunpack.c.l.b16 %v1439
  %v1669 = vunpack.c.h.b16 %v1439
  %v1670 = vunpack.c.l.b16 %v1440
  %v1671 = vunpack.c.h.b16 %v1440
  %v1672 = vunpack.c.l.b16 %v1441
  %v1673 = vunpack.c.h.b16 %v1441
  %v1674 = vunpack.c.l.b16 %v1442
  %v1675 = vunpack.c.h.b16 %v1442
  %v1676 = vunpack.c.l.b16 %v1443
  %v1677 = vunpack.c.h.b16 %v1443
  %v1678 = vpack.c.b16 %v1558, %v1550
  %v1679 = vpack.c.b16 %v1559, %v1551
  %v1680 = vpack.c.b16 %v1560, %v1552
  %v1681 = vpack.c.b16 %v1561, %v1553
  %v1682 = vpack.c.b16 %v1562, %v1554
  %v1683 = vpack.c.b16 %v1563, %v1555
  %v1684 = vpack.c.b16 %v1564, %v1556
  %v1685 = vpack.c.b16 %v1565, %v1557
  %v1686 = vpack.c.b16 %v1574, %v1566
  %v1687 = vpack.c.b16 %v1575, %v1567
  %v1688 = vpack.c.b16 %v1576, %v1568
  %v1689 = vpack.c.b16 %v1577, %v1569
  %v1690 = vpack.c.b16 %v1578, %v1570
  %v1691 = vpack.c.b16 %v1579, %v1571
  %v1692 = vpack.c.b16 %v1580, %v1572
  %v1693 = vpack.c.b16 %v1581, %v1573
  %v1694 = vpack.c.b16 %v1590, %v1582
  %v1695 = vpack.c.b16 %v1591, %v1583
  %v1696 = vpack.c.b16 %v1592, %v1584
  %v1697 = vpack.c.b16 %v1593, %v1585
  %v1698 = vpack.c.b16 %v1594, %v1586
  %v1699 = vpack.c.b16 %v1595, %v1587
  %v1700 = vpack.c.b16 %v1596, %v1588
  %v1701 = vpack.c.b16 %v1597, %v1589
  %v1702 = vpack.c.b16 %v1606, %v1598
  %v1703 = vpack.c.b16 %v1607, %v1599
  %v1704 = vpack.c.b16 %v1608, %v1600
  %v1705 = vpack.c.b16 %v1609, %v1601
  %v1706 = vpack.c.b16 %v1610, %v1602
  %v1707 = vpack.c.b16 %v1611, %v1603
  %v1708 = vpack.c.b16 %v1612, %v1604
  %v1709 = vpack.c.b16 %v1613, %v1605
  %v1710 = vpack.c.b16 %v1622, %v1614
  %v1711 = vpack.c.b16 %v1623, %v1615
  %v1712 = vpack.c.b16 %v1624, %v1616
  %v1713 = vpack.c.b16 %v1625, %v1617
  %v1714 = vpack.c.b16 %v1626, %v1618
  %v1715 = vpack.c.b16 %v1627, %v1619
  %v1716 = vpack.c.b16 %v1628, %v1620
  %v1717 = vpack.c.b16 %v1629, %v1621
  %v1718 = vpack.c.b16 %v1638, %v1630
  %v1719 = vpack.c.b16 %v1639, %v1631
  %v1720 = vpack.c.b16 %v1640, %v1632
  %v1721 = vpack.c.b16 %v1641, %v1633
  %v1722 = vpack.c.b16 %v1642, %v1634
  %v1723 = vpack.c.b16 %v1643, %v1635
  %v1724 = vpack.c.b16 %v1644, %v1636
  %v1725 = vpack.c.b16 %v1645, %v1637
  %v1726 = vpack.c.b16 %v1654, %v1646
  %v1727 = vpack.c.b16 %v1655, %v1647
  %v1728 = vpack.c.b16 %v1656, %v1648
  %v1729 = vpack.c.b16 %v1657, %v1649
  %v1730 = vpack.c.b16 %v1658, %v1650
  %v1731 = vpack.c.b16 %v1659, %v1651
  %v1732 = vpack.c.b16 %v1660, %v1652
  %v1733 = vpack.c.b16 %v1661, %v1653
  %v1734 = vpack.c.b16 %v1670, %v1662
  %v1735 = vpack.c.b16 %v1671, %v1663
  %v1736 = vpack.c.b16 %v1672, %v1664
  %v1737 = vpack.c.b16 %v1673, %v1665
  %v1738 = vpack.c.b16 %v1674, %v1666
  %v1739 = vpack.c.b16 %v1675, %v1667
  %v1740 = vpack.c.b16 %v1676, %v1668
  %v1741 = vpack.c.b16 %v1677, %v1669
  %1806 = vmatprep.subr.bf16.mxu0 %v1679
  %1807 = vmatpush1.bf16.msra.mxu0 %v1678
  %1808 = vmatprep.subr.bf16.mxu0 %v1687
  %1809 = vmatpush1.bf16.msra.mxu0 %v1686
  %1810 = vmatprep.subr.bf16.mxu0 %v1695
  %1811 = vmatpush1.bf16.msra.mxu0 %v1694
  %1812 = vmatprep.subr.bf16.mxu0 %v1703
  %1813 = vmatpush1.bf16.msra.mxu0 %v1702
  %1814 = vmatprep.subr.bf16.mxu0 %v1711
  %1815 = vmatpush1.bf16.msra.mxu0 %v1710
  %1816 = vmatprep.subr.bf16.mxu0 %v1719
  %1817 = vmatpush1.bf16.msra.mxu0 %v1718
  %1818 = vmatprep.subr.bf16.mxu0 %v1727
  %1819 = vmatpush1.bf16.msra.mxu0 %v1726
  %1820 = vmatprep.subr.bf16.mxu0 %v1735
  %1821 = vmatpush1.bf16.msra.mxu0 %v1734
  %1822 = vmatprep.subr.bf16.mxu0 0
  %1823 = vmatpush1.bf16.msra.mxu0 0
  %1824 = vmatprep.subr.bf16.mxu0 0
  %1825 = vmatpush1.bf16.msra.mxu0 0
  %1826 = vmatprep.subr.bf16.mxu0 0
  %1827 = vmatpush1.bf16.msra.mxu0 0
  %1828 = vmatprep.subr.bf16.mxu0 0
  %1829 = vmatpush1.bf16.msra.mxu0 0
  %1830 = vmatprep.subr.bf16.mxu0 0
  %1831 = vmatpush1.bf16.msra.mxu0 0
  %1832 = vmatprep.subr.bf16.mxu0 0
  %1833 = vmatpush1.bf16.msra.mxu0 0
  %1834 = vmatprep.subr.bf16.mxu0 0
  %1835 = vmatpush1.bf16.msra.mxu0 0
  %1836 = vmatprep.subr.bf16.mxu0 0
  %1837 = vmatpush1.bf16.msra.mxu0 0
  %1838 = vmatprep.mubr.bf16.mxu0 0
  %1839 = vmatmul.mubr.bf16.gmra.mrb[0].mxu0 %v1348
  %v1840 = vpop.f32.mrb[0].mxu0
  %v1841 = vadd.f32 %v1449, %v1840
  %v1842 = vpop.f32.mrb[0].mxu0
  %v1843 = vadd.f32 %v1453, %v1842
  %v1844 = vpop.f32.mrb[0].mxu0
  %v1845 = vadd.f32 %v1449, %v1844
  %v1846 = vpop.f32.mrb[0].mxu0
  %v1847 = vadd.f32 %v1453, %v1846
  %1848 = vmatprep.mubr.bf16.mxu0 0
  %1849 = vmatmul.mubr.bf16.gmra.mrb[0].mxu0 %v1349
  %v1850 = vpop.f32.mrb[0].mxu0
  %v1851 = vadd.f32 %v1449, %v1850
  %v1852 = vpop.f32.mrb[0].mxu0
  %v1853 = vadd.f32 %v1453, %v1852
  %v1854 = vpop.f32.mrb[0].mxu0
  %v1855 = vadd.f32 %v1449, %v1854
  %v1856 = vpop.f32.mrb[0].mxu0
  %v1857 = vadd.f32 %v1453, %v1856
  %1858 = vmatprep.mubr.bf16.mxu0 0
  %1859 = vmatmul.mubr.bf16.gmra.mrb[0].mxu0 %v1350
  %v1860 = vpop.f32.mrb[0].mxu0
  %v1861 = vadd.f32 %v1449, %v1860
  %v1862 = vpop.f32.mrb[0].mxu0
  %v1863 = vadd.f32 %v1453, %v1862
  %v1864 = vpop.f32.mrb[0].mxu0
  %v1865 = vadd.f32 %v1449, %v1864
  %v1866 = vpop.f32.mrb[0].mxu0
  %v1867 = vadd.f32 %v1453, %v1866
  %1868 = vmatprep.mubr.bf16.mxu0 0
  %1869 = vmatmul.mubr.bf16.gmra.mrb[0].mxu0 %v1351
  %v1870 = vpop.f32.mrb[0].mxu0
  %v1871 = vadd.f32 %v1449, %v1870
  %v1872 = vpop.f32.mrb[0].mxu0
  %v1873 = vadd.f32 %v1453, %v1872
  %v1874 = vpop.f32.mrb[0].mxu0
  %v1875 = vadd.f32 %v1449, %v1874
  %v1876 = vpop.f32.mrb[0].mxu0
  %v1877 = vadd.f32 %v1453, %v1876
  %1878 = vmatprep.mubr.bf16.mxu0 0
  %1879 = vmatmul.mubr.bf16.gmra.mrb[0].mxu0 %v1352
  %v1880 = vpop.f32.mrb[0].mxu0
  %v1881 = vadd.f32 %v1449, %v1880
  %v1882 = vpop.f32.mrb[0].mxu0
  %v1883 = vadd.f32 %v1453, %v1882
  %v1884 = vpop.f32.mrb[0].mxu0
  %v1885 = vadd.f32 %v1449, %v1884
  %v1886 = vpop.f32.mrb[0].mxu0
  %v1887 = vadd.f32 %v1453, %v1886
  %1888 = vmatprep.mubr.bf16.mxu0 0
  %1889 = vmatmul.mubr.bf16.gmra.mrb[0].mxu0 %v1353
  %v1890 = vpop.f32.mrb[0].mxu0
  %v1891 = vadd.f32 %v1449, %v1890
  %v1892 = vpop.f32.mrb[0].mxu0
  %v1893 = vadd.f32 %v1453, %v1892
  %v1894 = vpop.f32.mrb[0].mxu0
  %v1895 = vadd.f32 %v1449, %v1894
  %v1896 = vpop.f32.mrb[0].mxu0
  %v1897 = vadd.f32 %v1453, %v1896
  %1898 = vmatprep.mubr.bf16.mxu0 0
  %1899 = vmatmul.mubr.bf16.gmra.mrb[0].mxu0 %v1354
  %v1900 = vpop.f32.mrb[0].mxu0
  %v1901 = vadd.f32 %v1449, %v1900
  %v1902 = vpop.f32.mrb[0].mxu0
  %v1903 = vadd.f32 %v1453, %v1902
  %v1904 = vpop.f32.mrb[0].mxu0
  %v1905 = vadd.f32 %v1449, %v1904
  %v1906 = vpop.f32.mrb[0].mxu0
  %v1907 = vadd.f32 %v1453, %v1906
  %1908 = vmatprep.mubr.bf16.mxu0 0
  %1909 = vmatmul.mubr.bf16.gmra.mrb[0].mxu0 %v1355
  %v1910 = vpop.f32.mrb[0].mxu0
  %v1911 = vadd.f32 %v1449, %v1910
  %v1912 = vpop.f32.mrb[0].mxu0
  %v1913 = vadd.f32 %v1453, %v1912
  %v1914 = vpop.f32.mrb[0].mxu0
  %v1915 = vadd.f32 %v1449, %v1914
  %v1916 = vpop.f32.mrb[0].mxu0
  %v1917 = vadd.f32 %v1453, %v1916
  %1918 = vmatprep.mubr.bf16.mxu0 0
  %1919 = vmatmul.mubr.bf16.gmra.mrb[0].mxu0 %v1356
  %v1920 = vpop.f32.mrb[0].mxu0
  %v1921 = vadd.f32 %v1449, %v1920
  %v1922 = vpop.f32.mrb[0].mxu0
  %v1923 = vadd.f32 %v1453, %v1922
  %v1924 = vpop.f32.mrb[0].mxu0
  %v1925 = vadd.f32 %v1449, %v1924
  %v1926 = vpop.f32.mrb[0].mxu0
  %v1927 = vadd.f32 %v1453, %v1926
  %1928 = vmatprep.mubr.bf16.mxu0 0
  %1929 = vmatmul.mubr.bf16.gmra.mrb[0].mxu0 %v1357
  %v1930 = vpop.f32.mrb[0].mxu0
  %v1931 = vadd.f32 %v1449, %v1930
  %v1932 = vpop.f32.mrb[0].mxu0
  %v1933 = vadd.f32 %v1453, %v1932
  %v1934 = vpop.f32.mrb[0].mxu0
  %v1935 = vadd.f32 %v1449, %v1934
  %v1936 = vpop.f32.mrb[0].mxu0
  %v1937 = vadd.f32 %v1453, %v1936
  %1938 = vmatprep.mubr.bf16.mxu0 0
  %1939 = vmatmul.mubr.bf16.gmra.mrb[0].mxu0 %v1358
  %v1940 = vpop.f32.mrb[0].mxu0
  %v1941 = vadd.f32 %v1449, %v1940
  %v1942 = vpop.f32.mrb[0].mxu0
  %v1943 = vadd.f32 %v1453, %v1942
  %v1944 = vpop.f32.mrb[0].mxu0
  %v1945 = vadd.f32 %v1449, %v1944
  %v1946 = vpop.f32.mrb[0].mxu0
  %v1947 = vadd.f32 %v1453, %v1946
  %1948 = vmatprep.mubr.bf16.mxu0 0
  %1949 = vmatmul.mubr.bf16.gmra.mrb[0].mxu0 %v1359
  %v1950 = vpop.f32.mrb[0].mxu0
  %v1951 = vadd.f32 %v1449, %v1950
  %v1952 = vpop.f32.mrb[0].mxu0
  %v1953 = vadd.f32 %v1453, %v1952
  %v1954 = vpop.f32.mrb[0].mxu0
  %v1955 = vadd.f32 %v1449, %v1954
  %v1956 = vpop.f32.mrb[0].mxu0
  %v1957 = vadd.f32 %v1453, %v1956
  %1958 = vmatprep.mubr.bf16.mxu0 0
  %1959 = vmatmul.mubr.bf16.gmra.mrb[0].mxu0 %v1360
  %v1960 = vpop.f32.mrb[0].mxu0
  %v1961 = vadd.f32 %v1449, %v1960
  %v1962 = vpop.f32.mrb[0].mxu0
  %v1963 = vadd.f32 %v1453, %v1962
  %v1964 = vpop.f32.mrb[0].mxu0
  %v1965 = vadd.f32 %v1449, %v1964
  %v1966 = vpop.f32.mrb[0].mxu0
  %v1967 = vadd.f32 %v1453, %v1966
  %1968 = vmatprep.mubr.bf16.mxu0 0
  %1969 = vmatmul.mubr.bf16.gmra.mrb[0].mxu0 %v1361
  %v1970 = vpop.f32.mrb[0].mxu0
  %v1971 = vadd.f32 %v1449, %v1970
  %v1972 = vpop.f32.mrb[0].mxu0
  %v1973 = vadd.f32 %v1453, %v1972
  %v1974 = vpop.f32.mrb[0].mxu0
  %v1975 = vadd.f32 %v1449, %v1974
  %v1976 = vpop.f32.mrb[0].mxu0
  %v1977 = vadd.f32 %v1453, %v1976
  %1978 = vmatprep.mubr.bf16.mxu0 0
  %1979 = vmatmul.mubr.bf16.gmra.mrb[0].mxu0 %v1362
  %v1980 = vpop.f32.mrb[0].mxu0
  %v1981 = vadd.f32 %v1449, %v1980
  %v1982 = vpop.f32.mrb[0].mxu0
  %v1983 = vadd.f32 %v1453, %v1982
  %v1984 = vpop.f32.mrb[0].mxu0
  %v1985 = vadd.f32 %v1449, %v1984
  %v1986 = vpop.f32.mrb[0].mxu0
  %v1987 = vadd.f32 %v1453, %v1986
  %1988 = vmatprep.mubr.bf16.mxu0 0
  %1989 = vmatmul.mubr.bf16.gmra.mrb[0].mxu0 %v1363
  %v1990 = vpop.f32.mrb[0].mxu0
  %v1991 = vadd.f32 %v1449, %v1990
  %v1992 = vpop.f32.mrb[0].mxu0
  %v1993 = vadd.f32 %v1453, %v1992
  %v1994 = vpop.f32.mrb[0].mxu0
  %v1995 = vadd.f32 %v1449, %v1994
  %v1996 = vpop.f32.mrb[0].mxu0
  %v1997 = vadd.f32 %v1453, %v1996
  %1998 = vmatprep.mubr.bf16.mxu0 0
  %1999 = vmatmul.mubr.bf16.gmra.mrb[0].mxu0 %v1364
  %v2000 = vpop.f32.mrb[0].mxu0
  %v2001 = vadd.f32 %v1449, %v2000
  %v2002 = vpop.f32.mrb[0].mxu0
  %v2003 = vadd.f32 %v1453, %v2002
  %v2004 = vpop.f32.mrb[0].mxu0
  %v2005 = vadd.f32 %v1449, %v2004
  %v2006 = vpop.f32.mrb[0].mxu0
  %v2007 = vadd.f32 %v1453, %v2006
  %2008 = vmatprep.mubr.bf16.mxu0 0
  %2009 = vmatmul.mubr.bf16.gmra.mrb[0].mxu0 %v1365
  %v2010 = vpop.f32.mrb[0].mxu0
  %v2011 = vadd.f32 %v1449, %v2010
  %v2012 = vpop.f32.mrb[0].mxu0
  %v2013 = vadd.f32 %v1453, %v2012
  %v2014 = vpop.f32.mrb[0].mxu0
  %v2015 = vadd.f32 %v1449, %v2014
  %v2016 = vpop.f32.mrb[0].mxu0
  %v2017 = vadd.f32 %v1453, %v2016
  %2018 = vmatprep.mubr.bf16.mxu0 0
  %2019 = vmatmul.mubr.bf16.gmra.mrb[0].mxu0 %v1366
  %v2020 = vpop.f32.mrb[0].mxu0
  %v2021 = vadd.f32 %v1449, %v2020
  %v2022 = vpop.f32.mrb[0].mxu0
  %v2023 = vadd.f32 %v1453, %v2022
  %v2024 = vpop.f32.mrb[0].mxu0
  %v2025 = vadd.f32 %v1449, %v2024
  %v2026 = vpop.f32.mrb[0].mxu0
  %v2027 = vadd.f32 %v1453, %v2026
  %2028 = vmatprep.mubr.bf16.mxu0 0
  %2029 = vmatmul.mubr.bf16.gmra.mrb[0].mxu0 %v1367
  %v2030 = vpop.f32.mrb[0].mxu0
  %v2031 = vadd.f32 %v1449, %v2030
  %v2032 = vpop.f32.mrb[0].mxu0
  %v2033 = vadd.f32 %v1453, %v2032
  %v2034 = vpop.f32.mrb[0].mxu0
  %v2035 = vadd.f32 %v1449, %v2034
  %v2036 = vpop.f32.mrb[0].mxu0
  %v2037 = vadd.f32 %v1453, %v2036
  %2038 = vmatprep.mubr.bf16.mxu0 0
  %2039 = vmatmul.mubr.bf16.gmra.mrb[0].mxu0 %v1368
  %v2040 = vpop.f32.mrb[0].mxu0
  %v2041 = vadd.f32 %v1449, %v2040
  %v2042 = vpop.f32.mrb[0].mxu0
  %v2043 = vadd.f32 %v1453, %v2042
  %v2044 = vpop.f32.mrb[0].mxu0
  %v2045 = vadd.f32 %v1449, %v2044
  %v2046 = vpop.f32.mrb[0].mxu0
  %v2047 = vadd.f32 %v1453, %v2046
  %2048 = vmatprep.mubr.bf16.mxu0 0
  %2049 = vmatmul.mubr.bf16.gmra.mrb[0].mxu0 %v1369
  %v2050 = vpop.f32.mrb[0].mxu0
  %v2051 = vadd.f32 %v1449, %v2050
  %v2052 = vpop.f32.mrb[0].mxu0
  %v2053 = vadd.f32 %v1453, %v2052
  %v2054 = vpop.f32.mrb[0].mxu0
  %v2055 = vadd.f32 %v1449, %v2054
  %v2056 = vpop.f32.mrb[0].mxu0
  %v2057 = vadd.f32 %v1453, %v2056
  %2058 = vmatprep.mubr.bf16.mxu0 0
  %2059 = vmatmul.mubr.bf16.gmra.mrb[0].mxu0 %v1370
  %v2060 = vpop.f32.mrb[0].mxu0
  %v2061 = vadd.f32 %v1449, %v2060
  %v2062 = vpop.f32.mrb[0].mxu0
  %v2063 = vadd.f32 %v1453, %v2062
  %v2064 = vpop.f32.mrb[0].mxu0
  %v2065 = vadd.f32 %v1449, %v2064
  %v2066 = vpop.f32.mrb[0].mxu0
  %v2067 = vadd.f32 %v1453, %v2066
  %2068 = vmatprep.mubr.bf16.mxu0 0
  %2069 = vmatmul.mubr.bf16.gmra.mrb[0].mxu0 %v1371
  %v2070 = vpop.f32.mrb[0].mxu0
  %v2071 = vadd.f32 %v1449, %v2070
  %v2072 = vpop.f32.mrb[0].mxu0
  %v2073 = vadd.f32 %v1453, %v2072
  %v2074 = vpop.f32.mrb[0].mxu0
  %v2075 = vadd.f32 %v1449, %v2074
  %v2076 = vpop.f32.mrb[0].mxu0
  %v2077 = vadd.f32 %v1453, %v2076
  %2078 = vmatprep.mubr.bf16.mxu0 0
  %2079 = vmatmul.mubr.bf16.gmra.mrb[0].mxu0 %v1372
  %v2080 = vpop.f32.mrb[0].mxu0
  %v2081 = vadd.f32 %v1449, %v2080
  %v2082 = vpop.f32.mrb[0].mxu0
  %v2083 = vadd.f32 %v1453, %v2082
  %v2084 = vpop.f32.mrb[0].mxu0
  %v2085 = vadd.f32 %v1449, %v2084
  %v2086 = vpop.f32.mrb[0].mxu0
  %v2087 = vadd.f32 %v1453, %v2086
  %2088 = vmatprep.mubr.bf16.mxu0 0
  %2089 = vmatmul.mubr.bf16.gmra.mrb[0].mxu0 %v1373
  %v2090 = vpop.f32.mrb[0].mxu0
  %v2091 = vadd.f32 %v1449, %v2090
  %v2092 = vpop.f32.mrb[0].mxu0
  %v2093 = vadd.f32 %v1453, %v2092
  %v2094 = vpop.f32.mrb[0].mxu0
  %v2095 = vadd.f32 %v1449, %v2094
  %v2096 = vpop.f32.mrb[0].mxu0
  %v2097 = vadd.f32 %v1453, %v2096
  %2098 = vmatprep.mubr.bf16.mxu0 0
  %2099 = vmatmul.mubr.bf16.gmra.mrb[0].mxu0 %v1374
  %v2100 = vpop.f32.mrb[0].mxu0
  %v2101 = vadd.f32 %v1449, %v2100
  %v2102 = vpop.f32.mrb[0].mxu0
  %v2103 = vadd.f32 %v1453, %v2102
  %v2104 = vpop.f32.mrb[0].mxu0
  %v2105 = vadd.f32 %v1449, %v2104
  %v2106 = vpop.f32.mrb[0].mxu0
  %v2107 = vadd.f32 %v1453, %v2106
  %2108 = vmatprep.mubr.bf16.mxu0 0
  %2109 = vmatmul.mubr.bf16.gmra.mrb[0].mxu0 %v1375
  %v2110 = vpop.f32.mrb[0].mxu0
  %v2111 = vadd.f32 %v1449, %v2110
  %v2112 = vpop.f32.mrb[0].mxu0
  %v2113 = vadd.f32 %v1453, %v2112
  %v2114 = vpop.f32.mrb[0].mxu0
  %v2115 = vadd.f32 %v1449, %v2114
  %v2116 = vpop.f32.mrb[0].mxu0
  %v2117 = vadd.f32 %v1453, %v2116
  %2118 = vmatprep.mubr.bf16.mxu0 0
  %2119 = vmatmul.mubr.bf16.gmra.mrb[0].mxu0 %v1376
  %v2120 = vpop.f32.mrb[0].mxu0
  %v2121 = vadd.f32 %v1449, %v2120
  %v2122 = vpop.f32.mrb[0].mxu0
  %v2123 = vadd.f32 %v1453, %v2122
  %v2124 = vpop.f32.mrb[0].mxu0
  %v2125 = vadd.f32 %v1449, %v2124
  %v2126 = vpop.f32.mrb[0].mxu0
  %v2127 = vadd.f32 %v1453, %v2126
  %2128 = vmatprep.mubr.bf16.mxu0 0
  %2129 = vmatmul.mubr.bf16.gmra.mrb[0].mxu0 %v1377
  %v2130 = vpop.f32.mrb[0].mxu0
  %v2131 = vadd.f32 %v1449, %v2130
  %v2132 = vpop.f32.mrb[0].mxu0
  %v2133 = vadd.f32 %v1453, %v2132
  %v2134 = vpop.f32.mrb[0].mxu0
  %v2135 = vadd.f32 %v1449, %v2134
  %v2136 = vpop.f32.mrb[0].mxu0
  %v2137 = vadd.f32 %v1453, %v2136
  %2138 = vmatprep.mubr.bf16.mxu0 0
  %2139 = vmatmul.mubr.bf16.gmra.mrb[0].mxu0 %v1378
  %v2140 = vpop.f32.mrb[0].mxu0
  %v2141 = vadd.f32 %v1449, %v2140
  %v2142 = vpop.f32.mrb[0].mxu0
  %v2143 = vadd.f32 %v1453, %v2142
  %v2144 = vpop.f32.mrb[0].mxu0
  %v2145 = vadd.f32 %v1449, %v2144
  %v2146 = vpop.f32.mrb[0].mxu0
  %v2147 = vadd.f32 %v1453, %v2146
  %2148 = vmatprep.mubr.bf16.mxu0 0
  %2149 = vmatmul.mubr.bf16.gmra.mrb[0].mxu0 %v1379
  %v2150 = vpop.f32.mrb[0].mxu0
  %v2151 = vadd.f32 %v1449, %v2150
  %v2152 = vpop.f32.mrb[0].mxu0
  %v2153 = vadd.f32 %v1453, %v2152
  %v2154 = vpop.f32.mrb[0].mxu0
  %v2155 = vadd.f32 %v1449, %v2154
  %v2156 = vpop.f32.mrb[0].mxu0
  %v2157 = vadd.f32 %v1453, %v2156
  %2158 = vdwg.mxu0
  %2159 = vmatprep.subr.bf16.mxu0 %v1681
  %2160 = vmatpush1.bf16.msra.mxu0 %v1680
  %2161 = vmatprep.subr.bf16.mxu0 %v1689
  %2162 = vmatpush1.bf16.msra.mxu0 %v1688
  %2163 = vmatprep.subr.bf16.mxu0 %v1697
  %2164 = vmatpush1.bf16.msra.mxu0 %v1696
  %2165 = vmatprep.subr.bf16.mxu0 %v1705
  %2166 = vmatpush1.bf16.msra.mxu0 %v1704
  %2167 = vmatprep.subr.bf16.mxu0 %v1713
  %2168 = vmatpush1.bf16.msra.mxu0 %v1712
  %2169 = vmatprep.subr.bf16.mxu0 %v1721
  %2170 = vmatpush1.bf16.msra.mxu0 %v1720
  %2171 = vmatprep.subr.bf16.mxu0 %v1729
  %2172 = vmatpush1.bf16.msra.mxu0 %v1728
  %2173 = vmatprep.subr.bf16.mxu0 %v1737
  %2174 = vmatpush1.bf16.msra.mxu0 %v1736
  %2175 = vmatprep.subr.bf16.mxu0 0
  %2176 = vmatpush1.bf16.msra.mxu0 0
  %2177 = vmatprep.subr.bf16.mxu0 0
  %2178 = vmatpush1.bf16.msra.mxu0 0
  %2179 = vmatprep.subr.bf16.mxu0 0
  %2180 = vmatpush1.bf16.msra.mxu0 0
  %2181 = vmatprep.subr.bf16.mxu0 0
  %2182 = vmatpush1.bf16.msra.mxu0 0
  %2183 = vmatprep.subr.bf16.mxu0 0
  %2184 = vmatpush1.bf16.msra.mxu0 0
  %2185 = vmatprep.subr.bf16.mxu0 0
  %2186 = vmatpush1.bf16.msra.mxu0 0
  %2187 = vmatprep.subr.bf16.mxu0 0
  %2188 = vmatpush1.bf16.msra.mxu0 0
  %2189 = vmatprep.subr.bf16.mxu0 0
  %2190 = vmatpush1.bf16.msra.mxu0 0
  %2191 = vmatprep.mubr.bf16.mxu0 0
  %2192 = vmatmul.mubr.bf16.gmra.mrb[0].mxu0 %v1348
  %v2193 = vpop.f32.mrb[0].mxu0
  %v2194 = vadd.f32 %v1457, %v2193
  %v2195 = vpop.f32.mrb[0].mxu0
  %v2196 = vadd.f32 %v1461, %v2195
  %v2197 = vpop.f32.mrb[0].mxu0
  %v2198 = vadd.f32 %v1457, %v2197
  %v2199 = vpop.f32.mrb[0].mxu0
  %v2200 = vadd.f32 %v1461, %v2199
  %2201 = vmatprep.mubr.bf16.mxu0 0
  %2202 = vmatmul.mubr.bf16.gmra.mrb[0].mxu0 %v1349
  %v2203 = vpop.f32.mrb[0].mxu0
  %v2204 = vadd.f32 %v1457, %v2203
  %v2205 = vpop.f32.mrb[0].mxu0
  %v2206 = vadd.f32 %v1461, %v2205
  %v2207 = vpop.f32.mrb[0].mxu0
  %v2208 = vadd.f32 %v1457, %v2207
  %v2209 = vpop.f32.mrb[0].mxu0
  %v2210 = vadd.f32 %v1461, %v2209
  %2211 = vmatprep.mubr.bf16.mxu0 0
  %2212 = vmatmul.mubr.bf16.gmra.mrb[0].mxu0 %v1350
  %v2213 = vpop.f32.mrb[0].mxu0
  %v2214 = vadd.f32 %v1457, %v2213
  %v2215 = vpop.f32.mrb[0].mxu0
  %v2216 = vadd.f32 %v1461, %v2215
  %v2217 = vpop.f32.mrb[0].mxu0
  %v2218 = vadd.f32 %v1457, %v2217
  %v2219 = vpop.f32.mrb[0].mxu0
  %v2220 = vadd.f32 %v1461, %v2219
  %2221 = vmatprep.mubr.bf16.mxu0 0
  %2222 = vmatmul.mubr.bf16.gmra.mrb[0].mxu0 %v1351
  %v2223 = vpop.f32.mrb[0].mxu0
  %v2224 = vadd.f32 %v1457, %v2223
  %v2225 = vpop.f32.mrb[0].mxu0
  %v2226 = vadd.f32 %v1461, %v2225
  %v2227 = vpop.f32.mrb[0].mxu0
  %v2228 = vadd.f32 %v1457, %v2227
  %v2229 = vpop.f32.mrb[0].mxu0
  %v2230 = vadd.f32 %v1461, %v2229
  %2231 = vmatprep.mubr.bf16.mxu0 0
  %2232 = vmatmul.mubr.bf16.gmra.mrb[0].mxu0 %v1352
  %v2233 = vpop.f32.mrb[0].mxu0
  %v2234 = vadd.f32 %v1457, %v2233
  %v2235 = vpop.f32.mrb[0].mxu0
  %v2236 = vadd.f32 %v1461, %v2235
  %v2237 = vpop.f32.mrb[0].mxu0
  %v2238 = vadd.f32 %v1457, %v2237
  %v2239 = vpop.f32.mrb[0].mxu0
  %v2240 = vadd.f32 %v1461, %v2239
  %2241 = vmatprep.mubr.bf16.mxu0 0
  %2242 = vmatmul.mubr.bf16.gmra.mrb[0].mxu0 %v1353
  %v2243 = vpop.f32.mrb[0].mxu0
  %v2244 = vadd.f32 %v1457, %v2243
  %v2245 = vpop.f32.mrb[0].mxu0
  %v2246 = vadd.f32 %v1461, %v2245
  %v2247 = vpop.f32.mrb[0].mxu0
  %v2248 = vadd.f32 %v1457, %v2247
  %v2249 = vpop.f32.mrb[0].mxu0
  %v2250 = vadd.f32 %v1461, %v2249
  %2251 = vmatprep.mubr.bf16.mxu0 0
  %2252 = vmatmul.mubr.bf16.gmra.mrb[0].mxu0 %v1354
  %v2253 = vpop.f32.mrb[0].mxu0
  %v2254 = vadd.f32 %v1457, %v2253
  %v2255 = vpop.f32.mrb[0].mxu0
  %v2256 = vadd.f32 %v1461, %v2255
  %v2257 = vpop.f32.mrb[0].mxu0
  %v2258 = vadd.f32 %v1457, %v2257
  %v2259 = vpop.f32.mrb[0].mxu0
  %v2260 = vadd.f32 %v1461, %v2259
  %2261 = vmatprep.mubr.bf16.mxu0 0
  %2262 = vmatmul.mubr.bf16.gmra.mrb[0].mxu0 %v1355
  %v2263 = vpop.f32.mrb[0].mxu0
  %v2264 = vadd.f32 %v1457, %v2263
  %v2265 = vpop.f32.mrb[0].mxu0
  %v2266 = vadd.f32 %v1461, %v2265
  %v2267 = vpop.f32.mrb[0].mxu0
  %v2268 = vadd.f32 %v1457, %v2267
  %v2269 = vpop.f32.mrb[0].mxu0
  %v2270 = vadd.f32 %v1461, %v2269
  %2271 = vmatprep.mubr.bf16.mxu0 0
  %2272 = vmatmul.mubr.bf16.gmra.mrb[0].mxu0 %v1356
  %v2273 = vpop.f32.mrb[0].mxu0
  %v2274 = vadd.f32 %v1457, %v2273
  %v2275 = vpop.f32.mrb[0].mxu0
  %v2276 = vadd.f32 %v1461, %v2275
  %v2277 = vpop.f32.mrb[0].mxu0
  %v2278 = vadd.f32 %v1457, %v2277
  %v2279 = vpop.f32.mrb[0].mxu0
  %v2280 = vadd.f32 %v1461, %v2279
  %2281 = vmatprep.mubr.bf16.mxu0 0
  %2282 = vmatmul.mubr.bf16.gmra.mrb[0].mxu0 %v1357
  %v2283 = vpop.f32.mrb[0].mxu0
  %v2284 = vadd.f32 %v1457, %v2283
  %v2285 = vpop.f32.mrb[0].mxu0
  %v2286 = vadd.f32 %v1461, %v2285
  %v2287 = vpop.f32.mrb[0].mxu0
  %v2288 = vadd.f32 %v1457, %v2287
  %v2289 = vpop.f32.mrb[0].mxu0
  %v2290 = vadd.f32 %v1461, %v2289
  %2291 = vmatprep.mubr.bf16.mxu0 0
  %2292 = vmatmul.mubr.bf16.gmra.mrb[0].mxu0 %v1358
  %v2293 = vpop.f32.mrb[0].mxu0
  %v2294 = vadd.f32 %v1457, %v2293
  %v2295 = vpop.f32.mrb[0].mxu0
  %v2296 = vadd.f32 %v1461, %v2295
  %v2297 = vpop.f32.mrb[0].mxu0
  %v2298 = vadd.f32 %v1457, %v2297
  %v2299 = vpop.f32.mrb[0].mxu0
  %v2300 = vadd.f32 %v1461, %v2299
  %2301 = vmatprep.mubr.bf16.mxu0 0
  %2302 = vmatmul.mubr.bf16.gmra.mrb[0].mxu0 %v1359
  %v2303 = vpop.f32.mrb[0].mxu0
  %v2304 = vadd.f32 %v1457, %v2303
  %v2305 = vpop.f32.mrb[0].mxu0
  %v2306 = vadd.f32 %v1461, %v2305
  %v2307 = vpop.f32.mrb[0].mxu0
  %v2308 = vadd.f32 %v1457, %v2307
  %v2309 = vpop.f32.mrb[0].mxu0
  %v2310 = vadd.f32 %v1461, %v2309
  %2311 = vmatprep.mubr.bf16.mxu0 0
  %2312 = vmatmul.mubr.bf16.gmra.mrb[0].mxu0 %v1360
  %v2313 = vpop.f32.mrb[0].mxu0
  %v2314 = vadd.f32 %v1457, %v2313
  %v2315 = vpop.f32.mrb[0].mxu0
  %v2316 = vadd.f32 %v1461, %v2315
  %v2317 = vpop.f32.mrb[0].mxu0
  %v2318 = vadd.f32 %v1457, %v2317
  %v2319 = vpop.f32.mrb[0].mxu0
  %v2320 = vadd.f32 %v1461, %v2319
  %2321 = vmatprep.mubr.bf16.mxu0 0
  %2322 = vmatmul.mubr.bf16.gmra.mrb[0].mxu0 %v1361
  %v2323 = vpop.f32.mrb[0].mxu0
  %v2324 = vadd.f32 %v1457, %v2323
  %v2325 = vpop.f32.mrb[0].mxu0
  %v2326 = vadd.f32 %v1461, %v2325
  %v2327 = vpop.f32.mrb[0].mxu0
  %v2328 = vadd.f32 %v1457, %v2327
  %v2329 = vpop.f32.mrb[0].mxu0
  %v2330 = vadd.f32 %v1461, %v2329
  %2331 = vmatprep.mubr.bf16.mxu0 0
  %2332 = vmatmul.mubr.bf16.gmra.mrb[0].mxu0 %v1362
  %v2333 = vpop.f32.mrb[0].mxu0
  %v2334 = vadd.f32 %v1457, %v2333
  %v2335 = vpop.f32.mrb[0].mxu0
  %v2336 = vadd.f32 %v1461, %v2335
  %v2337 = vpop.f32.mrb[0].mxu0
  %v2338 = vadd.f32 %v1457, %v2337
  %v2339 = vpop.f32.mrb[0].mxu0
  %v2340 = vadd.f32 %v1461, %v2339
  %2341 = vmatprep.mubr.bf16.mxu0 0
  %2342 = vmatmul.mubr.bf16.gmra.mrb[0].mxu0 %v1363
  %v2343 = vpop.f32.mrb[0].mxu0
  %v2344 = vadd.f32 %v1457, %v2343
  %v2345 = vpop.f32.mrb[0].mxu0
  %v2346 = vadd.f32 %v1461, %v2345
  %v2347 = vpop.f32.mrb[0].mxu0
  %v2348 = vadd.f32 %v1457, %v2347
  %v2349 = vpop.f32.mrb[0].mxu0
  %v2350 = vadd.f32 %v1461, %v2349
  %2351 = vmatprep.mubr.bf16.mxu0 0
  %2352 = vmatmul.mubr.bf16.gmra.mrb[0].mxu0 %v1364
  %v2353 = vpop.f32.mrb[0].mxu0
  %v2354 = vadd.f32 %v1457, %v2353
  %v2355 = vpop.f32.mrb[0].mxu0
  %v2356 = vadd.f32 %v1461, %v2355
  %v2357 = vpop.f32.mrb[0].mxu0
  %v2358 = vadd.f32 %v1457, %v2357
  %v2359 = vpop.f32.mrb[0].mxu0
  %v2360 = vadd.f32 %v1461, %v2359
  %2361 = vmatprep.mubr.bf16.mxu0 0
  %2362 = vmatmul.mubr.bf16.gmra.mrb[0].mxu0 %v1365
  %v2363 = vpop.f32.mrb[0].mxu0
  %v2364 = vadd.f32 %v1457, %v2363
  %v2365 = vpop.f32.mrb[0].mxu0
  %v2366 = vadd.f32 %v1461, %v2365
  %v2367 = vpop.f32.mrb[0].mxu0
  %v2368 = vadd.f32 %v1457, %v2367
  %v2369 = vpop.f32.mrb[0].mxu0
  %v2370 = vadd.f32 %v1461, %v2369
  %2371 = vmatprep.mubr.bf16.mxu0 0
  %2372 = vmatmul.mubr.bf16.gmra.mrb[0].mxu0 %v1366
  %v2373 = vpop.f32.mrb[0].mxu0
  %v2374 = vadd.f32 %v1457, %v2373
  %v2375 = vpop.f32.mrb[0].mxu0
  %v2376 = vadd.f32 %v1461, %v2375
  %v2377 = vpop.f32.mrb[0].mxu0
  %v2378 = vadd.f32 %v1457, %v2377
  %v2379 = vpop.f32.mrb[0].mxu0
  %v2380 = vadd.f32 %v1461, %v2379
  %2381 = vmatprep.mubr.bf16.mxu0 0
  %2382 = vmatmul.mubr.bf16.gmra.mrb[0].mxu0 %v1367
  %v2383 = vpop.f32.mrb[0].mxu0
  %v2384 = vadd.f32 %v1457, %v2383
  %v2385 = vpop.f32.mrb[0].mxu0
  %v2386 = vadd.f32 %v1461, %v2385
  %v2387 = vpop.f32.mrb[0].mxu0
  %v2388 = vadd.f32 %v1457, %v2387
  %v2389 = vpop.f32.mrb[0].mxu0
  %v2390 = vadd.f32 %v1461, %v2389
  %2391 = vmatprep.mubr.bf16.mxu0 0
  %2392 = vmatmul.mubr.bf16.gmra.mrb[0].mxu0 %v1368
  %v2393 = vpop.f32.mrb[0].mxu0
  %v2394 = vadd.f32 %v1457, %v2393
  %v2395 = vpop.f32.mrb[0].mxu0
  %v2396 = vadd.f32 %v1461, %v2395
  %v2397 = vpop.f32.mrb[0].mxu0
  %v2398 = vadd.f32 %v1457, %v2397
  %v2399 = vpop.f32.mrb[0].mxu0
  %v2400 = vadd.f32 %v1461, %v2399
  %2401 = vmatprep.mubr.bf16.mxu0 0
  %2402 = vmatmul.mubr.bf16.gmra.mrb[0].mxu0 %v1369
  %v2403 = vpop.f32.mrb[0].mxu0
  %v2404 = vadd.f32 %v1457, %v2403
  %v2405 = vpop.f32.mrb[0].mxu0
  %v2406 = vadd.f32 %v1461, %v2405
  %v2407 = vpop.f32.mrb[0].mxu0
  %v2408 = vadd.f32 %v1457, %v2407
  %v2409 = vpop.f32.mrb[0].mxu0
  %v2410 = vadd.f32 %v1461, %v2409
  %2411 = vmatprep.mubr.bf16.mxu0 0
  %2412 = vmatmul.mubr.bf16.gmra.mrb[0].mxu0 %v1370
  %v2413 = vpop.f32.mrb[0].mxu0
  %v2414 = vadd.f32 %v1457, %v2413
  %v2415 = vpop.f32.mrb[0].mxu0
  %v2416 = vadd.f32 %v1461, %v2415
  %v2417 = vpop.f32.mrb[0].mxu0
  %v2418 = vadd.f32 %v1457, %v2417
  %v2419 = vpop.f32.mrb[0].mxu0
  %v2420 = vadd.f32 %v1461, %v2419
  %2421 = vmatprep.mubr.bf16.mxu0 0
  %2422 = vmatmul.mubr.bf16.gmra.mrb[0].mxu0 %v1371
  %v2423 = vpop.f32.mrb[0].mxu0
  %v2424 = vadd.f32 %v1457, %v2423
  %v2425 = vpop.f32.mrb[0].mxu0
  %v2426 = vadd.f32 %v1461, %v2425
  %v2427 = vpop.f32.mrb[0].mxu0
  %v2428 = vadd.f32 %v1457, %v2427
  %v2429 = vpop.f32.mrb[0].mxu0
  %v2430 = vadd.f32 %v1461, %v2429
  %2431 = vmatprep.mubr.bf16.mxu0 0
  %2432 = vmatmul.mubr.bf16.gmra.mrb[0].mxu0 %v1372
  %v2433 = vpop.f32.mrb[0].mxu0
  %v2434 = vadd.f32 %v1457, %v2433
  %v2435 = vpop.f32.mrb[0].mxu0
  %v2436 = vadd.f32 %v1461, %v2435
  %v2437 = vpop.f32.mrb[0].mxu0
  %v2438 = vadd.f32 %v1457, %v2437
  %v2439 = vpop.f32.mrb[0].mxu0
  %v2440 = vadd.f32 %v1461, %v2439
  %2441 = vmatprep.mubr.bf16.mxu0 0
  %2442 = vmatmul.mubr.bf16.gmra.mrb[0].mxu0 %v1373
  %v2443 = vpop.f32.mrb[0].mxu0
  %v2444 = vadd.f32 %v1457, %v2443
  %v2445 = vpop.f32.mrb[0].mxu0
  %v2446 = vadd.f32 %v1461, %v2445
  %v2447 = vpop.f32.mrb[0].mxu0
  %v2448 = vadd.f32 %v1457, %v2447
  %v2449 = vpop.f32.mrb[0].mxu0
  %v2450 = vadd.f32 %v1461, %v2449
  %2451 = vmatprep.mubr.bf16.mxu0 0
  %2452 = vmatmul.mubr.bf16.gmra.mrb[0].mxu0 %v1374
  %v2453 = vpop.f32.mrb[0].mxu0
  %v2454 = vadd.f32 %v1457, %v2453
  %v2455 = vpop.f32.mrb[0].mxu0
  %v2456 = vadd.f32 %v1461, %v2455
  %v2457 = vpop.f32.mrb[0].mxu0
  %v2458 = vadd.f32 %v1457, %v2457
  %v2459 = vpop.f32.mrb[0].mxu0
  %v2460 = vadd.f32 %v1461, %v2459
  %2461 = vmatprep.mubr.bf16.mxu0 0
  %2462 = vmatmul.mubr.bf16.gmra.mrb[0].mxu0 %v1375
  %v2463 = vpop.f32.mrb[0].mxu0
  %v2464 = vadd.f32 %v1457, %v2463
  %v2465 = vpop.f32.mrb[0].mxu0
  %v2466 = vadd.f32 %v1461, %v2465
  %v2467 = vpop.f32.mrb[0].mxu0
  %v2468 = vadd.f32 %v1457, %v2467
  %v2469 = vpop.f32.mrb[0].mxu0
  %v2470 = vadd.f32 %v1461, %v2469
  %2471 = vmatprep.mubr.bf16.mxu0 0
  %2472 = vmatmul.mubr.bf16.gmra.mrb[0].mxu0 %v1376
  %v2473 = vpop.f32.mrb[0].mxu0
  %v2474 = vadd.f32 %v1457, %v2473
  %v2475 = vpop.f32.mrb[0].mxu0
  %v2476 = vadd.f32 %v1461, %v2475
  %v2477 = vpop.f32.mrb[0].mxu0
  %v2478 = vadd.f32 %v1457, %v2477
  %v2479 = vpop.f32.mrb[0].mxu0
  %v2480 = vadd.f32 %v1461, %v2479
  %2481 = vmatprep.mubr.bf16.mxu0 0
  %2482 = vmatmul.mubr.bf16.gmra.mrb[0].mxu0 %v1377
  %v2483 = vpop.f32.mrb[0].mxu0
  %v2484 = vadd.f32 %v1457, %v2483
  %v2485 = vpop.f32.mrb[0].mxu0
  %v2486 = vadd.f32 %v1461, %v2485
  %v2487 = vpop.f32.mrb[0].mxu0
  %v2488 = vadd.f32 %v1457, %v2487
  %v2489 = vpop.f32.mrb[0].mxu0
  %v2490 = vadd.f32 %v1461, %v2489
  %2491 = vmatprep.mubr.bf16.mxu0 0
  %2492 = vmatmul.mubr.bf16.gmra.mrb[0].mxu0 %v1378
  %v2493 = vpop.f32.mrb[0].mxu0
  %v2494 = vadd.f32 %v1457, %v2493
  %v2495 = vpop.f32.mrb[0].mxu0
  %v2496 = vadd.f32 %v1461, %v2495
  %v2497 = vpop.f32.mrb[0].mxu0
  %v2498 = vadd.f32 %v1457, %v2497
  %v2499 = vpop.f32.mrb[0].mxu0
  %v2500 = vadd.f32 %v1461, %v2499
  %2501 = vmatprep.mubr.bf16.mxu0 0
  %2502 = vmatmul.mubr.bf16.gmra.mrb[0].mxu0 %v1379
  %v2503 = vpop.f32.mrb[0].mxu0
  %v2504 = vadd.f32 %v1457, %v2503
  %v2505 = vpop.f32.mrb[0].mxu0
  %v2506 = vadd.f32 %v1461, %v2505
  %v2507 = vpop.f32.mrb[0].mxu0
  %v2508 = vadd.f32 %v1457, %v2507
  %v2509 = vpop.f32.mrb[0].mxu0
  %v2510 = vadd.f32 %v1461, %v2509
  %2511 = vdwg.mxu0
  %2512 = vmatprep.subr.bf16.mxu0 %v1683
  %2513 = vmatpush1.bf16.msra.mxu0 %v1682
  %2514 = vmatprep.subr.bf16.mxu0 %v1691
  %2515 = vmatpush1.bf16.msra.mxu0 %v1690
  %2516 = vmatprep.subr.bf16.mxu0 %v1699
  %2517 = vmatpush1.bf16.msra.mxu0 %v1698
  %2518 = vmatprep.subr.bf16.mxu0 %v1707
  %2519 = vmatpush1.bf16.msra.mxu0 %v1706
  %2520 = vmatprep.subr.bf16.mxu0 %v1715
  %2521 = vmatpush1.bf16.msra.mxu0 %v1714
  %2522 = vmatprep.subr.bf16.mxu0 %v1723
  %2523 = vmatpush1.bf16.msra.mxu0 %v1722
  %2524 = vmatprep.subr.bf16.mxu0 %v1731
  %2525 = vmatpush1.bf16.msra.mxu0 %v1730
  %2526 = vmatprep.subr.bf16.mxu0 %v1739
  %2527 = vmatpush1.bf16.msra.mxu0 %v1738
  %2528 = vmatprep.subr.bf16.mxu0 0
  %2529 = vmatpush1.bf16.msra.mxu0 0
  %2530 = vmatprep.subr.bf16.mxu0 0
  %2531 = vmatpush1.bf16.msra.mxu0 0
  %2532 = vmatprep.subr.bf16.mxu0 0
  %2533 = vmatpush1.bf16.msra.mxu0 0
  %2534 = vmatprep.subr.bf16.mxu0 0
  %2535 = vmatpush1.bf16.msra.mxu0 0
  %2536 = vmatprep.subr.bf16.mxu0 0
  %2537 = vmatpush1.bf16.msra.mxu0 0
  %2538 = vmatprep.subr.bf16.mxu0 0
  %2539 = vmatpush1.bf16.msra.mxu0 0
  %2540 = vmatprep.subr.bf16.mxu0 0
  %2541 = vmatpush1.bf16.msra.mxu0 0
  %2542 = vmatprep.subr.bf16.mxu0 0
  %2543 = vmatpush1.bf16.msra.mxu0 0
  %2544 = vmatprep.mubr.bf16.mxu0 0
  %2545 = vmatmul.mubr.bf16.gmra.mrb[0].mxu0 %v1348
  %v2546 = vpop.f32.mrb[0].mxu0
  %v2547 = vadd.f32 %v1465, %v2546
  %v2548 = vpop.f32.mrb[0].mxu0
  %v2549 = vadd.f32 %v1469, %v2548
  %v2550 = vpop.f32.mrb[0].mxu0
  %v2551 = vadd.f32 %v1465, %v2550
  %v2552 = vpop.f32.mrb[0].mxu0
  %v2553 = vadd.f32 %v1469, %v2552
  %2554 = vmatprep.mubr.bf16.mxu0 0
  %2555 = vmatmul.mubr.bf16.gmra.mrb[0].mxu0 %v1349
  %v2556 = vpop.f32.mrb[0].mxu0
  %v2557 = vadd.f32 %v1465, %v2556
  %v2558 = vpop.f32.mrb[0].mxu0
  %v2559 = vadd.f32 %v1469, %v2558
  %v2560 = vpop.f32.mrb[0].mxu0
  %v2561 = vadd.f32 %v1465, %v2560
  %v2562 = vpop.f32.mrb[0].mxu0
  %v2563 = vadd.f32 %v1469, %v2562
  %2564 = vmatprep.mubr.bf16.mxu0 0
  %2565 = vmatmul.mubr.bf16.gmra.mrb[0].mxu0 %v1350
  %v2566 = vpop.f32.mrb[0].mxu0
  %v2567 = vadd.f32 %v1465, %v2566
  %v2568 = vpop.f32.mrb[0].mxu0
  %v2569 = vadd.f32 %v1469, %v2568
  %v2570 = vpop.f32.mrb[0].mxu0
  %v2571 = vadd.f32 %v1465, %v2570
  %v2572 = vpop.f32.mrb[0].mxu0
  %v2573 = vadd.f32 %v1469, %v2572
  %2574 = vmatprep.mubr.bf16.mxu0 0
  %2575 = vmatmul.mubr.bf16.gmra.mrb[0].mxu0 %v1351
  %v2576 = vpop.f32.mrb[0].mxu0
  %v2577 = vadd.f32 %v1465, %v2576
  %v2578 = vpop.f32.mrb[0].mxu0
  %v2579 = vadd.f32 %v1469, %v2578
  %v2580 = vpop.f32.mrb[0].mxu0
  %v2581 = vadd.f32 %v1465, %v2580
  %v2582 = vpop.f32.mrb[0].mxu0
  %v2583 = vadd.f32 %v1469, %v2582
  %2584 = vmatprep.mubr.bf16.mxu0 0
  %2585 = vmatmul.mubr.bf16.gmra.mrb[0].mxu0 %v1352
  %v2586 = vpop.f32.mrb[0].mxu0
  %v2587 = vadd.f32 %v1465, %v2586
  %v2588 = vpop.f32.mrb[0].mxu0
  %v2589 = vadd.f32 %v1469, %v2588
  %v2590 = vpop.f32.mrb[0].mxu0
  %v2591 = vadd.f32 %v1465, %v2590
  %v2592 = vpop.f32.mrb[0].mxu0
  %v2593 = vadd.f32 %v1469, %v2592
  %2594 = vmatprep.mubr.bf16.mxu0 0
  %2595 = vmatmul.mubr.bf16.gmra.mrb[0].mxu0 %v1353
  %v2596 = vpop.f32.mrb[0].mxu0
  %v2597 = vadd.f32 %v1465, %v2596
  %v2598 = vpop.f32.mrb[0].mxu0
  %v2599 = vadd.f32 %v1469, %v2598
  %v2600 = vpop.f32.mrb[0].mxu0
  %v2601 = vadd.f32 %v1465, %v2600
  %v2602 = vpop.f32.mrb[0].mxu0
  %v2603 = vadd.f32 %v1469, %v2602
  %2604 = vmatprep.mubr.bf16.mxu0 0
  %2605 = vmatmul.mubr.bf16.gmra.mrb[0].mxu0 %v1354
  %v2606 = vpop.f32.mrb[0].mxu0
  %v2607 = vadd.f32 %v1465, %v2606
  %v2608 = vpop.f32.mrb[0].mxu0
  %v2609 = vadd.f32 %v1469, %v2608
  %v2610 = vpop.f32.mrb[0].mxu0
  %v2611 = vadd.f32 %v1465, %v2610
  %v2612 = vpop.f32.mrb[0].mxu0
  %v2613 = vadd.f32 %v1469, %v2612
  %2614 = vmatprep.mubr.bf16.mxu0 0
  %2615 = vmatmul.mubr.bf16.gmra.mrb[0].mxu0 %v1355
  %v2616 = vpop.f32.mrb[0].mxu0
  %v2617 = vadd.f32 %v1465, %v2616
  %v2618 = vpop.f32.mrb[0].mxu0
  %v2619 = vadd.f32 %v1469, %v2618
  %v2620 = vpop.f32.mrb[0].mxu0
  %v2621 = vadd.f32 %v1465, %v2620
  %v2622 = vpop.f32.mrb[0].mxu0
  %v2623 = vadd.f32 %v1469, %v2622
  %2624 = vmatprep.mubr.bf16.mxu0 0
  %2625 = vmatmul.mubr.bf16.gmra.mrb[0].mxu0 %v1356
  %v2626 = vpop.f32.mrb[0].mxu0
  %v2627 = vadd.f32 %v1465, %v2626
  %v2628 = vpop.f32.mrb[0].mxu0
  %v2629 = vadd.f32 %v1469, %v2628
  %v2630 = vpop.f32.mrb[0].mxu0
  %v2631 = vadd.f32 %v1465, %v2630
  %v2632 = vpop.f32.mrb[0].mxu0
  %v2633 = vadd.f32 %v1469, %v2632
  %2634 = vmatprep.mubr.bf16.mxu0 0
  %2635 = vmatmul.mubr.bf16.gmra.mrb[0].mxu0 %v1357
  %v2636 = vpop.f32.mrb[0].mxu0
  %v2637 = vadd.f32 %v1465, %v2636
  %v2638 = vpop.f32.mrb[0].mxu0
  %v2639 = vadd.f32 %v1469, %v2638
  %v2640 = vpop.f32.mrb[0].mxu0
  %v2641 = vadd.f32 %v1465, %v2640
  %v2642 = vpop.f32.mrb[0].mxu0
  %v2643 = vadd.f32 %v1469, %v2642
  %2644 = vmatprep.mubr.bf16.mxu0 0
  %2645 = vmatmul.mubr.bf16.gmra.mrb[0].mxu0 %v1358
  %v2646 = vpop.f32.mrb[0].mxu0
  %v2647 = vadd.f32 %v1465, %v2646
  %v2648 = vpop.f32.mrb[0].mxu0
  %v2649 = vadd.f32 %v1469, %v2648
  %v2650 = vpop.f32.mrb[0].mxu0
  %v2651 = vadd.f32 %v1465, %v2650
  %v2652 = vpop.f32.mrb[0].mxu0
  %v2653 = vadd.f32 %v1469, %v2652
  %2654 = vmatprep.mubr.bf16.mxu0 0
  %2655 = vmatmul.mubr.bf16.gmra.mrb[0].mxu0 %v1359
  %v2656 = vpop.f32.mrb[0].mxu0
  %v2657 = vadd.f32 %v1465, %v2656
  %v2658 = vpop.f32.mrb[0].mxu0
  %v2659 = vadd.f32 %v1469, %v2658
  %v2660 = vpop.f32.mrb[0].mxu0
  %v2661 = vadd.f32 %v1465, %v2660
  %v2662 = vpop.f32.mrb[0].mxu0
  %v2663 = vadd.f32 %v1469, %v2662
  %2664 = vmatprep.mubr.bf16.mxu0 0
  %2665 = vmatmul.mubr.bf16.gmra.mrb[0].mxu0 %v1360
  %v2666 = vpop.f32.mrb[0].mxu0
  %v2667 = vadd.f32 %v1465, %v2666
  %v2668 = vpop.f32.mrb[0].mxu0
  %v2669 = vadd.f32 %v1469, %v2668
  %v2670 = vpop.f32.mrb[0].mxu0
  %v2671 = vadd.f32 %v1465, %v2670
  %v2672 = vpop.f32.mrb[0].mxu0
  %v2673 = vadd.f32 %v1469, %v2672
  %2674 = vmatprep.mubr.bf16.mxu0 0
  %2675 = vmatmul.mubr.bf16.gmra.mrb[0].mxu0 %v1361
  %v2676 = vpop.f32.mrb[0].mxu0
  %v2677 = vadd.f32 %v1465, %v2676
  %v2678 = vpop.f32.mrb[0].mxu0
  %v2679 = vadd.f32 %v1469, %v2678
  %v2680 = vpop.f32.mrb[0].mxu0
  %v2681 = vadd.f32 %v1465, %v2680
  %v2682 = vpop.f32.mrb[0].mxu0
  %v2683 = vadd.f32 %v1469, %v2682
  %2684 = vmatprep.mubr.bf16.mxu0 0
  %2685 = vmatmul.mubr.bf16.gmra.mrb[0].mxu0 %v1362
  %v2686 = vpop.f32.mrb[0].mxu0
  %v2687 = vadd.f32 %v1465, %v2686
  %v2688 = vpop.f32.mrb[0].mxu0
  %v2689 = vadd.f32 %v1469, %v2688
  %v2690 = vpop.f32.mrb[0].mxu0
  %v2691 = vadd.f32 %v1465, %v2690
  %v2692 = vpop.f32.mrb[0].mxu0
  %v2693 = vadd.f32 %v1469, %v2692
  %2694 = vmatprep.mubr.bf16.mxu0 0
  %2695 = vmatmul.mubr.bf16.gmra.mrb[0].mxu0 %v1363
  %v2696 = vpop.f32.mrb[0].mxu0
  %v2697 = vadd.f32 %v1465, %v2696
  %v2698 = vpop.f32.mrb[0].mxu0
  %v2699 = vadd.f32 %v1469, %v2698
  %v2700 = vpop.f32.mrb[0].mxu0
  %v2701 = vadd.f32 %v1465, %v2700
  %v2702 = vpop.f32.mrb[0].mxu0
  %v2703 = vadd.f32 %v1469, %v2702
  %2704 = vmatprep.mubr.bf16.mxu0 0
  %2705 = vmatmul.mubr.bf16.gmra.mrb[0].mxu0 %v1364
  %v2706 = vpop.f32.mrb[0].mxu0
  %v2707 = vadd.f32 %v1465, %v2706
  %v2708 = vpop.f32.mrb[0].mxu0
  %v2709 = vadd.f32 %v1469, %v2708
  %v2710 = vpop.f32.mrb[0].mxu0
  %v2711 = vadd.f32 %v1465, %v2710
  %v2712 = vpop.f32.mrb[0].mxu0
  %v2713 = vadd.f32 %v1469, %v2712
  %2714 = vmatprep.mubr.bf16.mxu0 0
  %2715 = vmatmul.mubr.bf16.gmra.mrb[0].mxu0 %v1365
  %v2716 = vpop.f32.mrb[0].mxu0
  %v2717 = vadd.f32 %v1465, %v2716
  %v2718 = vpop.f32.mrb[0].mxu0
  %v2719 = vadd.f32 %v1469, %v2718
  %v2720 = vpop.f32.mrb[0].mxu0
  %v2721 = vadd.f32 %v1465, %v2720
  %v2722 = vpop.f32.mrb[0].mxu0
  %v2723 = vadd.f32 %v1469, %v2722
  %2724 = vmatprep.mubr.bf16.mxu0 0
  %2725 = vmatmul.mubr.bf16.gmra.mrb[0].mxu0 %v1366
  %v2726 = vpop.f32.mrb[0].mxu0
  %v2727 = vadd.f32 %v1465, %v2726
  %v2728 = vpop.f32.mrb[0].mxu0
  %v2729 = vadd.f32 %v1469, %v2728
  %v2730 = vpop.f32.mrb[0].mxu0
  %v2731 = vadd.f32 %v1465, %v2730
  %v2732 = vpop.f32.mrb[0].mxu0
  %v2733 = vadd.f32 %v1469, %v2732
  %2734 = vmatprep.mubr.bf16.mxu0 0
  %2735 = vmatmul.mubr.bf16.gmra.mrb[0].mxu0 %v1367
  %v2736 = vpop.f32.mrb[0].mxu0
  %v2737 = vadd.f32 %v1465, %v2736
  %v2738 = vpop.f32.mrb[0].mxu0
  %v2739 = vadd.f32 %v1469, %v2738
  %v2740 = vpop.f32.mrb[0].mxu0
  %v2741 = vadd.f32 %v1465, %v2740
  %v2742 = vpop.f32.mrb[0].mxu0
  %v2743 = vadd.f32 %v1469, %v2742
  %2744 = vmatprep.mubr.bf16.mxu0 0
  %2745 = vmatmul.mubr.bf16.gmra.mrb[0].mxu0 %v1368
  %v2746 = vpop.f32.mrb[0].mxu0
  %v2747 = vadd.f32 %v1465, %v2746
  %v2748 = vpop.f32.mrb[0].mxu0
  %v2749 = vadd.f32 %v1469, %v2748
  %v2750 = vpop.f32.mrb[0].mxu0
  %v2751 = vadd.f32 %v1465, %v2750
  %v2752 = vpop.f32.mrb[0].mxu0
  %v2753 = vadd.f32 %v1469, %v2752
  %2754 = vmatprep.mubr.bf16.mxu0 0
  %2755 = vmatmul.mubr.bf16.gmra.mrb[0].mxu0 %v1369
  %v2756 = vpop.f32.mrb[0].mxu0
  %v2757 = vadd.f32 %v1465, %v2756
  %v2758 = vpop.f32.mrb[0].mxu0
  %v2759 = vadd.f32 %v1469, %v2758
  %v2760 = vpop.f32.mrb[0].mxu0
  %v2761 = vadd.f32 %v1465, %v2760
  %v2762 = vpop.f32.mrb[0].mxu0
  %v2763 = vadd.f32 %v1469, %v2762
  %2764 = vmatprep.mubr.bf16.mxu0 0
  %2765 = vmatmul.mubr.bf16.gmra.mrb[0].mxu0 %v1370
  %v2766 = vpop.f32.mrb[0].mxu0
  %v2767 = vadd.f32 %v1465, %v2766
  %v2768 = vpop.f32.mrb[0].mxu0
  %v2769 = vadd.f32 %v1469, %v2768
  %v2770 = vpop.f32.mrb[0].mxu0
  %v2771 = vadd.f32 %v1465, %v2770
  %v2772 = vpop.f32.mrb[0].mxu0
  %v2773 = vadd.f32 %v1469, %v2772
  %2774 = vmatprep.mubr.bf16.mxu0 0
  %2775 = vmatmul.mubr.bf16.gmra.mrb[0].mxu0 %v1371
  %v2776 = vpop.f32.mrb[0].mxu0
  %v2777 = vadd.f32 %v1465, %v2776
  %v2778 = vpop.f32.mrb[0].mxu0
  %v2779 = vadd.f32 %v1469, %v2778
  %v2780 = vpop.f32.mrb[0].mxu0
  %v2781 = vadd.f32 %v1465, %v2780
  %v2782 = vpop.f32.mrb[0].mxu0
  %v2783 = vadd.f32 %v1469, %v2782
  %2784 = vmatprep.mubr.bf16.mxu0 0
  %2785 = vmatmul.mubr.bf16.gmra.mrb[0].mxu0 %v1372
  %v2786 = vpop.f32.mrb[0].mxu0
  %v2787 = vadd.f32 %v1465, %v2786
  %v2788 = vpop.f32.mrb[0].mxu0
  %v2789 = vadd.f32 %v1469, %v2788
  %v2790 = vpop.f32.mrb[0].mxu0
  %v2791 = vadd.f32 %v1465, %v2790
  %v2792 = vpop.f32.mrb[0].mxu0
  %v2793 = vadd.f32 %v1469, %v2792
  %2794 = vmatprep.mubr.bf16.mxu0 0
  %2795 = vmatmul.mubr.bf16.gmra.mrb[0].mxu0 %v1373
  %v2796 = vpop.f32.mrb[0].mxu0
  %v2797 = vadd.f32 %v1465, %v2796
  %v2798 = vpop.f32.mrb[0].mxu0
  %v2799 = vadd.f32 %v1469, %v2798
  %v2800 = vpop.f32.mrb[0].mxu0
  %v2801 = vadd.f32 %v1465, %v2800
  %v2802 = vpop.f32.mrb[0].mxu0
  %v2803 = vadd.f32 %v1469, %v2802
  %2804 = vmatprep.mubr.bf16.mxu0 0
  %2805 = vmatmul.mubr.bf16.gmra.mrb[0].mxu0 %v1374
  %v2806 = vpop.f32.mrb[0].mxu0
  %v2807 = vadd.f32 %v1465, %v2806
  %v2808 = vpop.f32.mrb[0].mxu0
  %v2809 = vadd.f32 %v1469, %v2808
  %v2810 = vpop.f32.mrb[0].mxu0
  %v2811 = vadd.f32 %v1465, %v2810
  %v2812 = vpop.f32.mrb[0].mxu0
  %v2813 = vadd.f32 %v1469, %v2812
  %2814 = vmatprep.mubr.bf16.mxu0 0
  %2815 = vmatmul.mubr.bf16.gmra.mrb[0].mxu0 %v1375
  %v2816 = vpop.f32.mrb[0].mxu0
  %v2817 = vadd.f32 %v1465, %v2816
  %v2818 = vpop.f32.mrb[0].mxu0
  %v2819 = vadd.f32 %v1469, %v2818
  %v2820 = vpop.f32.mrb[0].mxu0
  %v2821 = vadd.f32 %v1465, %v2820
  %v2822 = vpop.f32.mrb[0].mxu0
  %v2823 = vadd.f32 %v1469, %v2822
  %2824 = vmatprep.mubr.bf16.mxu0 0
  %2825 = vmatmul.mubr.bf16.gmra.mrb[0].mxu0 %v1376
  %v2826 = vpop.f32.mrb[0].mxu0
  %v2827 = vadd.f32 %v1465, %v2826
  %v2828 = vpop.f32.mrb[0].mxu0
  %v2829 = vadd.f32 %v1469, %v2828
  %v2830 = vpop.f32.mrb[0].mxu0
  %v2831 = vadd.f32 %v1465, %v2830
  %v2832 = vpop.f32.mrb[0].mxu0
  %v2833 = vadd.f32 %v1469, %v2832
  %2834 = vmatprep.mubr.bf16.mxu0 0
  %2835 = vmatmul.mubr.bf16.gmra.mrb[0].mxu0 %v1377
  %v2836 = vpop.f32.mrb[0].mxu0
  %v2837 = vadd.f32 %v1465, %v2836
  %v2838 = vpop.f32.mrb[0].mxu0
  %v2839 = vadd.f32 %v1469, %v2838
  %v2840 = vpop.f32.mrb[0].mxu0
  %v2841 = vadd.f32 %v1465, %v2840
  %v2842 = vpop.f32.mrb[0].mxu0
  %v2843 = vadd.f32 %v1469, %v2842
  %2844 = vmatprep.mubr.bf16.mxu0 0
  %2845 = vmatmul.mubr.bf16.gmra.mrb[0].mxu0 %v1378
  %v2846 = vpop.f32.mrb[0].mxu0
  %v2847 = vadd.f32 %v1465, %v2846
  %v2848 = vpop.f32.mrb[0].mxu0
  %v2849 = vadd.f32 %v1469, %v2848
  %v2850 = vpop.f32.mrb[0].mxu0
  %v2851 = vadd.f32 %v1465, %v2850
  %v2852 = vpop.f32.mrb[0].mxu0
  %v2853 = vadd.f32 %v1469, %v2852
  %2854 = vmatprep.mubr.bf16.mxu0 0
  %2855 = vmatmul.mubr.bf16.gmra.mrb[0].mxu0 %v1379
  %v2856 = vpop.f32.mrb[0].mxu0
  %v2857 = vadd.f32 %v1465, %v2856
  %v2858 = vpop.f32.mrb[0].mxu0
  %v2859 = vadd.f32 %v1469, %v2858
  %v2860 = vpop.f32.mrb[0].mxu0
  %v2861 = vadd.f32 %v1465, %v2860
  %v2862 = vpop.f32.mrb[0].mxu0
  %v2863 = vadd.f32 %v1469, %v2862
  %2864 = vdwg.mxu0
  %2865 = vmatprep.subr.bf16.mxu0 %v1685
  %2866 = vmatpush1.bf16.msra.mxu0 %v1684
  %2867 = vmatprep.subr.bf16.mxu0 %v1693
  %2868 = vmatpush1.bf16.msra.mxu0 %v1692
  %2869 = vmatprep.subr.bf16.mxu0 %v1701
  %2870 = vmatpush1.bf16.msra.mxu0 %v1700
  %2871 = vmatprep.subr.bf16.mxu0 %v1709
  %2872 = vmatpush1.bf16.msra.mxu0 %v1708
  %2873 = vmatprep.subr.bf16.mxu0 %v1717
  %2874 = vmatpush1.bf16.msra.mxu0 %v1716
  %2875 = vmatprep.subr.bf16.mxu0 %v1725
  %2876 = vmatpush1.bf16.msra.mxu0 %v1724
  %2877 = vmatprep.subr.bf16.mxu0 %v1733
  %2878 = vmatpush1.bf16.msra.mxu0 %v1732
  %2879 = vmatprep.subr.bf16.mxu0 %v1741
  %2880 = vmatpush1.bf16.msra.mxu0 %v1740
  %2881 = vmatprep.subr.bf16.mxu0 0
  %2882 = vmatpush1.bf16.msra.mxu0 0
  %2883 = vmatprep.subr.bf16.mxu0 0
  %2884 = vmatpush1.bf16.msra.mxu0 0
  %2885 = vmatprep.subr.bf16.mxu0 0
  %2886 = vmatpush1.bf16.msra.mxu0 0
  %2887 = vmatprep.subr.bf16.mxu0 0
  %2888 = vmatpush1.bf16.msra.mxu0 0
  %2889 = vmatprep.subr.bf16.mxu0 0
  %2890 = vmatpush1.bf16.msra.mxu0 0
  %2891 = vmatprep.subr.bf16.mxu0 0
  %2892 = vmatpush1.bf16.msra.mxu0 0
  %2893 = vmatprep.subr.bf16.mxu0 0
  %2894 = vmatpush1.bf16.msra.mxu0 0
  %2895 = vmatprep.subr.bf16.mxu0 0
  %2896 = vmatpush1.bf16.msra.mxu0 0
  %2897 = vmatprep.mubr.bf16.mxu0 0
  %2898 = vmatmul.mubr.bf16.gmra.mrb[0].mxu0 %v1348
  %v2899 = vpop.f32.mrb[0].mxu0
  %v2900 = vadd.f32 %v1473, %v2899
  %v2901 = vpop.f32.mrb[0].mxu0
  %v2902 = vadd.f32 %v1477, %v2901
  %v2903 = vpop.f32.mrb[0].mxu0
  %v2904 = vadd.f32 %v1473, %v2903
  %v2905 = vpop.f32.mrb[0].mxu0
  %v2906 = vadd.f32 %v1477, %v2905
  %2907 = vmatprep.mubr.bf16.mxu0 0
  %2908 = vmatmul.mubr.bf16.gmra.mrb[0].mxu0 %v1349
  %v2909 = vpop.f32.mrb[0].mxu0
  %v2910 = vadd.f32 %v1473, %v2909
  %v2911 = vpop.f32.mrb[0].mxu0
  %v2912 = vadd.f32 %v1477, %v2911
  %v2913 = vpop.f32.mrb[0].mxu0
  %v2914 = vadd.f32 %v1473, %v2913
  %v2915 = vpop.f32.mrb[0].mxu0
  %v2916 = vadd.f32 %v1477, %v2915
  %2917 = vmatprep.mubr.bf16.mxu0 0
  %2918 = vmatmul.mubr.bf16.gmra.mrb[0].mxu0 %v1350
  %v2919 = vpop.f32.mrb[0].mxu0
  %v2920 = vadd.f32 %v1473, %v2919
  %v2921 = vpop.f32.mrb[0].mxu0
  %v2922 = vadd.f32 %v1477, %v2921
  %v2923 = vpop.f32.mrb[0].mxu0
  %v2924 = vadd.f32 %v1473, %v2923
  %v2925 = vpop.f32.mrb[0].mxu0
  %v2926 = vadd.f32 %v1477, %v2925
  %2927 = vmatprep.mubr.bf16.mxu0 0
  %2928 = vmatmul.mubr.bf16.gmra.mrb[0].mxu0 %v1351
  %v2929 = vpop.f32.mrb[0].mxu0
  %v2930 = vadd.f32 %v1473, %v2929
  %v2931 = vpop.f32.mrb[0].mxu0
  %v2932 = vadd.f32 %v1477, %v2931
  %v2933 = vpop.f32.mrb[0].mxu0
  %v2934 = vadd.f32 %v1473, %v2933
  %v2935 = vpop.f32.mrb[0].mxu0
  %v2936 = vadd.f32 %v1477, %v2935
  %2937 = vmatprep.mubr.bf16.mxu0 0
  %2938 = vmatmul.mubr.bf16.gmra.mrb[0].mxu0 %v1352
  %v2939 = vpop.f32.mrb[0].mxu0
  %v2940 = vadd.f32 %v1473, %v2939
  %v2941 = vpop.f32.mrb[0].mxu0
  %v2942 = vadd.f32 %v1477, %v2941
  %v2943 = vpop.f32.mrb[0].mxu0
  %v2944 = vadd.f32 %v1473, %v2943
  %v2945 = vpop.f32.mrb[0].mxu0
  %v2946 = vadd.f32 %v1477, %v2945
  %2947 = vmatprep.mubr.bf16.mxu0 0
  %2948 = vmatmul.mubr.bf16.gmra.mrb[0].mxu0 %v1353
  %v2949 = vpop.f32.mrb[0].mxu0
  %v2950 = vadd.f32 %v1473, %v2949
  %v2951 = vpop.f32.mrb[0].mxu0
  %v2952 = vadd.f32 %v1477, %v2951
  %v2953 = vpop.f32.mrb[0].mxu0
  %v2954 = vadd.f32 %v1473, %v2953
  %v2955 = vpop.f32.mrb[0].mxu0
  %v2956 = vadd.f32 %v1477, %v2955
  %2957 = vmatprep.mubr.bf16.mxu0 0
  %2958 = vmatmul.mubr.bf16.gmra.mrb[0].mxu0 %v1354
  %v2959 = vpop.f32.mrb[0].mxu0
  %v2960 = vadd.f32 %v1473, %v2959
  %v2961 = vpop.f32.mrb[0].mxu0
  %v2962 = vadd.f32 %v1477, %v2961
  %v2963 = vpop.f32.mrb[0].mxu0
  %v2964 = vadd.f32 %v1473, %v2963
  %v2965 = vpop.f32.mrb[0].mxu0
  %v2966 = vadd.f32 %v1477, %v2965
  %2967 = vmatprep.mubr.bf16.mxu0 0
  %2968 = vmatmul.mubr.bf16.gmra.mrb[0].mxu0 %v1355
  %v2969 = vpop.f32.mrb[0].mxu0
  %v2970 = vadd.f32 %v1473, %v2969
  %v2971 = vpop.f32.mrb[0].mxu0
  %v2972 = vadd.f32 %v1477, %v2971
  %v2973 = vpop.f32.mrb[0].mxu0
  %v2974 = vadd.f32 %v1473, %v2973
  %v2975 = vpop.f32.mrb[0].mxu0
  %v2976 = vadd.f32 %v1477, %v2975
  %2977 = vmatprep.mubr.bf16.mxu0 0
  %2978 = vmatmul.mubr.bf16.gmra.mrb[0].mxu0 %v1356
  %v2979 = vpop.f32.mrb[0].mxu0
  %v2980 = vadd.f32 %v1473, %v2979
  %v2981 = vpop.f32.mrb[0].mxu0
  %v2982 = vadd.f32 %v1477, %v2981
  %v2983 = vpop.f32.mrb[0].mxu0
  %v2984 = vadd.f32 %v1473, %v2983
  %v2985 = vpop.f32.mrb[0].mxu0
  %v2986 = vadd.f32 %v1477, %v2985
  %2987 = vmatprep.mubr.bf16.mxu0 0
  %2988 = vmatmul.mubr.bf16.gmra.mrb[0].mxu0 %v1357
  %v2989 = vpop.f32.mrb[0].mxu0
  %v2990 = vadd.f32 %v1473, %v2989
  %v2991 = vpop.f32.mrb[0].mxu0
  %v2992 = vadd.f32 %v1477, %v2991
  %v2993 = vpop.f32.mrb[0].mxu0
  %v2994 = vadd.f32 %v1473, %v2993
  %v2995 = vpop.f32.mrb[0].mxu0
  %v2996 = vadd.f32 %v1477, %v2995
  %2997 = vmatprep.mubr.bf16.mxu0 0
  %2998 = vmatmul.mubr.bf16.gmra.mrb[0].mxu0 %v1358
  %v2999 = vpop.f32.mrb[0].mxu0
  %v3000 = vadd.f32 %v1473, %v2999
  %v3001 = vpop.f32.mrb[0].mxu0
  %v3002 = vadd.f32 %v1477, %v3001
  %v3003 = vpop.f32.mrb[0].mxu0
  %v3004 = vadd.f32 %v1473, %v3003
  %v3005 = vpop.f32.mrb[0].mxu0
  %v3006 = vadd.f32 %v1477, %v3005
  %3007 = vmatprep.mubr.bf16.mxu0 0
  %3008 = vmatmul.mubr.bf16.gmra.mrb[0].mxu0 %v1359
  %v3009 = vpop.f32.mrb[0].mxu0
  %v3010 = vadd.f32 %v1473, %v3009
  %v3011 = vpop.f32.mrb[0].mxu0
  %v3012 = vadd.f32 %v1477, %v3011
  %v3013 = vpop.f32.mrb[0].mxu0
  %v3014 = vadd.f32 %v1473, %v3013
  %v3015 = vpop.f32.mrb[0].mxu0
  %v3016 = vadd.f32 %v1477, %v3015
  %3017 = vmatprep.mubr.bf16.mxu0 0
  %3018 = vmatmul.mubr.bf16.gmra.mrb[0].mxu0 %v1360
  %v3019 = vpop.f32.mrb[0].mxu0
  %v3020 = vadd.f32 %v1473, %v3019
  %v3021 = vpop.f32.mrb[0].mxu0
  %v3022 = vadd.f32 %v1477, %v3021
  %v3023 = vpop.f32.mrb[0].mxu0
  %v3024 = vadd.f32 %v1473, %v3023
  %v3025 = vpop.f32.mrb[0].mxu0
  %v3026 = vadd.f32 %v1477, %v3025
  %3027 = vmatprep.mubr.bf16.mxu0 0
  %3028 = vmatmul.mubr.bf16.gmra.mrb[0].mxu0 %v1361
  %v3029 = vpop.f32.mrb[0].mxu0
  %v3030 = vadd.f32 %v1473, %v3029
  %v3031 = vpop.f32.mrb[0].mxu0
  %v3032 = vadd.f32 %v1477, %v3031
  %v3033 = vpop.f32.mrb[0].mxu0
  %v3034 = vadd.f32 %v1473, %v3033
  %v3035 = vpop.f32.mrb[0].mxu0
  %v3036 = vadd.f32 %v1477, %v3035
  %3037 = vmatprep.mubr.bf16.mxu0 0
  %3038 = vmatmul.mubr.bf16.gmra.mrb[0].mxu0 %v1362
  %v3039 = vpop.f32.mrb[0].mxu0
  %v3040 = vadd.f32 %v1473, %v3039
  %v3041 = vpop.f32.mrb[0].mxu0
  %v3042 = vadd.f32 %v1477, %v3041
  %v3043 = vpop.f32.mrb[0].mxu0
  %v3044 = vadd.f32 %v1473, %v3043
  %v3045 = vpop.f32.mrb[0].mxu0
  %v3046 = vadd.f32 %v1477, %v3045
  %3047 = vmatprep.mubr.bf16.mxu0 0
  %3048 = vmatmul.mubr.bf16.gmra.mrb[0].mxu0 %v1363
  %v3049 = vpop.f32.mrb[0].mxu0
  %v3050 = vadd.f32 %v1473, %v3049
  %v3051 = vpop.f32.mrb[0].mxu0
  %v3052 = vadd.f32 %v1477, %v3051
  %v3053 = vpop.f32.mrb[0].mxu0
  %v3054 = vadd.f32 %v1473, %v3053
  %v3055 = vpop.f32.mrb[0].mxu0
  %v3056 = vadd.f32 %v1477, %v3055
  %3057 = vmatprep.mubr.bf16.mxu0 0
  %3058 = vmatmul.mubr.bf16.gmra.mrb[0].mxu0 %v1364
  %v3059 = vpop.f32.mrb[0].mxu0
  %v3060 = vadd.f32 %v1473, %v3059
  %v3061 = vpop.f32.mrb[0].mxu0
  %v3062 = vadd.f32 %v1477, %v3061
  %v3063 = vpop.f32.mrb[0].mxu0
  %v3064 = vadd.f32 %v1473, %v3063
  %v3065 = vpop.f32.mrb[0].mxu0
  %v3066 = vadd.f32 %v1477, %v3065
  %3067 = vmatprep.mubr.bf16.mxu0 0
  %3068 = vmatmul.mubr.bf16.gmra.mrb[0].mxu0 %v1365
  %v3069 = vpop.f32.mrb[0].mxu0
  %v3070 = vadd.f32 %v1473, %v3069
  %v3071 = vpop.f32.mrb[0].mxu0
  %v3072 = vadd.f32 %v1477, %v3071
  %v3073 = vpop.f32.mrb[0].mxu0
  %v3074 = vadd.f32 %v1473, %v3073
  %v3075 = vpop.f32.mrb[0].mxu0
  %v3076 = vadd.f32 %v1477, %v3075
  %3077 = vmatprep.mubr.bf16.mxu0 0
  %3078 = vmatmul.mubr.bf16.gmra.mrb[0].mxu0 %v1366
  %v3079 = vpop.f32.mrb[0].mxu0
  %v3080 = vadd.f32 %v1473, %v3079
  %v3081 = vpop.f32.mrb[0].mxu0
  %v3082 = vadd.f32 %v1477, %v3081
  %v3083 = vpop.f32.mrb[0].mxu0
  %v3084 = vadd.f32 %v1473, %v3083
  %v3085 = vpop.f32.mrb[0].mxu0
  %v3086 = vadd.f32 %v1477, %v3085
  %3087 = vmatprep.mubr.bf16.mxu0 0
  %3088 = vmatmul.mubr.bf16.gmra.mrb[0].mxu0 %v1367
  %v3089 = vpop.f32.mrb[0].mxu0
  %v3090 = vadd.f32 %v1473, %v3089
  %v3091 = vpop.f32.mrb[0].mxu0
  %v3092 = vadd.f32 %v1477, %v3091
  %v3093 = vpop.f32.mrb[0].mxu0
  %v3094 = vadd.f32 %v1473, %v3093
  %v3095 = vpop.f32.mrb[0].mxu0
  %v3096 = vadd.f32 %v1477, %v3095
  %3097 = vmatprep.mubr.bf16.mxu0 0
  %3098 = vmatmul.mubr.bf16.gmra.mrb[0].mxu0 %v1368
  %v3099 = vpop.f32.mrb[0].mxu0
  %v3100 = vadd.f32 %v1473, %v3099
  %v3101 = vpop.f32.mrb[0].mxu0
  %v3102 = vadd.f32 %v1477, %v3101
  %v3103 = vpop.f32.mrb[0].mxu0
  %v3104 = vadd.f32 %v1473, %v3103
  %v3105 = vpop.f32.mrb[0].mxu0
  %v3106 = vadd.f32 %v1477, %v3105
  %3107 = vmatprep.mubr.bf16.mxu0 0
  %3108 = vmatmul.mubr.bf16.gmra.mrb[0].mxu0 %v1369
  %v3109 = vpop.f32.mrb[0].mxu0
  %v3110 = vadd.f32 %v1473, %v3109
  %v3111 = vpop.f32.mrb[0].mxu0
  %v3112 = vadd.f32 %v1477, %v3111
  %v3113 = vpop.f32.mrb[0].mxu0
  %v3114 = vadd.f32 %v1473, %v3113
  %v3115 = vpop.f32.mrb[0].mxu0
  %v3116 = vadd.f32 %v1477, %v3115
  %3117 = vmatprep.mubr.bf16.mxu0 0
  %3118 = vmatmul.mubr.bf16.gmra.mrb[0].mxu0 %v1370
  %v3119 = vpop.f32.mrb[0].mxu0
  %v3120 = vadd.f32 %v1473, %v3119
  %v3121 = vpop.f32.mrb[0].mxu0
  %v3122 = vadd.f32 %v1477, %v3121
  %v3123 = vpop.f32.mrb[0].mxu0
  %v3124 = vadd.f32 %v1473, %v3123
  %v3125 = vpop.f32.mrb[0].mxu0
  %v3126 = vadd.f32 %v1477, %v3125
  %3127 = vmatprep.mubr.bf16.mxu0 0
  %3128 = vmatmul.mubr.bf16.gmra.mrb[0].mxu0 %v1371
  %v3129 = vpop.f32.mrb[0].mxu0
  %v3130 = vadd.f32 %v1473, %v3129
  %v3131 = vpop.f32.mrb[0].mxu0
  %v3132 = vadd.f32 %v1477, %v3131
  %v3133 = vpop.f32.mrb[0].mxu0
  %v3134 = vadd.f32 %v1473, %v3133
  %v3135 = vpop.f32.mrb[0].mxu0
  %v3136 = vadd.f32 %v1477, %v3135
  %3137 = vmatprep.mubr.bf16.mxu0 0
  %3138 = vmatmul.mubr.bf16.gmra.mrb[0].mxu0 %v1372
  %v3139 = vpop.f32.mrb[0].mxu0
  %v3140 = vadd.f32 %v1473, %v3139
  %v3141 = vpop.f32.mrb[0].mxu0
  %v3142 = vadd.f32 %v1477, %v3141
  %v3143 = vpop.f32.mrb[0].mxu0
  %v3144 = vadd.f32 %v1473, %v3143
  %v3145 = vpop.f32.mrb[0].mxu0
  %v3146 = vadd.f32 %v1477, %v3145
  %3147 = vmatprep.mubr.bf16.mxu0 0
  %3148 = vmatmul.mubr.bf16.gmra.mrb[0].mxu0 %v1373
  %v3149 = vpop.f32.mrb[0].mxu0
  %v3150 = vadd.f32 %v1473, %v3149
  %v3151 = vpop.f32.mrb[0].mxu0
  %v3152 = vadd.f32 %v1477, %v3151
  %v3153 = vpop.f32.mrb[0].mxu0
  %v3154 = vadd.f32 %v1473, %v3153
  %v3155 = vpop.f32.mrb[0].mxu0
  %v3156 = vadd.f32 %v1477, %v3155
  %3157 = vmatprep.mubr.bf16.mxu0 0
  %3158 = vmatmul.mubr.bf16.gmra.mrb[0].mxu0 %v1374
  %v3159 = vpop.f32.mrb[0].mxu0
  %v3160 = vadd.f32 %v1473, %v3159
  %v3161 = vpop.f32.mrb[0].mxu0
  %v3162 = vadd.f32 %v1477, %v3161
  %v3163 = vpop.f32.mrb[0].mxu0
  %v3164 = vadd.f32 %v1473, %v3163
  %v3165 = vpop.f32.mrb[0].mxu0
  %v3166 = vadd.f32 %v1477, %v3165
  %3167 = vmatprep.mubr.bf16.mxu0 0
  %3168 = vmatmul.mubr.bf16.gmra.mrb[0].mxu0 %v1375
  %v3169 = vpop.f32.mrb[0].mxu0
  %v3170 = vadd.f32 %v1473, %v3169
  %v3171 = vpop.f32.mrb[0].mxu0
  %v3172 = vadd.f32 %v1477, %v3171
  %v3173 = vpop.f32.mrb[0].mxu0
  %v3174 = vadd.f32 %v1473, %v3173
  %v3175 = vpop.f32.mrb[0].mxu0
  %v3176 = vadd.f32 %v1477, %v3175
  %3177 = vmatprep.mubr.bf16.mxu0 0
  %3178 = vmatmul.mubr.bf16.gmra.mrb[0].mxu0 %v1376
  %v3179 = vpop.f32.mrb[0].mxu0
  %v3180 = vadd.f32 %v1473, %v3179
  %v3181 = vpop.f32.mrb[0].mxu0
  %v3182 = vadd.f32 %v1477, %v3181
  %v3183 = vpop.f32.mrb[0].mxu0
  %v3184 = vadd.f32 %v1473, %v3183
  %v3185 = vpop.f32.mrb[0].mxu0
  %v3186 = vadd.f32 %v1477, %v3185
  %3187 = vmatprep.mubr.bf16.mxu0 0
  %3188 = vmatmul.mubr.bf16.gmra.mrb[0].mxu0 %v1377
  %v3189 = vpop.f32.mrb[0].mxu0
  %v3190 = vadd.f32 %v1473, %v3189
  %v3191 = vpop.f32.mrb[0].mxu0
  %v3192 = vadd.f32 %v1477, %v3191
  %v3193 = vpop.f32.mrb[0].mxu0
  %v3194 = vadd.f32 %v1473, %v3193
  %v3195 = vpop.f32.mrb[0].mxu0
  %v3196 = vadd.f32 %v1477, %v3195
  %3197 = vmatprep.mubr.bf16.mxu0 0
  %3198 = vmatmul.mubr.bf16.gmra.mrb[0].mxu0 %v1378
  %v3199 = vpop.f32.mrb[0].mxu0
  %v3200 = vadd.f32 %v1473, %v3199
  %v3201 = vpop.f32.mrb[0].mxu0
  %v3202 = vadd.f32 %v1477, %v3201
  %v3203 = vpop.f32.mrb[0].mxu0
  %v3204 = vadd.f32 %v1473, %v3203
  %v3205 = vpop.f32.mrb[0].mxu0
  %v3206 = vadd.f32 %v1477, %v3205
  %3207 = vmatprep.mubr.bf16.mxu0 0
  %3208 = vmatmul.mubr.bf16.gmra.mrb[0].mxu0 %v1379
  %v3209 = vpop.f32.mrb[0].mxu0
  %v3210 = vadd.f32 %v1473, %v3209
  %v3211 = vpop.f32.mrb[0].mxu0
  %v3212 = vadd.f32 %v1477, %v3211
  %v3213 = vpop.f32.mrb[0].mxu0
  %v3214 = vadd.f32 %v1473, %v3213
  %v3215 = vpop.f32.mrb[0].mxu0
  %v3216 = vadd.f32 %v1477, %v3215
  %3217 = vdwg.mxu0
  %v3218 = vmax.f32 %v1841, 0.0
  %v3219 = vmax.f32 %v1843, 0.0
  %v3220 = vmax.f32 %v2194, 0.0
  %v3221 = vmax.f32 %v2196, 0.0
  %v3222 = vmax.f32 %v2547, 0.0
  %v3223 = vmax.f32 %v2549, 0.0
  %v3224 = vmax.f32 %v2900, 0.0
  %v3225 = vmax.f32 %v2902, 0.0
  %v3226 = vmax.f32 %v1845, 0.0
  %v3227 = vmax.f32 %v1847, 0.0
  %v3228 = vmax.f32 %v2198, 0.0
  %v3229 = vmax.f32 %v2200, 0.0
  %v3230 = vmax.f32 %v2551, 0.0
  %v3231 = vmax.f32 %v2553, 0.0
  %v3232 = vmax.f32 %v2904, 0.0
  %v3233 = vmax.f32 %v2906, 0.0
  %v3234 = vmax.f32 %v1851, 0.0
  %v3235 = vmax.f32 %v1853, 0.0
  %v3236 = vmax.f32 %v2204, 0.0
  %v3237 = vmax.f32 %v2206, 0.0
  %v3238 = vmax.f32 %v2557, 0.0
  %v3239 = vmax.f32 %v2559, 0.0
  %v3240 = vmax.f32 %v2910, 0.0
  %v3241 = vmax.f32 %v2912, 0.0
  %v3242 = vmax.f32 %v1855, 0.0
  %v3243 = vmax.f32 %v1857, 0.0
  %v3244 = vmax.f32 %v2208, 0.0
  %v3245 = vmax.f32 %v2210, 0.0
  %v3246 = vmax.f32 %v2561, 0.0
  %v3247 = vmax.f32 %v2563, 0.0
  %v3248 = vmax.f32 %v2914, 0.0
  %v3249 = vmax.f32 %v2916, 0.0
  %v3250 = vmax.f32 %v1861, 0.0
  %v3251 = vmax.f32 %v1863, 0.0
  %v3252 = vmax.f32 %v2214, 0.0
  %v3253 = vmax.f32 %v2216, 0.0
  %v3254 = vmax.f32 %v2567, 0.0
  %v3255 = vmax.f32 %v2569, 0.0
  %v3256 = vmax.f32 %v2920, 0.0
  %v3257 = vmax.f32 %v2922, 0.0
  %v3258 = vmax.f32 %v1865, 0.0
  %v3259 = vmax.f32 %v1867, 0.0
  %v3260 = vmax.f32 %v2218, 0.0
  %v3261 = vmax.f32 %v2220, 0.0
  %v3262 = vmax.f32 %v2571, 0.0
  %v3263 = vmax.f32 %v2573, 0.0
  %v3264 = vmax.f32 %v2924, 0.0
  %v3265 = vmax.f32 %v2926, 0.0
  %v3266 = vmax.f32 %v1871, 0.0
  %v3267 = vmax.f32 %v1873, 0.0
  %v3268 = vmax.f32 %v2224, 0.0
  %v3269 = vmax.f32 %v2226, 0.0
  %v3270 = vmax.f32 %v2577, 0.0
  %v3271 = vmax.f32 %v2579, 0.0
  %v3272 = vmax.f32 %v2930, 0.0
  %v3273 = vmax.f32 %v2932, 0.0
  %v3274 = vmax.f32 %v1875, 0.0
  %v3275 = vmax.f32 %v1877, 0.0
  %v3276 = vmax.f32 %v2228, 0.0
  %v3277 = vmax.f32 %v2230, 0.0
  %v3278 = vmax.f32 %v2581, 0.0
  %v3279 = vmax.f32 %v2583, 0.0
  %v3280 = vmax.f32 %v2934, 0.0
  %v3281 = vmax.f32 %v2936, 0.0
  %v3282 = vmax.f32 %v1881, 0.0
  %v3283 = vmax.f32 %v1883, 0.0
  %v3284 = vmax.f32 %v2234, 0.0
  %v3285 = vmax.f32 %v2236, 0.0
  %v3286 = vmax.f32 %v2587, 0.0
  %v3287 = vmax.f32 %v2589, 0.0
  %v3288 = vmax.f32 %v2940, 0.0
  %v3289 = vmax.f32 %v2942, 0.0
  %v3290 = vmax.f32 %v1885, 0.0
  %v3291 = vmax.f32 %v1887, 0.0
  %v3292 = vmax.f32 %v2238, 0.0
  %v3293 = vmax.f32 %v2240, 0.0
  %v3294 = vmax.f32 %v2591, 0.0
  %v3295 = vmax.f32 %v2593, 0.0
  %v3296 = vmax.f32 %v2944, 0.0
  %v3297 = vmax.f32 %v2946, 0.0
  %v3298 = vmax.f32 %v1891, 0.0
  %v3299 = vmax.f32 %v1893, 0.0
  %v3300 = vmax.f32 %v2244, 0.0
  %v3301 = vmax.f32 %v2246, 0.0
  %v3302 = vmax.f32 %v2597, 0.0
  %v3303 = vmax.f32 %v2599, 0.0
  %v3304 = vmax.f32 %v2950, 0.0
  %v3305 = vmax.f32 %v2952, 0.0
  %v3306 = vmax.f32 %v1895, 0.0
  %v3307 = vmax.f32 %v1897, 0.0
  %v3308 = vmax.f32 %v2248, 0.0
  %v3309 = vmax.f32 %v2250, 0.0
  %v3310 = vmax.f32 %v2601, 0.0
  %v3311 = vmax.f32 %v2603, 0.0
  %v3312 = vmax.f32 %v2954, 0.0
  %v3313 = vmax.f32 %v2956, 0.0
  %v3314 = vmax.f32 %v1901, 0.0
  %v3315 = vmax.f32 %v1903, 0.0
  %v3316 = vmax.f32 %v2254, 0.0
  %v3317 = vmax.f32 %v2256, 0.0
  %v3318 = vmax.f32 %v2607, 0.0
  %v3319 = vmax.f32 %v2609, 0.0
  %v3320 = vmax.f32 %v2960, 0.0
  %v3321 = vmax.f32 %v2962, 0.0
  %v3322 = vmax.f32 %v1905, 0.0
  %v3323 = vmax.f32 %v1907, 0.0
  %v3324 = vmax.f32 %v2258, 0.0
  %v3325 = vmax.f32 %v2260, 0.0
  %v3326 = vmax.f32 %v2611, 0.0
  %v3327 = vmax.f32 %v2613, 0.0
  %v3328 = vmax.f32 %v2964, 0.0
  %v3329 = vmax.f32 %v2966, 0.0
  %v3330 = vmax.f32 %v1911, 0.0
  %v3331 = vmax.f32 %v1913, 0.0
  %v3332 = vmax.f32 %v2264, 0.0
  %v3333 = vmax.f32 %v2266, 0.0
  %v3334 = vmax.f32 %v2617, 0.0
  %v3335 = vmax.f32 %v2619, 0.0
  %v3336 = vmax.f32 %v2970, 0.0
  %v3337 = vmax.f32 %v2972, 0.0
  %v3338 = vmax.f32 %v1915, 0.0
  %v3339 = vmax.f32 %v1917, 0.0
  %v3340 = vmax.f32 %v2268, 0.0
  %v3341 = vmax.f32 %v2270, 0.0
  %v3342 = vmax.f32 %v2621, 0.0
  %v3343 = vmax.f32 %v2623, 0.0
  %v3344 = vmax.f32 %v2974, 0.0
  %v3345 = vmax.f32 %v2976, 0.0
  %v3346 = vmax.f32 %v1921, 0.0
  %v3347 = vmax.f32 %v1923, 0.0
  %v3348 = vmax.f32 %v2274, 0.0
  %v3349 = vmax.f32 %v2276, 0.0
  %v3350 = vmax.f32 %v2627, 0.0
  %v3351 = vmax.f32 %v2629, 0.0
  %v3352 = vmax.f32 %v2980, 0.0
  %v3353 = vmax.f32 %v2982, 0.0
  %v3354 = vmax.f32 %v1925, 0.0
  %v3355 = vmax.f32 %v1927, 0.0
  %v3356 = vmax.f32 %v2278, 0.0
  %v3357 = vmax.f32 %v2280, 0.0
  %v3358 = vmax.f32 %v2631, 0.0
  %v3359 = vmax.f32 %v2633, 0.0
  %v3360 = vmax.f32 %v2984, 0.0
  %v3361 = vmax.f32 %v2986, 0.0
  %v3362 = vmax.f32 %v1931, 0.0
  %v3363 = vmax.f32 %v1933, 0.0
  %v3364 = vmax.f32 %v2284, 0.0
  %v3365 = vmax.f32 %v2286, 0.0
  %v3366 = vmax.f32 %v2637, 0.0
  %v3367 = vmax.f32 %v2639, 0.0
  %v3368 = vmax.f32 %v2990, 0.0
  %v3369 = vmax.f32 %v2992, 0.0
  %v3370 = vmax.f32 %v1935, 0.0
  %v3371 = vmax.f32 %v1937, 0.0
  %v3372 = vmax.f32 %v2288, 0.0
  %v3373 = vmax.f32 %v2290, 0.0
  %v3374 = vmax.f32 %v2641, 0.0
  %v3375 = vmax.f32 %v2643, 0.0
  %v3376 = vmax.f32 %v2994, 0.0
  %v3377 = vmax.f32 %v2996, 0.0
  %v3378 = vmax.f32 %v1941, 0.0
  %v3379 = vmax.f32 %v1943, 0.0
  %v3380 = vmax.f32 %v2294, 0.0
  %v3381 = vmax.f32 %v2296, 0.0
  %v3382 = vmax.f32 %v2647, 0.0
  %v3383 = vmax.f32 %v2649, 0.0
  %v3384 = vmax.f32 %v3000, 0.0
  %v3385 = vmax.f32 %v3002, 0.0
  %v3386 = vmax.f32 %v1945, 0.0
  %v3387 = vmax.f32 %v1947, 0.0
  %v3388 = vmax.f32 %v2298, 0.0
  %v3389 = vmax.f32 %v2300, 0.0
  %v3390 = vmax.f32 %v2651, 0.0
  %v3391 = vmax.f32 %v2653, 0.0
  %v3392 = vmax.f32 %v3004, 0.0
  %v3393 = vmax.f32 %v3006, 0.0
  %v3394 = vmax.f32 %v1951, 0.0
  %v3395 = vmax.f32 %v1953, 0.0
  %v3396 = vmax.f32 %v2304, 0.0
  %v3397 = vmax.f32 %v2306, 0.0
  %v3398 = vmax.f32 %v2657, 0.0
  %v3399 = vmax.f32 %v2659, 0.0
  %v3400 = vmax.f32 %v3010, 0.0
  %v3401 = vmax.f32 %v3012, 0.0
  %v3402 = vmax.f32 %v1955, 0.0
  %v3403 = vmax.f32 %v1957, 0.0
  %v3404 = vmax.f32 %v2308, 0.0
  %v3405 = vmax.f32 %v2310, 0.0
  %v3406 = vmax.f32 %v2661, 0.0
  %v3407 = vmax.f32 %v2663, 0.0
  %v3408 = vmax.f32 %v3014, 0.0
  %v3409 = vmax.f32 %v3016, 0.0
  %v3410 = vmax.f32 %v1961, 0.0
  %v3411 = vmax.f32 %v1963, 0.0
  %v3412 = vmax.f32 %v2314, 0.0
  %v3413 = vmax.f32 %v2316, 0.0
  %v3414 = vmax.f32 %v2667, 0.0
  %v3415 = vmax.f32 %v2669, 0.0
  %v3416 = vmax.f32 %v3020, 0.0
  %v3417 = vmax.f32 %v3022, 0.0
  %v3418 = vmax.f32 %v1965, 0.0
  %v3419 = vmax.f32 %v1967, 0.0
  %v3420 = vmax.f32 %v2318, 0.0
  %v3421 = vmax.f32 %v2320, 0.0
  %v3422 = vmax.f32 %v2671, 0.0
  %v3423 = vmax.f32 %v2673, 0.0
  %v3424 = vmax.f32 %v3024, 0.0
  %v3425 = vmax.f32 %v3026, 0.0
  %v3426 = vmax.f32 %v1971, 0.0
  %v3427 = vmax.f32 %v1973, 0.0
  %v3428 = vmax.f32 %v2324, 0.0
  %v3429 = vmax.f32 %v2326, 0.0
  %v3430 = vmax.f32 %v2677, 0.0
  %v3431 = vmax.f32 %v2679, 0.0
  %v3432 = vmax.f32 %v3030, 0.0
  %v3433 = vmax.f32 %v3032, 0.0
  %v3434 = vmax.f32 %v1975, 0.0
  %v3435 = vmax.f32 %v1977, 0.0
  %v3436 = vmax.f32 %v2328, 0.0
  %v3437 = vmax.f32 %v2330, 0.0
  %v3438 = vmax.f32 %v2681, 0.0
  %v3439 = vmax.f32 %v2683, 0.0
  %v3440 = vmax.f32 %v3034, 0.0
  %v3441 = vmax.f32 %v3036, 0.0
  %v3442 = vmax.f32 %v1981, 0.0
  %v3443 = vmax.f32 %v1983, 0.0
  %v3444 = vmax.f32 %v2334, 0.0
  %v3445 = vmax.f32 %v2336, 0.0
  %v3446 = vmax.f32 %v2687, 0.0
  %v3447 = vmax.f32 %v2689, 0.0
  %v3448 = vmax.f32 %v3040, 0.0
  %v3449 = vmax.f32 %v3042, 0.0
  %v3450 = vmax.f32 %v1985, 0.0
  %v3451 = vmax.f32 %v1987, 0.0
  %v3452 = vmax.f32 %v2338, 0.0
  %v3453 = vmax.f32 %v2340, 0.0
  %v3454 = vmax.f32 %v2691, 0.0
  %v3455 = vmax.f32 %v2693, 0.0
  %v3456 = vmax.f32 %v3044, 0.0
  %v3457 = vmax.f32 %v3046, 0.0
  %v3458 = vmax.f32 %v1991, 0.0
  %v3459 = vmax.f32 %v1993, 0.0
  %v3460 = vmax.f32 %v2344, 0.0
  %v3461 = vmax.f32 %v2346, 0.0
  %v3462 = vmax.f32 %v2697, 0.0
  %v3463 = vmax.f32 %v2699, 0.0
  %v3464 = vmax.f32 %v3050, 0.0
  %v3465 = vmax.f32 %v3052, 0.0
  %v3466 = vmax.f32 %v1995, 0.0
  %v3467 = vmax.f32 %v1997, 0.0
  %v3468 = vmax.f32 %v2348, 0.0
  %v3469 = vmax.f32 %v2350, 0.0
  %v3470 = vmax.f32 %v2701, 0.0
  %v3471 = vmax.f32 %v2703, 0.0
  %v3472 = vmax.f32 %v3054, 0.0
  %v3473 = vmax.f32 %v3056, 0.0
  %v3474 = vmax.f32 %v2001, 0.0
  %v3475 = vmax.f32 %v2003, 0.0
  %v3476 = vmax.f32 %v2354, 0.0
  %v3477 = vmax.f32 %v2356, 0.0
  %v3478 = vmax.f32 %v2707, 0.0
  %v3479 = vmax.f32 %v2709, 0.0
  %v3480 = vmax.f32 %v3060, 0.0
  %v3481 = vmax.f32 %v3062, 0.0
  %v3482 = vmax.f32 %v2005, 0.0
  %v3483 = vmax.f32 %v2007, 0.0
  %v3484 = vmax.f32 %v2358, 0.0
  %v3485 = vmax.f32 %v2360, 0.0
  %v3486 = vmax.f32 %v2711, 0.0
  %v3487 = vmax.f32 %v2713, 0.0
  %v3488 = vmax.f32 %v3064, 0.0
  %v3489 = vmax.f32 %v3066, 0.0
  %v3490 = vmax.f32 %v2011, 0.0
  %v3491 = vmax.f32 %v2013, 0.0
  %v3492 = vmax.f32 %v2364, 0.0
  %v3493 = vmax.f32 %v2366, 0.0
  %v3494 = vmax.f32 %v2717, 0.0
  %v3495 = vmax.f32 %v2719, 0.0
  %v3496 = vmax.f32 %v3070, 0.0
  %v3497 = vmax.f32 %v3072, 0.0
  %v3498 = vmax.f32 %v2015, 0.0
  %v3499 = vmax.f32 %v2017, 0.0
  %v3500 = vmax.f32 %v2368, 0.0
  %v3501 = vmax.f32 %v2370, 0.0
  %v3502 = vmax.f32 %v2721, 0.0
  %v3503 = vmax.f32 %v2723, 0.0
  %v3504 = vmax.f32 %v3074, 0.0
  %v3505 = vmax.f32 %v3076, 0.0
  %v3506 = vmax.f32 %v2021, 0.0
  %v3507 = vmax.f32 %v2023, 0.0
  %v3508 = vmax.f32 %v2374, 0.0
  %v3509 = vmax.f32 %v2376, 0.0
  %v3510 = vmax.f32 %v2727, 0.0
  %v3511 = vmax.f32 %v2729, 0.0
  %v3512 = vmax.f32 %v3080, 0.0
  %v3513 = vmax.f32 %v3082, 0.0
  %v3514 = vmax.f32 %v2025, 0.0
  %v3515 = vmax.f32 %v2027, 0.0
  %v3516 = vmax.f32 %v2378, 0.0
  %v3517 = vmax.f32 %v2380, 0.0
  %v3518 = vmax.f32 %v2731, 0.0
  %v3519 = vmax.f32 %v2733, 0.0
  %v3520 = vmax.f32 %v3084, 0.0
  %v3521 = vmax.f32 %v3086, 0.0
  %v3522 = vmax.f32 %v2031, 0.0
  %v3523 = vmax.f32 %v2033, 0.0
  %v3524 = vmax.f32 %v2384, 0.0
  %v3525 = vmax.f32 %v2386, 0.0
  %v3526 = vmax.f32 %v2737, 0.0
  %v3527 = vmax.f32 %v2739, 0.0
  %v3528 = vmax.f32 %v3090, 0.0
  %v3529 = vmax.f32 %v3092, 0.0
  %v3530 = vmax.f32 %v2035, 0.0
  %v3531 = vmax.f32 %v2037, 0.0
  %v3532 = vmax.f32 %v2388, 0.0
  %v3533 = vmax.f32 %v2390, 0.0
  %v3534 = vmax.f32 %v2741, 0.0
  %v3535 = vmax.f32 %v2743, 0.0
  %v3536 = vmax.f32 %v3094, 0.0
  %v3537 = vmax.f32 %v3096, 0.0
  %v3538 = vmax.f32 %v2041, 0.0
  %v3539 = vmax.f32 %v2043, 0.0
  %v3540 = vmax.f32 %v2394, 0.0
  %v3541 = vmax.f32 %v2396, 0.0
  %v3542 = vmax.f32 %v2747, 0.0
  %v3543 = vmax.f32 %v2749, 0.0
  %v3544 = vmax.f32 %v3100, 0.0
  %v3545 = vmax.f32 %v3102, 0.0
  %v3546 = vmax.f32 %v2045, 0.0
  %v3547 = vmax.f32 %v2047, 0.0
  %v3548 = vmax.f32 %v2398, 0.0
  %v3549 = vmax.f32 %v2400, 0.0
  %v3550 = vmax.f32 %v2751, 0.0
  %v3551 = vmax.f32 %v2753, 0.0
  %v3552 = vmax.f32 %v3104, 0.0
  %v3553 = vmax.f32 %v3106, 0.0
  %v3554 = vmax.f32 %v2051, 0.0
  %v3555 = vmax.f32 %v2053, 0.0
  %v3556 = vmax.f32 %v2404, 0.0
  %v3557 = vmax.f32 %v2406, 0.0
  %v3558 = vmax.f32 %v2757, 0.0
  %v3559 = vmax.f32 %v2759, 0.0
  %v3560 = vmax.f32 %v3110, 0.0
  %v3561 = vmax.f32 %v3112, 0.0
  %v3562 = vmax.f32 %v2055, 0.0
  %v3563 = vmax.f32 %v2057, 0.0
  %v3564 = vmax.f32 %v2408, 0.0
  %v3565 = vmax.f32 %v2410, 0.0
  %v3566 = vmax.f32 %v2761, 0.0
  %v3567 = vmax.f32 %v2763, 0.0
  %v3568 = vmax.f32 %v3114, 0.0
  %v3569 = vmax.f32 %v3116, 0.0
  %v3570 = vmax.f32 %v2061, 0.0
  %v3571 = vmax.f32 %v2063, 0.0
  %v3572 = vmax.f32 %v2414, 0.0
  %v3573 = vmax.f32 %v2416, 0.0
  %v3574 = vmax.f32 %v2767, 0.0
  %v3575 = vmax.f32 %v2769, 0.0
  %v3576 = vmax.f32 %v3120, 0.0
  %v3577 = vmax.f32 %v3122, 0.0
  %v3578 = vmax.f32 %v2065, 0.0
  %v3579 = vmax.f32 %v2067, 0.0
  %v3580 = vmax.f32 %v2418, 0.0
  %v3581 = vmax.f32 %v2420, 0.0
  %v3582 = vmax.f32 %v2771, 0.0
  %v3583 = vmax.f32 %v2773, 0.0
  %v3584 = vmax.f32 %v3124, 0.0
  %v3585 = vmax.f32 %v3126, 0.0
  %v3586 = vmax.f32 %v2071, 0.0
  %v3587 = vmax.f32 %v2073, 0.0
  %v3588 = vmax.f32 %v2424, 0.0
  %v3589 = vmax.f32 %v2426, 0.0
  %v3590 = vmax.f32 %v2777, 0.0
  %v3591 = vmax.f32 %v2779, 0.0
  %v3592 = vmax.f32 %v3130, 0.0
  %v3593 = vmax.f32 %v3132, 0.0
  %v3594 = vmax.f32 %v2075, 0.0
  %v3595 = vmax.f32 %v2077, 0.0
  %v3596 = vmax.f32 %v2428, 0.0
  %v3597 = vmax.f32 %v2430, 0.0
  %v3598 = vmax.f32 %v2781, 0.0
  %v3599 = vmax.f32 %v2783, 0.0
  %v3600 = vmax.f32 %v3134, 0.0
  %v3601 = vmax.f32 %v3136, 0.0
  %v3602 = vmax.f32 %v2081, 0.0
  %v3603 = vmax.f32 %v2083, 0.0
  %v3604 = vmax.f32 %v2434, 0.0
  %v3605 = vmax.f32 %v2436, 0.0
  %v3606 = vmax.f32 %v2787, 0.0
  %v3607 = vmax.f32 %v2789, 0.0
  %v3608 = vmax.f32 %v3140, 0.0
  %v3609 = vmax.f32 %v3142, 0.0
  %v3610 = vmax.f32 %v2085, 0.0
  %v3611 = vmax.f32 %v2087, 0.0
  %v3612 = vmax.f32 %v2438, 0.0
  %v3613 = vmax.f32 %v2440, 0.0
  %v3614 = vmax.f32 %v2791, 0.0
  %v3615 = vmax.f32 %v2793, 0.0
  %v3616 = vmax.f32 %v3144, 0.0
  %v3617 = vmax.f32 %v3146, 0.0
  %v3618 = vmax.f32 %v2091, 0.0
  %v3619 = vmax.f32 %v2093, 0.0
  %v3620 = vmax.f32 %v2444, 0.0
  %v3621 = vmax.f32 %v2446, 0.0
  %v3622 = vmax.f32 %v2797, 0.0
  %v3623 = vmax.f32 %v2799, 0.0
  %v3624 = vmax.f32 %v3150, 0.0
  %v3625 = vmax.f32 %v3152, 0.0
  %v3626 = vmax.f32 %v2095, 0.0
  %v3627 = vmax.f32 %v2097, 0.0
  %v3628 = vmax.f32 %v2448, 0.0
  %v3629 = vmax.f32 %v2450, 0.0
  %v3630 = vmax.f32 %v2801, 0.0
  %v3631 = vmax.f32 %v2803, 0.0
  %v3632 = vmax.f32 %v3154, 0.0
  %v3633 = vmax.f32 %v3156, 0.0
  %v3634 = vmax.f32 %v2101, 0.0
  %v3635 = vmax.f32 %v2103, 0.0
  %v3636 = vmax.f32 %v2454, 0.0
  %v3637 = vmax.f32 %v2456, 0.0
  %v3638 = vmax.f32 %v2807, 0.0
  %v3639 = vmax.f32 %v2809, 0.0
  %v3640 = vmax.f32 %v3160, 0.0
  %v3641 = vmax.f32 %v3162, 0.0
  %v3642 = vmax.f32 %v2105, 0.0
  %v3643 = vmax.f32 %v2107, 0.0
  %v3644 = vmax.f32 %v2458, 0.0
  %v3645 = vmax.f32 %v2460, 0.0
  %v3646 = vmax.f32 %v2811, 0.0
  %v3647 = vmax.f32 %v2813, 0.0
  %v3648 = vmax.f32 %v3164, 0.0
  %v3649 = vmax.f32 %v3166, 0.0
  %v3650 = vmax.f32 %v2111, 0.0
  %v3651 = vmax.f32 %v2113, 0.0
  %v3652 = vmax.f32 %v2464, 0.0
  %v3653 = vmax.f32 %v2466, 0.0
  %v3654 = vmax.f32 %v2817, 0.0
  %v3655 = vmax.f32 %v2819, 0.0
  %v3656 = vmax.f32 %v3170, 0.0
  %v3657 = vmax.f32 %v3172, 0.0
  %v3658 = vmax.f32 %v2115, 0.0
  %v3659 = vmax.f32 %v2117, 0.0
  %v3660 = vmax.f32 %v2468, 0.0
  %v3661 = vmax.f32 %v2470, 0.0
  %v3662 = vmax.f32 %v2821, 0.0
  %v3663 = vmax.f32 %v2823, 0.0
  %v3664 = vmax.f32 %v3174, 0.0
  %v3665 = vmax.f32 %v3176, 0.0
  %v3666 = vmax.f32 %v2121, 0.0
  %v3667 = vmax.f32 %v2123, 0.0
  %v3668 = vmax.f32 %v2474, 0.0
  %v3669 = vmax.f32 %v2476, 0.0
  %v3670 = vmax.f32 %v2827, 0.0
  %v3671 = vmax.f32 %v2829, 0.0
  %v3672 = vmax.f32 %v3180, 0.0
  %v3673 = vmax.f32 %v3182, 0.0
  %v3674 = vmax.f32 %v2125, 0.0
  %v3675 = vmax.f32 %v2127, 0.0
  %v3676 = vmax.f32 %v2478, 0.0
  %v3677 = vmax.f32 %v2480, 0.0
  %v3678 = vmax.f32 %v2831, 0.0
  %v3679 = vmax.f32 %v2833, 0.0
  %v3680 = vmax.f32 %v3184, 0.0
  %v3681 = vmax.f32 %v3186, 0.0
  %v3682 = vmax.f32 %v2131, 0.0
  %v3683 = vmax.f32 %v2133, 0.0
  %v3684 = vmax.f32 %v2484, 0.0
  %v3685 = vmax.f32 %v2486, 0.0
  %v3686 = vmax.f32 %v2837, 0.0
  %v3687 = vmax.f32 %v2839, 0.0
  %v3688 = vmax.f32 %v3190, 0.0
  %v3689 = vmax.f32 %v3192, 0.0
  %v3690 = vmax.f32 %v2135, 0.0
  %v3691 = vmax.f32 %v2137, 0.0
  %v3692 = vmax.f32 %v2488, 0.0
  %v3693 = vmax.f32 %v2490, 0.0
  %v3694 = vmax.f32 %v2841, 0.0
  %v3695 = vmax.f32 %v2843, 0.0
  %v3696 = vmax.f32 %v3194, 0.0
  %v3697 = vmax.f32 %v3196, 0.0
  %v3698 = vmax.f32 %v2141, 0.0
  %v3699 = vmax.f32 %v2143, 0.0
  %v3700 = vmax.f32 %v2494, 0.0
  %v3701 = vmax.f32 %v2496, 0.0
  %v3702 = vmax.f32 %v2847, 0.0
  %v3703 = vmax.f32 %v2849, 0.0
  %v3704 = vmax.f32 %v3200, 0.0
  %v3705 = vmax.f32 %v3202, 0.0
  %v3706 = vmax.f32 %v2145, 0.0
  %v3707 = vmax.f32 %v2147, 0.0
  %v3708 = vmax.f32 %v2498, 0.0
  %v3709 = vmax.f32 %v2500, 0.0
  %v3710 = vmax.f32 %v2851, 0.0
  %v3711 = vmax.f32 %v2853, 0.0
  %v3712 = vmax.f32 %v3204, 0.0
  %v3713 = vmax.f32 %v3206, 0.0
  %v3714 = vmax.f32 %v2151, 0.0
  %v3715 = vmax.f32 %v2153, 0.0
  %v3716 = vmax.f32 %v2504, 0.0
  %v3717 = vmax.f32 %v2506, 0.0
  %v3718 = vmax.f32 %v2857, 0.0
  %v3719 = vmax.f32 %v2859, 0.0
  %v3720 = vmax.f32 %v3210, 0.0
  %v3721 = vmax.f32 %v3212, 0.0
  %v3722 = vmax.f32 %v2155, 0.0
  %v3723 = vmax.f32 %v2157, 0.0
  %v3724 = vmax.f32 %v2508, 0.0
  %v3725 = vmax.f32 %v2510, 0.0
  %v3726 = vmax.f32 %v2861, 0.0
  %v3727 = vmax.f32 %v2863, 0.0
  %v3728 = vmax.f32 %v3214, 0.0
  %v3729 = vmax.f32 %v3216, 0.0
  %v3730 = vmax.f32 %v3218, %v3226
  %v3731 = vmax.f32 %v3730, %v3234
  %v3732 = vmax.f32 %v3731, %v3242
  %v3733 = vmax.f32 %v3732, %v3250
  %v3734 = vmax.f32 %v3733, %v3258
  %v3735 = vmax.f32 %v3734, %v3266
  %v3736 = vmax.f32 %v3735, %v3274
  %v3737 = vmax.f32 %v3736, %v3282
  %v3738 = vmax.f32 %v3737, %v3290
  %v3739 = vmax.f32 %v3738, %v3298
  %v3740 = vmax.f32 %v3739, %v3306
  %v3741 = vmax.f32 %v3740, %v3314
  %v3742 = vmax.f32 %v3741, %v3322
  %v3743 = vmax.f32 %v3742, %v3330
  %v3744 = vmax.f32 %v3743, %v3338
  %v3745 = vmax.f32 %v3744, %v3346
  %v3746 = vmax.f32 %v3745, %v3354
  %v3747 = vmax.f32 %v3746, %v3362
  %v3748 = vmax.f32 %v3747, %v3370
  %v3749 = vmax.f32 %v3748, %v3378
  %v3750 = vmax.f32 %v3749, %v3386
  %v3751 = vmax.f32 %v3750, %v3394
  %v3752 = vmax.f32 %v3751, %v3402
  %v3753 = vmax.f32 %v3752, %v3410
  %v3754 = vmax.f32 %v3753, %v3418
  %v3755 = vmax.f32 %v3754, %v3426
  %v3756 = vmax.f32 %v3755, %v3434
  %v3757 = vmax.f32 %v3756, %v3442
  %v3758 = vmax.f32 %v3757, %v3450
  %v3759 = vmax.f32 %v3758, %v3458
  %v3760 = vmax.f32 %v3759, %v3466
  %v3761 = vrot.slane %v3760, 4
  %v3762 = vmax.f32 %v3760, %v3761
  %v3763 = vrot.slane %v3762, 2
  %v3764 = vmax.f32 %v3762, %v3763
  %v3765 = vrot.slane %v3764, 1
  %v3766 = vmax.f32 %v3764, %v3765
  %v3767 = vmax.f32 %v3219, %v3227
  %v3768 = vmax.f32 %v3767, %v3235
  %v3769 = vmax.f32 %v3768, %v3243
  %v3770 = vmax.f32 %v3769, %v3251
  %v3771 = vmax.f32 %v3770, %v3259
  %v3772 = vmax.f32 %v3771, %v3267
  %v3773 = vmax.f32 %v3772, %v3275
  %v3774 = vmax.f32 %v3773, %v3283
  %v3775 = vmax.f32 %v3774, %v3291
  %v3776 = vmax.f32 %v3775, %v3299
  %v3777 = vmax.f32 %v3776, %v3307
  %v3778 = vmax.f32 %v3777, %v3315
  %v3779 = vmax.f32 %v3778, %v3323
  %v3780 = vmax.f32 %v3779, %v3331
  %v3781 = vmax.f32 %v3780, %v3339
  %v3782 = vmax.f32 %v3781, %v3347
  %v3783 = vmax.f32 %v3782, %v3355
  %v3784 = vmax.f32 %v3783, %v3363
  %v3785 = vmax.f32 %v3784, %v3371
  %v3786 = vmax.f32 %v3785, %v3379
  %v3787 = vmax.f32 %v3786, %v3387
  %v3788 = vmax.f32 %v3787, %v3395
  %v3789 = vmax.f32 %v3788, %v3403
  %v3790 = vmax.f32 %v3789, %v3411
  %v3791 = vmax.f32 %v3790, %v3419
  %v3792 = vmax.f32 %v3791, %v3427
  %v3793 = vmax.f32 %v3792, %v3435
  %v3794 = vmax.f32 %v3793, %v3443
  %v3795 = vmax.f32 %v3794, %v3451
  %v3796 = vmax.f32 %v3795, %v3459
  %v3797 = vmax.f32 %v3796, %v3467
  %v3798 = vrot.slane %v3797, 4
  %v3799 = vmax.f32 %v3797, %v3798
  %v3800 = vrot.slane %v3799, 2
  %v3801 = vmax.f32 %v3799, %v3800
  %v3802 = vrot.slane %v3801, 1
  %v3803 = vmax.f32 %v3801, %v3802
  %v3804 = vmax.f32 %v3220, %v3228
  %v3805 = vmax.f32 %v3804, %v3236
  %v3806 = vmax.f32 %v3805, %v3244
  %v3807 = vmax.f32 %v3806, %v3252
  %v3808 = vmax.f32 %v3807, %v3260
  %v3809 = vmax.f32 %v3808, %v3268
  %v3810 = vmax.f32 %v3809, %v3276
  %v3811 = vmax.f32 %v3810, %v3284
  %v3812 = vmax.f32 %v3811, %v3292
  %v3813 = vmax.f32 %v3812, %v3300
  %v3814 = vmax.f32 %v3813, %v3308
  %v3815 = vmax.f32 %v3814, %v3316
  %v3816 = vmax.f32 %v3815, %v3324
  %v3817 = vmax.f32 %v3816, %v3332
  %v3818 = vmax.f32 %v3817, %v3340
  %v3819 = vmax.f32 %v3818, %v3348
  %v3820 = vmax.f32 %v3819, %v3356
  %v3821 = vmax.f32 %v3820, %v3364
  %v3822 = vmax.f32 %v3821, %v3372
  %v3823 = vmax.f32 %v3822, %v3380
  %v3824 = vmax.f32 %v3823, %v3388
  %v3825 = vmax.f32 %v3824, %v3396
  %v3826 = vmax.f32 %v3825, %v3404
  %v3827 = vmax.f32 %v3826, %v3412
  %v3828 = vmax.f32 %v3827, %v3420
  %v3829 = vmax.f32 %v3828, %v3428
  %v3830 = vmax.f32 %v3829, %v3436
  %v3831 = vmax.f32 %v3830, %v3444
  %v3832 = vmax.f32 %v3831, %v3452
  %v3833 = vmax.f32 %v3832, %v3460
  %v3834 = vmax.f32 %v3833, %v3468
  %v3835 = vrot.slane %v3834, 4
  %v3836 = vmax.f32 %v3834, %v3835
  %v3837 = vrot.slane %v3836, 2
  %v3838 = vmax.f32 %v3836, %v3837
  %v3839 = vrot.slane %v3838, 1
  %v3840 = vmax.f32 %v3838, %v3839
  %v3841 = vmax.f32 %v3221, %v3229
  %v3842 = vmax.f32 %v3841, %v3237
  %v3843 = vmax.f32 %v3842, %v3245
  %v3844 = vmax.f32 %v3843, %v3253
  %v3845 = vmax.f32 %v3844, %v3261
  %v3846 = vmax.f32 %v3845, %v3269
  %v3847 = vmax.f32 %v3846, %v3277
  %v3848 = vmax.f32 %v3847, %v3285
  %v3849 = vmax.f32 %v3848, %v3293
  %v3850 = vmax.f32 %v3849, %v3301
  %v3851 = vmax.f32 %v3850, %v3309
  %v3852 = vmax.f32 %v3851, %v3317
  %v3853 = vmax.f32 %v3852, %v3325
  %v3854 = vmax.f32 %v3853, %v3333
  %v3855 = vmax.f32 %v3854, %v3341
  %v3856 = vmax.f32 %v3855, %v3349
  %v3857 = vmax.f32 %v3856, %v3357
  %v3858 = vmax.f32 %v3857, %v3365
  %v3859 = vmax.f32 %v3858, %v3373
  %v3860 = vmax.f32 %v3859, %v3381
  %v3861 = vmax.f32 %v3860, %v3389
  %v3862 = vmax.f32 %v3861, %v3397
  %v3863 = vmax.f32 %v3862, %v3405
  %v3864 = vmax.f32 %v3863, %v3413
  %v3865 = vmax.f32 %v3864, %v3421
  %v3866 = vmax.f32 %v3865, %v3429
  %v3867 = vmax.f32 %v3866, %v3437
  %v3868 = vmax.f32 %v3867, %v3445
  %v3869 = vmax.f32 %v3868, %v3453
  %v3870 = vmax.f32 %v3869, %v3461
  %v3871 = vmax.f32 %v3870, %v3469
  %v3872 = vrot.slane %v3871, 4
  %v3873 = vmax.f32 %v3871, %v3872
  %v3874 = vrot.slane %v3873, 2
  %v3875 = vmax.f32 %v3873, %v3874
  %v3876 = vrot.slane %v3875, 1
  %v3877 = vmax.f32 %v3875, %v3876
  %v3878 = vmax.f32 %v3222, %v3230
  %v3879 = vmax.f32 %v3878, %v3238
  %v3880 = vmax.f32 %v3879, %v3246
  %v3881 = vmax.f32 %v3880, %v3254
  %v3882 = vmax.f32 %v3881, %v3262
  %v3883 = vmax.f32 %v3882, %v3270
  %v3884 = vmax.f32 %v3883, %v3278
  %v3885 = vmax.f32 %v3884, %v3286
  %v3886 = vmax.f32 %v3885, %v3294
  %v3887 = vmax.f32 %v3886, %v3302
  %v3888 = vmax.f32 %v3887, %v3310
  %v3889 = vmax.f32 %v3888, %v3318
  %v3890 = vmax.f32 %v3889, %v3326
  %v3891 = vmax.f32 %v3890, %v3334
  %v3892 = vmax.f32 %v3891, %v3342
  %v3893 = vmax.f32 %v3892, %v3350
  %v3894 = vmax.f32 %v3893, %v3358
  %v3895 = vmax.f32 %v3894, %v3366
  %v3896 = vmax.f32 %v3895, %v3374
  %v3897 = vmax.f32 %v3896, %v3382
  %v3898 = vmax.f32 %v3897, %v3390
  %v3899 = vmax.f32 %v3898, %v3398
  %v3900 = vmax.f32 %v3899, %v3406
  %v3901 = vmax.f32 %v3900, %v3414
  %v3902 = vmax.f32 %v3901, %v3422
  %v3903 = vmax.f32 %v3902, %v3430
  %v3904 = vmax.f32 %v3903, %v3438
  %v3905 = vmax.f32 %v3904, %v3446
  %v3906 = vmax.f32 %v3905, %v3454
  %v3907 = vmax.f32 %v3906, %v3462
  %v3908 = vmax.f32 %v3907, %v3470
  %v3909 = vrot.slane %v3908, 4
  %v3910 = vmax.f32 %v3908, %v3909
  %v3911 = vrot.slane %v3910, 2
  %v3912 = vmax.f32 %v3910, %v3911
  %v3913 = vrot.slane %v3912, 1
  %v3914 = vmax.f32 %v3912, %v3913
  %v3915 = vmax.f32 %v3223, %v3231
  %v3916 = vmax.f32 %v3915, %v3239
  %v3917 = vmax.f32 %v3916, %v3247
  %v3918 = vmax.f32 %v3917, %v3255
  %v3919 = vmax.f32 %v3918, %v3263
  %v3920 = vmax.f32 %v3919, %v3271
  %v3921 = vmax.f32 %v3920, %v3279
  %v3922 = vmax.f32 %v3921, %v3287
  %v3923 = vmax.f32 %v3922, %v3295
  %v3924 = vmax.f32 %v3923, %v3303
  %v3925 = vmax.f32 %v3924, %v3311
  %v3926 = vmax.f32 %v3925, %v3319
  %v3927 = vmax.f32 %v3926, %v3327
  %v3928 = vmax.f32 %v3927, %v3335
  %v3929 = vmax.f32 %v3928, %v3343
  %v3930 = vmax.f32 %v3929, %v3351
  %v3931 = vmax.f32 %v3930, %v3359
  %v3932 = vmax.f32 %v3931, %v3367
  %v3933 = vmax.f32 %v3932, %v3375
  %v3934 = vmax.f32 %v3933, %v3383
  %v3935 = vmax.f32 %v3934, %v3391
  %v3936 = vmax.f32 %v3935, %v3399
  %v3937 = vmax.f32 %v3936, %v3407
  %v3938 = vmax.f32 %v3937, %v3415
  %v3939 = vmax.f32 %v3938, %v3423
  %v3940 = vmax.f32 %v3939, %v3431
  %v3941 = vmax.f32 %v3940, %v3439
  %v3942 = vmax.f32 %v3941, %v3447
  %v3943 = vmax.f32 %v3942, %v3455
  %v3944 = vmax.f32 %v3943, %v3463
  %v3945 = vmax.f32 %v3944, %v3471
  %v3946 = vrot.slane %v3945, 4
  %v3947 = vmax.f32 %v3945, %v3946
  %v3948 = vrot.slane %v3947, 2
  %v3949 = vmax.f32 %v3947, %v3948
  %v3950 = vrot.slane %v3949, 1
  %v3951 = vmax.f32 %v3949, %v3950
  %v3952 = vmax.f32 %v3224, %v3232
  %v3953 = vmax.f32 %v3952, %v3240
  %v3954 = vmax.f32 %v3953, %v3248
  %v3955 = vmax.f32 %v3954, %v3256
  %v3956 = vmax.f32 %v3955, %v3264
  %v3957 = vmax.f32 %v3956, %v3272
  %v3958 = vmax.f32 %v3957, %v3280
  %v3959 = vmax.f32 %v3958, %v3288
  %v3960 = vmax.f32 %v3959, %v3296
  %v3961 = vmax.f32 %v3960, %v3304
  %v3962 = vmax.f32 %v3961, %v3312
  %v3963 = vmax.f32 %v3962, %v3320
  %v3964 = vmax.f32 %v3963, %v3328
  %v3965 = vmax.f32 %v3964, %v3336
  %v3966 = vmax.f32 %v3965, %v3344
  %v3967 = vmax.f32 %v3966, %v3352
  %v3968 = vmax.f32 %v3967, %v3360
  %v3969 = vmax.f32 %v3968, %v3368
  %v3970 = vmax.f32 %v3969, %v3376
  %v3971 = vmax.f32 %v3970, %v3384
  %v3972 = vmax.f32 %v3971, %v3392
  %v3973 = vmax.f32 %v3972, %v3400
  %v3974 = vmax.f32 %v3973, %v3408
  %v3975 = vmax.f32 %v3974, %v3416
  %v3976 = vmax.f32 %v3975, %v3424
  %v3977 = vmax.f32 %v3976, %v3432
  %v3978 = vmax.f32 %v3977, %v3440
  %v3979 = vmax.f32 %v3978, %v3448
  %v3980 = vmax.f32 %v3979, %v3456
  %v3981 = vmax.f32 %v3980, %v3464
  %v3982 = vmax.f32 %v3981, %v3472
  %v3983 = vrot.slane %v3982, 4
  %v3984 = vmax.f32 %v3982, %v3983
  %v3985 = vrot.slane %v3984, 2
  %v3986 = vmax.f32 %v3984, %v3985
  %v3987 = vrot.slane %v3986, 1
  %v3988 = vmax.f32 %v3986, %v3987
  %v3989 = vmax.f32 %v3225, %v3233
  %v3990 = vmax.f32 %v3989, %v3241
  %v3991 = vmax.f32 %v3990, %v3249
  %v3992 = vmax.f32 %v3991, %v3257
  %v3993 = vmax.f32 %v3992, %v3265
  %v3994 = vmax.f32 %v3993, %v3273
  %v3995 = vmax.f32 %v3994, %v3281
  %v3996 = vmax.f32 %v3995, %v3289
  %v3997 = vmax.f32 %v3996, %v3297
  %v3998 = vmax.f32 %v3997, %v3305
  %v3999 = vmax.f32 %v3998, %v3313
  %v4000 = vmax.f32 %v3999, %v3321
  %v4001 = vmax.f32 %v4000, %v3329
  %v4002 = vmax.f32 %v4001, %v3337
  %v4003 = vmax.f32 %v4002, %v3345
  %v4004 = vmax.f32 %v4003, %v3353
  %v4005 = vmax.f32 %v4004, %v3361
  %v4006 = vmax.f32 %v4005, %v3369
  %v4007 = vmax.f32 %v4006, %v3377
  %v4008 = vmax.f32 %v4007, %v3385
  %v4009 = vmax.f32 %v4008, %v3393
  %v4010 = vmax.f32 %v4009, %v3401
  %v4011 = vmax.f32 %v4010, %v3409
  %v4012 = vmax.f32 %v4011, %v3417
  %v4013 = vmax.f32 %v4012, %v3425
  %v4014 = vmax.f32 %v4013, %v3433
  %v4015 = vmax.f32 %v4014, %v3441
  %v4016 = vmax.f32 %v4015, %v3449
  %v4017 = vmax.f32 %v4016, %v3457
  %v4018 = vmax.f32 %v4017, %v3465
  %v4019 = vmax.f32 %v4018, %v3473
  %v4020 = vrot.slane %v4019, 4
  %v4021 = vmax.f32 %v4019, %v4020
  %v4022 = vrot.slane %v4021, 2
  %v4023 = vmax.f32 %v4021, %v4022
  %v4024 = vrot.slane %v4023, 1
  %v4025 = vmax.f32 %v4023, %v4024
  %v4026 = vmax.f32 %v3474, %v3482
  %v4027 = vmax.f32 %v4026, %v3490
  %v4028 = vmax.f32 %v4027, %v3498
  %v4029 = vmax.f32 %v4028, %v3506
  %v4030 = vmax.f32 %v4029, %v3514
  %v4031 = vmax.f32 %v4030, %v3522
  %v4032 = vmax.f32 %v4031, %v3530
  %v4033 = vmax.f32 %v4032, %v3538
  %v4034 = vmax.f32 %v4033, %v3546
  %v4035 = vmax.f32 %v4034, %v3554
  %v4036 = vmax.f32 %v4035, %v3562
  %v4037 = vmax.f32 %v4036, %v3570
  %v4038 = vmax.f32 %v4037, %v3578
  %v4039 = vmax.f32 %v4038, %v3586
  %v4040 = vmax.f32 %v4039, %v3594
  %v4041 = vmax.f32 %v4040, %v3602
  %v4042 = vmax.f32 %v4041, %v3610
  %v4043 = vmax.f32 %v4042, %v3618
  %v4044 = vmax.f32 %v4043, %v3626
  %v4045 = vmax.f32 %v4044, %v3634
  %v4046 = vmax.f32 %v4045, %v3642
  %v4047 = vmax.f32 %v4046, %v3650
  %v4048 = vmax.f32 %v4047, %v3658
  %v4049 = vmax.f32 %v4048, %v3666
  %v4050 = vmax.f32 %v4049, %v3674
  %v4051 = vmax.f32 %v4050, %v3682
  %v4052 = vmax.f32 %v4051, %v3690
  %v4053 = vmax.f32 %v4052, %v3698
  %v4054 = vmax.f32 %v4053, %v3706
  %v4055 = vmax.f32 %v4054, %v3714
  %v4056 = vmax.f32 %v4055, %v3722
  %v4057 = vrot.slane %v4056, 4
  %v4058 = vmax.f32 %v4056, %v4057
  %v4059 = vrot.slane %v4058, 2
  %v4060 = vmax.f32 %v4058, %v4059
  %v4061 = vrot.slane %v4060, 1
  %v4062 = vmax.f32 %v4060, %v4061
  %v4063 = vmax.f32 %v3475, %v3483
  %v4064 = vmax.f32 %v4063, %v3491
  %v4065 = vmax.f32 %v4064, %v3499
  %v4066 = vmax.f32 %v4065, %v3507
  %v4067 = vmax.f32 %v4066, %v3515
  %v4068 = vmax.f32 %v4067, %v3523
  %v4069 = vmax.f32 %v4068, %v3531
  %v4070 = vmax.f32 %v4069, %v3539
  %v4071 = vmax.f32 %v4070, %v3547
  %v4072 = vmax.f32 %v4071, %v3555
  %v4073 = vmax.f32 %v4072, %v3563
  %v4074 = vmax.f32 %v4073, %v3571
  %v4075 = vmax.f32 %v4074, %v3579
  %v4076 = vmax.f32 %v4075, %v3587
  %v4077 = vmax.f32 %v4076, %v3595
  %v4078 = vmax.f32 %v4077, %v3603
  %v4079 = vmax.f32 %v4078, %v3611
  %v4080 = vmax.f32 %v4079, %v3619
  %v4081 = vmax.f32 %v4080, %v3627
  %v4082 = vmax.f32 %v4081, %v3635
  %v4083 = vmax.f32 %v4082, %v3643
  %v4084 = vmax.f32 %v4083, %v3651
  %v4085 = vmax.f32 %v4084, %v3659
  %v4086 = vmax.f32 %v4085, %v3667
  %v4087 = vmax.f32 %v4086, %v3675
  %v4088 = vmax.f32 %v4087, %v3683
  %v4089 = vmax.f32 %v4088, %v3691
  %v4090 = vmax.f32 %v4089, %v3699
  %v4091 = vmax.f32 %v4090, %v3707
  %v4092 = vmax.f32 %v4091, %v3715
  %v4093 = vmax.f32 %v4092, %v3723
  %v4094 = vrot.slane %v4093, 4
  %v4095 = vmax.f32 %v4093, %v4094
  %v4096 = vrot.slane %v4095, 2
  %v4097 = vmax.f32 %v4095, %v4096
  %v4098 = vrot.slane %v4097, 1
  %v4099 = vmax.f32 %v4097, %v4098
  %v4100 = vmax.f32 %v3476, %v3484
  %v4101 = vmax.f32 %v4100, %v3492
  %v4102 = vmax.f32 %v4101, %v3500
  %v4103 = vmax.f32 %v4102, %v3508
  %v4104 = vmax.f32 %v4103, %v3516
  %v4105 = vmax.f32 %v4104, %v3524
  %v4106 = vmax.f32 %v4105, %v3532
  %v4107 = vmax.f32 %v4106, %v3540
  %v4108 = vmax.f32 %v4107, %v3548
  %v4109 = vmax.f32 %v4108, %v3556
  %v4110 = vmax.f32 %v4109, %v3564
  %v4111 = vmax.f32 %v4110, %v3572
  %v4112 = vmax.f32 %v4111, %v3580
  %v4113 = vmax.f32 %v4112, %v3588
  %v4114 = vmax.f32 %v4113, %v3596
  %v4115 = vmax.f32 %v4114, %v3604
  %v4116 = vmax.f32 %v4115, %v3612
  %v4117 = vmax.f32 %v4116, %v3620
  %v4118 = vmax.f32 %v4117, %v3628
  %v4119 = vmax.f32 %v4118, %v3636
  %v4120 = vmax.f32 %v4119, %v3644
  %v4121 = vmax.f32 %v4120, %v3652
  %v4122 = vmax.f32 %v4121, %v3660
  %v4123 = vmax.f32 %v4122, %v3668
  %v4124 = vmax.f32 %v4123, %v3676
  %v4125 = vmax.f32 %v4124, %v3684
  %v4126 = vmax.f32 %v4125, %v3692
  %v4127 = vmax.f32 %v4126, %v3700
  %v4128 = vmax.f32 %v4127, %v3708
  %v4129 = vmax.f32 %v4128, %v3716
  %v4130 = vmax.f32 %v4129, %v3724
  %v4131 = vrot.slane %v4130, 4
  %v4132 = vmax.f32 %v4130, %v4131
  %v4133 = vrot.slane %v4132, 2
  %v4134 = vmax.f32 %v4132, %v4133
  %v4135 = vrot.slane %v4134, 1
  %v4136 = vmax.f32 %v4134, %v4135
  %v4137 = vmax.f32 %v3477, %v3485
  %v4138 = vmax.f32 %v4137, %v3493
  %v4139 = vmax.f32 %v4138, %v3501
  %v4140 = vmax.f32 %v4139, %v3509
  %v4141 = vmax.f32 %v4140, %v3517
  %v4142 = vmax.f32 %v4141, %v3525
  %v4143 = vmax.f32 %v4142, %v3533
  %v4144 = vmax.f32 %v4143, %v3541
  %v4145 = vmax.f32 %v4144, %v3549
  %v4146 = vmax.f32 %v4145, %v3557
  %v4147 = vmax.f32 %v4146, %v3565
  %v4148 = vmax.f32 %v4147, %v3573
  %v4149 = vmax.f32 %v4148, %v3581
  %v4150 = vmax.f32 %v4149, %v3589
  %v4151 = vmax.f32 %v4150, %v3597
  %v4152 = vmax.f32 %v4151, %v3605
  %v4153 = vmax.f32 %v4152, %v3613
  %v4154 = vmax.f32 %v4153, %v3621
  %v4155 = vmax.f32 %v4154, %v3629
  %v4156 = vmax.f32 %v4155, %v3637
  %v4157 = vmax.f32 %v4156, %v3645
  %v4158 = vmax.f32 %v4157, %v3653
  %v4159 = vmax.f32 %v4158, %v3661
  %v4160 = vmax.f32 %v4159, %v3669
  %v4161 = vmax.f32 %v4160, %v3677
  %v4162 = vmax.f32 %v4161, %v3685
  %v4163 = vmax.f32 %v4162, %v3693
  %v4164 = vmax.f32 %v4163, %v3701
  %v4165 = vmax.f32 %v4164, %v3709
  %v4166 = vmax.f32 %v4165, %v3717
  %v4167 = vmax.f32 %v4166, %v3725
  %v4168 = vrot.slane %v4167, 4
  %v4169 = vmax.f32 %v4167, %v4168
  %v4170 = vrot.slane %v4169, 2
  %v4171 = vmax.f32 %v4169, %v4170
  %v4172 = vrot.slane %v4171, 1
  %v4173 = vmax.f32 %v4171, %v4172
  %v4174 = vmax.f32 %v3478, %v3486
  %v4175 = vmax.f32 %v4174, %v3494
  %v4176 = vmax.f32 %v4175, %v3502
  %v4177 = vmax.f32 %v4176, %v3510
  %v4178 = vmax.f32 %v4177, %v3518
  %v4179 = vmax.f32 %v4178, %v3526
  %v4180 = vmax.f32 %v4179, %v3534
  %v4181 = vmax.f32 %v4180, %v3542
  %v4182 = vmax.f32 %v4181, %v3550
  %v4183 = vmax.f32 %v4182, %v3558
  %v4184 = vmax.f32 %v4183, %v3566
  %v4185 = vmax.f32 %v4184, %v3574
  %v4186 = vmax.f32 %v4185, %v3582
  %v4187 = vmax.f32 %v4186, %v3590
  %v4188 = vmax.f32 %v4187, %v3598
  %v4189 = vmax.f32 %v4188, %v3606
  %v4190 = vmax.f32 %v4189, %v3614
  %v4191 = vmax.f32 %v4190, %v3622
  %v4192 = vmax.f32 %v4191, %v3630
  %v4193 = vmax.f32 %v4192, %v3638
  %v4194 = vmax.f32 %v4193, %v3646
  %v4195 = vmax.f32 %v4194, %v3654
  %v4196 = vmax.f32 %v4195, %v3662
  %v4197 = vmax.f32 %v4196, %v3670
  %v4198 = vmax.f32 %v4197, %v3678
  %v4199 = vmax.f32 %v4198, %v3686
  %v4200 = vmax.f32 %v4199, %v3694
  %v4201 = vmax.f32 %v4200, %v3702
  %v4202 = vmax.f32 %v4201, %v3710
  %v4203 = vmax.f32 %v4202, %v3718
  %v4204 = vmax.f32 %v4203, %v3726
  %v4205 = vrot.slane %v4204, 4
  %v4206 = vmax.f32 %v4204, %v4205
  %v4207 = vrot.slane %v4206, 2
  %v4208 = vmax.f32 %v4206, %v4207
  %v4209 = vrot.slane %v4208, 1
  %v4210 = vmax.f32 %v4208, %v4209
  %v4211 = vmax.f32 %v3479, %v3487
  %v4212 = vmax.f32 %v4211, %v3495
  %v4213 = vmax.f32 %v4212, %v3503
  %v4214 = vmax.f32 %v4213, %v3511
  %v4215 = vmax.f32 %v4214, %v3519
  %v4216 = vmax.f32 %v4215, %v3527
  %v4217 = vmax.f32 %v4216, %v3535
  %v4218 = vmax.f32 %v4217, %v3543
  %v4219 = vmax.f32 %v4218, %v3551
  %v4220 = vmax.f32 %v4219, %v3559
  %v4221 = vmax.f32 %v4220, %v3567
  %v4222 = vmax.f32 %v4221, %v3575
  %v4223 = vmax.f32 %v4222, %v3583
  %v4224 = vmax.f32 %v4223, %v3591
  %v4225 = vmax.f32 %v4224, %v3599
  %v4226 = vmax.f32 %v4225, %v3607
  %v4227 = vmax.f32 %v4226, %v3615
  %v4228 = vmax.f32 %v4227, %v3623
  %v4229 = vmax.f32 %v4228, %v3631
  %v4230 = vmax.f32 %v4229, %v3639
  %v4231 = vmax.f32 %v4230, %v3647
  %v4232 = vmax.f32 %v4231, %v3655
  %v4233 = vmax.f32 %v4232, %v3663
  %v4234 = vmax.f32 %v4233, %v3671
  %v4235 = vmax.f32 %v4234, %v3679
  %v4236 = vmax.f32 %v4235, %v3687
  %v4237 = vmax.f32 %v4236, %v3695
  %v4238 = vmax.f32 %v4237, %v3703
  %v4239 = vmax.f32 %v4238, %v3711
  %v4240 = vmax.f32 %v4239, %v3719
  %v4241 = vmax.f32 %v4240, %v3727
  %v4242 = vrot.slane %v4241, 4
  %v4243 = vmax.f32 %v4241, %v4242
  %v4244 = vrot.slane %v4243, 2
  %v4245 = vmax.f32 %v4243, %v4244
  %v4246 = vrot.slane %v4245, 1
  %v4247 = vmax.f32 %v4245, %v4246
  %v4248 = vmax.f32 %v3480, %v3488
  %v4249 = vmax.f32 %v4248, %v3496
  %v4250 = vmax.f32 %v4249, %v3504
  %v4251 = vmax.f32 %v4250, %v3512
  %v4252 = vmax.f32 %v4251, %v3520
  %v4253 = vmax.f32 %v4252, %v3528
  %v4254 = vmax.f32 %v4253, %v3536
  %v4255 = vmax.f32 %v4254, %v3544
  %v4256 = vmax.f32 %v4255, %v3552
  %v4257 = vmax.f32 %v4256, %v3560
  %v4258 = vmax.f32 %v4257, %v3568
  %v4259 = vmax.f32 %v4258, %v3576
  %v4260 = vmax.f32 %v4259, %v3584
  %v4261 = vmax.f32 %v4260, %v3592
  %v4262 = vmax.f32 %v4261, %v3600
  %v4263 = vmax.f32 %v4262, %v3608
  %v4264 = vmax.f32 %v4263, %v3616
  %v4265 = vmax.f32 %v4264, %v3624
  %v4266 = vmax.f32 %v4265, %v3632
  %v4267 = vmax.f32 %v4266, %v3640
  %v4268 = vmax.f32 %v4267, %v3648
  %v4269 = vmax.f32 %v4268, %v3656
  %v4270 = vmax.f32 %v4269, %v3664
  %v4271 = vmax.f32 %v4270, %v3672
  %v4272 = vmax.f32 %v4271, %v3680
  %v4273 = vmax.f32 %v4272, %v3688
  %v4274 = vmax.f32 %v4273, %v3696
  %v4275 = vmax.f32 %v4274, %v3704
  %v4276 = vmax.f32 %v4275, %v3712
  %v4277 = vmax.f32 %v4276, %v3720
  %v4278 = vmax.f32 %v4277, %v3728
  %v4279 = vrot.slane %v4278, 4
  %v4280 = vmax.f32 %v4278, %v4279
  %v4281 = vrot.slane %v4280, 2
  %v4282 = vmax.f32 %v4280, %v4281
  %v4283 = vrot.slane %v4282, 1
  %v4284 = vmax.f32 %v4282, %v4283
  %v4285 = vmax.f32 %v3481, %v3489
  %v4286 = vmax.f32 %v4285, %v3497
  %v4287 = vmax.f32 %v4286, %v3505
  %v4288 = vmax.f32 %v4287, %v3513
  %v4289 = vmax.f32 %v4288, %v3521
  %v4290 = vmax.f32 %v4289, %v3529
  %v4291 = vmax.f32 %v4290, %v3537
  %v4292 = vmax.f32 %v4291, %v3545
  %v4293 = vmax.f32 %v4292, %v3553
  %v4294 = vmax.f32 %v4293, %v3561
  %v4295 = vmax.f32 %v4294, %v3569
  %v4296 = vmax.f32 %v4295, %v3577
  %v4297 = vmax.f32 %v4296, %v3585
  %v4298 = vmax.f32 %v4297, %v3593
  %v4299 = vmax.f32 %v4298, %v3601
  %v4300 = vmax.f32 %v4299, %v3609
  %v4301 = vmax.f32 %v4300, %v3617
  %v4302 = vmax.f32 %v4301, %v3625
  %v4303 = vmax.f32 %v4302, %v3633
  %v4304 = vmax.f32 %v4303, %v3641
  %v4305 = vmax.f32 %v4304, %v3649
  %v4306 = vmax.f32 %v4305, %v3657
  %v4307 = vmax.f32 %v4306, %v3665
  %v4308 = vmax.f32 %v4307, %v3673
  %v4309 = vmax.f32 %v4308, %v3681
  %v4310 = vmax.f32 %v4309, %v3689
  %v4311 = vmax.f32 %v4310, %v3697
  %v4312 = vmax.f32 %v4311, %v3705
  %v4313 = vmax.f32 %v4312, %v3713
  %v4314 = vmax.f32 %v4313, %v3721
  %v4315 = vmax.f32 %v4314, %v3729
  %v4316 = vrot.slane %v4315, 4
  %v4317 = vmax.f32 %v4315, %v4316
  %v4318 = vrot.slane %v4317, 2
  %v4319 = vmax.f32 %v4317, %v4318
  %v4320 = vrot.slane %v4319, 1
  %v4321 = vmax.f32 %v4319, %v4320
  %v4322 = vpack.c.bf16 %v3766, %v3766
  %v4323 = vpack.c.bf16 %v3803, %v3803
  %v4324 = vpack.c.bf16 %v3840, %v3840
  %v4325 = vpack.c.bf16 %v3877, %v3877
  %v4326 = vpack.c.bf16 %v3914, %v3914
  %v4327 = vpack.c.bf16 %v3951, %v3951
  %v4328 = vpack.c.bf16 %v3988, %v3988
  %v4329 = vpack.c.bf16 %v4025, %v4025
  %v4330 = vpack.c.bf16 %v4062, %v4062
  %v4331 = vpack.c.bf16 %v4099, %v4099
  %v4332 = vpack.c.bf16 %v4136, %v4136
  %v4333 = vpack.c.bf16 %v4173, %v4173
  %v4334 = vpack.c.bf16 %v4210, %v4210
  %v4335 = vpack.c.bf16 %v4247, %v4247
  %v4336 = vpack.c.bf16 %v4284, %v4284
  %v4337 = vpack.c.bf16 %v4321, %v4321
  %v4338 = vld [vmem:[%s7] sm:$0xff]
  %v4339 = vld [vmem:[%s7 + $0x8] sm:$0xff]
  %v4340 = vld [vmem:[%s7 + $0x10] sm:$0xff]
  %v4341 = vld [vmem:[%s7 + $0x18] sm:$0xff]
  %v4342 = vld [vmem:[%s7 + $0x20] sm:$0xff]
  %v4343 = vld [vmem:[%s7 + $0x28] sm:$0xff]
  %v4344 = vld [vmem:[%s7 + $0x30] sm:$0xff]
  %v4345 = vld [vmem:[%s7 + $0x38] sm:$0xff]
  %v4346 = vld [vmem:[%s7 + $0x40] sm:$0xff]
  %v4347 = vld [vmem:[%s7 + $0x48] sm:$0xff]
  %v4348 = vld [vmem:[%s7 + $0x50] sm:$0xff]
  %v4349 = vld [vmem:[%s7 + $0x58] sm:$0xff]
  %v4350 = vld [vmem:[%s7 + $0x60] sm:$0xff]
  %v4351 = vld [vmem:[%s7 + $0x68] sm:$0xff]
  %v4352 = vld [vmem:[%s7 + $0x70] sm:$0xff]
  %v4353 = vld [vmem:[%s7 + $0x78] sm:$0xff]
  %v4354 = vld [vmem:[%s7 + $0x80] sm:$0xff]
  %v4355 = vld [vmem:[%s7 + $0x88] sm:$0xff]
  %v4356 = vld [vmem:[%s7 + $0x90] sm:$0xff]
  %v4357 = vld [vmem:[%s7 + $0x98] sm:$0xff]
  %v4358 = vld [vmem:[%s7 + $0xa0] sm:$0xff]
  %v4359 = vld [vmem:[%s7 + $0xa8] sm:$0xff]
  %v4360 = vld [vmem:[%s7 + $0xb0] sm:$0xff]
  %v4361 = vld [vmem:[%s7 + $0xb8] sm:$0xff]
  %v4362 = vld [vmem:[%s7 + $0xc0] sm:$0xff]
  %v4363 = vld [vmem:[%s7 + $0xc8] sm:$0xff]
  %v4364 = vld [vmem:[%s7 + $0xd0] sm:$0xff]
  %v4365 = vld [vmem:[%s7 + $0xd8] sm:$0xff]
  %v4366 = vld [vmem:[%s7 + $0xe0] sm:$0xff]
  %v4367 = vld [vmem:[%s7 + $0xe8] sm:$0xff]
  %v4368 = vld [vmem:[%s7 + $0xf0] sm:$0xff]
  %v4369 = vld [vmem:[%s7 + $0xf8] sm:$0xff]
  %v4370 = vld [vmem:[%s7 + $0x100] sm:$0xff]
  %v4371 = vld [vmem:[%s7 + $0x108] sm:$0xff]
  %v4372 = vld [vmem:[%s7 + $0x110] sm:$0xff]
  %v4373 = vld [vmem:[%s7 + $0x118] sm:$0xff]
  %v4374 = vld [vmem:[%s7 + $0x120] sm:$0xff]
  %v4375 = vld [vmem:[%s7 + $0x128] sm:$0xff]
  %v4376 = vld [vmem:[%s7 + $0x130] sm:$0xff]
  %v4377 = vld [vmem:[%s7 + $0x138] sm:$0xff]
  %v4378 = vld [vmem:[%s7 + $0x140] sm:$0xff]
  %v4379 = vld [vmem:[%s7 + $0x148] sm:$0xff]
  %v4380 = vld [vmem:[%s7 + $0x150] sm:$0xff]
  %v4381 = vld [vmem:[%s7 + $0x158] sm:$0xff]
  %v4382 = vld [vmem:[%s7 + $0x160] sm:$0xff]
  %v4383 = vld [vmem:[%s7 + $0x168] sm:$0xff]
  %v4384 = vld [vmem:[%s7 + $0x170] sm:$0xff]
  %v4385 = vld [vmem:[%s7 + $0x178] sm:$0xff]
  %v4386 = vld [vmem:[%s7 + $0x180] sm:$0xff]
  %v4387 = vld [vmem:[%s7 + $0x188] sm:$0xff]
  %v4388 = vld [vmem:[%s7 + $0x190] sm:$0xff]
  %v4389 = vld [vmem:[%s7 + $0x198] sm:$0xff]
  %v4390 = vld [vmem:[%s7 + $0x1a0] sm:$0xff]
  %v4391 = vld [vmem:[%s7 + $0x1a8] sm:$0xff]
  %v4392 = vld [vmem:[%s7 + $0x1b0] sm:$0xff]
  %v4393 = vld [vmem:[%s7 + $0x1b8] sm:$0xff]
  %v4394 = vld [vmem:[%s7 + $0x1c0] sm:$0xff]
  %v4395 = vld [vmem:[%s7 + $0x1c8] sm:$0xff]
  %v4396 = vld [vmem:[%s7 + $0x1d0] sm:$0xff]
  %v4397 = vld [vmem:[%s7 + $0x1d8] sm:$0xff]
  %v4398 = vld [vmem:[%s7 + $0x1e0] sm:$0xff]
  %v4399 = vld [vmem:[%s7 + $0x1e8] sm:$0xff]
  %v4400 = vld [vmem:[%s7 + $0x1f0] sm:$0xff]
  %v4401 = vld [vmem:[%s7 + $0x1f8] sm:$0xff]
  %v4402 = vld [vmem:[%s7 + $0x200] sm:$0xff]
  %v4403 = vld [vmem:[%s7 + $0x208] sm:$0xff]
  %v4404 = vld [vmem:[%s7 + $0x210] sm:$0xff]
  %v4405 = vld [vmem:[%s7 + $0x218] sm:$0xff]
  %v4406 = vld [vmem:[%s7 + $0x220] sm:$0xff]
  %v4407 = vld [vmem:[%s7 + $0x228] sm:$0xff]
  %v4408 = vld [vmem:[%s7 + $0x230] sm:$0xff]
  %v4409 = vld [vmem:[%s7 + $0x238] sm:$0xff]
  %v4410 = vld [vmem:[%s7 + $0x240] sm:$0xff]
  %v4411 = vld [vmem:[%s7 + $0x248] sm:$0xff]
  %v4412 = vld [vmem:[%s7 + $0x250] sm:$0xff]
  %v4413 = vld [vmem:[%s7 + $0x258] sm:$0xff]
  %v4414 = vld [vmem:[%s7 + $0x260] sm:$0xff]
  %v4415 = vld [vmem:[%s7 + $0x268] sm:$0xff]
  %v4416 = vld [vmem:[%s7 + $0x270] sm:$0xff]
  %v4417 = vld [vmem:[%s7 + $0x278] sm:$0xff]
  %v4418 = vld [vmem:[%s7 + $0x280] sm:$0xff]
  %v4419 = vld [vmem:[%s7 + $0x288] sm:$0xff]
  %v4420 = vld [vmem:[%s7 + $0x290] sm:$0xff]
  %v4421 = vld [vmem:[%s7 + $0x298] sm:$0xff]
  %v4422 = vld [vmem:[%s7 + $0x2a0] sm:$0xff]
  %v4423 = vld [vmem:[%s7 + $0x2a8] sm:$0xff]
  %v4424 = vld [vmem:[%s7 + $0x2b0] sm:$0xff]
  %v4425 = vld [vmem:[%s7 + $0x2b8] sm:$0xff]
  %v4426 = vld [vmem:[%s7 + $0x2c0] sm:$0xff]
  %v4427 = vld [vmem:[%s7 + $0x2c8] sm:$0xff]
  %v4428 = vld [vmem:[%s7 + $0x2d0] sm:$0xff]
  %v4429 = vld [vmem:[%s7 + $0x2d8] sm:$0xff]
  %v4430 = vld [vmem:[%s7 + $0x2e0] sm:$0xff]
  %v4431 = vld [vmem:[%s7 + $0x2e8] sm:$0xff]
  %v4432 = vld [vmem:[%s7 + $0x2f0] sm:$0xff]
  %v4433 = vld [vmem:[%s7 + $0x2f8] sm:$0xff]
  %v4434 = vld [vmem:[%s7 + $0x300] sm:$0xff]
  %v4435 = vld [vmem:[%s7 + $0x308] sm:$0xff]
  %v4436 = vld [vmem:[%s7 + $0x310] sm:$0xff]
  %v4437 = vld [vmem:[%s7 + $0x318] sm:$0xff]
  %v4438 = vld [vmem:[%s7 + $0x320] sm:$0xff]
  %v4439 = vld [vmem:[%s7 + $0x328] sm:$0xff]
  %v4440 = vld [vmem:[%s7 + $0x330] sm:$0xff]
  %v4441 = vld [vmem:[%s7 + $0x338] sm:$0xff]
  %v4442 = vld [vmem:[%s7 + $0x340] sm:$0xff]
  %v4443 = vld [vmem:[%s7 + $0x348] sm:$0xff]
  %v4444 = vld [vmem:[%s7 + $0x350] sm:$0xff]
  %v4445 = vld [vmem:[%s7 + $0x358] sm:$0xff]
  %v4446 = vld [vmem:[%s7 + $0x360] sm:$0xff]
  %v4447 = vld [vmem:[%s7 + $0x368] sm:$0xff]
  %v4448 = vld [vmem:[%s7 + $0x370] sm:$0xff]
  %v4449 = vld [vmem:[%s7 + $0x378] sm:$0xff]
  %v4450 = vld [vmem:[%s7 + $0x380] sm:$0xff]
  %v4451 = vld [vmem:[%s7 + $0x388] sm:$0xff]
  %v4452 = vld [vmem:[%s7 + $0x390] sm:$0xff]
  %v4453 = vld [vmem:[%s7 + $0x398] sm:$0xff]
  %v4454 = vld [vmem:[%s7 + $0x3a0] sm:$0xff]
  %v4455 = vld [vmem:[%s7 + $0x3a8] sm:$0xff]
  %v4456 = vld [vmem:[%s7 + $0x3b0] sm:$0xff]
  %v4457 = vld [vmem:[%s7 + $0x3b8] sm:$0xff]
  %v4458 = vld [vmem:[%s7 + $0x3c0] sm:$0xff]
  %v4459 = vld [vmem:[%s7 + $0x3c8] sm:$0xff]
  %v4460 = vld [vmem:[%s7 + $0x3d0] sm:$0xff]
  %v4461 = vld [vmem:[%s7 + $0x3d8] sm:$0xff]
  %v4462 = vld [vmem:[%s7 + $0x3e0] sm:$0xff]
  %v4463 = vld [vmem:[%s7 + $0x3e8] sm:$0xff]
  %v4464 = vld [vmem:[%s7 + $0x3f0] sm:$0xff]
  %v4465 = vld [vmem:[%s7 + $0x3f8] sm:$0xff]
  %v4466 = vld [vmem:[%s7 + $0x400] sm:$0xff]
  %v4467 = vld [vmem:[%s7 + $0x408] sm:$0xff]
  %v4468 = vld [vmem:[%s7 + $0x410] sm:$0xff]
  %v4469 = vld [vmem:[%s7 + $0x418] sm:$0xff]
  %v4470 = vld [vmem:[%s7 + $0x420] sm:$0xff]
  %v4471 = vld [vmem:[%s7 + $0x428] sm:$0xff]
  %v4472 = vld [vmem:[%s7 + $0x430] sm:$0xff]
  %v4473 = vld [vmem:[%s7 + $0x438] sm:$0xff]
  %v4474 = vld [vmem:[%s7 + $0x440] sm:$0xff]
  %v4475 = vld [vmem:[%s7 + $0x448] sm:$0xff]
  %v4476 = vld [vmem:[%s7 + $0x450] sm:$0xff]
  %v4477 = vld [vmem:[%s7 + $0x458] sm:$0xff]
  %v4478 = vld [vmem:[%s7 + $0x460] sm:$0xff]
  %v4479 = vld [vmem:[%s7 + $0x468] sm:$0xff]
  %v4480 = vld [vmem:[%s7 + $0x470] sm:$0xff]
  %v4481 = vld [vmem:[%s7 + $0x478] sm:$0xff]
  %v4482 = vld [vmem:[%s7 + $0x480] sm:$0xff]
  %v4483 = vld [vmem:[%s7 + $0x488] sm:$0xff]
  %v4484 = vld [vmem:[%s7 + $0x490] sm:$0xff]
  %v4485 = vld [vmem:[%s7 + $0x498] sm:$0xff]
  %v4486 = vld [vmem:[%s7 + $0x4a0] sm:$0xff]
  %v4487 = vld [vmem:[%s7 + $0x4a8] sm:$0xff]
  %v4488 = vld [vmem:[%s7 + $0x4b0] sm:$0xff]
  %v4489 = vld [vmem:[%s7 + $0x4b8] sm:$0xff]
  %v4490 = vld [vmem:[%s7 + $0x4c0] sm:$0xff]
  %v4491 = vld [vmem:[%s7 + $0x4c8] sm:$0xff]
  %v4492 = vld [vmem:[%s7 + $0x4d0] sm:$0xff]
  %v4493 = vld [vmem:[%s7 + $0x4d8] sm:$0xff]
  %v4494 = vld [vmem:[%s7 + $0x4e0] sm:$0xff]
  %v4495 = vld [vmem:[%s7 + $0x4e8] sm:$0xff]
  %v4496 = vld [vmem:[%s7 + $0x4f0] sm:$0xff]
  %v4497 = vld [vmem:[%s7 + $0x4f8] sm:$0xff]
  %v4498 = vld [vmem:[%s7 + $0x500] sm:$0xff]
  %v4499 = vld [vmem:[%s7 + $0x508] sm:$0xff]
  %v4500 = vld [vmem:[%s7 + $0x510] sm:$0xff]
  %v4501 = vld [vmem:[%s7 + $0x518] sm:$0xff]
  %v4502 = vld [vmem:[%s7 + $0x520] sm:$0xff]
  %v4503 = vld [vmem:[%s7 + $0x528] sm:$0xff]
  %v4504 = vld [vmem:[%s7 + $0x530] sm:$0xff]
  %v4505 = vld [vmem:[%s7 + $0x538] sm:$0xff]
  %v4506 = vld [vmem:[%s7 + $0x540] sm:$0xff]
  %v4507 = vld [vmem:[%s7 + $0x548] sm:$0xff]
  %v4508 = vld [vmem:[%s7 + $0x550] sm:$0xff]
  %v4509 = vld [vmem:[%s7 + $0x558] sm:$0xff]
  %v4510 = vld [vmem:[%s7 + $0x560] sm:$0xff]
  %v4511 = vld [vmem:[%s7 + $0x568] sm:$0xff]
  %v4512 = vld [vmem:[%s7 + $0x570] sm:$0xff]
  %v4513 = vld [vmem:[%s7 + $0x578] sm:$0xff]
  %v4514 = vld [vmem:[%s7 + $0x580] sm:$0xff]
  %v4515 = vld [vmem:[%s7 + $0x588] sm:$0xff]
  %v4516 = vld [vmem:[%s7 + $0x590] sm:$0xff]
  %v4517 = vld [vmem:[%s7 + $0x598] sm:$0xff]
  %v4518 = vld [vmem:[%s7 + $0x5a0] sm:$0xff]
  %v4519 = vld [vmem:[%s7 + $0x5a8] sm:$0xff]
  %v4520 = vld [vmem:[%s7 + $0x5b0] sm:$0xff]
  %v4521 = vld [vmem:[%s7 + $0x5b8] sm:$0xff]
  %v4522 = vld [vmem:[%s7 + $0x5c0] sm:$0xff]
  %v4523 = vld [vmem:[%s7 + $0x5c8] sm:$0xff]
  %v4524 = vld [vmem:[%s7 + $0x5d0] sm:$0xff]
  %v4525 = vld [vmem:[%s7 + $0x5d8] sm:$0xff]
  %v4526 = vld [vmem:[%s7 + $0x5e0] sm:$0xff]
  %v4527 = vld [vmem:[%s7 + $0x5e8] sm:$0xff]
  %v4528 = vld [vmem:[%s7 + $0x5f0] sm:$0xff]
  %v4529 = vld [vmem:[%s7 + $0x5f8] sm:$0xff]
  %v4530 = vld [vmem:[%s7 + $0x600] sm:$0xff]
  %v4531 = vld [vmem:[%s7 + $0x608] sm:$0xff]
  %v4532 = vld [vmem:[%s7 + $0x610] sm:$0xff]
  %v4533 = vld [vmem:[%s7 + $0x618] sm:$0xff]
  %v4534 = vld [vmem:[%s7 + $0x620] sm:$0xff]
  %v4535 = vld [vmem:[%s7 + $0x628] sm:$0xff]
  %v4536 = vld [vmem:[%s7 + $0x630] sm:$0xff]
  %v4537 = vld [vmem:[%s7 + $0x638] sm:$0xff]
  %v4538 = vld [vmem:[%s7 + $0x640] sm:$0xff]
  %v4539 = vld [vmem:[%s7 + $0x648] sm:$0xff]
  %v4540 = vld [vmem:[%s7 + $0x650] sm:$0xff]
  %v4541 = vld [vmem:[%s7 + $0x658] sm:$0xff]
  %v4542 = vld [vmem:[%s7 + $0x660] sm:$0xff]
  %v4543 = vld [vmem:[%s7 + $0x668] sm:$0xff]
  %v4544 = vld [vmem:[%s7 + $0x670] sm:$0xff]
  %v4545 = vld [vmem:[%s7 + $0x678] sm:$0xff]
  %v4546 = vld [vmem:[%s7 + $0x680] sm:$0xff]
  %v4547 = vld [vmem:[%s7 + $0x688] sm:$0xff]
  %v4548 = vld [vmem:[%s7 + $0x690] sm:$0xff]
  %v4549 = vld [vmem:[%s7 + $0x698] sm:$0xff]
  %v4550 = vld [vmem:[%s7 + $0x6a0] sm:$0xff]
  %v4551 = vld [vmem:[%s7 + $0x6a8] sm:$0xff]
  %v4552 = vld [vmem:[%s7 + $0x6b0] sm:$0xff]
  %v4553 = vld [vmem:[%s7 + $0x6b8] sm:$0xff]
  %v4554 = vld [vmem:[%s7 + $0x6c0] sm:$0xff]
  %v4555 = vld [vmem:[%s7 + $0x6c8] sm:$0xff]
  %v4556 = vld [vmem:[%s7 + $0x6d0] sm:$0xff]
  %v4557 = vld [vmem:[%s7 + $0x6d8] sm:$0xff]
  %v4558 = vld [vmem:[%s7 + $0x6e0] sm:$0xff]
  %v4559 = vld [vmem:[%s7 + $0x6e8] sm:$0xff]
  %v4560 = vld [vmem:[%s7 + $0x6f0] sm:$0xff]
  %v4561 = vld [vmem:[%s7 + $0x6f8] sm:$0xff]
  %v4562 = vld [vmem:[%s7 + $0x700] sm:$0xff]
  %v4563 = vld [vmem:[%s7 + $0x708] sm:$0xff]
  %v4564 = vld [vmem:[%s7 + $0x710] sm:$0xff]
  %v4565 = vld [vmem:[%s7 + $0x718] sm:$0xff]
  %v4566 = vld [vmem:[%s7 + $0x720] sm:$0xff]
  %v4567 = vld [vmem:[%s7 + $0x728] sm:$0xff]
  %v4568 = vld [vmem:[%s7 + $0x730] sm:$0xff]
  %v4569 = vld [vmem:[%s7 + $0x738] sm:$0xff]
  %v4570 = vld [vmem:[%s7 + $0x740] sm:$0xff]
  %v4571 = vld [vmem:[%s7 + $0x748] sm:$0xff]
  %v4572 = vld [vmem:[%s7 + $0x750] sm:$0xff]
  %v4573 = vld [vmem:[%s7 + $0x758] sm:$0xff]
  %v4574 = vld [vmem:[%s7 + $0x760] sm:$0xff]
  %v4575 = vld [vmem:[%s7 + $0x768] sm:$0xff]
  %v4576 = vld [vmem:[%s7 + $0x770] sm:$0xff]
  %v4577 = vld [vmem:[%s7 + $0x778] sm:$0xff]
  %v4578 = vld [vmem:[%s7 + $0x780] sm:$0xff]
  %v4579 = vld [vmem:[%s7 + $0x788] sm:$0xff]
  %v4580 = vld [vmem:[%s7 + $0x790] sm:$0xff]
  %v4581 = vld [vmem:[%s7 + $0x798] sm:$0xff]
  %v4582 = vld [vmem:[%s7 + $0x7a0] sm:$0xff]
  %v4583 = vld [vmem:[%s7 + $0x7a8] sm:$0xff]
  %v4584 = vld [vmem:[%s7 + $0x7b0] sm:$0xff]
  %v4585 = vld [vmem:[%s7 + $0x7b8] sm:$0xff]
  %v4586 = vld [vmem:[%s7 + $0x7c0] sm:$0xff]
  %v4587 = vld [vmem:[%s7 + $0x7c8] sm:$0xff]
  %v4588 = vld [vmem:[%s7 + $0x7d0] sm:$0xff]
  %v4589 = vld [vmem:[%s7 + $0x7d8] sm:$0xff]
  %v4590 = vld [vmem:[%s7 + $0x7e0] sm:$0xff]
  %v4591 = vld [vmem:[%s7 + $0x7e8] sm:$0xff]
  %v4592 = vld [vmem:[%s7 + $0x7f0] sm:$0xff]
  %v4593 = vld [vmem:[%s7 + $0x7f8] sm:$0xff]
  %v4594 = vld [vmem:[%s8] sm:$0xf]
  %v4596 = vlaneseq
  %v4597 = vshrl.u32 %v4596, 7
  %v4598 = vsub.s32 0, %v4597
  %v4599 = vrot.slane %v4594, %v4598
  %v4600 = vlaneseq
  %v4601 = vshrl.u32 %v4600, 7
  %v4602 = vsub.s32 1, %v4601
  %v4603 = vrot.slane %v4594, %v4602
  %v4604 = vlaneseq
  %v4605 = vshrl.u32 %v4604, 7
  %v4606 = vsub.s32 2, %v4605
  %v4607 = vrot.slane %v4594, %v4606
  %v4608 = vlaneseq
  %v4609 = vshrl.u32 %v4608, 7
  %v4610 = vsub.s32 3, %v4609
  %v4611 = vrot.slane %v4594, %v4610
  %v4632 = vunpack.c.l.b16 %v4322
  %v4633 = vunpack.c.l.b16 %v4323
  %v4634 = vunpack.c.l.b16 %v4324
  %v4635 = vunpack.c.l.b16 %v4325
  %v4636 = vunpack.c.l.b16 %v4326
  %v4637 = vunpack.c.l.b16 %v4327
  %v4638 = vunpack.c.l.b16 %v4328
  %v4639 = vunpack.c.l.b16 %v4329
  %v4640 = vunpack.c.l.b16 %v4330
  %v4641 = vunpack.c.l.b16 %v4331
  %v4642 = vunpack.c.l.b16 %v4332
  %v4643 = vunpack.c.l.b16 %v4333
  %v4644 = vunpack.c.l.b16 %v4334
  %v4645 = vunpack.c.l.b16 %v4335
  %v4646 = vunpack.c.l.b16 %v4336
  %v4647 = vunpack.c.l.b16 %v4337
  %vm4648 = vcmask 1041409
  %v4649 = vsel %vm4648, %v4640, %v4632
  %v4650 = vsel %vm4648, %v4641, %v4633
  %v4651 = vsel %vm4648, %v4642, %v4634
  %v4652 = vsel %vm4648, %v4643, %v4635
  %v4653 = vsel %vm4648, %v4644, %v4636
  %v4654 = vsel %vm4648, %v4645, %v4637
  %v4655 = vsel %vm4648, %v4646, %v4638
  %v4656 = vsel %vm4648, %v4647, %v4639
  %v4657 = vpack.c.b16 %v4649, %v4649
  %v4658 = vpack.c.b16 %v4650, %v4650
  %v4659 = vpack.c.b16 %v4651, %v4651
  %v4660 = vpack.c.b16 %v4652, %v4652
  %v4661 = vpack.c.b16 %v4653, %v4653
  %v4662 = vpack.c.b16 %v4654, %v4654
  %v4663 = vpack.c.b16 %v4655, %v4655
  %v4664 = vpack.c.b16 %v4656, %v4656
  %v4929 = vunpack.c.l.b16 %v4338
  %v4930 = vunpack.c.h.b16 %v4338
  %v4931 = vunpack.c.l.b16 %v4339
  %v4932 = vunpack.c.h.b16 %v4339
  %v4933 = vunpack.c.l.b16 %v4340
  %v4934 = vunpack.c.h.b16 %v4340
  %v4935 = vunpack.c.l.b16 %v4341
  %v4936 = vunpack.c.h.b16 %v4341
  %v4937 = vunpack.c.l.b16 %v4342
  %v4938 = vunpack.c.h.b16 %v4342
  %v4939 = vunpack.c.l.b16 %v4343
  %v4940 = vunpack.c.h.b16 %v4343
  %v4941 = vunpack.c.l.b16 %v4344
  %v4942 = vunpack.c.h.b16 %v4344
  %v4943 = vunpack.c.l.b16 %v4345
  %v4944 = vunpack.c.h.b16 %v4345
  %v4945 = vunpack.c.l.b16 %v4346
  %v4946 = vunpack.c.h.b16 %v4346
  %v4947 = vunpack.c.l.b16 %v4347
  %v4948 = vunpack.c.h.b16 %v4347
  %v4949 = vunpack.c.l.b16 %v4348
  %v4950 = vunpack.c.h.b16 %v4348
  %v4951 = vunpack.c.l.b16 %v4349
  %v4952 = vunpack.c.h.b16 %v4349
  %v4953 = vunpack.c.l.b16 %v4350
  %v4954 = vunpack.c.h.b16 %v4350
  %v4955 = vunpack.c.l.b16 %v4351
  %v4956 = vunpack.c.h.b16 %v4351
  %v4957 = vunpack.c.l.b16 %v4352
  %v4958 = vunpack.c.h.b16 %v4352
  %v4959 = vunpack.c.l.b16 %v4353
  %v4960 = vunpack.c.h.b16 %v4353
  %v4961 = vunpack.c.l.b16 %v4354
  %v4962 = vunpack.c.h.b16 %v4354
  %v4963 = vunpack.c.l.b16 %v4355
  %v4964 = vunpack.c.h.b16 %v4355
  %v4965 = vunpack.c.l.b16 %v4356
  %v4966 = vunpack.c.h.b16 %v4356
  %v4967 = vunpack.c.l.b16 %v4357
  %v4968 = vunpack.c.h.b16 %v4357
  %v4969 = vunpack.c.l.b16 %v4358
  %v4970 = vunpack.c.h.b16 %v4358
  %v4971 = vunpack.c.l.b16 %v4359
  %v4972 = vunpack.c.h.b16 %v4359
  %v4973 = vunpack.c.l.b16 %v4360
  %v4974 = vunpack.c.h.b16 %v4360
  %v4975 = vunpack.c.l.b16 %v4361
  %v4976 = vunpack.c.h.b16 %v4361
  %v4977 = vunpack.c.l.b16 %v4362
  %v4978 = vunpack.c.h.b16 %v4362
  %v4979 = vunpack.c.l.b16 %v4363
  %v4980 = vunpack.c.h.b16 %v4363
  %v4981 = vunpack.c.l.b16 %v4364
  %v4982 = vunpack.c.h.b16 %v4364
  %v4983 = vunpack.c.l.b16 %v4365
  %v4984 = vunpack.c.h.b16 %v4365
  %v4985 = vunpack.c.l.b16 %v4366
  %v4986 = vunpack.c.h.b16 %v4366
  %v4987 = vunpack.c.l.b16 %v4367
  %v4988 = vunpack.c.h.b16 %v4367
  %v4989 = vunpack.c.l.b16 %v4368
  %v4990 = vunpack.c.h.b16 %v4368
  %v4991 = vunpack.c.l.b16 %v4369
  %v4992 = vunpack.c.h.b16 %v4369
  %v4993 = vunpack.c.l.b16 %v4370
  %v4994 = vunpack.c.h.b16 %v4370
  %v4995 = vunpack.c.l.b16 %v4371
  %v4996 = vunpack.c.h.b16 %v4371
  %v4997 = vunpack.c.l.b16 %v4372
  %v4998 = vunpack.c.h.b16 %v4372
  %v4999 = vunpack.c.l.b16 %v4373
  %v5000 = vunpack.c.h.b16 %v4373
  %v5001 = vunpack.c.l.b16 %v4374
  %v5002 = vunpack.c.h.b16 %v4374
  %v5003 = vunpack.c.l.b16 %v4375
  %v5004 = vunpack.c.h.b16 %v4375
  %v5005 = vunpack.c.l.b16 %v4376
  %v5006 = vunpack.c.h.b16 %v4376
  %v5007 = vunpack.c.l.b16 %v4377
  %v5008 = vunpack.c.h.b16 %v4377
  %v5009 = vunpack.c.l.b16 %v4378
  %v5010 = vunpack.c.h.b16 %v4378
  %v5011 = vunpack.c.l.b16 %v4379
  %v5012 = vunpack.c.h.b16 %v4379
  %v5013 = vunpack.c.l.b16 %v4380
  %v5014 = vunpack.c.h.b16 %v4380
  %v5015 = vunpack.c.l.b16 %v4381
  %v5016 = vunpack.c.h.b16 %v4381
  %v5017 = vunpack.c.l.b16 %v4382
  %v5018 = vunpack.c.h.b16 %v4382
  %v5019 = vunpack.c.l.b16 %v4383
  %v5020 = vunpack.c.h.b16 %v4383
  %v5021 = vunpack.c.l.b16 %v4384
  %v5022 = vunpack.c.h.b16 %v4384
  %v5023 = vunpack.c.l.b16 %v4385
  %v5024 = vunpack.c.h.b16 %v4385
  %v5025 = vunpack.c.l.b16 %v4386
  %v5026 = vunpack.c.h.b16 %v4386
  %v5027 = vunpack.c.l.b16 %v4387
  %v5028 = vunpack.c.h.b16 %v4387
  %v5029 = vunpack.c.l.b16 %v4388
  %v5030 = vunpack.c.h.b16 %v4388
  %v5031 = vunpack.c.l.b16 %v4389
  %v5032 = vunpack.c.h.b16 %v4389
  %v5033 = vunpack.c.l.b16 %v4390
  %v5034 = vunpack.c.h.b16 %v4390
  %v5035 = vunpack.c.l.b16 %v4391
  %v5036 = vunpack.c.h.b16 %v4391
  %v5037 = vunpack.c.l.b16 %v4392
  %v5038 = vunpack.c.h.b16 %v4392
  %v5039 = vunpack.c.l.b16 %v4393
  %v5040 = vunpack.c.h.b16 %v4393
  %v5041 = vunpack.c.l.b16 %v4394
  %v5042 = vunpack.c.h.b16 %v4394
  %v5043 = vunpack.c.l.b16 %v4395
  %v5044 = vunpack.c.h.b16 %v4395
  %v5045 = vunpack.c.l.b16 %v4396
  %v5046 = vunpack.c.h.b16 %v4396
  %v5047 = vunpack.c.l.b16 %v4397
  %v5048 = vunpack.c.h.b16 %v4397
  %v5049 = vunpack.c.l.b16 %v4398
  %v5050 = vunpack.c.h.b16 %v4398
  %v5051 = vunpack.c.l.b16 %v4399
  %v5052 = vunpack.c.h.b16 %v4399
  %v5053 = vunpack.c.l.b16 %v4400
  %v5054 = vunpack.c.h.b16 %v4400
  %v5055 = vunpack.c.l.b16 %v4401
  %v5056 = vunpack.c.h.b16 %v4401
  %v5057 = vunpack.c.l.b16 %v4402
  %v5058 = vunpack.c.h.b16 %v4402
  %v5059 = vunpack.c.l.b16 %v4403
  %v5060 = vunpack.c.h.b16 %v4403
  %v5061 = vunpack.c.l.b16 %v4404
  %v5062 = vunpack.c.h.b16 %v4404
  %v5063 = vunpack.c.l.b16 %v4405
  %v5064 = vunpack.c.h.b16 %v4405
  %v5065 = vunpack.c.l.b16 %v4406
  %v5066 = vunpack.c.h.b16 %v4406
  %v5067 = vunpack.c.l.b16 %v4407
  %v5068 = vunpack.c.h.b16 %v4407
  %v5069 = vunpack.c.l.b16 %v4408
  %v5070 = vunpack.c.h.b16 %v4408
  %v5071 = vunpack.c.l.b16 %v4409
  %v5072 = vunpack.c.h.b16 %v4409
  %v5073 = vunpack.c.l.b16 %v4410
  %v5074 = vunpack.c.h.b16 %v4410
  %v5075 = vunpack.c.l.b16 %v4411
  %v5076 = vunpack.c.h.b16 %v4411
  %v5077 = vunpack.c.l.b16 %v4412
  %v5078 = vunpack.c.h.b16 %v4412
  %v5079 = vunpack.c.l.b16 %v4413
  %v5080 = vunpack.c.h.b16 %v4413
  %v5081 = vunpack.c.l.b16 %v4414
  %v5082 = vunpack.c.h.b16 %v4414
  %v5083 = vunpack.c.l.b16 %v4415
  %v5084 = vunpack.c.h.b16 %v4415
  %v5085 = vunpack.c.l.b16 %v4416
  %v5086 = vunpack.c.h.b16 %v4416
  %v5087 = vunpack.c.l.b16 %v4417
  %v5088 = vunpack.c.h.b16 %v4417
  %v5089 = vunpack.c.l.b16 %v4418
  %v5090 = vunpack.c.h.b16 %v4418
  %v5091 = vunpack.c.l.b16 %v4419
  %v5092 = vunpack.c.h.b16 %v4419
  %v5093 = vunpack.c.l.b16 %v4420
  %v5094 = vunpack.c.h.b16 %v4420
  %v5095 = vunpack.c.l.b16 %v4421
  %v5096 = vunpack.c.h.b16 %v4421
  %v5097 = vunpack.c.l.b16 %v4422
  %v5098 = vunpack.c.h.b16 %v4422
  %v5099 = vunpack.c.l.b16 %v4423
  %v5100 = vunpack.c.h.b16 %v4423
  %v5101 = vunpack.c.l.b16 %v4424
  %v5102 = vunpack.c.h.b16 %v4424
  %v5103 = vunpack.c.l.b16 %v4425
  %v5104 = vunpack.c.h.b16 %v4425
  %v5105 = vunpack.c.l.b16 %v4426
  %v5106 = vunpack.c.h.b16 %v4426
  %v5107 = vunpack.c.l.b16 %v4427
  %v5108 = vunpack.c.h.b16 %v4427
  %v5109 = vunpack.c.l.b16 %v4428
  %v5110 = vunpack.c.h.b16 %v4428
  %v5111 = vunpack.c.l.b16 %v4429
  %v5112 = vunpack.c.h.b16 %v4429
  %v5113 = vunpack.c.l.b16 %v4430
  %v5114 = vunpack.c.h.b16 %v4430
  %v5115 = vunpack.c.l.b16 %v4431
  %v5116 = vunpack.c.h.b16 %v4431
  %v5117 = vunpack.c.l.b16 %v4432
  %v5118 = vunpack.c.h.b16 %v4432
  %v5119 = vunpack.c.l.b16 %v4433
  %v5120 = vunpack.c.h.b16 %v4433
  %v5121 = vunpack.c.l.b16 %v4434
  %v5122 = vunpack.c.h.b16 %v4434
  %v5123 = vunpack.c.l.b16 %v4435
  %v5124 = vunpack.c.h.b16 %v4435
  %v5125 = vunpack.c.l.b16 %v4436
  %v5126 = vunpack.c.h.b16 %v4436
  %v5127 = vunpack.c.l.b16 %v4437
  %v5128 = vunpack.c.h.b16 %v4437
  %v5129 = vunpack.c.l.b16 %v4438
  %v5130 = vunpack.c.h.b16 %v4438
  %v5131 = vunpack.c.l.b16 %v4439
  %v5132 = vunpack.c.h.b16 %v4439
  %v5133 = vunpack.c.l.b16 %v4440
  %v5134 = vunpack.c.h.b16 %v4440
  %v5135 = vunpack.c.l.b16 %v4441
  %v5136 = vunpack.c.h.b16 %v4441
  %v5137 = vunpack.c.l.b16 %v4442
  %v5138 = vunpack.c.h.b16 %v4442
  %v5139 = vunpack.c.l.b16 %v4443
  %v5140 = vunpack.c.h.b16 %v4443
  %v5141 = vunpack.c.l.b16 %v4444
  %v5142 = vunpack.c.h.b16 %v4444
  %v5143 = vunpack.c.l.b16 %v4445
  %v5144 = vunpack.c.h.b16 %v4445
  %v5145 = vunpack.c.l.b16 %v4446
  %v5146 = vunpack.c.h.b16 %v4446
  %v5147 = vunpack.c.l.b16 %v4447
  %v5148 = vunpack.c.h.b16 %v4447
  %v5149 = vunpack.c.l.b16 %v4448
  %v5150 = vunpack.c.h.b16 %v4448
  %v5151 = vunpack.c.l.b16 %v4449
  %v5152 = vunpack.c.h.b16 %v4449
  %v5153 = vunpack.c.l.b16 %v4450
  %v5154 = vunpack.c.h.b16 %v4450
  %v5155 = vunpack.c.l.b16 %v4451
  %v5156 = vunpack.c.h.b16 %v4451
  %v5157 = vunpack.c.l.b16 %v4452
  %v5158 = vunpack.c.h.b16 %v4452
  %v5159 = vunpack.c.l.b16 %v4453
  %v5160 = vunpack.c.h.b16 %v4453
  %v5161 = vunpack.c.l.b16 %v4454
  %v5162 = vunpack.c.h.b16 %v4454
  %v5163 = vunpack.c.l.b16 %v4455
  %v5164 = vunpack.c.h.b16 %v4455
  %v5165 = vunpack.c.l.b16 %v4456
  %v5166 = vunpack.c.h.b16 %v4456
  %v5167 = vunpack.c.l.b16 %v4457
  %v5168 = vunpack.c.h.b16 %v4457
  %v5169 = vunpack.c.l.b16 %v4458
  %v5170 = vunpack.c.h.b16 %v4458
  %v5171 = vunpack.c.l.b16 %v4459
  %v5172 = vunpack.c.h.b16 %v4459
  %v5173 = vunpack.c.l.b16 %v4460
  %v5174 = vunpack.c.h.b16 %v4460
  %v5175 = vunpack.c.l.b16 %v4461
  %v5176 = vunpack.c.h.b16 %v4461
  %v5177 = vunpack.c.l.b16 %v4462
  %v5178 = vunpack.c.h.b16 %v4462
  %v5179 = vunpack.c.l.b16 %v4463
  %v5180 = vunpack.c.h.b16 %v4463
  %v5181 = vunpack.c.l.b16 %v4464
  %v5182 = vunpack.c.h.b16 %v4464
  %v5183 = vunpack.c.l.b16 %v4465
  %v5184 = vunpack.c.h.b16 %v4465
  %v5185 = vunpack.c.l.b16 %v4466
  %v5186 = vunpack.c.h.b16 %v4466
  %v5187 = vunpack.c.l.b16 %v4467
  %v5188 = vunpack.c.h.b16 %v4467
  %v5189 = vunpack.c.l.b16 %v4468
  %v5190 = vunpack.c.h.b16 %v4468
  %v5191 = vunpack.c.l.b16 %v4469
  %v5192 = vunpack.c.h.b16 %v4469
  %v5193 = vunpack.c.l.b16 %v4470
  %v5194 = vunpack.c.h.b16 %v4470
  %v5195 = vunpack.c.l.b16 %v4471
  %v5196 = vunpack.c.h.b16 %v4471
  %v5197 = vunpack.c.l.b16 %v4472
  %v5198 = vunpack.c.h.b16 %v4472
  %v5199 = vunpack.c.l.b16 %v4473
  %v5200 = vunpack.c.h.b16 %v4473
  %v5201 = vunpack.c.l.b16 %v4474
  %v5202 = vunpack.c.h.b16 %v4474
  %v5203 = vunpack.c.l.b16 %v4475
  %v5204 = vunpack.c.h.b16 %v4475
  %v5205 = vunpack.c.l.b16 %v4476
  %v5206 = vunpack.c.h.b16 %v4476
  %v5207 = vunpack.c.l.b16 %v4477
  %v5208 = vunpack.c.h.b16 %v4477
  %v5209 = vunpack.c.l.b16 %v4478
  %v5210 = vunpack.c.h.b16 %v4478
  %v5211 = vunpack.c.l.b16 %v4479
  %v5212 = vunpack.c.h.b16 %v4479
  %v5213 = vunpack.c.l.b16 %v4480
  %v5214 = vunpack.c.h.b16 %v4480
  %v5215 = vunpack.c.l.b16 %v4481
  %v5216 = vunpack.c.h.b16 %v4481
  %v5217 = vunpack.c.l.b16 %v4482
  %v5218 = vunpack.c.h.b16 %v4482
  %v5219 = vunpack.c.l.b16 %v4483
  %v5220 = vunpack.c.h.b16 %v4483
  %v5221 = vunpack.c.l.b16 %v4484
  %v5222 = vunpack.c.h.b16 %v4484
  %v5223 = vunpack.c.l.b16 %v4485
  %v5224 = vunpack.c.h.b16 %v4485
  %v5225 = vunpack.c.l.b16 %v4486
  %v5226 = vunpack.c.h.b16 %v4486
  %v5227 = vunpack.c.l.b16 %v4487
  %v5228 = vunpack.c.h.b16 %v4487
  %v5229 = vunpack.c.l.b16 %v4488
  %v5230 = vunpack.c.h.b16 %v4488
  %v5231 = vunpack.c.l.b16 %v4489
  %v5232 = vunpack.c.h.b16 %v4489
  %v5233 = vunpack.c.l.b16 %v4490
  %v5234 = vunpack.c.h.b16 %v4490
  %v5235 = vunpack.c.l.b16 %v4491
  %v5236 = vunpack.c.h.b16 %v4491
  %v5237 = vunpack.c.l.b16 %v4492
  %v5238 = vunpack.c.h.b16 %v4492
  %v5239 = vunpack.c.l.b16 %v4493
  %v5240 = vunpack.c.h.b16 %v4493
  %v5241 = vunpack.c.l.b16 %v4494
  %v5242 = vunpack.c.h.b16 %v4494
  %v5243 = vunpack.c.l.b16 %v4495
  %v5244 = vunpack.c.h.b16 %v4495
  %v5245 = vunpack.c.l.b16 %v4496
  %v5246 = vunpack.c.h.b16 %v4496
  %v5247 = vunpack.c.l.b16 %v4497
  %v5248 = vunpack.c.h.b16 %v4497
  %v5249 = vunpack.c.l.b16 %v4498
  %v5250 = vunpack.c.h.b16 %v4498
  %v5251 = vunpack.c.l.b16 %v4499
  %v5252 = vunpack.c.h.b16 %v4499
  %v5253 = vunpack.c.l.b16 %v4500
  %v5254 = vunpack.c.h.b16 %v4500
  %v5255 = vunpack.c.l.b16 %v4501
  %v5256 = vunpack.c.h.b16 %v4501
  %v5257 = vunpack.c.l.b16 %v4502
  %v5258 = vunpack.c.h.b16 %v4502
  %v5259 = vunpack.c.l.b16 %v4503
  %v5260 = vunpack.c.h.b16 %v4503
  %v5261 = vunpack.c.l.b16 %v4504
  %v5262 = vunpack.c.h.b16 %v4504
  %v5263 = vunpack.c.l.b16 %v4505
  %v5264 = vunpack.c.h.b16 %v4505
  %v5265 = vunpack.c.l.b16 %v4506
  %v5266 = vunpack.c.h.b16 %v4506
  %v5267 = vunpack.c.l.b16 %v4507
  %v5268 = vunpack.c.h.b16 %v4507
  %v5269 = vunpack.c.l.b16 %v4508
  %v5270 = vunpack.c.h.b16 %v4508
  %v5271 = vunpack.c.l.b16 %v4509
  %v5272 = vunpack.c.h.b16 %v4509
  %v5273 = vunpack.c.l.b16 %v4510
  %v5274 = vunpack.c.h.b16 %v4510
  %v5275 = vunpack.c.l.b16 %v4511
  %v5276 = vunpack.c.h.b16 %v4511
  %v5277 = vunpack.c.l.b16 %v4512
  %v5278 = vunpack.c.h.b16 %v4512
  %v5279 = vunpack.c.l.b16 %v4513
  %v5280 = vunpack.c.h.b16 %v4513
  %v5281 = vunpack.c.l.b16 %v4514
  %v5282 = vunpack.c.h.b16 %v4514
  %v5283 = vunpack.c.l.b16 %v4515
  %v5284 = vunpack.c.h.b16 %v4515
  %v5285 = vunpack.c.l.b16 %v4516
  %v5286 = vunpack.c.h.b16 %v4516
  %v5287 = vunpack.c.l.b16 %v4517
  %v5288 = vunpack.c.h.b16 %v4517
  %v5289 = vunpack.c.l.b16 %v4518
  %v5290 = vunpack.c.h.b16 %v4518
  %v5291 = vunpack.c.l.b16 %v4519
  %v5292 = vunpack.c.h.b16 %v4519
  %v5293 = vunpack.c.l.b16 %v4520
  %v5294 = vunpack.c.h.b16 %v4520
  %v5295 = vunpack.c.l.b16 %v4521
  %v5296 = vunpack.c.h.b16 %v4521
  %v5297 = vunpack.c.l.b16 %v4522
  %v5298 = vunpack.c.h.b16 %v4522
  %v5299 = vunpack.c.l.b16 %v4523
  %v5300 = vunpack.c.h.b16 %v4523
  %v5301 = vunpack.c.l.b16 %v4524
  %v5302 = vunpack.c.h.b16 %v4524
  %v5303 = vunpack.c.l.b16 %v4525
  %v5304 = vunpack.c.h.b16 %v4525
  %v5305 = vunpack.c.l.b16 %v4526
  %v5306 = vunpack.c.h.b16 %v4526
  %v5307 = vunpack.c.l.b16 %v4527
  %v5308 = vunpack.c.h.b16 %v4527
  %v5309 = vunpack.c.l.b16 %v4528
  %v5310 = vunpack.c.h.b16 %v4528
  %v5311 = vunpack.c.l.b16 %v4529
  %v5312 = vunpack.c.h.b16 %v4529
  %v5313 = vunpack.c.l.b16 %v4530
  %v5314 = vunpack.c.h.b16 %v4530
  %v5315 = vunpack.c.l.b16 %v4531
  %v5316 = vunpack.c.h.b16 %v4531
  %v5317 = vunpack.c.l.b16 %v4532
  %v5318 = vunpack.c.h.b16 %v4532
  %v5319 = vunpack.c.l.b16 %v4533
  %v5320 = vunpack.c.h.b16 %v4533
  %v5321 = vunpack.c.l.b16 %v4534
  %v5322 = vunpack.c.h.b16 %v4534
  %v5323 = vunpack.c.l.b16 %v4535
  %v5324 = vunpack.c.h.b16 %v4535
  %v5325 = vunpack.c.l.b16 %v4536
  %v5326 = vunpack.c.h.b16 %v4536
  %v5327 = vunpack.c.l.b16 %v4537
  %v5328 = vunpack.c.h.b16 %v4537
  %v5329 = vunpack.c.l.b16 %v4538
  %v5330 = vunpack.c.h.b16 %v4538
  %v5331 = vunpack.c.l.b16 %v4539
  %v5332 = vunpack.c.h.b16 %v4539
  %v5333 = vunpack.c.l.b16 %v4540
  %v5334 = vunpack.c.h.b16 %v4540
  %v5335 = vunpack.c.l.b16 %v4541
  %v5336 = vunpack.c.h.b16 %v4541
  %v5337 = vunpack.c.l.b16 %v4542
  %v5338 = vunpack.c.h.b16 %v4542
  %v5339 = vunpack.c.l.b16 %v4543
  %v5340 = vunpack.c.h.b16 %v4543
  %v5341 = vunpack.c.l.b16 %v4544
  %v5342 = vunpack.c.h.b16 %v4544
  %v5343 = vunpack.c.l.b16 %v4545
  %v5344 = vunpack.c.h.b16 %v4545
  %v5345 = vunpack.c.l.b16 %v4546
  %v5346 = vunpack.c.h.b16 %v4546
  %v5347 = vunpack.c.l.b16 %v4547
  %v5348 = vunpack.c.h.b16 %v4547
  %v5349 = vunpack.c.l.b16 %v4548
  %v5350 = vunpack.c.h.b16 %v4548
  %v5351 = vunpack.c.l.b16 %v4549
  %v5352 = vunpack.c.h.b16 %v4549
  %v5353 = vunpack.c.l.b16 %v4550
  %v5354 = vunpack.c.h.b16 %v4550
  %v5355 = vunpack.c.l.b16 %v4551
  %v5356 = vunpack.c.h.b16 %v4551
  %v5357 = vunpack.c.l.b16 %v4552
  %v5358 = vunpack.c.h.b16 %v4552
  %v5359 = vunpack.c.l.b16 %v4553
  %v5360 = vunpack.c.h.b16 %v4553
  %v5361 = vunpack.c.l.b16 %v4554
  %v5362 = vunpack.c.h.b16 %v4554
  %v5363 = vunpack.c.l.b16 %v4555
  %v5364 = vunpack.c.h.b16 %v4555
  %v5365 = vunpack.c.l.b16 %v4556
  %v5366 = vunpack.c.h.b16 %v4556
  %v5367 = vunpack.c.l.b16 %v4557
  %v5368 = vunpack.c.h.b16 %v4557
  %v5369 = vunpack.c.l.b16 %v4558
  %v5370 = vunpack.c.h.b16 %v4558
  %v5371 = vunpack.c.l.b16 %v4559
  %v5372 = vunpack.c.h.b16 %v4559
  %v5373 = vunpack.c.l.b16 %v4560
  %v5374 = vunpack.c.h.b16 %v4560
  %v5375 = vunpack.c.l.b16 %v4561
  %v5376 = vunpack.c.h.b16 %v4561
  %v5377 = vunpack.c.l.b16 %v4562
  %v5378 = vunpack.c.h.b16 %v4562
  %v5379 = vunpack.c.l.b16 %v4563
  %v5380 = vunpack.c.h.b16 %v4563
  %v5381 = vunpack.c.l.b16 %v4564
  %v5382 = vunpack.c.h.b16 %v4564
  %v5383 = vunpack.c.l.b16 %v4565
  %v5384 = vunpack.c.h.b16 %v4565
  %v5385 = vunpack.c.l.b16 %v4566
  %v5386 = vunpack.c.h.b16 %v4566
  %v5387 = vunpack.c.l.b16 %v4567
  %v5388 = vunpack.c.h.b16 %v4567
  %v5389 = vunpack.c.l.b16 %v4568
  %v5390 = vunpack.c.h.b16 %v4568
  %v5391 = vunpack.c.l.b16 %v4569
  %v5392 = vunpack.c.h.b16 %v4569
  %v5393 = vunpack.c.l.b16 %v4570
  %v5394 = vunpack.c.h.b16 %v4570
  %v5395 = vunpack.c.l.b16 %v4571
  %v5396 = vunpack.c.h.b16 %v4571
  %v5397 = vunpack.c.l.b16 %v4572
  %v5398 = vunpack.c.h.b16 %v4572
  %v5399 = vunpack.c.l.b16 %v4573
  %v5400 = vunpack.c.h.b16 %v4573
  %v5401 = vunpack.c.l.b16 %v4574
  %v5402 = vunpack.c.h.b16 %v4574
  %v5403 = vunpack.c.l.b16 %v4575
  %v5404 = vunpack.c.h.b16 %v4575
  %v5405 = vunpack.c.l.b16 %v4576
  %v5406 = vunpack.c.h.b16 %v4576
  %v5407 = vunpack.c.l.b16 %v4577
  %v5408 = vunpack.c.h.b16 %v4577
  %v5409 = vunpack.c.l.b16 %v4578
  %v5410 = vunpack.c.h.b16 %v4578
  %v5411 = vunpack.c.l.b16 %v4579
  %v5412 = vunpack.c.h.b16 %v4579
  %v5413 = vunpack.c.l.b16 %v4580
  %v5414 = vunpack.c.h.b16 %v4580
  %v5415 = vunpack.c.l.b16 %v4581
  %v5416 = vunpack.c.h.b16 %v4581
  %v5417 = vunpack.c.l.b16 %v4582
  %v5418 = vunpack.c.h.b16 %v4582
  %v5419 = vunpack.c.l.b16 %v4583
  %v5420 = vunpack.c.h.b16 %v4583
  %v5421 = vunpack.c.l.b16 %v4584
  %v5422 = vunpack.c.h.b16 %v4584
  %v5423 = vunpack.c.l.b16 %v4585
  %v5424 = vunpack.c.h.b16 %v4585
  %v5425 = vunpack.c.l.b16 %v4586
  %v5426 = vunpack.c.h.b16 %v4586
  %v5427 = vunpack.c.l.b16 %v4587
  %v5428 = vunpack.c.h.b16 %v4587
  %v5429 = vunpack.c.l.b16 %v4588
  %v5430 = vunpack.c.h.b16 %v4588
  %v5431 = vunpack.c.l.b16 %v4589
  %v5432 = vunpack.c.h.b16 %v4589
  %v5433 = vunpack.c.l.b16 %v4590
  %v5434 = vunpack.c.h.b16 %v4590
  %v5435 = vunpack.c.l.b16 %v4591
  %v5436 = vunpack.c.h.b16 %v4591
  %v5437 = vunpack.c.l.b16 %v4592
  %v5438 = vunpack.c.h.b16 %v4592
  %v5439 = vunpack.c.l.b16 %v4593
  %v5440 = vunpack.c.h.b16 %v4593
  %v5441 = vpack.c.b16 %v4933, %v4929
  %v5442 = vpack.c.b16 %v4934, %v4930
  %v5443 = vpack.c.b16 %v4935, %v4931
  %v5444 = vpack.c.b16 %v4936, %v4932
  %v5445 = vpack.c.b16 %v4941, %v4937
  %v5446 = vpack.c.b16 %v4942, %v4938
  %v5447 = vpack.c.b16 %v4943, %v4939
  %v5448 = vpack.c.b16 %v4944, %v4940
  %v5449 = vpack.c.b16 %v4949, %v4945
  %v5450 = vpack.c.b16 %v4950, %v4946
  %v5451 = vpack.c.b16 %v4951, %v4947
  %v5452 = vpack.c.b16 %v4952, %v4948
  %v5453 = vpack.c.b16 %v4957, %v4953
  %v5454 = vpack.c.b16 %v4958, %v4954
  %v5455 = vpack.c.b16 %v4959, %v4955
  %v5456 = vpack.c.b16 %v4960, %v4956
  %v5457 = vpack.c.b16 %v4965, %v4961
  %v5458 = vpack.c.b16 %v4966, %v4962
  %v5459 = vpack.c.b16 %v4967, %v4963
  %v5460 = vpack.c.b16 %v4968, %v4964
  %v5461 = vpack.c.b16 %v4973, %v4969
  %v5462 = vpack.c.b16 %v4974, %v4970
  %v5463 = vpack.c.b16 %v4975, %v4971
  %v5464 = vpack.c.b16 %v4976, %v4972
  %v5465 = vpack.c.b16 %v4981, %v4977
  %v5466 = vpack.c.b16 %v4982, %v4978
  %v5467 = vpack.c.b16 %v4983, %v4979
  %v5468 = vpack.c.b16 %v4984, %v4980
  %v5469 = vpack.c.b16 %v4989, %v4985
  %v5470 = vpack.c.b16 %v4990, %v4986
  %v5471 = vpack.c.b16 %v4991, %v4987
  %v5472 = vpack.c.b16 %v4992, %v4988
  %v5473 = vpack.c.b16 %v4997, %v4993
  %v5474 = vpack.c.b16 %v4998, %v4994
  %v5475 = vpack.c.b16 %v4999, %v4995
  %v5476 = vpack.c.b16 %v5000, %v4996
  %v5477 = vpack.c.b16 %v5005, %v5001
  %v5478 = vpack.c.b16 %v5006, %v5002
  %v5479 = vpack.c.b16 %v5007, %v5003
  %v5480 = vpack.c.b16 %v5008, %v5004
  %v5481 = vpack.c.b16 %v5013, %v5009
  %v5482 = vpack.c.b16 %v5014, %v5010
  %v5483 = vpack.c.b16 %v5015, %v5011
  %v5484 = vpack.c.b16 %v5016, %v5012
  %v5485 = vpack.c.b16 %v5021, %v5017
  %v5486 = vpack.c.b16 %v5022, %v5018
  %v5487 = vpack.c.b16 %v5023, %v5019
  %v5488 = vpack.c.b16 %v5024, %v5020
  %v5489 = vpack.c.b16 %v5029, %v5025
  %v5490 = vpack.c.b16 %v5030, %v5026
  %v5491 = vpack.c.b16 %v5031, %v5027
  %v5492 = vpack.c.b16 %v5032, %v5028
  %v5493 = vpack.c.b16 %v5037, %v5033
  %v5494 = vpack.c.b16 %v5038, %v5034
  %v5495 = vpack.c.b16 %v5039, %v5035
  %v5496 = vpack.c.b16 %v5040, %v5036
  %v5497 = vpack.c.b16 %v5045, %v5041
  %v5498 = vpack.c.b16 %v5046, %v5042
  %v5499 = vpack.c.b16 %v5047, %v5043
  %v5500 = vpack.c.b16 %v5048, %v5044
  %v5501 = vpack.c.b16 %v5053, %v5049
  %v5502 = vpack.c.b16 %v5054, %v5050
  %v5503 = vpack.c.b16 %v5055, %v5051
  %v5504 = vpack.c.b16 %v5056, %v5052
  %v5505 = vpack.c.b16 %v5061, %v5057
  %v5506 = vpack.c.b16 %v5062, %v5058
  %v5507 = vpack.c.b16 %v5063, %v5059
  %v5508 = vpack.c.b16 %v5064, %v5060
  %v5509 = vpack.c.b16 %v5069, %v5065
  %v5510 = vpack.c.b16 %v5070, %v5066
  %v5511 = vpack.c.b16 %v5071, %v5067
  %v5512 = vpack.c.b16 %v5072, %v5068
  %v5513 = vpack.c.b16 %v5077, %v5073
  %v5514 = vpack.c.b16 %v5078, %v5074
  %v5515 = vpack.c.b16 %v5079, %v5075
  %v5516 = vpack.c.b16 %v5080, %v5076
  %v5517 = vpack.c.b16 %v5085, %v5081
  %v5518 = vpack.c.b16 %v5086, %v5082
  %v5519 = vpack.c.b16 %v5087, %v5083
  %v5520 = vpack.c.b16 %v5088, %v5084
  %v5521 = vpack.c.b16 %v5093, %v5089
  %v5522 = vpack.c.b16 %v5094, %v5090
  %v5523 = vpack.c.b16 %v5095, %v5091
  %v5524 = vpack.c.b16 %v5096, %v5092
  %v5525 = vpack.c.b16 %v5101, %v5097
  %v5526 = vpack.c.b16 %v5102, %v5098
  %v5527 = vpack.c.b16 %v5103, %v5099
  %v5528 = vpack.c.b16 %v5104, %v5100
  %v5529 = vpack.c.b16 %v5109, %v5105
  %v5530 = vpack.c.b16 %v5110, %v5106
  %v5531 = vpack.c.b16 %v5111, %v5107
  %v5532 = vpack.c.b16 %v5112, %v5108
  %v5533 = vpack.c.b16 %v5117, %v5113
  %v5534 = vpack.c.b16 %v5118, %v5114
  %v5535 = vpack.c.b16 %v5119, %v5115
  %v5536 = vpack.c.b16 %v5120, %v5116
  %v5537 = vpack.c.b16 %v5125, %v5121
  %v5538 = vpack.c.b16 %v5126, %v5122
  %v5539 = vpack.c.b16 %v5127, %v5123
  %v5540 = vpack.c.b16 %v5128, %v5124
  %v5541 = vpack.c.b16 %v5133, %v5129
  %v5542 = vpack.c.b16 %v5134, %v5130
  %v5543 = vpack.c.b16 %v5135, %v5131
  %v5544 = vpack.c.b16 %v5136, %v5132
  %v5545 = vpack.c.b16 %v5141, %v5137
  %v5546 = vpack.c.b16 %v5142, %v5138
  %v5547 = vpack.c.b16 %v5143, %v5139
  %v5548 = vpack.c.b16 %v5144, %v5140
  %v5549 = vpack.c.b16 %v5149, %v5145
  %v5550 = vpack.c.b16 %v5150, %v5146
  %v5551 = vpack.c.b16 %v5151, %v5147
  %v5552 = vpack.c.b16 %v5152, %v5148
  %v5553 = vpack.c.b16 %v5157, %v5153
  %v5554 = vpack.c.b16 %v5158, %v5154
  %v5555 = vpack.c.b16 %v5159, %v5155
  %v5556 = vpack.c.b16 %v5160, %v5156
  %v5557 = vpack.c.b16 %v5165, %v5161
  %v5558 = vpack.c.b16 %v5166, %v5162
  %v5559 = vpack.c.b16 %v5167, %v5163
  %v5560 = vpack.c.b16 %v5168, %v5164
  %v5561 = vpack.c.b16 %v5173, %v5169
  %v5562 = vpack.c.b16 %v5174, %v5170
  %v5563 = vpack.c.b16 %v5175, %v5171
  %v5564 = vpack.c.b16 %v5176, %v5172
  %v5565 = vpack.c.b16 %v5181, %v5177
  %v5566 = vpack.c.b16 %v5182, %v5178
  %v5567 = vpack.c.b16 %v5183, %v5179
  %v5568 = vpack.c.b16 %v5184, %v5180
  %v5569 = vpack.c.b16 %v5189, %v5185
  %v5570 = vpack.c.b16 %v5190, %v5186
  %v5571 = vpack.c.b16 %v5191, %v5187
  %v5572 = vpack.c.b16 %v5192, %v5188
  %v5573 = vpack.c.b16 %v5197, %v5193
  %v5574 = vpack.c.b16 %v5198, %v5194
  %v5575 = vpack.c.b16 %v5199, %v5195
  %v5576 = vpack.c.b16 %v5200, %v5196
  %v5577 = vpack.c.b16 %v5205, %v5201
  %v5578 = vpack.c.b16 %v5206, %v5202
  %v5579 = vpack.c.b16 %v5207, %v5203
  %v5580 = vpack.c.b16 %v5208, %v5204
  %v5581 = vpack.c.b16 %v5213, %v5209
  %v5582 = vpack.c.b16 %v5214, %v5210
  %v5583 = vpack.c.b16 %v5215, %v5211
  %v5584 = vpack.c.b16 %v5216, %v5212
  %v5585 = vpack.c.b16 %v5221, %v5217
  %v5586 = vpack.c.b16 %v5222, %v5218
  %v5587 = vpack.c.b16 %v5223, %v5219
  %v5588 = vpack.c.b16 %v5224, %v5220
  %v5589 = vpack.c.b16 %v5229, %v5225
  %v5590 = vpack.c.b16 %v5230, %v5226
  %v5591 = vpack.c.b16 %v5231, %v5227
  %v5592 = vpack.c.b16 %v5232, %v5228
  %v5593 = vpack.c.b16 %v5237, %v5233
  %v5594 = vpack.c.b16 %v5238, %v5234
  %v5595 = vpack.c.b16 %v5239, %v5235
  %v5596 = vpack.c.b16 %v5240, %v5236
  %v5597 = vpack.c.b16 %v5245, %v5241
  %v5598 = vpack.c.b16 %v5246, %v5242
  %v5599 = vpack.c.b16 %v5247, %v5243
  %v5600 = vpack.c.b16 %v5248, %v5244
  %v5601 = vpack.c.b16 %v5253, %v5249
  %v5602 = vpack.c.b16 %v5254, %v5250
  %v5603 = vpack.c.b16 %v5255, %v5251
  %v5604 = vpack.c.b16 %v5256, %v5252
  %v5605 = vpack.c.b16 %v5261, %v5257
  %v5606 = vpack.c.b16 %v5262, %v5258
  %v5607 = vpack.c.b16 %v5263, %v5259
  %v5608 = vpack.c.b16 %v5264, %v5260
  %v5609 = vpack.c.b16 %v5269, %v5265
  %v5610 = vpack.c.b16 %v5270, %v5266
  %v5611 = vpack.c.b16 %v5271, %v5267
  %v5612 = vpack.c.b16 %v5272, %v5268
  %v5613 = vpack.c.b16 %v5277, %v5273
  %v5614 = vpack.c.b16 %v5278, %v5274
  %v5615 = vpack.c.b16 %v5279, %v5275
  %v5616 = vpack.c.b16 %v5280, %v5276
  %v5617 = vpack.c.b16 %v5285, %v5281
  %v5618 = vpack.c.b16 %v5286, %v5282
  %v5619 = vpack.c.b16 %v5287, %v5283
  %v5620 = vpack.c.b16 %v5288, %v5284
  %v5621 = vpack.c.b16 %v5293, %v5289
  %v5622 = vpack.c.b16 %v5294, %v5290
  %v5623 = vpack.c.b16 %v5295, %v5291
  %v5624 = vpack.c.b16 %v5296, %v5292
  %v5625 = vpack.c.b16 %v5301, %v5297
  %v5626 = vpack.c.b16 %v5302, %v5298
  %v5627 = vpack.c.b16 %v5303, %v5299
  %v5628 = vpack.c.b16 %v5304, %v5300
  %v5629 = vpack.c.b16 %v5309, %v5305
  %v5630 = vpack.c.b16 %v5310, %v5306
  %v5631 = vpack.c.b16 %v5311, %v5307
  %v5632 = vpack.c.b16 %v5312, %v5308
  %v5633 = vpack.c.b16 %v5317, %v5313
  %v5634 = vpack.c.b16 %v5318, %v5314
  %v5635 = vpack.c.b16 %v5319, %v5315
  %v5636 = vpack.c.b16 %v5320, %v5316
  %v5637 = vpack.c.b16 %v5325, %v5321
  %v5638 = vpack.c.b16 %v5326, %v5322
  %v5639 = vpack.c.b16 %v5327, %v5323
  %v5640 = vpack.c.b16 %v5328, %v5324
  %v5641 = vpack.c.b16 %v5333, %v5329
  %v5642 = vpack.c.b16 %v5334, %v5330
  %v5643 = vpack.c.b16 %v5335, %v5331
  %v5644 = vpack.c.b16 %v5336, %v5332
  %v5645 = vpack.c.b16 %v5341, %v5337
  %v5646 = vpack.c.b16 %v5342, %v5338
  %v5647 = vpack.c.b16 %v5343, %v5339
  %v5648 = vpack.c.b16 %v5344, %v5340
  %v5649 = vpack.c.b16 %v5349, %v5345
  %v5650 = vpack.c.b16 %v5350, %v5346
  %v5651 = vpack.c.b16 %v5351, %v5347
  %v5652 = vpack.c.b16 %v5352, %v5348
  %v5653 = vpack.c.b16 %v5357, %v5353
  %v5654 = vpack.c.b16 %v5358, %v5354
  %v5655 = vpack.c.b16 %v5359, %v5355
  %v5656 = vpack.c.b16 %v5360, %v5356
  %v5657 = vpack.c.b16 %v5365, %v5361
  %v5658 = vpack.c.b16 %v5366, %v5362
  %v5659 = vpack.c.b16 %v5367, %v5363
  %v5660 = vpack.c.b16 %v5368, %v5364
  %v5661 = vpack.c.b16 %v5373, %v5369
  %v5662 = vpack.c.b16 %v5374, %v5370
  %v5663 = vpack.c.b16 %v5375, %v5371
  %v5664 = vpack.c.b16 %v5376, %v5372
  %v5665 = vpack.c.b16 %v5381, %v5377
  %v5666 = vpack.c.b16 %v5382, %v5378
  %v5667 = vpack.c.b16 %v5383, %v5379
  %v5668 = vpack.c.b16 %v5384, %v5380
  %v5669 = vpack.c.b16 %v5389, %v5385
  %v5670 = vpack.c.b16 %v5390, %v5386
  %v5671 = vpack.c.b16 %v5391, %v5387
  %v5672 = vpack.c.b16 %v5392, %v5388
  %v5673 = vpack.c.b16 %v5397, %v5393
  %v5674 = vpack.c.b16 %v5398, %v5394
  %v5675 = vpack.c.b16 %v5399, %v5395
  %v5676 = vpack.c.b16 %v5400, %v5396
  %v5677 = vpack.c.b16 %v5405, %v5401
  %v5678 = vpack.c.b16 %v5406, %v5402
  %v5679 = vpack.c.b16 %v5407, %v5403
  %v5680 = vpack.c.b16 %v5408, %v5404
  %v5681 = vpack.c.b16 %v5413, %v5409
  %v5682 = vpack.c.b16 %v5414, %v5410
  %v5683 = vpack.c.b16 %v5415, %v5411
  %v5684 = vpack.c.b16 %v5416, %v5412
  %v5685 = vpack.c.b16 %v5421, %v5417
  %v5686 = vpack.c.b16 %v5422, %v5418
  %v5687 = vpack.c.b16 %v5423, %v5419
  %v5688 = vpack.c.b16 %v5424, %v5420
  %v5689 = vpack.c.b16 %v5429, %v5425
  %v5690 = vpack.c.b16 %v5430, %v5426
  %v5691 = vpack.c.b16 %v5431, %v5427
  %v5692 = vpack.c.b16 %v5432, %v5428
  %v5693 = vpack.c.b16 %v5437, %v5433
  %v5694 = vpack.c.b16 %v5438, %v5434
  %v5695 = vpack.c.b16 %v5439, %v5435
  %v5696 = vpack.c.b16 %v5440, %v5436
  %5953 = vmatprep.subr.bf16.mxu0 %v5442
  %5954 = vmatpush1.bf16.msra.mxu0 %v5441
  %5955 = vmatprep.subr.bf16.mxu0 %v5446
  %5956 = vmatpush1.bf16.msra.mxu0 %v5445
  %5957 = vmatprep.subr.bf16.mxu0 %v5450
  %5958 = vmatpush1.bf16.msra.mxu0 %v5449
  %5959 = vmatprep.subr.bf16.mxu0 %v5454
  %5960 = vmatpush1.bf16.msra.mxu0 %v5453
  %5961 = vmatprep.subr.bf16.mxu0 %v5458
  %5962 = vmatpush1.bf16.msra.mxu0 %v5457
  %5963 = vmatprep.subr.bf16.mxu0 %v5462
  %5964 = vmatpush1.bf16.msra.mxu0 %v5461
  %5965 = vmatprep.subr.bf16.mxu0 %v5466
  %5966 = vmatpush1.bf16.msra.mxu0 %v5465
  %5967 = vmatprep.subr.bf16.mxu0 %v5470
  %5968 = vmatpush1.bf16.msra.mxu0 %v5469
  %5969 = vmatprep.subr.bf16.mxu0 %v5474
  %5970 = vmatpush1.bf16.msra.mxu0 %v5473
  %5971 = vmatprep.subr.bf16.mxu0 %v5478
  %5972 = vmatpush1.bf16.msra.mxu0 %v5477
  %5973 = vmatprep.subr.bf16.mxu0 %v5482
  %5974 = vmatpush1.bf16.msra.mxu0 %v5481
  %5975 = vmatprep.subr.bf16.mxu0 %v5486
  %5976 = vmatpush1.bf16.msra.mxu0 %v5485
  %5977 = vmatprep.subr.bf16.mxu0 %v5490
  %5978 = vmatpush1.bf16.msra.mxu0 %v5489
  %5979 = vmatprep.subr.bf16.mxu0 %v5494
  %5980 = vmatpush1.bf16.msra.mxu0 %v5493
  %5981 = vmatprep.subr.bf16.mxu0 %v5498
  %5982 = vmatpush1.bf16.msra.mxu0 %v5497
  %5983 = vmatprep.subr.bf16.mxu0 %v5502
  %5984 = vmatpush1.bf16.msra.mxu0 %v5501
  %5985 = vmatprep.mubr.bf16.mxu0 %v4658
  %5986 = vmatmul.mubr.bf16.gmra.mrb[0].mxu0 %v4657
  %v5987 = vpop.f32.mrb[0].mxu0
  %v5988 = vadd.f32 %v4599, %v5987
  %v5989 = vpop.f32.mrb[0].mxu0
  %v5990 = vadd.f32 %v4603, %v5989
  %v5991 = vpop.f32.mrb[0].mxu0
  %v5992 = vpop.f32.mrb[0].mxu0
  %5993 = vdwg.mxu0
  %5994 = vmatprep.subr.bf16.mxu0 %v5506
  %5995 = vmatpush1.bf16.msra.mxu0 %v5505
  %5996 = vmatprep.subr.bf16.mxu0 %v5510
  %5997 = vmatpush1.bf16.msra.mxu0 %v5509
  %5998 = vmatprep.subr.bf16.mxu0 %v5514
  %5999 = vmatpush1.bf16.msra.mxu0 %v5513
  %6000 = vmatprep.subr.bf16.mxu0 %v5518
  %6001 = vmatpush1.bf16.msra.mxu0 %v5517
  %6002 = vmatprep.subr.bf16.mxu0 %v5522
  %6003 = vmatpush1.bf16.msra.mxu0 %v5521
  %6004 = vmatprep.subr.bf16.mxu0 %v5526
  %6005 = vmatpush1.bf16.msra.mxu0 %v5525
  %6006 = vmatprep.subr.bf16.mxu0 %v5530
  %6007 = vmatpush1.bf16.msra.mxu0 %v5529
  %6008 = vmatprep.subr.bf16.mxu0 %v5534
  %6009 = vmatpush1.bf16.msra.mxu0 %v5533
  %6010 = vmatprep.subr.bf16.mxu0 %v5538
  %6011 = vmatpush1.bf16.msra.mxu0 %v5537
  %6012 = vmatprep.subr.bf16.mxu0 %v5542
  %6013 = vmatpush1.bf16.msra.mxu0 %v5541
  %6014 = vmatprep.subr.bf16.mxu0 %v5546
  %6015 = vmatpush1.bf16.msra.mxu0 %v5545
  %6016 = vmatprep.subr.bf16.mxu0 %v5550
  %6017 = vmatpush1.bf16.msra.mxu0 %v5549
  %6018 = vmatprep.subr.bf16.mxu0 %v5554
  %6019 = vmatpush1.bf16.msra.mxu0 %v5553
  %6020 = vmatprep.subr.bf16.mxu0 %v5558
  %6021 = vmatpush1.bf16.msra.mxu0 %v5557
  %6022 = vmatprep.subr.bf16.mxu0 %v5562
  %6023 = vmatpush1.bf16.msra.mxu0 %v5561
  %6024 = vmatprep.subr.bf16.mxu0 %v5566
  %6025 = vmatpush1.bf16.msra.mxu0 %v5565
  %6026 = vmatprep.mubr.bf16.mxu0 %v4660
  %6027 = vmatmul.mubr.bf16.gmra.mrb[0].mxu0 %v4659
  %v6028 = vpop.f32.mrb[0].mxu0
  %v6029 = vadd.f32 %v5988, %v6028
  %v6030 = vpop.f32.mrb[0].mxu0
  %v6031 = vadd.f32 %v5990, %v6030
  %v6032 = vpop.f32.mrb[0].mxu0
  %v6033 = vpop.f32.mrb[0].mxu0
  %6034 = vdwg.mxu0
  %6035 = vmatprep.subr.bf16.mxu0 %v5570
  %6036 = vmatpush1.bf16.msra.mxu0 %v5569
  %6037 = vmatprep.subr.bf16.mxu0 %v5574
  %6038 = vmatpush1.bf16.msra.mxu0 %v5573
  %6039 = vmatprep.subr.bf16.mxu0 %v5578
  %6040 = vmatpush1.bf16.msra.mxu0 %v5577
  %6041 = vmatprep.subr.bf16.mxu0 %v5582
  %6042 = vmatpush1.bf16.msra.mxu0 %v5581
  %6043 = vmatprep.subr.bf16.mxu0 %v5586
  %6044 = vmatpush1.bf16.msra.mxu0 %v5585
  %6045 = vmatprep.subr.bf16.mxu0 %v5590
  %6046 = vmatpush1.bf16.msra.mxu0 %v5589
  %6047 = vmatprep.subr.bf16.mxu0 %v5594
  %6048 = vmatpush1.bf16.msra.mxu0 %v5593
  %6049 = vmatprep.subr.bf16.mxu0 %v5598
  %6050 = vmatpush1.bf16.msra.mxu0 %v5597
  %6051 = vmatprep.subr.bf16.mxu0 %v5602
  %6052 = vmatpush1.bf16.msra.mxu0 %v5601
  %6053 = vmatprep.subr.bf16.mxu0 %v5606
  %6054 = vmatpush1.bf16.msra.mxu0 %v5605
  %6055 = vmatprep.subr.bf16.mxu0 %v5610
  %6056 = vmatpush1.bf16.msra.mxu0 %v5609
  %6057 = vmatprep.subr.bf16.mxu0 %v5614
  %6058 = vmatpush1.bf16.msra.mxu0 %v5613
  %6059 = vmatprep.subr.bf16.mxu0 %v5618
  %6060 = vmatpush1.bf16.msra.mxu0 %v5617
  %6061 = vmatprep.subr.bf16.mxu0 %v5622
  %6062 = vmatpush1.bf16.msra.mxu0 %v5621
  %6063 = vmatprep.subr.bf16.mxu0 %v5626
  %6064 = vmatpush1.bf16.msra.mxu0 %v5625
  %6065 = vmatprep.subr.bf16.mxu0 %v5630
  %6066 = vmatpush1.bf16.msra.mxu0 %v5629
  %6067 = vmatprep.mubr.bf16.mxu0 %v4662
  %6068 = vmatmul.mubr.bf16.gmra.mrb[0].mxu0 %v4661
  %v6069 = vpop.f32.mrb[0].mxu0
  %v6070 = vadd.f32 %v6029, %v6069
  %v6071 = vpop.f32.mrb[0].mxu0
  %v6072 = vadd.f32 %v6031, %v6071
  %v6073 = vpop.f32.mrb[0].mxu0
  %v6074 = vpop.f32.mrb[0].mxu0
  %6075 = vdwg.mxu0
  %6076 = vmatprep.subr.bf16.mxu0 %v5634
  %6077 = vmatpush1.bf16.msra.mxu0 %v5633
  %6078 = vmatprep.subr.bf16.mxu0 %v5638
  %6079 = vmatpush1.bf16.msra.mxu0 %v5637
  %6080 = vmatprep.subr.bf16.mxu0 %v5642
  %6081 = vmatpush1.bf16.msra.mxu0 %v5641
  %6082 = vmatprep.subr.bf16.mxu0 %v5646
  %6083 = vmatpush1.bf16.msra.mxu0 %v5645
  %6084 = vmatprep.subr.bf16.mxu0 %v5650
  %6085 = vmatpush1.bf16.msra.mxu0 %v5649
  %6086 = vmatprep.subr.bf16.mxu0 %v5654
  %6087 = vmatpush1.bf16.msra.mxu0 %v5653
  %6088 = vmatprep.subr.bf16.mxu0 %v5658
  %6089 = vmatpush1.bf16.msra.mxu0 %v5657
  %6090 = vmatprep.subr.bf16.mxu0 %v5662
  %6091 = vmatpush1.bf16.msra.mxu0 %v5661
  %6092 = vmatprep.subr.bf16.mxu0 %v5666
  %6093 = vmatpush1.bf16.msra.mxu0 %v5665
  %6094 = vmatprep.subr.bf16.mxu0 %v5670
  %6095 = vmatpush1.bf16.msra.mxu0 %v5669
  %6096 = vmatprep.subr.bf16.mxu0 %v5674
  %6097 = vmatpush1.bf16.msra.mxu0 %v5673
  %6098 = vmatprep.subr.bf16.mxu0 %v5678
  %6099 = vmatpush1.bf16.msra.mxu0 %v5677
  %6100 = vmatprep.subr.bf16.mxu0 %v5682
  %6101 = vmatpush1.bf16.msra.mxu0 %v5681
  %6102 = vmatprep.subr.bf16.mxu0 %v5686
  %6103 = vmatpush1.bf16.msra.mxu0 %v5685
  %6104 = vmatprep.subr.bf16.mxu0 %v5690
  %6105 = vmatpush1.bf16.msra.mxu0 %v5689
  %6106 = vmatprep.subr.bf16.mxu0 %v5694
  %6107 = vmatpush1.bf16.msra.mxu0 %v5693
  %6108 = vmatprep.mubr.bf16.mxu0 %v4664
  %6109 = vmatmul.mubr.bf16.gmra.mrb[0].mxu0 %v4663
  %v6110 = vpop.f32.mrb[0].mxu0
  %v6111 = vadd.f32 %v6070, %v6110
  %v6112 = vpop.f32.mrb[0].mxu0
  %v6113 = vadd.f32 %v6072, %v6112
  %v6114 = vpop.f32.mrb[0].mxu0
  %v6115 = vpop.f32.mrb[0].mxu0
  %6116 = vdwg.mxu0
  %6117 = vmatprep.subr.bf16.mxu0 %v5444
  %6118 = vmatpush1.bf16.msra.mxu0 %v5443
  %6119 = vmatprep.subr.bf16.mxu0 %v5448
  %6120 = vmatpush1.bf16.msra.mxu0 %v5447
  %6121 = vmatprep.subr.bf16.mxu0 %v5452
  %6122 = vmatpush1.bf16.msra.mxu0 %v5451
  %6123 = vmatprep.subr.bf16.mxu0 %v5456
  %6124 = vmatpush1.bf16.msra.mxu0 %v5455
  %6125 = vmatprep.subr.bf16.mxu0 %v5460
  %6126 = vmatpush1.bf16.msra.mxu0 %v5459
  %6127 = vmatprep.subr.bf16.mxu0 %v5464
  %6128 = vmatpush1.bf16.msra.mxu0 %v5463
  %6129 = vmatprep.subr.bf16.mxu0 %v5468
  %6130 = vmatpush1.bf16.msra.mxu0 %v5467
  %6131 = vmatprep.subr.bf16.mxu0 %v5472
  %6132 = vmatpush1.bf16.msra.mxu0 %v5471
  %6133 = vmatprep.subr.bf16.mxu0 %v5476
  %6134 = vmatpush1.bf16.msra.mxu0 %v5475
  %6135 = vmatprep.subr.bf16.mxu0 %v5480
  %6136 = vmatpush1.bf16.msra.mxu0 %v5479
  %6137 = vmatprep.subr.bf16.mxu0 %v5484
  %6138 = vmatpush1.bf16.msra.mxu0 %v5483
  %6139 = vmatprep.subr.bf16.mxu0 %v5488
  %6140 = vmatpush1.bf16.msra.mxu0 %v5487
  %6141 = vmatprep.subr.bf16.mxu0 %v5492
  %6142 = vmatpush1.bf16.msra.mxu0 %v5491
  %6143 = vmatprep.subr.bf16.mxu0 %v5496
  %6144 = vmatpush1.bf16.msra.mxu0 %v5495
  %6145 = vmatprep.subr.bf16.mxu0 %v5500
  %6146 = vmatpush1.bf16.msra.mxu0 %v5499
  %6147 = vmatprep.subr.bf16.mxu0 %v5504
  %6148 = vmatpush1.bf16.msra.mxu0 %v5503
  %6149 = vmatprep.mubr.bf16.mxu0 %v4658
  %6150 = vmatmul.mubr.bf16.gmra.mrb[0].mxu0 %v4657
  %v6151 = vpop.f32.mrb[0].mxu0
  %v6152 = vadd.f32 %v4607, %v6151
  %v6153 = vpop.f32.mrb[0].mxu0
  %v6154 = vadd.f32 %v4611, %v6153
  %v6155 = vpop.f32.mrb[0].mxu0
  %v6156 = vpop.f32.mrb[0].mxu0
  %6157 = vdwg.mxu0
  %6158 = vmatprep.subr.bf16.mxu0 %v5508
  %6159 = vmatpush1.bf16.msra.mxu0 %v5507
  %6160 = vmatprep.subr.bf16.mxu0 %v5512
  %6161 = vmatpush1.bf16.msra.mxu0 %v5511
  %6162 = vmatprep.subr.bf16.mxu0 %v5516
  %6163 = vmatpush1.bf16.msra.mxu0 %v5515
  %6164 = vmatprep.subr.bf16.mxu0 %v5520
  %6165 = vmatpush1.bf16.msra.mxu0 %v5519
  %6166 = vmatprep.subr.bf16.mxu0 %v5524
  %6167 = vmatpush1.bf16.msra.mxu0 %v5523
  %6168 = vmatprep.subr.bf16.mxu0 %v5528
  %6169 = vmatpush1.bf16.msra.mxu0 %v5527
  %6170 = vmatprep.subr.bf16.mxu0 %v5532
  %6171 = vmatpush1.bf16.msra.mxu0 %v5531
  %6172 = vmatprep.subr.bf16.mxu0 %v5536
  %6173 = vmatpush1.bf16.msra.mxu0 %v5535
  %6174 = vmatprep.subr.bf16.mxu0 %v5540
  %6175 = vmatpush1.bf16.msra.mxu0 %v5539
  %6176 = vmatprep.subr.bf16.mxu0 %v5544
  %6177 = vmatpush1.bf16.msra.mxu0 %v5543
  %6178 = vmatprep.subr.bf16.mxu0 %v5548
  %6179 = vmatpush1.bf16.msra.mxu0 %v5547
  %6180 = vmatprep.subr.bf16.mxu0 %v5552
  %6181 = vmatpush1.bf16.msra.mxu0 %v5551
  %6182 = vmatprep.subr.bf16.mxu0 %v5556
  %6183 = vmatpush1.bf16.msra.mxu0 %v5555
  %6184 = vmatprep.subr.bf16.mxu0 %v5560
  %6185 = vmatpush1.bf16.msra.mxu0 %v5559
  %6186 = vmatprep.subr.bf16.mxu0 %v5564
  %6187 = vmatpush1.bf16.msra.mxu0 %v5563
  %6188 = vmatprep.subr.bf16.mxu0 %v5568
  %6189 = vmatpush1.bf16.msra.mxu0 %v5567
  %6190 = vmatprep.mubr.bf16.mxu0 %v4660
  %6191 = vmatmul.mubr.bf16.gmra.mrb[0].mxu0 %v4659
  %v6192 = vpop.f32.mrb[0].mxu0
  %v6193 = vadd.f32 %v6152, %v6192
  %v6194 = vpop.f32.mrb[0].mxu0
  %v6195 = vadd.f32 %v6154, %v6194
  %v6196 = vpop.f32.mrb[0].mxu0
  %v6197 = vpop.f32.mrb[0].mxu0
  %6198 = vdwg.mxu0
  %6199 = vmatprep.subr.bf16.mxu0 %v5572
  %6200 = vmatpush1.bf16.msra.mxu0 %v5571
  %6201 = vmatprep.subr.bf16.mxu0 %v5576
  %6202 = vmatpush1.bf16.msra.mxu0 %v5575
  %6203 = vmatprep.subr.bf16.mxu0 %v5580
  %6204 = vmatpush1.bf16.msra.mxu0 %v5579
  %6205 = vmatprep.subr.bf16.mxu0 %v5584
  %6206 = vmatpush1.bf16.msra.mxu0 %v5583
  %6207 = vmatprep.subr.bf16.mxu0 %v5588
  %6208 = vmatpush1.bf16.msra.mxu0 %v5587
  %6209 = vmatprep.subr.bf16.mxu0 %v5592
  %6210 = vmatpush1.bf16.msra.mxu0 %v5591
  %6211 = vmatprep.subr.bf16.mxu0 %v5596
  %6212 = vmatpush1.bf16.msra.mxu0 %v5595
  %6213 = vmatprep.subr.bf16.mxu0 %v5600
  %6214 = vmatpush1.bf16.msra.mxu0 %v5599
  %6215 = vmatprep.subr.bf16.mxu0 %v5604
  %6216 = vmatpush1.bf16.msra.mxu0 %v5603
  %6217 = vmatprep.subr.bf16.mxu0 %v5608
  %6218 = vmatpush1.bf16.msra.mxu0 %v5607
  %6219 = vmatprep.subr.bf16.mxu0 %v5612
  %6220 = vmatpush1.bf16.msra.mxu0 %v5611
  %6221 = vmatprep.subr.bf16.mxu0 %v5616
  %6222 = vmatpush1.bf16.msra.mxu0 %v5615
  %6223 = vmatprep.subr.bf16.mxu0 %v5620
  %6224 = vmatpush1.bf16.msra.mxu0 %v5619
  %6225 = vmatprep.subr.bf16.mxu0 %v5624
  %6226 = vmatpush1.bf16.msra.mxu0 %v5623
  %6227 = vmatprep.subr.bf16.mxu0 %v5628
  %6228 = vmatpush1.bf16.msra.mxu0 %v5627
  %6229 = vmatprep.subr.bf16.mxu0 %v5632
  %6230 = vmatpush1.bf16.msra.mxu0 %v5631
  %6231 = vmatprep.mubr.bf16.mxu0 %v4662
  %6232 = vmatmul.mubr.bf16.gmra.mrb[0].mxu0 %v4661
  %v6233 = vpop.f32.mrb[0].mxu0
  %v6234 = vadd.f32 %v6193, %v6233
  %v6235 = vpop.f32.mrb[0].mxu0
  %v6236 = vadd.f32 %v6195, %v6235
  %v6237 = vpop.f32.mrb[0].mxu0
  %v6238 = vpop.f32.mrb[0].mxu0
  %6239 = vdwg.mxu0
  %6240 = vmatprep.subr.bf16.mxu0 %v5636
  %6241 = vmatpush1.bf16.msra.mxu0 %v5635
  %6242 = vmatprep.subr.bf16.mxu0 %v5640
  %6243 = vmatpush1.bf16.msra.mxu0 %v5639
  %6244 = vmatprep.subr.bf16.mxu0 %v5644
  %6245 = vmatpush1.bf16.msra.mxu0 %v5643
  %6246 = vmatprep.subr.bf16.mxu0 %v5648
  %6247 = vmatpush1.bf16.msra.mxu0 %v5647
  %6248 = vmatprep.subr.bf16.mxu0 %v5652
  %6249 = vmatpush1.bf16.msra.mxu0 %v5651
  %6250 = vmatprep.subr.bf16.mxu0 %v5656
  %6251 = vmatpush1.bf16.msra.mxu0 %v5655
  %6252 = vmatprep.subr.bf16.mxu0 %v5660
  %6253 = vmatpush1.bf16.msra.mxu0 %v5659
  %6254 = vmatprep.subr.bf16.mxu0 %v5664
  %6255 = vmatpush1.bf16.msra.mxu0 %v5663
  %6256 = vmatprep.subr.bf16.mxu0 %v5668
  %6257 = vmatpush1.bf16.msra.mxu0 %v5667
  %6258 = vmatprep.subr.bf16.mxu0 %v5672
  %6259 = vmatpush1.bf16.msra.mxu0 %v5671
  %6260 = vmatprep.subr.bf16.mxu0 %v5676
  %6261 = vmatpush1.bf16.msra.mxu0 %v5675
  %6262 = vmatprep.subr.bf16.mxu0 %v5680
  %6263 = vmatpush1.bf16.msra.mxu0 %v5679
  %6264 = vmatprep.subr.bf16.mxu0 %v5684
  %6265 = vmatpush1.bf16.msra.mxu0 %v5683
  %6266 = vmatprep.subr.bf16.mxu0 %v5688
  %6267 = vmatpush1.bf16.msra.mxu0 %v5687
  %6268 = vmatprep.subr.bf16.mxu0 %v5692
  %6269 = vmatpush1.bf16.msra.mxu0 %v5691
  %6270 = vmatprep.subr.bf16.mxu0 %v5696
  %6271 = vmatpush1.bf16.msra.mxu0 %v5695
  %6272 = vmatprep.mubr.bf16.mxu0 %v4664
  %6273 = vmatmul.mubr.bf16.gmra.mrb[0].mxu0 %v4663
  %v6274 = vpop.f32.mrb[0].mxu0
  %v6275 = vadd.f32 %v6234, %v6274
  %v6276 = vpop.f32.mrb[0].mxu0
  %v6277 = vadd.f32 %v6236, %v6276
  %v6278 = vpop.f32.mrb[0].mxu0
  %v6279 = vpop.f32.mrb[0].mxu0
  %6280 = vdwg.mxu0
  %v6281 = vmax.f32 %v6111, 0.0
  %v6282 = vmax.f32 %v6113, 0.0
  %v6283 = vmax.f32 %v6275, 0.0
  %v6284 = vmax.f32 %v6277, 0.0
  %v6285 = vpack.c.bf16 %v6281, %v6281
  %v6286 = vpack.c.bf16 %v6282, %v6282
  %v6287 = vpack.c.bf16 %v6283, %v6283
  %v6288 = vpack.c.bf16 %v6284, %v6284
  %v6289 = vld [vmem:[%s9] sm:$0xff]
  %v6290 = vld [vmem:[%s9 + $0x8] sm:$0xff]
  %v6291 = vld [vmem:[%s9 + $0x10] sm:$0xff]
  %v6292 = vld [vmem:[%s9 + $0x18] sm:$0xff]
  %v6293 = vld [vmem:[%s9 + $0x20] sm:$0xff]
  %v6294 = vld [vmem:[%s9 + $0x28] sm:$0xff]
  %v6295 = vld [vmem:[%s9 + $0x30] sm:$0xff]
  %v6296 = vld [vmem:[%s9 + $0x38] sm:$0xff]
  %v6297 = vld [vmem:[%s9 + $0x40] sm:$0xff]
  %v6298 = vld [vmem:[%s9 + $0x48] sm:$0xff]
  %v6299 = vld [vmem:[%s9 + $0x50] sm:$0xff]
  %v6300 = vld [vmem:[%s9 + $0x58] sm:$0xff]
  %v6301 = vld [vmem:[%s9 + $0x60] sm:$0xff]
  %v6302 = vld [vmem:[%s9 + $0x68] sm:$0xff]
  %v6303 = vld [vmem:[%s9 + $0x70] sm:$0xff]
  %v6304 = vld [vmem:[%s9 + $0x78] sm:$0xff]
  %v6305 = vld [vmem:[%s9 + $0x80] sm:$0xff]
  %v6306 = vld [vmem:[%s9 + $0x88] sm:$0xff]
  %v6307 = vld [vmem:[%s9 + $0x90] sm:$0xff]
  %v6308 = vld [vmem:[%s9 + $0x98] sm:$0xff]
  %v6309 = vld [vmem:[%s9 + $0xa0] sm:$0xff]
  %v6310 = vld [vmem:[%s9 + $0xa8] sm:$0xff]
  %v6311 = vld [vmem:[%s9 + $0xb0] sm:$0xff]
  %v6312 = vld [vmem:[%s9 + $0xb8] sm:$0xff]
  %v6313 = vld [vmem:[%s9 + $0xc0] sm:$0xff]
  %v6314 = vld [vmem:[%s9 + $0xc8] sm:$0xff]
  %v6315 = vld [vmem:[%s9 + $0xd0] sm:$0xff]
  %v6316 = vld [vmem:[%s9 + $0xd8] sm:$0xff]
  %v6317 = vld [vmem:[%s9 + $0xe0] sm:$0xff]
  %v6318 = vld [vmem:[%s9 + $0xe8] sm:$0xff]
  %v6319 = vld [vmem:[%s9 + $0xf0] sm:$0xff]
  %v6320 = vld [vmem:[%s9 + $0xf8] sm:$0xff]
  %v6321 = vld [vmem:[%s9 + $0x100] sm:$0xff]
  %v6322 = vld [vmem:[%s9 + $0x108] sm:$0xff]
  %v6323 = vld [vmem:[%s9 + $0x110] sm:$0xff]
  %v6324 = vld [vmem:[%s9 + $0x118] sm:$0xff]
  %v6325 = vld [vmem:[%s9 + $0x120] sm:$0xff]
  %v6326 = vld [vmem:[%s9 + $0x128] sm:$0xff]
  %v6327 = vld [vmem:[%s9 + $0x130] sm:$0xff]
  %v6328 = vld [vmem:[%s9 + $0x138] sm:$0xff]
  %v6329 = vld [vmem:[%s9 + $0x140] sm:$0xff]
  %v6330 = vld [vmem:[%s9 + $0x148] sm:$0xff]
  %v6331 = vld [vmem:[%s9 + $0x150] sm:$0xff]
  %v6332 = vld [vmem:[%s9 + $0x158] sm:$0xff]
  %v6333 = vld [vmem:[%s9 + $0x160] sm:$0xff]
  %v6334 = vld [vmem:[%s9 + $0x168] sm:$0xff]
  %v6335 = vld [vmem:[%s9 + $0x170] sm:$0xff]
  %v6336 = vld [vmem:[%s9 + $0x178] sm:$0xff]
  %v6337 = vld [vmem:[%s9 + $0x180] sm:$0xff]
  %v6338 = vld [vmem:[%s9 + $0x188] sm:$0xff]
  %v6339 = vld [vmem:[%s9 + $0x190] sm:$0xff]
  %v6340 = vld [vmem:[%s9 + $0x198] sm:$0xff]
  %v6341 = vld [vmem:[%s9 + $0x1a0] sm:$0xff]
  %v6342 = vld [vmem:[%s9 + $0x1a8] sm:$0xff]
  %v6343 = vld [vmem:[%s9 + $0x1b0] sm:$0xff]
  %v6344 = vld [vmem:[%s9 + $0x1b8] sm:$0xff]
  %v6345 = vld [vmem:[%s9 + $0x1c0] sm:$0xff]
  %v6346 = vld [vmem:[%s9 + $0x1c8] sm:$0xff]
  %v6347 = vld [vmem:[%s9 + $0x1d0] sm:$0xff]
  %v6348 = vld [vmem:[%s9 + $0x1d8] sm:$0xff]
  %v6349 = vld [vmem:[%s9 + $0x1e0] sm:$0xff]
  %v6350 = vld [vmem:[%s9 + $0x1e8] sm:$0xff]
  %v6351 = vld [vmem:[%s9 + $0x1f0] sm:$0xff]
  %v6352 = vld [vmem:[%s9 + $0x1f8] sm:$0xff]
  %v6353 = vld [vmem:[%s10] sm:$0x3]
  %v6355 = vlaneseq
  %v6356 = vshrl.u32 %v6355, 7
  %v6357 = vsub.s32 0, %v6356
  %v6358 = vrot.slane %v6353, %v6357
  %v6359 = vlaneseq
  %v6360 = vshrl.u32 %v6359, 7
  %v6361 = vsub.s32 1, %v6360
  %v6362 = vrot.slane %v6353, %v6361
  %v6429 = vunpack.c.l.b16 %v6289
  %v6430 = vunpack.c.h.b16 %v6289
  %v6431 = vunpack.c.l.b16 %v6290
  %v6432 = vunpack.c.h.b16 %v6290
  %v6433 = vunpack.c.l.b16 %v6291
  %v6434 = vunpack.c.h.b16 %v6291
  %v6435 = vunpack.c.l.b16 %v6292
  %v6436 = vunpack.c.h.b16 %v6292
  %v6437 = vunpack.c.l.b16 %v6293
  %v6438 = vunpack.c.h.b16 %v6293
  %v6439 = vunpack.c.l.b16 %v6294
  %v6440 = vunpack.c.h.b16 %v6294
  %v6441 = vunpack.c.l.b16 %v6295
  %v6442 = vunpack.c.h.b16 %v6295
  %v6443 = vunpack.c.l.b16 %v6296
  %v6444 = vunpack.c.h.b16 %v6296
  %v6445 = vunpack.c.l.b16 %v6297
  %v6446 = vunpack.c.h.b16 %v6297
  %v6447 = vunpack.c.l.b16 %v6298
  %v6448 = vunpack.c.h.b16 %v6298
  %v6449 = vunpack.c.l.b16 %v6299
  %v6450 = vunpack.c.h.b16 %v6299
  %v6451 = vunpack.c.l.b16 %v6300
  %v6452 = vunpack.c.h.b16 %v6300
  %v6453 = vunpack.c.l.b16 %v6301
  %v6454 = vunpack.c.h.b16 %v6301
  %v6455 = vunpack.c.l.b16 %v6302
  %v6456 = vunpack.c.h.b16 %v6302
  %v6457 = vunpack.c.l.b16 %v6303
  %v6458 = vunpack.c.h.b16 %v6303
  %v6459 = vunpack.c.l.b16 %v6304
  %v6460 = vunpack.c.h.b16 %v6304
  %v6461 = vunpack.c.l.b16 %v6305
  %v6462 = vunpack.c.h.b16 %v6305
  %v6463 = vunpack.c.l.b16 %v6306
  %v6464 = vunpack.c.h.b16 %v6306
  %v6465 = vunpack.c.l.b16 %v6307
  %v6466 = vunpack.c.h.b16 %v6307
  %v6467 = vunpack.c.l.b16 %v6308
  %v6468 = vunpack.c.h.b16 %v6308
  %v6469 = vunpack.c.l.b16 %v6309
  %v6470 = vunpack.c.h.b16 %v6309
  %v6471 = vunpack.c.l.b16 %v6310
  %v6472 = vunpack.c.h.b16 %v6310
  %v6473 = vunpack.c.l.b16 %v6311
  %v6474 = vunpack.c.h.b16 %v6311
  %v6475 = vunpack.c.l.b16 %v6312
  %v6476 = vunpack.c.h.b16 %v6312
  %v6477 = vunpack.c.l.b16 %v6313
  %v6478 = vunpack.c.h.b16 %v6313
  %v6479 = vunpack.c.l.b16 %v6314
  %v6480 = vunpack.c.h.b16 %v6314
  %v6481 = vunpack.c.l.b16 %v6315
  %v6482 = vunpack.c.h.b16 %v6315
  %v6483 = vunpack.c.l.b16 %v6316
  %v6484 = vunpack.c.h.b16 %v6316
  %v6485 = vunpack.c.l.b16 %v6317
  %v6486 = vunpack.c.h.b16 %v6317
  %v6487 = vunpack.c.l.b16 %v6318
  %v6488 = vunpack.c.h.b16 %v6318
  %v6489 = vunpack.c.l.b16 %v6319
  %v6490 = vunpack.c.h.b16 %v6319
  %v6491 = vunpack.c.l.b16 %v6320
  %v6492 = vunpack.c.h.b16 %v6320
  %v6493 = vunpack.c.l.b16 %v6321
  %v6494 = vunpack.c.h.b16 %v6321
  %v6495 = vunpack.c.l.b16 %v6322
  %v6496 = vunpack.c.h.b16 %v6322
  %v6497 = vunpack.c.l.b16 %v6323
  %v6498 = vunpack.c.h.b16 %v6323
  %v6499 = vunpack.c.l.b16 %v6324
  %v6500 = vunpack.c.h.b16 %v6324
  %v6501 = vunpack.c.l.b16 %v6325
  %v6502 = vunpack.c.h.b16 %v6325
  %v6503 = vunpack.c.l.b16 %v6326
  %v6504 = vunpack.c.h.b16 %v6326
  %v6505 = vunpack.c.l.b16 %v6327
  %v6506 = vunpack.c.h.b16 %v6327
  %v6507 = vunpack.c.l.b16 %v6328
  %v6508 = vunpack.c.h.b16 %v6328
  %v6509 = vunpack.c.l.b16 %v6329
  %v6510 = vunpack.c.h.b16 %v6329
  %v6511 = vunpack.c.l.b16 %v6330
  %v6512 = vunpack.c.h.b16 %v6330
  %v6513 = vunpack.c.l.b16 %v6331
  %v6514 = vunpack.c.h.b16 %v6331
  %v6515 = vunpack.c.l.b16 %v6332
  %v6516 = vunpack.c.h.b16 %v6332
  %v6517 = vunpack.c.l.b16 %v6333
  %v6518 = vunpack.c.h.b16 %v6333
  %v6519 = vunpack.c.l.b16 %v6334
  %v6520 = vunpack.c.h.b16 %v6334
  %v6521 = vunpack.c.l.b16 %v6335
  %v6522 = vunpack.c.h.b16 %v6335
  %v6523 = vunpack.c.l.b16 %v6336
  %v6524 = vunpack.c.h.b16 %v6336
  %v6525 = vunpack.c.l.b16 %v6337
  %v6526 = vunpack.c.h.b16 %v6337
  %v6527 = vunpack.c.l.b16 %v6338
  %v6528 = vunpack.c.h.b16 %v6338
  %v6529 = vunpack.c.l.b16 %v6339
  %v6530 = vunpack.c.h.b16 %v6339
  %v6531 = vunpack.c.l.b16 %v6340
  %v6532 = vunpack.c.h.b16 %v6340
  %v6533 = vunpack.c.l.b16 %v6341
  %v6534 = vunpack.c.h.b16 %v6341
  %v6535 = vunpack.c.l.b16 %v6342
  %v6536 = vunpack.c.h.b16 %v6342
  %v6537 = vunpack.c.l.b16 %v6343
  %v6538 = vunpack.c.h.b16 %v6343
  %v6539 = vunpack.c.l.b16 %v6344
  %v6540 = vunpack.c.h.b16 %v6344
  %v6541 = vunpack.c.l.b16 %v6345
  %v6542 = vunpack.c.h.b16 %v6345
  %v6543 = vunpack.c.l.b16 %v6346
  %v6544 = vunpack.c.h.b16 %v6346
  %v6545 = vunpack.c.l.b16 %v6347
  %v6546 = vunpack.c.h.b16 %v6347
  %v6547 = vunpack.c.l.b16 %v6348
  %v6548 = vunpack.c.h.b16 %v6348
  %v6549 = vunpack.c.l.b16 %v6349
  %v6550 = vunpack.c.h.b16 %v6349
  %v6551 = vunpack.c.l.b16 %v6350
  %v6552 = vunpack.c.h.b16 %v6350
  %v6553 = vunpack.c.l.b16 %v6351
  %v6554 = vunpack.c.h.b16 %v6351
  %v6555 = vunpack.c.l.b16 %v6352
  %v6556 = vunpack.c.h.b16 %v6352
  %v6557 = vpack.c.b16 %v6431, %v6429
  %v6558 = vpack.c.b16 %v6432, %v6430
  %v6559 = vpack.c.b16 %v6435, %v6433
  %v6560 = vpack.c.b16 %v6436, %v6434
  %v6561 = vpack.c.b16 %v6439, %v6437
  %v6562 = vpack.c.b16 %v6440, %v6438
  %v6563 = vpack.c.b16 %v6443, %v6441
  %v6564 = vpack.c.b16 %v6444, %v6442
  %v6565 = vpack.c.b16 %v6447, %v6445
  %v6566 = vpack.c.b16 %v6448, %v6446
  %v6567 = vpack.c.b16 %v6451, %v6449
  %v6568 = vpack.c.b16 %v6452, %v6450
  %v6569 = vpack.c.b16 %v6455, %v6453
  %v6570 = vpack.c.b16 %v6456, %v6454
  %v6571 = vpack.c.b16 %v6459, %v6457
  %v6572 = vpack.c.b16 %v6460, %v6458
  %v6573 = vpack.c.b16 %v6463, %v6461
  %v6574 = vpack.c.b16 %v6464, %v6462
  %v6575 = vpack.c.b16 %v6467, %v6465
  %v6576 = vpack.c.b16 %v6468, %v6466
  %v6577 = vpack.c.b16 %v6471, %v6469
  %v6578 = vpack.c.b16 %v6472, %v6470
  %v6579 = vpack.c.b16 %v6475, %v6473
  %v6580 = vpack.c.b16 %v6476, %v6474
  %v6581 = vpack.c.b16 %v6479, %v6477
  %v6582 = vpack.c.b16 %v6480, %v6478
  %v6583 = vpack.c.b16 %v6483, %v6481
  %v6584 = vpack.c.b16 %v6484, %v6482
  %v6585 = vpack.c.b16 %v6487, %v6485
  %v6586 = vpack.c.b16 %v6488, %v6486
  %v6587 = vpack.c.b16 %v6491, %v6489
  %v6588 = vpack.c.b16 %v6492, %v6490
  %v6589 = vpack.c.b16 %v6495, %v6493
  %v6590 = vpack.c.b16 %v6496, %v6494
  %v6591 = vpack.c.b16 %v6499, %v6497
  %v6592 = vpack.c.b16 %v6500, %v6498
  %v6593 = vpack.c.b16 %v6503, %v6501
  %v6594 = vpack.c.b16 %v6504, %v6502
  %v6595 = vpack.c.b16 %v6507, %v6505
  %v6596 = vpack.c.b16 %v6508, %v6506
  %v6597 = vpack.c.b16 %v6511, %v6509
  %v6598 = vpack.c.b16 %v6512, %v6510
  %v6599 = vpack.c.b16 %v6515, %v6513
  %v6600 = vpack.c.b16 %v6516, %v6514
  %v6601 = vpack.c.b16 %v6519, %v6517
  %v6602 = vpack.c.b16 %v6520, %v6518
  %v6603 = vpack.c.b16 %v6523, %v6521
  %v6604 = vpack.c.b16 %v6524, %v6522
  %v6605 = vpack.c.b16 %v6527, %v6525
  %v6606 = vpack.c.b16 %v6528, %v6526
  %v6607 = vpack.c.b16 %v6531, %v6529
  %v6608 = vpack.c.b16 %v6532, %v6530
  %v6609 = vpack.c.b16 %v6535, %v6533
  %v6610 = vpack.c.b16 %v6536, %v6534
  %v6611 = vpack.c.b16 %v6539, %v6537
  %v6612 = vpack.c.b16 %v6540, %v6538
  %v6613 = vpack.c.b16 %v6543, %v6541
  %v6614 = vpack.c.b16 %v6544, %v6542
  %v6615 = vpack.c.b16 %v6547, %v6545
  %v6616 = vpack.c.b16 %v6548, %v6546
  %v6617 = vpack.c.b16 %v6551, %v6549
  %v6618 = vpack.c.b16 %v6552, %v6550
  %v6619 = vpack.c.b16 %v6555, %v6553
  %v6620 = vpack.c.b16 %v6556, %v6554
  %6685 = vmatprep.subr.bf16.mxu0 %v6558
  %6686 = vmatpush1.bf16.msra.mxu0 %v6557
  %6687 = vmatprep.subr.bf16.mxu0 %v6560
  %6688 = vmatpush1.bf16.msra.mxu0 %v6559
  %6689 = vmatprep.subr.bf16.mxu0 %v6562
  %6690 = vmatpush1.bf16.msra.mxu0 %v6561
  %6691 = vmatprep.subr.bf16.mxu0 %v6564
  %6692 = vmatpush1.bf16.msra.mxu0 %v6563
  %6693 = vmatprep.subr.bf16.mxu0 %v6566
  %6694 = vmatpush1.bf16.msra.mxu0 %v6565
  %6695 = vmatprep.subr.bf16.mxu0 %v6568
  %6696 = vmatpush1.bf16.msra.mxu0 %v6567
  %6697 = vmatprep.subr.bf16.mxu0 %v6570
  %6698 = vmatpush1.bf16.msra.mxu0 %v6569
  %6699 = vmatprep.subr.bf16.mxu0 %v6572
  %6700 = vmatpush1.bf16.msra.mxu0 %v6571
  %6701 = vmatprep.subr.bf16.mxu0 %v6574
  %6702 = vmatpush1.bf16.msra.mxu0 %v6573
  %6703 = vmatprep.subr.bf16.mxu0 %v6576
  %6704 = vmatpush1.bf16.msra.mxu0 %v6575
  %6705 = vmatprep.subr.bf16.mxu0 %v6578
  %6706 = vmatpush1.bf16.msra.mxu0 %v6577
  %6707 = vmatprep.subr.bf16.mxu0 %v6580
  %6708 = vmatpush1.bf16.msra.mxu0 %v6579
  %6709 = vmatprep.subr.bf16.mxu0 %v6582
  %6710 = vmatpush1.bf16.msra.mxu0 %v6581
  %6711 = vmatprep.subr.bf16.mxu0 %v6584
  %6712 = vmatpush1.bf16.msra.mxu0 %v6583
  %6713 = vmatprep.subr.bf16.mxu0 %v6586
  %6714 = vmatpush1.bf16.msra.mxu0 %v6585
  %6715 = vmatprep.subr.bf16.mxu0 %v6588
  %6716 = vmatpush1.bf16.msra.mxu0 %v6587
  %6717 = vmatprep.mubr.bf16.mxu0 %v6286
  %6718 = vmatmul.mubr.bf16.gmra.mrb[0].mxu0 %v6285
  %v6719 = vpop.f32.mrb[0].mxu0
  %v6720 = vadd.f32 %v6358, %v6719
  %v6721 = vpop.f32.mrb[0].mxu0
  %v6722 = vadd.f32 %v6362, %v6721
  %v6723 = vpop.f32.mrb[0].mxu0
  %v6724 = vpop.f32.mrb[0].mxu0
  %6725 = vdwg.mxu0
  %6726 = vmatprep.subr.bf16.mxu0 %v6590
  %6727 = vmatpush1.bf16.msra.mxu0 %v6589
  %6728 = vmatprep.subr.bf16.mxu0 %v6592
  %6729 = vmatpush1.bf16.msra.mxu0 %v6591
  %6730 = vmatprep.subr.bf16.mxu0 %v6594
  %6731 = vmatpush1.bf16.msra.mxu0 %v6593
  %6732 = vmatprep.subr.bf16.mxu0 %v6596
  %6733 = vmatpush1.bf16.msra.mxu0 %v6595
  %6734 = vmatprep.subr.bf16.mxu0 %v6598
  %6735 = vmatpush1.bf16.msra.mxu0 %v6597
  %6736 = vmatprep.subr.bf16.mxu0 %v6600
  %6737 = vmatpush1.bf16.msra.mxu0 %v6599
  %6738 = vmatprep.subr.bf16.mxu0 %v6602
  %6739 = vmatpush1.bf16.msra.mxu0 %v6601
  %6740 = vmatprep.subr.bf16.mxu0 %v6604
  %6741 = vmatpush1.bf16.msra.mxu0 %v6603
  %6742 = vmatprep.subr.bf16.mxu0 %v6606
  %6743 = vmatpush1.bf16.msra.mxu0 %v6605
  %6744 = vmatprep.subr.bf16.mxu0 %v6608
  %6745 = vmatpush1.bf16.msra.mxu0 %v6607
  %6746 = vmatprep.subr.bf16.mxu0 %v6610
  %6747 = vmatpush1.bf16.msra.mxu0 %v6609
  %6748 = vmatprep.subr.bf16.mxu0 %v6612
  %6749 = vmatpush1.bf16.msra.mxu0 %v6611
  %6750 = vmatprep.subr.bf16.mxu0 %v6614
  %6751 = vmatpush1.bf16.msra.mxu0 %v6613
  %6752 = vmatprep.subr.bf16.mxu0 %v6616
  %6753 = vmatpush1.bf16.msra.mxu0 %v6615
  %6754 = vmatprep.subr.bf16.mxu0 %v6618
  %6755 = vmatpush1.bf16.msra.mxu0 %v6617
  %6756 = vmatprep.subr.bf16.mxu0 %v6620
  %6757 = vmatpush1.bf16.msra.mxu0 %v6619
  %6758 = vmatprep.mubr.bf16.mxu0 %v6288
  %6759 = vmatmul.mubr.bf16.gmra.mrb[0].mxu0 %v6287
  %v6760 = vpop.f32.mrb[0].mxu0
  %v6761 = vadd.f32 %v6720, %v6760
  %v6762 = vpop.f32.mrb[0].mxu0
  %v6763 = vadd.f32 %v6722, %v6762
  %v6764 = vpop.f32.mrb[0].mxu0
  %v6765 = vpop.f32.mrb[0].mxu0
  %6766 = vdwg.mxu0
  %v6767 = vmax.f32 %v6761, 0.0
  %v6768 = vmax.f32 %v6763, 0.0
  %v6769 = vld [vmem:[%s11] sm:$0xff]
  %v6770 = vld [vmem:[%s11 + $0x8] sm:$0xff]
  %v6771 = vld [vmem:[%s11 + $0x10] sm:$0xff]
  %v6772 = vld [vmem:[%s11 + $0x18] sm:$0xff]
  %v6773 = vld [vmem:[%s11 + $0x20] sm:$0xff]
  %v6774 = vld [vmem:[%s11 + $0x28] sm:$0xff]
  %v6775 = vld [vmem:[%s11 + $0x30] sm:$0xff]
  %v6776 = vld [vmem:[%s11 + $0x38] sm:$0xff]
  %v6777 = vld [vmem:[%s11 + $0x40] sm:$0xff]
  %v6778 = vld [vmem:[%s11 + $0x48] sm:$0xff]
  %v6779 = vld [vmem:[%s11 + $0x50] sm:$0xff]
  %v6780 = vld [vmem:[%s11 + $0x58] sm:$0xff]
  %v6781 = vld [vmem:[%s11 + $0x60] sm:$0xff]
  %v6782 = vld [vmem:[%s11 + $0x68] sm:$0xff]
  %v6783 = vld [vmem:[%s11 + $0x70] sm:$0xff]
  %v6784 = vld [vmem:[%s11 + $0x78] sm:$0xff]
  %v6785 = vld [vmem:[%s11 + $0x80] sm:$0xff]
  %v6786 = vld [vmem:[%s11 + $0x88] sm:$0xff]
  %v6787 = vld [vmem:[%s11 + $0x90] sm:$0xff]
  %v6788 = vld [vmem:[%s11 + $0x98] sm:$0xff]
  %v6789 = vld [vmem:[%s11 + $0xa0] sm:$0xff]
  %v6790 = vld [vmem:[%s11 + $0xa8] sm:$0xff]
  %v6791 = vld [vmem:[%s11 + $0xb0] sm:$0xff]
  %v6792 = vld [vmem:[%s11 + $0xb8] sm:$0xff]
  %v6793 = vld [vmem:[%s11 + $0xc0] sm:$0xff]
  %v6794 = vld [vmem:[%s11 + $0xc8] sm:$0xff]
  %v6795 = vld [vmem:[%s11 + $0xd0] sm:$0xff]
  %v6796 = vld [vmem:[%s11 + $0xd8] sm:$0xff]
  %v6797 = vld [vmem:[%s11 + $0xe0] sm:$0xff]
  %v6798 = vld [vmem:[%s11 + $0xe8] sm:$0xff]
  %v6799 = vld [vmem:[%s11 + $0xf0] sm:$0xff]
  %v6800 = vld [vmem:[%s11 + $0xf8] sm:$0xff]
  %v6801 = vld [vmem:[%s12] sm:$0x1]
  %v6803 = vlaneseq
  %v6804 = vshrl.u32 %v6803, 7
  %v6805 = vsub.s32 0, %v6804
  %v6806 = vrot.slane %v6801, %v6805
  %6808 = vmatprep.subr.mxu0 0.0
  %6809 = vmatpush1.msra.mxu0 %v6769
  %6810 = vmatprep.subr.mxu0 0.0
  %6811 = vmatpush1.msra.mxu0 %v6770
  %6812 = vmatprep.subr.mxu0 0.0
  %6813 = vmatpush1.msra.mxu0 %v6771
  %6814 = vmatprep.subr.mxu0 0.0
  %6815 = vmatpush1.msra.mxu0 %v6772
  %6816 = vmatprep.subr.mxu0 0.0
  %6817 = vmatpush1.msra.mxu0 %v6773
  %6818 = vmatprep.subr.mxu0 0.0
  %6819 = vmatpush1.msra.mxu0 %v6774
  %6820 = vmatprep.subr.mxu0 0.0
  %6821 = vmatpush1.msra.mxu0 %v6775
  %6822 = vmatprep.subr.mxu0 0.0
  %6823 = vmatpush1.msra.mxu0 %v6776
  %6824 = vmatprep.subr.mxu0 0.0
  %6825 = vmatpush1.msra.mxu0 %v6777
  %6826 = vmatprep.subr.mxu0 0.0
  %6827 = vmatpush1.msra.mxu0 %v6778
  %6828 = vmatprep.subr.mxu0 0.0
  %6829 = vmatpush1.msra.mxu0 %v6779
  %6830 = vmatprep.subr.mxu0 0.0
  %6831 = vmatpush1.msra.mxu0 %v6780
  %6832 = vmatprep.subr.mxu0 0.0
  %6833 = vmatpush1.msra.mxu0 %v6781
  %6834 = vmatprep.subr.mxu0 0.0
  %6835 = vmatpush1.msra.mxu0 %v6782
  %6836 = vmatprep.subr.mxu0 0.0
  %6837 = vmatpush1.msra.mxu0 %v6783
  %6838 = vmatprep.subr.mxu0 0.0
  %6839 = vmatpush1.msra.mxu0 %v6784
  %6840 = vmatprep.subr.mxu0 0.0
  %6841 = vmatpush1.msra.mxu0 %v6785
  %6842 = vmatprep.subr.mxu0 0.0
  %6843 = vmatpush1.msra.mxu0 %v6786
  %6844 = vmatprep.subr.mxu0 0.0
  %6845 = vmatpush1.msra.mxu0 %v6787
  %6846 = vmatprep.subr.mxu0 0.0
  %6847 = vmatpush1.msra.mxu0 %v6788
  %6848 = vmatprep.subr.mxu0 0.0
  %6849 = vmatpush1.msra.mxu0 %v6789
  %6850 = vmatprep.subr.mxu0 0.0
  %6851 = vmatpush1.msra.mxu0 %v6790
  %6852 = vmatprep.subr.mxu0 0.0
  %6853 = vmatpush1.msra.mxu0 %v6791
  %6854 = vmatprep.subr.mxu0 0.0
  %6855 = vmatpush1.msra.mxu0 %v6792
  %6856 = vmatprep.subr.mxu0 0.0
  %6857 = vmatpush1.msra.mxu0 %v6793
  %6858 = vmatprep.subr.mxu0 0.0
  %6859 = vmatpush1.msra.mxu0 %v6794
  %6860 = vmatprep.subr.mxu0 0.0
  %6861 = vmatpush1.msra.mxu0 %v6795
  %6862 = vmatprep.subr.mxu0 0.0
  %6863 = vmatpush1.msra.mxu0 %v6796
  %6864 = vmatprep.subr.mxu0 0.0
  %6865 = vmatpush1.msra.mxu0 %v6797
  %6866 = vmatprep.subr.mxu0 0.0
  %6867 = vmatpush1.msra.mxu0 %v6798
  %6868 = vmatprep.subr.mxu0 0.0
  %6869 = vmatpush1.msra.mxu0 %v6799
  %6870 = vmatprep.subr.mxu0 0.0
  %6871 = vmatpush1.msra.mxu0 %v6800
  %6872 = vmatprep.mubr.f32.mxu0 %v6768
  %6873 = vmatmul.mubr.f32.gmra.mrb[0].mxu0 %v6767
  %v6874 = vpop.f32.mrb[0].mxu0
  %v6875 = vadd.f32 %v6806, %v6874
  %v6876 = vpop.f32.mrb[0].mxu0
  %6877 = vdwg.mxu0
  %6878 = vst [vmem:[%s13] sm:$0x3] %v6875
  // Predicated region
  $region54: #{itnet_forward.3} parent=0 // pred_check
    _
  $region55: #{itnet_forward.3} parent=0 // pred_check_branch
    %6880 = sbr.rel (0) target = $region57
  $region56: #{itnet_forward.3} parent=0 // pred_region
    _
  $region57: #{itnet_forward.3} parent=0 // pred_fallthru
    _
  // Predicated region
  $region58: #{itnet_forward.3} parent=0 // pred_check
    _
  $region59: #{itnet_forward.3} parent=0 // pred_check_branch
    %6882 = sbr.rel (0) target = $region61
  $region60: #{itnet_forward.3} parent=0 // pred_region
    _
  $region61: #{itnet_forward.3} parent=0 // pred_fallthru
    _

</llo_original>
